<compile_context>
chip_gen: v6e
topology: v6e:2x2x1
jax: 0.10.0
libtpu: 0.0.40
codegen_flags: <defaults>
</compile_context>

<pallas_src>
import jax
import jax.numpy as jnp
from jax.experimental import pallas as pl
from jax.experimental.pallas import tpu as pltpu

FEAT_DIM = 768
PROJ_DIM = 512
TILE = 256  # row tile for both passes; batch is padded to a multiple of this.


# ----------------------------------------------------------------------------
# Pass 1: projections + L2 normalization (+ logit-scale fold), one visit/row.
# ----------------------------------------------------------------------------
def _proj_norm_kernel(scale_ref,    # SMEM (1, 1) f32: exp(logit_scale)
                      img_ref,      # (TILE, 768) bf16 image embeddings tile
                      sig_ref,      # (TILE, 768) bf16 signal embeddings tile
                      wi_ref,       # (768, 512)  bf16 proj_image W.T
                      bi_ref,       # (1, 512)    f32  proj_image bias
                      ws_ref,       # (768, 512)  bf16 proj_signal W.T
                      bs_ref,       # (1, 512)    f32  proj_signal bias
                      img_out_ref,  # (TILE, 512) bf16 scale * normalized image feats
                      sig_out_ref): # (TILE, 512) bf16 normalized signal feats
    scale = scale_ref[0, 0]

    # nn.Linear: y = x @ W.T + b  (bf16 operands, f32 accumulation on the MXU)
    img_feat = jnp.dot(img_ref[...], wi_ref[...],
                       preferred_element_type=jnp.float32) + bi_ref[...]
    sig_feat = jnp.dot(sig_ref[...], ws_ref[...],
                       preferred_element_type=jnp.float32) + bs_ref[...]

    # x / x.norm(dim=1, keepdim=True) via rsqrt (EUP).  eps keeps padded
    # (bias-only) rows finite even if a bias were ~zero.
    img_inv = jax.lax.rsqrt(
        jnp.sum(img_feat * img_feat, axis=-1, keepdims=True) + 1e-12)
    sig_inv = jax.lax.rsqrt(
        jnp.sum(sig_feat * sig_feat, axis=-1, keepdims=True) + 1e-12)

    # Fold exp(logit_scale) into the image rows so pass 2 needs no scaling.
    img_out_ref[...] = (img_feat * (scale * img_inv)).astype(img_out_ref.dtype)
    sig_out_ref[...] = (sig_feat * sig_inv).astype(sig_out_ref.dtype)


# ----------------------------------------------------------------------------
# Pass 2: (TILE, TILE) similarity blocks, bf16 operands, f32 accumulation.
# ----------------------------------------------------------------------------
def _logits_kernel(img_ref,   # (TILE, 512) bf16  scale * img_norm rows (block i)
                   sig_ref,   # (TILE, 512) bf16  sig_norm rows       (block j)
                   lpi_ref,   # (TILE, TILE) f32  logits_per_image  block (i, j)
                   lps_ref):  # (TILE, TILE) f32  logits_per_signal block (j, i)
    dnums = (((1,), (1,)), ((), ()))  # contract last dims (MXU trans_b path, no .T)
    lpi_ref[...] = jax.lax.dot_general(img_ref[...], sig_ref[...], dnums,
                                       preferred_element_type=jnp.float32)
    # logits_per_signal = logits_per_image.T, emitted as a second MXU matmul
    # (MXU has slack) written as a dense row-major tile at the transposed index.
    lps_ref[...] = jax.lax.dot_general(sig_ref[...], img_ref[...], dnums,
                                       preferred_element_type=jnp.float32)


def ecgclip_head(img_emb, sig_emb, w_img, b_img, w_sig, b_sig, log_scale):
    """Runs the ECGCLIP head (projections + norm + logits) via two Pallas calls."""
    B, D = img_emb.shape            # D = 768
    P = w_img.shape[1]              # P = 512

    Bp = max(TILE, ((B + TILE - 1) // TILE) * TILE)
    pad = Bp - B

    # Embeddings are already bf16 from the encoder; pad batch to a multiple of
    # TILE for lane-dense stores and dense MXU tiles.
    img_p = jnp.pad(img_emb, ((0, pad), (0, 0)))
    sig_p = jnp.pad(sig_emb, ((0, pad), (0, 0)))
    wi = w_img.astype(jnp.bfloat16)
    ws = w_sig.astype(jnp.bfloat16)
    bi = b_img.astype(jnp.float32).reshape(1, P)
    bs = b_sig.astype(jnp.float32).reshape(1, P)

    # exp() on the host; pass as an SMEM scalar (keeps it off the VMEM path).
    scale = jnp.exp(log_scale).reshape(1, 1).astype(jnp.float32)

    vmem_limit = 32 * 1024 * 1024  # explicit, modest; fits every chip's VMEM.

    # -------------------- Pass 1: projection + normalization -----------------
    img_n, sig_n = pl.pallas_call(
        _proj_norm_kernel,
        out_shape=(jax.ShapeDtypeStruct((Bp, P), jnp.bfloat16),
                   jax.ShapeDtypeStruct((Bp, P), jnp.bfloat16)),
        grid=(Bp // TILE,),
        in_specs=[
            pl.BlockSpec(memory_space=pltpu.MemorySpace.SMEM),     # scale
            pl.BlockSpec((TILE, D), lambda i: (i, 0)),             # img tile
            pl.BlockSpec((TILE, D), lambda i: (i, 0)),             # sig tile
            pl.BlockSpec((D, P),    lambda i: (0, 0)),             # W_img.T
            pl.BlockSpec((1, P),    lambda i: (0, 0)),             # b_img
            pl.BlockSpec((D, P),    lambda i: (0, 0)),             # W_sig.T
            pl.BlockSpec((1, P),    lambda i: (0, 0)),             # b_sig
        ],
        out_specs=(pl.BlockSpec((TILE, P), lambda i: (i, 0)),
                   pl.BlockSpec((TILE, P), lambda i: (i, 0))),
        compiler_params=pltpu.CompilerParams(
            dimension_semantics=("parallel",),
            vmem_limit_bytes=vmem_limit),
    )(scale, img_p, sig_p, wi, bi, ws, bs)

    # -------------------- Pass 2: 2-D tiled similarity logits ----------------
    lpi, lps = pl.pallas_call(
        _logits_kernel,
        out_shape=(jax.ShapeDtypeStruct((Bp, Bp), jnp.float32),
                   jax.ShapeDtypeStruct((Bp, Bp), jnp.float32)),
        grid=(Bp // TILE, Bp // TILE),
        in_specs=[
            pl.BlockSpec((TILE, P), lambda i, j: (i, 0)),          # img rows
            pl.BlockSpec((TILE, P), lambda i, j: (j, 0)),          # sig rows
        ],
        out_specs=(pl.BlockSpec((TILE, TILE), lambda i, j: (i, j)),   # lpi block
                   pl.BlockSpec((TILE, TILE), lambda i, j: (j, i))),  # lps block
        compiler_params=pltpu.CompilerParams(
            dimension_semantics=("parallel", "parallel"),
            vmem_limit_bytes=vmem_limit),
    )(img_n, sig_n)

    return lpi[:B, :B], lps[:B, :B]


# ----------------------------------------------------------------------------
# Glue: deterministic stand-in encoders (flatten -> linear -> 768, bf16 out)
# ----------------------------------------------------------------------------
def stub_encoder(x, weight):
    """Deterministic stand-in for the pretrained backbone: flatten + linear."""
    B = x.shape[0]
    feats = jnp.reshape(x, (B, -1)).astype(jnp.float32) @ weight
    return feats.astype(jnp.bfloat16)   # bf16 directly -> lane-dense kernel input


class ECGCLIPPallas:
    def __init__(self, key, img_in_dim, sig_in_dim, feat_dim=FEAT_DIM, proj_dim=PROJ_DIM):
        ks = jax.random.split(key, 6)
        s = 0.02
        # stand-in backbone weights (glue)
        self.enc_img_w = s * jax.random.normal(ks[0], (img_in_dim, feat_dim), jnp.float32)
        self.enc_sig_w = s * jax.random.normal(ks[1], (sig_in_dim, feat_dim), jnp.float32)
        # proj_image / proj_signal: nn.Linear(768, 512); store W.T as (768, 512)
        self.w_img = s * jax.random.normal(ks[2], (feat_dim, proj_dim), jnp.float32)
        self.b_img = s * jax.random.normal(ks[3], (1, proj_dim), jnp.float32)
        self.w_sig = s * jax.random.normal(ks[4], (feat_dim, proj_dim), jnp.float32)
        self.b_sig = s * jax.random.normal(ks[5], (1, proj_dim), jnp.float32)
        # logit_scale = log(1/0.07)
        self.log_scale = jnp.full((1, 1), jnp.log(1.0 / 0.07), jnp.float32)

    def __call__(self, image, signal):
        img_emb = stub_encoder(image, self.enc_img_w)    # (B, 768) bf16
        sig_emb = stub_encoder(signal, self.enc_sig_w)   # (B, 768) bf16
        return ecgclip_head(img_emb, sig_emb,
                            self.w_img, self.b_img,
                            self.w_sig, self.b_sig,
                            self.log_scale)


# ----------------------------------------------------------------------------
# Reference (plain JAX, same bf16 projection precision) for a sanity check
# ----------------------------------------------------------------------------
def reference(model, image, signal):
    img_emb = stub_encoder(image, model.enc_img_w)
    sig_emb = stub_encoder(signal, model.enc_sig_w)
    img_feat = jnp.dot(img_emb, model.w_img.astype(jnp.bfloat16),
                       preferred_element_type=jnp.float32) + model.b_img
    sig_feat = jnp.dot(sig_emb, model.w_sig.astype(jnp.bfloat16),
                       preferred_element_type=jnp.float32) + model.b_sig
    img_feat = img_feat / jnp.linalg.norm(img_feat, axis=1, keepdims=True)
    sig_feat = sig_feat / jnp.linalg.norm(sig_feat, axis=1, keepdims=True)
    scale = jnp.exp(model.log_scale[0, 0])
    lpi = scale * img_feat @ sig_feat.T
    return lpi, lpi.T


if __name__ == "__main__":
    key = jax.random.PRNGKey(0)
    k_img, k_sig, k_param = jax.random.split(key, 3)

    # Small shapes consistent with the forward:
    #   image : NCHW  (B, C, H, W)
    #   signal: (B, leads, T)
    B, C, H, W = 2, 4, 16, 16
    L, T = 12, 128
    image = jax.random.normal(k_img, (B, C, H, W), jnp.float32)
    signal = jax.random.normal(k_sig, (B, L, T), jnp.float32)

    model = ECGCLIPPallas(k_param, img_in_dim=C * H * W, sig_in_dim=L * T)

    logits_per_image, logits_per_signal = model(image, signal)
    jax.block_until_ready((logits_per_image, logits_per_signal))

    ref_lpi, ref_lps = reference(model, image, signal)
    assert logits_per_image.shape == (B, B) and logits_per_signal.shape == (B, B)
    assert jnp.allclose(logits_per_image, ref_lpi, atol=1e-2, rtol=1e-2)
    assert jnp.allclose(logits_per_signal, ref_lps, atol=1e-2, rtol=1e-2)
    assert jnp.allclose(logits_per_signal, logits_per_image.T, atol=1e-3, rtol=1e-3)

    print("KERNEL_OK")
</pallas_src>

<mosaic_0001>
module attributes {stable_mosaic.version = 11 : i64} {
  func.func @_proj_norm_kernel(%arg0: i32, %arg1: memref<1x1xf32, #tpu.memory_space<smem>>, %arg2: memref<256x768xbf16, #tpu.memory_space<vmem>>, %arg3: memref<256x768xbf16, #tpu.memory_space<vmem>>, %arg4: memref<768x512xbf16, #tpu.memory_space<vmem>>, %arg5: memref<1x512xf32, #tpu.memory_space<vmem>>, %arg6: memref<768x512xbf16, #tpu.memory_space<vmem>>, %arg7: memref<1x512xf32, #tpu.memory_space<vmem>>, %arg8: memref<256x512xbf16, #tpu.memory_space<vmem>>, %arg9: memref<256x512xbf16, #tpu.memory_space<vmem>>) attributes {dimension_semantics = [#tpu.dimension_semantics<parallel>], iteration_bounds = array<i64: 1>, scalar_prefetch = 0 : i64, scratch_operands = 0 : i64, tpu.core_type = #tpu.core_type<tc>, window_params = [{transform_indices = @transform_0, window_bounds = array<i64: 1, 1>}, {transform_indices = @transform_1, window_bounds = array<i64: 256, 768>}, {transform_indices = @transform_2, window_bounds = array<i64: 256, 768>}, {pipeline_mode = #tpu.pipeline_mode<synchronous>, transform_indices = @transform_3, window_bounds = array<i64: 768, 512>}, {pipeline_mode = #tpu.pipeline_mode<synchronous>, transform_indices = @transform_4, window_bounds = array<i64: 1, 512>}, {pipeline_mode = #tpu.pipeline_mode<synchronous>, transform_indices = @transform_5, window_bounds = array<i64: 768, 512>}, {pipeline_mode = #tpu.pipeline_mode<synchronous>, transform_indices = @transform_6, window_bounds = array<i64: 1, 512>}, {transform_indices = @transform_7, window_bounds = array<i64: 256, 512>}, {transform_indices = @transform_8, window_bounds = array<i64: 256, 512>}]} {
    %c0 = arith.constant 0 : index
    %c0_0 = arith.constant 0 : index
    %0 = memref.load %arg1[%c0, %c0_0] : memref<1x1xf32, #tpu.memory_space<smem>>
    %c0_1 = arith.constant 0 : index
    %c0_2 = arith.constant 0 : index
    %1 = vector.load %arg2[%c0_1, %c0_2] : memref<256x768xbf16, #tpu.memory_space<vmem>>, vector<256x768xbf16>
    %c0_3 = arith.constant 0 : index
    %c0_4 = arith.constant 0 : index
    %2 = vector.load %arg4[%c0_3, %c0_4] : memref<768x512xbf16, #tpu.memory_space<vmem>>, vector<768x512xbf16>
    %cst = arith.constant dense<0.000000e+00> : vector<256x512xf32>
    %3 = tpu.matmul %1, %2, %cst {dimension_numbers = #tpu.dot_dimension_numbers<[1], [0], [0], [1], [0, 0, 1, 1], [], []>} : vector<256x768xbf16>, vector<768x512xbf16>, vector<256x512xf32> -> vector<256x512xf32>
    %c0_5 = arith.constant 0 : index
    %c0_6 = arith.constant 0 : index
    %4 = vector.load %arg5[%c0_5, %c0_6] : memref<1x512xf32, #tpu.memory_space<vmem>>, vector<1x512xf32>
    %5 = vector.broadcast %4 : vector<1x512xf32> to vector<256x512xf32>
    %6 = arith.addf %3, %5 : vector<256x512xf32>
    %c0_7 = arith.constant 0 : index
    %c0_8 = arith.constant 0 : index
    %7 = vector.load %arg3[%c0_7, %c0_8] : memref<256x768xbf16, #tpu.memory_space<vmem>>, vector<256x768xbf16>
    %c0_9 = arith.constant 0 : index
    %c0_10 = arith.constant 0 : index
    %8 = vector.load %arg6[%c0_9, %c0_10] : memref<768x512xbf16, #tpu.memory_space<vmem>>, vector<768x512xbf16>
    %cst_11 = arith.constant dense<0.000000e+00> : vector<256x512xf32>
    %9 = tpu.matmul %7, %8, %cst_11 {dimension_numbers = #tpu.dot_dimension_numbers<[1], [0], [0], [1], [0, 0, 1, 1], [], []>} : vector<256x768xbf16>, vector<768x512xbf16>, vector<256x512xf32> -> vector<256x512xf32>
    %c0_12 = arith.constant 0 : index
    %c0_13 = arith.constant 0 : index
    %10 = vector.load %arg7[%c0_12, %c0_13] : memref<1x512xf32, #tpu.memory_space<vmem>>, vector<1x512xf32>
    %11 = vector.broadcast %10 : vector<1x512xf32> to vector<256x512xf32>
    %12 = arith.addf %9, %11 : vector<256x512xf32>
    %13 = arith.mulf %6, %6 : vector<256x512xf32>
    %cst_14 = arith.constant dense<0.000000e+00> : vector<256xf32>
    %14 = vector.multi_reduction <add>, %13, %cst_14 [1] : vector<256x512xf32> to vector<256xf32>
    %15 = vector.shape_cast %14 : vector<256xf32> to vector<256x1xf32>
    %cst_15 = arith.constant 9.99999996E-13 : f32
    %16 = vector.broadcast %cst_15 : f32 to vector<256x1xf32>
    %17 = arith.addf %15, %16 : vector<256x1xf32>
    %18 = math.rsqrt %17 : vector<256x1xf32>
    %19 = arith.mulf %12, %12 : vector<256x512xf32>
    %cst_16 = arith.constant dense<0.000000e+00> : vector<256xf32>
    %20 = vector.multi_reduction <add>, %19, %cst_16 [1] : vector<256x512xf32> to vector<256xf32>
    %21 = vector.shape_cast %20 : vector<256xf32> to vector<256x1xf32>
    %cst_17 = arith.constant 9.99999996E-13 : f32
    %22 = vector.broadcast %cst_17 : f32 to vector<256x1xf32>
    %23 = arith.addf %21, %22 : vector<256x1xf32>
    %24 = math.rsqrt %23 : vector<256x1xf32>
    %25 = vector.broadcast %0 : f32 to vector<256x1xf32>
    %26 = arith.mulf %25, %18 : vector<256x1xf32>
    %27 = vector.broadcast %26 : vector<256x1xf32> to vector<256x512xf32>
    %28 = arith.mulf %6, %27 : vector<256x512xf32>
    %29 = arith.truncf %28 : vector<256x512xf32> to vector<256x512xbf16>
    %c0_18 = arith.constant 0 : index
    %c0_19 = arith.constant 0 : index
    %30 = vector.load %arg8[%c0_18, %c0_19] : memref<256x512xbf16, #tpu.memory_space<vmem>>, vector<256x512xbf16>
    tpu.vector_store %arg8[%c0_18, %c0_19], %29 {strides = array<i32>} : memref<256x512xbf16, #tpu.memory_space<vmem>>, vector<256x512xbf16>,
    %31 = vector.broadcast %24 : vector<256x1xf32> to vector<256x512xf32>
    %32 = arith.mulf %12, %31 : vector<256x512xf32>
    %33 = arith.truncf %32 : vector<256x512xf32> to vector<256x512xbf16>
    %c0_20 = arith.constant 0 : index
    %c0_21 = arith.constant 0 : index
    %34 = vector.load %arg9[%c0_20, %c0_21] : memref<256x512xbf16, #tpu.memory_space<vmem>>, vector<256x512xbf16>
    tpu.vector_store %arg9[%c0_20, %c0_21], %33 {strides = array<i32>} : memref<256x512xbf16, #tpu.memory_space<vmem>>, vector<256x512xbf16>,
    return
  }
  func.func @transform_0(%arg0: i32) -> (i32, i32) {
    %c0_i32 = arith.constant 0 : i32
    %c0_i32_0 = arith.constant 0 : i32
    %c0_i32_1 = arith.constant 0 : i32
    return %c0_i32, %c0_i32_0 : i32, i32
  }
  func.func @transform_1(%arg0: i32) -> (i32, i32) {
    %c0_i32 = arith.constant 0 : i32
    %c0_i32_0 = arith.constant 0 : i32
    return %arg0, %c0_i32 : i32, i32
  }
  func.func @transform_2(%arg0: i32) -> (i32, i32) {
    %c0_i32 = arith.constant 0 : i32
    %c0_i32_0 = arith.constant 0 : i32
    return %arg0, %c0_i32 : i32, i32
  }
  func.func @transform_3(%arg0: i32) -> (i32, i32) {
    %c0_i32 = arith.constant 0 : i32
    %c0_i32_0 = arith.constant 0 : i32
    %c0_i32_1 = arith.constant 0 : i32
    return %c0_i32, %c0_i32_0 : i32, i32
  }
  func.func @transform_4(%arg0: i32) -> (i32, i32) {
    %c0_i32 = arith.constant 0 : i32
    %c0_i32_0 = arith.constant 0 : i32
    %c0_i32_1 = arith.constant 0 : i32
    return %c0_i32, %c0_i32_0 : i32, i32
  }
  func.func @transform_5(%arg0: i32) -> (i32, i32) {
    %c0_i32 = arith.constant 0 : i32
    %c0_i32_0 = arith.constant 0 : i32
    %c0_i32_1 = arith.constant 0 : i32
    return %c0_i32, %c0_i32_0 : i32, i32
  }
  func.func @transform_6(%arg0: i32) -> (i32, i32) {
    %c0_i32 = arith.constant 0 : i32
    %c0_i32_0 = arith.constant 0 : i32
    %c0_i32_1 = arith.constant 0 : i32
    return %c0_i32, %c0_i32_0 : i32, i32
  }
  func.func @transform_7(%arg0: i32) -> (i32, i32) {
    %c0_i32 = arith.constant 0 : i32
    %c0_i32_0 = arith.constant 0 : i32
    return %arg0, %c0_i32 : i32, i32
  }
  func.func @transform_8(%arg0: i32) -> (i32, i32) {
    %c0_i32 = arith.constant 0 : i32
    %c0_i32_0 = arith.constant 0 : i32
    return %arg0, %c0_i32 : i32, i32
  }
}

</mosaic_0001>

<llo_original>
// kernel: tpu_custom_call.1
$region0: #{tpu_custom_call.1}
  #allocation0 [shape = 'u32[]', space=smem, size = 0x4, offset = 0x4, fixed_abs, tag = 'smem constant byte address 0x4 - core index']
  #allocation1 [shape = 'u32[144,128]{1,0:T(1,128)}', space=vmem, size = 0x12000, scoped, tag = 'internal scratch']
  #allocation2 [shape = 'f32[1,1]{1,0:T(1,128)S(6)}', space=smem, size = 0x200, scoped, tag = 'scoped memory for tpu_custom_call.1']
  %s0 = inlined_call_operand.<no memory space> [shape: f32[1,1], index: 0, kind: input, shape index: {}]
  %s1 = inlined_call_operand.hbm [shape: bf16[256,768], index: 1, kind: input, shape index: {}]
  %s2 = inlined_call_operand.hbm [shape: bf16[256,768], index: 2, kind: input, shape index: {}]
  %s3 = inlined_call_operand.hbm [shape: bf16[768,512], index: 3, kind: input, shape index: {}]
  %s4 = inlined_call_operand.vmem [shape: f32[1,512], index: 4, kind: input, shape index: {}]
  %s5 = inlined_call_operand.hbm [shape: bf16[768,512], index: 5, kind: input, shape index: {}]
  %s6 = inlined_call_operand.vmem [shape: f32[1,512], index: 6, kind: input, shape index: {}]
  %s7 = inlined_call_operand.hbm [shape: bf16[256,512], index: 7, kind: output, shape index: {0}]
  %s8 = inlined_call_operand.hbm [shape: bf16[256,512], index: 8, kind: output, shape index: {1}]
  %9 = xla_tuple %s7, %s8
  %s10 = sld [smem:[#allocation0]]
  $region62: #{tpu_custom_call.1} parent=0
    _
  %s12 = ssub.s32 1, %s10
  %s13 = scalar_select 0, %s12, %s10
  %14 = sst [smem:[#allocation2]] %s0
  $region1: #{tpu_custom_call.1} parent=0
    #allocation3 [shape = 'u8[393216]{0}', space=vmem, size = 0x60000, scoped, tag = 'input window, operand 1, single buffered']
    #allocation4 [shape = 's32[1]{0}', space=sflag, size = 0x4, scoped, tag = 'scoped memory for tpu_custom_call.1']
    #allocation5 [shape = 's32[1]{0}', space=sflag, size = 0x4, scoped, tag = 'scoped memory for tpu_custom_call.1']
    #allocation6 [shape = 'u8[393216]{0}', space=vmem, size = 0x60000, scoped, tag = 'input window, operand 2, single buffered']
    #allocation7 [shape = 's32[1]{0}', space=sflag, size = 0x4, scoped, tag = 'scoped memory for tpu_custom_call.1']
    #allocation8 [shape = 'u8[786432]{0}', space=vmem, size = 0xc0000, scoped, tag = 'input window, operand 3, single buffered']
    #allocation9 [shape = 'u8[786432]{0}', space=vmem, size = 0xc0000, scoped, tag = 'input window, operand 5, single buffered']
    #allocation10 [shape = 's32[1]{0}', space=sflag, size = 0x4, scoped, tag = 'scoped memory for tpu_custom_call.1']
    #allocation11 [shape = 'u8[262144]{0}', space=vmem, size = 0x40000, scoped, tag = 'output window, operand 0, single buffered']
    #allocation12 [shape = 'u8[262144]{0}', space=vmem, size = 0x40000, scoped, tag = 'output window, operand 1, single buffered']
    #allocation13 [shape = 's32[1]{0}', space=sflag, size = 0x4, scoped, tag = 'scoped memory for tpu_custom_call.1']
    %15 = vsyncpa [#allocation4], 0
    %16 = vsyncpa [#allocation7], 0
    %17 = vsyncpa [#allocation10], 0
    %18 = vsyncpa [#allocation5], 0
    %19 = vsyncpa [#allocation13], 0
    // Predicated region
    $region2: #{tpu_custom_call.1} parent=1 // pred_check
      _
    $region3: #{tpu_custom_call.1} parent=1 // pred_check_branch
      %21 = sbr.rel (0) target = $region5
    $region4: #{tpu_custom_call.1} parent=1 // pred_region
      _
    $region5: #{tpu_custom_call.1} parent=1 // pred_fallthru
      _
    // Predicated region
    $region6: #{tpu_custom_call.1} parent=1 // pred_check
      _
    $region7: #{tpu_custom_call.1} parent=1 // pred_check_branch
      %23 = sbr.rel (0) target = $region9
    $region8: #{tpu_custom_call.1} parent=1 // pred_region
      %s25 = ssub.s32 12288, 12288
      %26 = vsyncadd [#allocation4], %s25
      %s27 = sshll.u32 [#allocation3], 4
      %s28 = int_to_ptr.vmem [resolvable:$true] %s27
      %33 = dma.hbm_to_vmem [thread:$0]  %s1, 12288, %s28, [#allocation4], 384, 384, 24
    $region9: #{tpu_custom_call.1} parent=1 // pred_fallthru
      _
    // Predicated region
    $region10: #{tpu_custom_call.1} parent=1 // pred_check
      _
    $region11: #{tpu_custom_call.1} parent=1 // pred_check_branch
      %35 = sbr.rel (0) target = $region13
    $region12: #{tpu_custom_call.1} parent=1 // pred_region
      %s37 = ssub.s32 12288, 12288
      %38 = vsyncadd [#allocation7], %s37
      %s39 = sshll.u32 [#allocation6], 4
      %s40 = int_to_ptr.vmem [resolvable:$true] %s39
      %45 = dma.hbm_to_vmem [thread:$0]  %s2, 12288, %s40, [#allocation7], 384, 384, 24
    $region13: #{tpu_custom_call.1} parent=1 // pred_fallthru
      _
    // Predicated region
    $region14: #{tpu_custom_call.1} parent=1 // pred_check
      _
    $region15: #{tpu_custom_call.1} parent=1 // pred_check_branch
      %47 = sbr.rel (0) target = $region17
    $region16: #{tpu_custom_call.1} parent=1 // pred_region
      %s49 = ssub.s32 24576, 24576
      %50 = vsyncadd [#allocation7], %s49
      %s51 = sshll.u32 [#allocation8], 4
      %s52 = int_to_ptr.vmem [resolvable:$true] %s51
      %57 = dma.hbm_to_vmem [thread:$0]  %s3, 24576, %s52, [#allocation7], 256, 256, 16
    $region17: #{tpu_custom_call.1} parent=1 // pred_fallthru
      _
    // Predicated region
    $region18: #{tpu_custom_call.1} parent=1 // pred_check
      _
    $region19: #{tpu_custom_call.1} parent=1 // pred_check_branch
      %59 = sbr.rel (0) target = $region21
    $region20: #{tpu_custom_call.1} parent=1 // pred_region
      _
    $region21: #{tpu_custom_call.1} parent=1 // pred_fallthru
      _
    // Predicated region
    $region22: #{tpu_custom_call.1} parent=1 // pred_check
      _
    $region23: #{tpu_custom_call.1} parent=1 // pred_check_branch
      %61 = sbr.rel (0) target = $region25
    $region24: #{tpu_custom_call.1} parent=1 // pred_region
      %s63 = ssub.s32 24576, 24576
      %64 = vsyncadd [#allocation10], %s63
      %s65 = sshll.u32 [#allocation9], 4
      %s66 = int_to_ptr.vmem [resolvable:$true] %s65
      %71 = dma.hbm_to_vmem [thread:$0]  %s5, 24576, %s66, [#allocation10], 256, 256, 16
    $region25: #{tpu_custom_call.1} parent=1 // pred_fallthru
      _
    // Predicated region
    $region26: #{tpu_custom_call.1} parent=1 // pred_check
      _
    $region27: #{tpu_custom_call.1} parent=1 // pred_check_branch
      %73 = sbr.rel (0) target = $region29
    $region28: #{tpu_custom_call.1} parent=1 // pred_region
      _
    $region29: #{tpu_custom_call.1} parent=1 // pred_fallthru
      _
    // Predicated region
    $region30: #{tpu_custom_call.1} parent=1 // pred_check
      _
    $region31: #{tpu_custom_call.1} parent=1 // pred_check_branch
      %75 = sbr.rel (0) target = $region33
    $region32: #{tpu_custom_call.1} parent=1 // pred_region
      %76 = dma.done [#allocation4], 12288
    $region33: #{tpu_custom_call.1} parent=1 // pred_fallthru
      _
    // Predicated region
    $region34: #{tpu_custom_call.1} parent=1 // pred_check
      _
    $region35: #{tpu_custom_call.1} parent=1 // pred_check_branch
      %78 = sbr.rel (0) target = $region37
    $region36: #{tpu_custom_call.1} parent=1 // pred_region
      %79 = dma.done [#allocation7], 12288
    $region37: #{tpu_custom_call.1} parent=1 // pred_fallthru
      _
    // Predicated region
    $region38: #{tpu_custom_call.1} parent=1 // pred_check
      _
    $region39: #{tpu_custom_call.1} parent=1 // pred_check_branch
      %81 = sbr.rel (0) target = $region41
    $region40: #{tpu_custom_call.1} parent=1 // pred_region
      %82 = dma.done [#allocation7], 24576
    $region41: #{tpu_custom_call.1} parent=1 // pred_fallthru
      _
    // Predicated region
    $region42: #{tpu_custom_call.1} parent=1 // pred_check
      _
    $region43: #{tpu_custom_call.1} parent=1 // pred_check_branch
      %84 = sbr.rel (0) target = $region45
    $region44: #{tpu_custom_call.1} parent=1 // pred_region
      %85 = dma.done [#allocation10], 24576
    $region45: #{tpu_custom_call.1} parent=1 // pred_fallthru
      _
    %s86 = sld [smem:[#allocation2]]
    %v87 = vld [vmem:[#allocation3] sm:$0xff]
    %v88 = vld [vmem:[#allocation3 + $0x8] sm:$0xff]
    %v89 = vld [vmem:[#allocation3 + $0x10] sm:$0xff]
    %v90 = vld [vmem:[#allocation3 + $0x18] sm:$0xff]
    %v91 = vld [vmem:[#allocation3 + $0x20] sm:$0xff]
    %v92 = vld [vmem:[#allocation3 + $0x28] sm:$0xff]
    %v93 = vld [vmem:[#allocation3 + $0x30] sm:$0xff]
    %v94 = vld [vmem:[#allocation3 + $0x38] sm:$0xff]
    %v95 = vld [vmem:[#allocation3 + $0x40] sm:$0xff]
    %v96 = vld [vmem:[#allocation3 + $0x48] sm:$0xff]
    %v97 = vld [vmem:[#allocation3 + $0x50] sm:$0xff]
    %v98 = vld [vmem:[#allocation3 + $0x58] sm:$0xff]
    %v99 = vld [vmem:[#allocation3 + $0x60] sm:$0xff]
    %v100 = vld [vmem:[#allocation3 + $0x68] sm:$0xff]
    %v101 = vld [vmem:[#allocation3 + $0x70] sm:$0xff]
    %v102 = vld [vmem:[#allocation3 + $0x78] sm:$0xff]
    %v103 = vld [vmem:[#allocation3 + $0x80] sm:$0xff]
    %v104 = vld [vmem:[#allocation3 + $0x88] sm:$0xff]
    %v105 = vld [vmem:[#allocation3 + $0x90] sm:$0xff]
    %v106 = vld [vmem:[#allocation3 + $0x98] sm:$0xff]
    %v107 = vld [vmem:[#allocation3 + $0xa0] sm:$0xff]
    %v108 = vld [vmem:[#allocation3 + $0xa8] sm:$0xff]
    %v109 = vld [vmem:[#allocation3 + $0xb0] sm:$0xff]
    %v110 = vld [vmem:[#allocation3 + $0xb8] sm:$0xff]
    %v111 = vld [vmem:[#allocation3 + $0xc0] sm:$0xff]
    %v112 = vld [vmem:[#allocation3 + $0xc8] sm:$0xff]
    %v113 = vld [vmem:[#allocation3 + $0xd0] sm:$0xff]
    %v114 = vld [vmem:[#allocation3 + $0xd8] sm:$0xff]
    %v115 = vld [vmem:[#allocation3 + $0xe0] sm:$0xff]
    %v116 = vld [vmem:[#allocation3 + $0xe8] sm:$0xff]
    %v117 = vld [vmem:[#allocation3 + $0xf0] sm:$0xff]
    %v118 = vld [vmem:[#allocation3 + $0xf8] sm:$0xff]
    %v119 = vld [vmem:[#allocation3 + $0x100] sm:$0xff]
    %v120 = vld [vmem:[#allocation3 + $0x108] sm:$0xff]
    %v121 = vld [vmem:[#allocation3 + $0x110] sm:$0xff]
    %v122 = vld [vmem:[#allocation3 + $0x118] sm:$0xff]
    %v123 = vld [vmem:[#allocation3 + $0x120] sm:$0xff]
    %v124 = vld [vmem:[#allocation3 + $0x128] sm:$0xff]
    %v125 = vld [vmem:[#allocation3 + $0x130] sm:$0xff]
    %v126 = vld [vmem:[#allocation3 + $0x138] sm:$0xff]
    %v127 = vld [vmem:[#allocation3 + $0x140] sm:$0xff]
    %v128 = vld [vmem:[#allocation3 + $0x148] sm:$0xff]
    %v129 = vld [vmem:[#allocation3 + $0x150] sm:$0xff]
    %v130 = vld [vmem:[#allocation3 + $0x158] sm:$0xff]
    %v131 = vld [vmem:[#allocation3 + $0x160] sm:$0xff]
    %v132 = vld [vmem:[#allocation3 + $0x168] sm:$0xff]
    %v133 = vld [vmem:[#allocation3 + $0x170] sm:$0xff]
    %v134 = vld [vmem:[#allocation3 + $0x178] sm:$0xff]
    %v135 = vld [vmem:[#allocation3 + $0x180] sm:$0xff]
    %v136 = vld [vmem:[#allocation3 + $0x188] sm:$0xff]
    %v137 = vld [vmem:[#allocation3 + $0x190] sm:$0xff]
    %v138 = vld [vmem:[#allocation3 + $0x198] sm:$0xff]
    %v139 = vld [vmem:[#allocation3 + $0x1a0] sm:$0xff]
    %v140 = vld [vmem:[#allocation3 + $0x1a8] sm:$0xff]
    %v141 = vld [vmem:[#allocation3 + $0x1b0] sm:$0xff]
    %v142 = vld [vmem:[#allocation3 + $0x1b8] sm:$0xff]
    %v143 = vld [vmem:[#allocation3 + $0x1c0] sm:$0xff]
    %v144 = vld [vmem:[#allocation3 + $0x1c8] sm:$0xff]
    %v145 = vld [vmem:[#allocation3 + $0x1d0] sm:$0xff]
    %v146 = vld [vmem:[#allocation3 + $0x1d8] sm:$0xff]
    %v147 = vld [vmem:[#allocation3 + $0x1e0] sm:$0xff]
    %v148 = vld [vmem:[#allocation3 + $0x1e8] sm:$0xff]
    %v149 = vld [vmem:[#allocation3 + $0x1f0] sm:$0xff]
    %v150 = vld [vmem:[#allocation3 + $0x1f8] sm:$0xff]
    %v151 = vld [vmem:[#allocation3 + $0x200] sm:$0xff]
    %v152 = vld [vmem:[#allocation3 + $0x208] sm:$0xff]
    %v153 = vld [vmem:[#allocation3 + $0x210] sm:$0xff]
    %v154 = vld [vmem:[#allocation3 + $0x218] sm:$0xff]
    %v155 = vld [vmem:[#allocation3 + $0x220] sm:$0xff]
    %v156 = vld [vmem:[#allocation3 + $0x228] sm:$0xff]
    %v157 = vld [vmem:[#allocation3 + $0x230] sm:$0xff]
    %v158 = vld [vmem:[#allocation3 + $0x238] sm:$0xff]
    %v159 = vld [vmem:[#allocation3 + $0x240] sm:$0xff]
    %v160 = vld [vmem:[#allocation3 + $0x248] sm:$0xff]
    %v161 = vld [vmem:[#allocation3 + $0x250] sm:$0xff]
    %v162 = vld [vmem:[#allocation3 + $0x258] sm:$0xff]
    %v163 = vld [vmem:[#allocation3 + $0x260] sm:$0xff]
    %v164 = vld [vmem:[#allocation3 + $0x268] sm:$0xff]
    %v165 = vld [vmem:[#allocation3 + $0x270] sm:$0xff]
    %v166 = vld [vmem:[#allocation3 + $0x278] sm:$0xff]
    %v167 = vld [vmem:[#allocation3 + $0x280] sm:$0xff]
    %v168 = vld [vmem:[#allocation3 + $0x288] sm:$0xff]
    %v169 = vld [vmem:[#allocation3 + $0x290] sm:$0xff]
    %v170 = vld [vmem:[#allocation3 + $0x298] sm:$0xff]
    %v171 = vld [vmem:[#allocation3 + $0x2a0] sm:$0xff]
    %v172 = vld [vmem:[#allocation3 + $0x2a8] sm:$0xff]
    %v173 = vld [vmem:[#allocation3 + $0x2b0] sm:$0xff]
    %v174 = vld [vmem:[#allocation3 + $0x2b8] sm:$0xff]
    %v175 = vld [vmem:[#allocation3 + $0x2c0] sm:$0xff]
    %v176 = vld [vmem:[#allocation3 + $0x2c8] sm:$0xff]
    %v177 = vld [vmem:[#allocation3 + $0x2d0] sm:$0xff]
    %v178 = vld [vmem:[#allocation3 + $0x2d8] sm:$0xff]
    %v179 = vld [vmem:[#allocation3 + $0x2e0] sm:$0xff]
    %v180 = vld [vmem:[#allocation3 + $0x2e8] sm:$0xff]
    %v181 = vld [vmem:[#allocation3 + $0x2f0] sm:$0xff]
    %v182 = vld [vmem:[#allocation3 + $0x2f8] sm:$0xff]
    %v183 = vld [vmem:[#allocation8] sm:$0xff]
    %v184 = vld [vmem:[#allocation8 + $0x8] sm:$0xff]
    %v185 = vld [vmem:[#allocation8 + $0x10] sm:$0xff]
    %v186 = vld [vmem:[#allocation8 + $0x18] sm:$0xff]
    %v187 = vld [vmem:[#allocation8 + $0x20] sm:$0xff]
    %v188 = vld [vmem:[#allocation8 + $0x28] sm:$0xff]
    %v189 = vld [vmem:[#allocation8 + $0x30] sm:$0xff]
    %v190 = vld [vmem:[#allocation8 + $0x38] sm:$0xff]
    %v191 = vld [vmem:[#allocation8 + $0x40] sm:$0xff]
    %v192 = vld [vmem:[#allocation8 + $0x48] sm:$0xff]
    %v193 = vld [vmem:[#allocation8 + $0x50] sm:$0xff]
    %v194 = vld [vmem:[#allocation8 + $0x58] sm:$0xff]
    %v195 = vld [vmem:[#allocation8 + $0x60] sm:$0xff]
    %v196 = vld [vmem:[#allocation8 + $0x68] sm:$0xff]
    %v197 = vld [vmem:[#allocation8 + $0x70] sm:$0xff]
    %v198 = vld [vmem:[#allocation8 + $0x78] sm:$0xff]
    %v199 = vld [vmem:[#allocation8 + $0x80] sm:$0xff]
    %v200 = vld [vmem:[#allocation8 + $0x88] sm:$0xff]
    %v201 = vld [vmem:[#allocation8 + $0x90] sm:$0xff]
    %v202 = vld [vmem:[#allocation8 + $0x98] sm:$0xff]
    %v203 = vld [vmem:[#allocation8 + $0xa0] sm:$0xff]
    %v204 = vld [vmem:[#allocation8 + $0xa8] sm:$0xff]
    %v205 = vld [vmem:[#allocation8 + $0xb0] sm:$0xff]
    %v206 = vld [vmem:[#allocation8 + $0xb8] sm:$0xff]
    %v207 = vld [vmem:[#allocation8 + $0xc0] sm:$0xff]
    %v208 = vld [vmem:[#allocation8 + $0xc8] sm:$0xff]
    %v209 = vld [vmem:[#allocation8 + $0xd0] sm:$0xff]
    %v210 = vld [vmem:[#allocation8 + $0xd8] sm:$0xff]
    %v211 = vld [vmem:[#allocation8 + $0xe0] sm:$0xff]
    %v212 = vld [vmem:[#allocation8 + $0xe8] sm:$0xff]
    %v213 = vld [vmem:[#allocation8 + $0xf0] sm:$0xff]
    %v214 = vld [vmem:[#allocation8 + $0xf8] sm:$0xff]
    %v215 = vld [vmem:[#allocation8 + $0x100] sm:$0xff]
    %v216 = vld [vmem:[#allocation8 + $0x108] sm:$0xff]
    %v217 = vld [vmem:[#allocation8 + $0x110] sm:$0xff]
    %v218 = vld [vmem:[#allocation8 + $0x118] sm:$0xff]
    %v219 = vld [vmem:[#allocation8 + $0x120] sm:$0xff]
    %v220 = vld [vmem:[#allocation8 + $0x128] sm:$0xff]
    %v221 = vld [vmem:[#allocation8 + $0x130] sm:$0xff]
    %v222 = vld [vmem:[#allocation8 + $0x138] sm:$0xff]
    %v223 = vld [vmem:[#allocation8 + $0x140] sm:$0xff]
    %v224 = vld [vmem:[#allocation8 + $0x148] sm:$0xff]
    %v225 = vld [vmem:[#allocation8 + $0x150] sm:$0xff]
    %v226 = vld [vmem:[#allocation8 + $0x158] sm:$0xff]
    %v227 = vld [vmem:[#allocation8 + $0x160] sm:$0xff]
    %v228 = vld [vmem:[#allocation8 + $0x168] sm:$0xff]
    %v229 = vld [vmem:[#allocation8 + $0x170] sm:$0xff]
    %v230 = vld [vmem:[#allocation8 + $0x178] sm:$0xff]
    %v231 = vld [vmem:[#allocation8 + $0x180] sm:$0xff]
    %v232 = vld [vmem:[#allocation8 + $0x188] sm:$0xff]
    %v233 = vld [vmem:[#allocation8 + $0x190] sm:$0xff]
    %v234 = vld [vmem:[#allocation8 + $0x198] sm:$0xff]
    %v235 = vld [vmem:[#allocation8 + $0x1a0] sm:$0xff]
    %v236 = vld [vmem:[#allocation8 + $0x1a8] sm:$0xff]
    %v237 = vld [vmem:[#allocation8 + $0x1b0] sm:$0xff]
    %v238 = vld [vmem:[#allocation8 + $0x1b8] sm:$0xff]
    %v239 = vld [vmem:[#allocation8 + $0x1c0] sm:$0xff]
    %v240 = vld [vmem:[#allocation8 + $0x1c8] sm:$0xff]
    %v241 = vld [vmem:[#allocation8 + $0x1d0] sm:$0xff]
    %v242 = vld [vmem:[#allocation8 + $0x1d8] sm:$0xff]
    %v243 = vld [vmem:[#allocation8 + $0x1e0] sm:$0xff]
    %v244 = vld [vmem:[#allocation8 + $0x1e8] sm:$0xff]
    %v245 = vld [vmem:[#allocation8 + $0x1f0] sm:$0xff]
    %v246 = vld [vmem:[#allocation8 + $0x1f8] sm:$0xff]
    %v247 = vld [vmem:[#allocation8 + $0x200] sm:$0xff]
    %v248 = vld [vmem:[#allocation8 + $0x208] sm:$0xff]
    %v249 = vld [vmem:[#allocation8 + $0x210] sm:$0xff]
    %v250 = vld [vmem:[#allocation8 + $0x218] sm:$0xff]
    %v251 = vld [vmem:[#allocation8 + $0x220] sm:$0xff]
    %v252 = vld [vmem:[#allocation8 + $0x228] sm:$0xff]
    %v253 = vld [vmem:[#allocation8 + $0x230] sm:$0xff]
    %v254 = vld [vmem:[#allocation8 + $0x238] sm:$0xff]
    %v255 = vld [vmem:[#allocation8 + $0x240] sm:$0xff]
    %v256 = vld [vmem:[#allocation8 + $0x248] sm:$0xff]
    %v257 = vld [vmem:[#allocation8 + $0x250] sm:$0xff]
    %v258 = vld [vmem:[#allocation8 + $0x258] sm:$0xff]
    %v259 = vld [vmem:[#allocation8 + $0x260] sm:$0xff]
    %v260 = vld [vmem:[#allocation8 + $0x268] sm:$0xff]
    %v261 = vld [vmem:[#allocation8 + $0x270] sm:$0xff]
    %v262 = vld [vmem:[#allocation8 + $0x278] sm:$0xff]
    %v263 = vld [vmem:[#allocation8 + $0x280] sm:$0xff]
    %v264 = vld [vmem:[#allocation8 + $0x288] sm:$0xff]
    %v265 = vld [vmem:[#allocation8 + $0x290] sm:$0xff]
    %v266 = vld [vmem:[#allocation8 + $0x298] sm:$0xff]
    %v267 = vld [vmem:[#allocation8 + $0x2a0] sm:$0xff]
    %v268 = vld [vmem:[#allocation8 + $0x2a8] sm:$0xff]
    %v269 = vld [vmem:[#allocation8 + $0x2b0] sm:$0xff]
    %v270 = vld [vmem:[#allocation8 + $0x2b8] sm:$0xff]
    %v271 = vld [vmem:[#allocation8 + $0x2c0] sm:$0xff]
    %v272 = vld [vmem:[#allocation8 + $0x2c8] sm:$0xff]
    %v273 = vld [vmem:[#allocation8 + $0x2d0] sm:$0xff]
    %v274 = vld [vmem:[#allocation8 + $0x2d8] sm:$0xff]
    %v275 = vld [vmem:[#allocation8 + $0x2e0] sm:$0xff]
    %v276 = vld [vmem:[#allocation8 + $0x2e8] sm:$0xff]
    %v277 = vld [vmem:[#allocation8 + $0x2f0] sm:$0xff]
    %v278 = vld [vmem:[#allocation8 + $0x2f8] sm:$0xff]
    %v279 = vld [vmem:[#allocation8 + $0x300] sm:$0xff]
    %v280 = vld [vmem:[#allocation8 + $0x308] sm:$0xff]
    %v281 = vld [vmem:[#allocation8 + $0x310] sm:$0xff]
    %v282 = vld [vmem:[#allocation8 + $0x318] sm:$0xff]
    %v283 = vld [vmem:[#allocation8 + $0x320] sm:$0xff]
    %v284 = vld [vmem:[#allocation8 + $0x328] sm:$0xff]
    %v285 = vld [vmem:[#allocation8 + $0x330] sm:$0xff]
    %v286 = vld [vmem:[#allocation8 + $0x338] sm:$0xff]
    %v287 = vld [vmem:[#allocation8 + $0x340] sm:$0xff]
    %v288 = vld [vmem:[#allocation8 + $0x348] sm:$0xff]
    %v289 = vld [vmem:[#allocation8 + $0x350] sm:$0xff]
    %v290 = vld [vmem:[#allocation8 + $0x358] sm:$0xff]
    %v291 = vld [vmem:[#allocation8 + $0x360] sm:$0xff]
    %v292 = vld [vmem:[#allocation8 + $0x368] sm:$0xff]
    %v293 = vld [vmem:[#allocation8 + $0x370] sm:$0xff]
    %v294 = vld [vmem:[#allocation8 + $0x378] sm:$0xff]
    %v295 = vld [vmem:[#allocation8 + $0x380] sm:$0xff]
    %v296 = vld [vmem:[#allocation8 + $0x388] sm:$0xff]
    %v297 = vld [vmem:[#allocation8 + $0x390] sm:$0xff]
    %v298 = vld [vmem:[#allocation8 + $0x398] sm:$0xff]
    %v299 = vld [vmem:[#allocation8 + $0x3a0] sm:$0xff]
    %v300 = vld [vmem:[#allocation8 + $0x3a8] sm:$0xff]
    %v301 = vld [vmem:[#allocation8 + $0x3b0] sm:$0xff]
    %v302 = vld [vmem:[#allocation8 + $0x3b8] sm:$0xff]
    %v303 = vld [vmem:[#allocation8 + $0x3c0] sm:$0xff]
    %v304 = vld [vmem:[#allocation8 + $0x3c8] sm:$0xff]
    %v305 = vld [vmem:[#allocation8 + $0x3d0] sm:$0xff]
    %v306 = vld [vmem:[#allocation8 + $0x3d8] sm:$0xff]
    %v307 = vld [vmem:[#allocation8 + $0x3e0] sm:$0xff]
    %v308 = vld [vmem:[#allocation8 + $0x3e8] sm:$0xff]
    %v309 = vld [vmem:[#allocation8 + $0x3f0] sm:$0xff]
    %v310 = vld [vmem:[#allocation8 + $0x3f8] sm:$0xff]
    %v311 = vld [vmem:[#allocation8 + $0x400] sm:$0xff]
    %v312 = vld [vmem:[#allocation8 + $0x408] sm:$0xff]
    %v313 = vld [vmem:[#allocation8 + $0x410] sm:$0xff]
    %v314 = vld [vmem:[#allocation8 + $0x418] sm:$0xff]
    %v315 = vld [vmem:[#allocation8 + $0x420] sm:$0xff]
    %v316 = vld [vmem:[#allocation8 + $0x428] sm:$0xff]
    %v317 = vld [vmem:[#allocation8 + $0x430] sm:$0xff]
    %v318 = vld [vmem:[#allocation8 + $0x438] sm:$0xff]
    %v319 = vld [vmem:[#allocation8 + $0x440] sm:$0xff]
    %v320 = vld [vmem:[#allocation8 + $0x448] sm:$0xff]
    %v321 = vld [vmem:[#allocation8 + $0x450] sm:$0xff]
    %v322 = vld [vmem:[#allocation8 + $0x458] sm:$0xff]
    %v323 = vld [vmem:[#allocation8 + $0x460] sm:$0xff]
    %v324 = vld [vmem:[#allocation8 + $0x468] sm:$0xff]
    %v325 = vld [vmem:[#allocation8 + $0x470] sm:$0xff]
    %v326 = vld [vmem:[#allocation8 + $0x478] sm:$0xff]
    %v327 = vld [vmem:[#allocation8 + $0x480] sm:$0xff]
    %v328 = vld [vmem:[#allocation8 + $0x488] sm:$0xff]
    %v329 = vld [vmem:[#allocation8 + $0x490] sm:$0xff]
    %v330 = vld [vmem:[#allocation8 + $0x498] sm:$0xff]
    %v331 = vld [vmem:[#allocation8 + $0x4a0] sm:$0xff]
    %v332 = vld [vmem:[#allocation8 + $0x4a8] sm:$0xff]
    %v333 = vld [vmem:[#allocation8 + $0x4b0] sm:$0xff]
    %v334 = vld [vmem:[#allocation8 + $0x4b8] sm:$0xff]
    %v335 = vld [vmem:[#allocation8 + $0x4c0] sm:$0xff]
    %v336 = vld [vmem:[#allocation8 + $0x4c8] sm:$0xff]
    %v337 = vld [vmem:[#allocation8 + $0x4d0] sm:$0xff]
    %v338 = vld [vmem:[#allocation8 + $0x4d8] sm:$0xff]
    %v339 = vld [vmem:[#allocation8 + $0x4e0] sm:$0xff]
    %v340 = vld [vmem:[#allocation8 + $0x4e8] sm:$0xff]
    %v341 = vld [vmem:[#allocation8 + $0x4f0] sm:$0xff]
    %v342 = vld [vmem:[#allocation8 + $0x4f8] sm:$0xff]
    %v343 = vld [vmem:[#allocation8 + $0x500] sm:$0xff]
    %v344 = vld [vmem:[#allocation8 + $0x508] sm:$0xff]
    %v345 = vld [vmem:[#allocation8 + $0x510] sm:$0xff]
    %v346 = vld [vmem:[#allocation8 + $0x518] sm:$0xff]
    %v347 = vld [vmem:[#allocation8 + $0x520] sm:$0xff]
    %v348 = vld [vmem:[#allocation8 + $0x528] sm:$0xff]
    %v349 = vld [vmem:[#allocation8 + $0x530] sm:$0xff]
    %v350 = vld [vmem:[#allocation8 + $0x538] sm:$0xff]
    %v351 = vld [vmem:[#allocation8 + $0x540] sm:$0xff]
    %v352 = vld [vmem:[#allocation8 + $0x548] sm:$0xff]
    %v353 = vld [vmem:[#allocation8 + $0x550] sm:$0xff]
    %v354 = vld [vmem:[#allocation8 + $0x558] sm:$0xff]
    %v355 = vld [vmem:[#allocation8 + $0x560] sm:$0xff]
    %v356 = vld [vmem:[#allocation8 + $0x568] sm:$0xff]
    %v357 = vld [vmem:[#allocation8 + $0x570] sm:$0xff]
    %v358 = vld [vmem:[#allocation8 + $0x578] sm:$0xff]
    %v359 = vld [vmem:[#allocation8 + $0x580] sm:$0xff]
    %v360 = vld [vmem:[#allocation8 + $0x588] sm:$0xff]
    %v361 = vld [vmem:[#allocation8 + $0x590] sm:$0xff]
    %v362 = vld [vmem:[#allocation8 + $0x598] sm:$0xff]
    %v363 = vld [vmem:[#allocation8 + $0x5a0] sm:$0xff]
    %v364 = vld [vmem:[#allocation8 + $0x5a8] sm:$0xff]
    %v365 = vld [vmem:[#allocation8 + $0x5b0] sm:$0xff]
    %v366 = vld [vmem:[#allocation8 + $0x5b8] sm:$0xff]
    %v367 = vld [vmem:[#allocation8 + $0x5c0] sm:$0xff]
    %v368 = vld [vmem:[#allocation8 + $0x5c8] sm:$0xff]
    %v369 = vld [vmem:[#allocation8 + $0x5d0] sm:$0xff]
    %v370 = vld [vmem:[#allocation8 + $0x5d8] sm:$0xff]
    %v371 = vld [vmem:[#allocation8 + $0x5e0] sm:$0xff]
    %v372 = vld [vmem:[#allocation8 + $0x5e8] sm:$0xff]
    %v373 = vld [vmem:[#allocation8 + $0x5f0] sm:$0xff]
    %v374 = vld [vmem:[#allocation8 + $0x5f8] sm:$0xff]
    %v375 = vld [vmem:[%s4] sm:$0xf]
    %v377 = vlaneseq
    %v378 = vshrl.u32 %v377, 7
    %v379 = vsub.s32 0, %v378
    %v380 = vrot.slane %v375, %v379
    %v381 = vlaneseq
    %v382 = vshrl.u32 %v381, 7
    %v383 = vsub.s32 1, %v382
    %v384 = vrot.slane %v375, %v383
    %v385 = vlaneseq
    %v386 = vshrl.u32 %v385, 7
    %v387 = vsub.s32 2, %v386
    %v388 = vrot.slane %v375, %v387
    %v389 = vlaneseq
    %v390 = vshrl.u32 %v389, 7
    %v391 = vsub.s32 3, %v390
    %v392 = vrot.slane %v375, %v391
    %v493 = vunpack.c.l.b16 %v87
    %v494 = vunpack.c.h.b16 %v87
    %v495 = vunpack.c.l.b16 %v88
    %v496 = vunpack.c.h.b16 %v88
    %v497 = vunpack.c.l.b16 %v89
    %v498 = vunpack.c.h.b16 %v89
    %v499 = vunpack.c.l.b16 %v90
    %v500 = vunpack.c.h.b16 %v90
    %v501 = vunpack.c.l.b16 %v91
    %v502 = vunpack.c.h.b16 %v91
    %v503 = vunpack.c.l.b16 %v92
    %v504 = vunpack.c.h.b16 %v92
    %v505 = vunpack.c.l.b16 %v93
    %v506 = vunpack.c.h.b16 %v93
    %v507 = vunpack.c.l.b16 %v94
    %v508 = vunpack.c.h.b16 %v94
    %v509 = vunpack.c.l.b16 %v95
    %v510 = vunpack.c.h.b16 %v95
    %v511 = vunpack.c.l.b16 %v96
    %v512 = vunpack.c.h.b16 %v96
    %v513 = vunpack.c.l.b16 %v97
    %v514 = vunpack.c.h.b16 %v97
    %v515 = vunpack.c.l.b16 %v98
    %v516 = vunpack.c.h.b16 %v98
    %v517 = vunpack.c.l.b16 %v99
    %v518 = vunpack.c.h.b16 %v99
    %v519 = vunpack.c.l.b16 %v100
    %v520 = vunpack.c.h.b16 %v100
    %v521 = vunpack.c.l.b16 %v101
    %v522 = vunpack.c.h.b16 %v101
    %v523 = vunpack.c.l.b16 %v102
    %v524 = vunpack.c.h.b16 %v102
    %v525 = vunpack.c.l.b16 %v103
    %v526 = vunpack.c.h.b16 %v103
    %v527 = vunpack.c.l.b16 %v104
    %v528 = vunpack.c.h.b16 %v104
    %v529 = vunpack.c.l.b16 %v105
    %v530 = vunpack.c.h.b16 %v105
    %v531 = vunpack.c.l.b16 %v106
    %v532 = vunpack.c.h.b16 %v106
    %v533 = vunpack.c.l.b16 %v107
    %v534 = vunpack.c.h.b16 %v107
    %v535 = vunpack.c.l.b16 %v108
    %v536 = vunpack.c.h.b16 %v108
    %v537 = vunpack.c.l.b16 %v109
    %v538 = vunpack.c.h.b16 %v109
    %v539 = vunpack.c.l.b16 %v110
    %v540 = vunpack.c.h.b16 %v110
    %v541 = vunpack.c.l.b16 %v111
    %v542 = vunpack.c.h.b16 %v111
    %v543 = vunpack.c.l.b16 %v112
    %v544 = vunpack.c.h.b16 %v112
    %v545 = vunpack.c.l.b16 %v113
    %v546 = vunpack.c.h.b16 %v113
    %v547 = vunpack.c.l.b16 %v114
    %v548 = vunpack.c.h.b16 %v114
    %v549 = vunpack.c.l.b16 %v115
    %v550 = vunpack.c.h.b16 %v115
    %v551 = vunpack.c.l.b16 %v116
    %v552 = vunpack.c.h.b16 %v116
    %v553 = vunpack.c.l.b16 %v117
    %v554 = vunpack.c.h.b16 %v117
    %v555 = vunpack.c.l.b16 %v118
    %v556 = vunpack.c.h.b16 %v118
    %v557 = vunpack.c.l.b16 %v119
    %v558 = vunpack.c.h.b16 %v119
    %v559 = vunpack.c.l.b16 %v120
    %v560 = vunpack.c.h.b16 %v120
    %v561 = vunpack.c.l.b16 %v121
    %v562 = vunpack.c.h.b16 %v121
    %v563 = vunpack.c.l.b16 %v122
    %v564 = vunpack.c.h.b16 %v122
    %v565 = vunpack.c.l.b16 %v123
    %v566 = vunpack.c.h.b16 %v123
    %v567 = vunpack.c.l.b16 %v124
    %v568 = vunpack.c.h.b16 %v124
    %v569 = vunpack.c.l.b16 %v125
    %v570 = vunpack.c.h.b16 %v125
    %v571 = vunpack.c.l.b16 %v126
    %v572 = vunpack.c.h.b16 %v126
    %v573 = vunpack.c.l.b16 %v127
    %v574 = vunpack.c.h.b16 %v127
    %v575 = vunpack.c.l.b16 %v128
    %v576 = vunpack.c.h.b16 %v128
    %v577 = vunpack.c.l.b16 %v129
    %v578 = vunpack.c.h.b16 %v129
    %v579 = vunpack.c.l.b16 %v130
    %v580 = vunpack.c.h.b16 %v130
    %v581 = vunpack.c.l.b16 %v131
    %v582 = vunpack.c.h.b16 %v131
    %v583 = vunpack.c.l.b16 %v132
    %v584 = vunpack.c.h.b16 %v132
    %v585 = vunpack.c.l.b16 %v133
    %v586 = vunpack.c.h.b16 %v133
    %v587 = vunpack.c.l.b16 %v134
    %v588 = vunpack.c.h.b16 %v134
    %v589 = vunpack.c.l.b16 %v135
    %v590 = vunpack.c.h.b16 %v135
    %v591 = vunpack.c.l.b16 %v136
    %v592 = vunpack.c.h.b16 %v136
    %v593 = vunpack.c.l.b16 %v137
    %v594 = vunpack.c.h.b16 %v137
    %v595 = vunpack.c.l.b16 %v138
    %v596 = vunpack.c.h.b16 %v138
    %v597 = vunpack.c.l.b16 %v139
    %v598 = vunpack.c.h.b16 %v139
    %v599 = vunpack.c.l.b16 %v140
    %v600 = vunpack.c.h.b16 %v140
    %v601 = vunpack.c.l.b16 %v141
    %v602 = vunpack.c.h.b16 %v141
    %v603 = vunpack.c.l.b16 %v142
    %v604 = vunpack.c.h.b16 %v142
    %v605 = vunpack.c.l.b16 %v143
    %v606 = vunpack.c.h.b16 %v143
    %v607 = vunpack.c.l.b16 %v144
    %v608 = vunpack.c.h.b16 %v144
    %v609 = vunpack.c.l.b16 %v145
    %v610 = vunpack.c.h.b16 %v145
    %v611 = vunpack.c.l.b16 %v146
    %v612 = vunpack.c.h.b16 %v146
    %v613 = vunpack.c.l.b16 %v147
    %v614 = vunpack.c.h.b16 %v147
    %v615 = vunpack.c.l.b16 %v148
    %v616 = vunpack.c.h.b16 %v148
    %v617 = vunpack.c.l.b16 %v149
    %v618 = vunpack.c.h.b16 %v149
    %v619 = vunpack.c.l.b16 %v150
    %v620 = vunpack.c.h.b16 %v150
    %v621 = vunpack.c.l.b16 %v151
    %v622 = vunpack.c.h.b16 %v151
    %v623 = vunpack.c.l.b16 %v152
    %v624 = vunpack.c.h.b16 %v152
    %v625 = vunpack.c.l.b16 %v153
    %v626 = vunpack.c.h.b16 %v153
    %v627 = vunpack.c.l.b16 %v154
    %v628 = vunpack.c.h.b16 %v154
    %v629 = vunpack.c.l.b16 %v155
    %v630 = vunpack.c.h.b16 %v155
    %v631 = vunpack.c.l.b16 %v156
    %v632 = vunpack.c.h.b16 %v156
    %v633 = vunpack.c.l.b16 %v157
    %v634 = vunpack.c.h.b16 %v157
    %v635 = vunpack.c.l.b16 %v158
    %v636 = vunpack.c.h.b16 %v158
    %v637 = vunpack.c.l.b16 %v159
    %v638 = vunpack.c.h.b16 %v159
    %v639 = vunpack.c.l.b16 %v160
    %v640 = vunpack.c.h.b16 %v160
    %v641 = vunpack.c.l.b16 %v161
    %v642 = vunpack.c.h.b16 %v161
    %v643 = vunpack.c.l.b16 %v162
    %v644 = vunpack.c.h.b16 %v162
    %v645 = vunpack.c.l.b16 %v163
    %v646 = vunpack.c.h.b16 %v163
    %v647 = vunpack.c.l.b16 %v164
    %v648 = vunpack.c.h.b16 %v164
    %v649 = vunpack.c.l.b16 %v165
    %v650 = vunpack.c.h.b16 %v165
    %v651 = vunpack.c.l.b16 %v166
    %v652 = vunpack.c.h.b16 %v166
    %v653 = vunpack.c.l.b16 %v167
    %v654 = vunpack.c.h.b16 %v167
    %v655 = vunpack.c.l.b16 %v168
    %v656 = vunpack.c.h.b16 %v168
    %v657 = vunpack.c.l.b16 %v169
    %v658 = vunpack.c.h.b16 %v169
    %v659 = vunpack.c.l.b16 %v170
    %v660 = vunpack.c.h.b16 %v170
    %v661 = vunpack.c.l.b16 %v171
    %v662 = vunpack.c.h.b16 %v171
    %v663 = vunpack.c.l.b16 %v172
    %v664 = vunpack.c.h.b16 %v172
    %v665 = vunpack.c.l.b16 %v173
    %v666 = vunpack.c.h.b16 %v173
    %v667 = vunpack.c.l.b16 %v174
    %v668 = vunpack.c.h.b16 %v174
    %v669 = vunpack.c.l.b16 %v175
    %v670 = vunpack.c.h.b16 %v175
    %v671 = vunpack.c.l.b16 %v176
    %v672 = vunpack.c.h.b16 %v176
    %v673 = vunpack.c.l.b16 %v177
    %v674 = vunpack.c.h.b16 %v177
    %v675 = vunpack.c.l.b16 %v178
    %v676 = vunpack.c.h.b16 %v178
    %v677 = vunpack.c.l.b16 %v179
    %v678 = vunpack.c.h.b16 %v179
    %v679 = vunpack.c.l.b16 %v180
    %v680 = vunpack.c.h.b16 %v180
    %v681 = vunpack.c.l.b16 %v181
    %v682 = vunpack.c.h.b16 %v181
    %v683 = vunpack.c.l.b16 %v182
    %v684 = vunpack.c.h.b16 %v182
    %v685 = vpack.c.b16 %v499, %v493
    %v686 = vpack.c.b16 %v500, %v494
    %v687 = vpack.c.b16 %v501, %v495
    %v688 = vpack.c.b16 %v502, %v496
    %v689 = vpack.c.b16 %v503, %v497
    %v690 = vpack.c.b16 %v504, %v498
    %v691 = vpack.c.b16 %v511, %v505
    %v692 = vpack.c.b16 %v512, %v506
    %v693 = vpack.c.b16 %v513, %v507
    %v694 = vpack.c.b16 %v514, %v508
    %v695 = vpack.c.b16 %v515, %v509
    %v696 = vpack.c.b16 %v516, %v510
    %v697 = vpack.c.b16 %v523, %v517
    %v698 = vpack.c.b16 %v524, %v518
    %v699 = vpack.c.b16 %v525, %v519
    %v700 = vpack.c.b16 %v526, %v520
    %v701 = vpack.c.b16 %v527, %v521
    %v702 = vpack.c.b16 %v528, %v522
    %v703 = vpack.c.b16 %v535, %v529
    %v704 = vpack.c.b16 %v536, %v530
    %v705 = vpack.c.b16 %v537, %v531
    %v706 = vpack.c.b16 %v538, %v532
    %v707 = vpack.c.b16 %v539, %v533
    %v708 = vpack.c.b16 %v540, %v534
    %v709 = vpack.c.b16 %v547, %v541
    %v710 = vpack.c.b16 %v548, %v542
    %v711 = vpack.c.b16 %v549, %v543
    %v712 = vpack.c.b16 %v550, %v544
    %v713 = vpack.c.b16 %v551, %v545
    %v714 = vpack.c.b16 %v552, %v546
    %v715 = vpack.c.b16 %v559, %v553
    %v716 = vpack.c.b16 %v560, %v554
    %v717 = vpack.c.b16 %v561, %v555
    %v718 = vpack.c.b16 %v562, %v556
    %v719 = vpack.c.b16 %v563, %v557
    %v720 = vpack.c.b16 %v564, %v558
    %v721 = vpack.c.b16 %v571, %v565
    %v722 = vpack.c.b16 %v572, %v566
    %v723 = vpack.c.b16 %v573, %v567
    %v724 = vpack.c.b16 %v574, %v568
    %v725 = vpack.c.b16 %v575, %v569
    %v726 = vpack.c.b16 %v576, %v570
    %v727 = vpack.c.b16 %v583, %v577
    %v728 = vpack.c.b16 %v584, %v578
    %v729 = vpack.c.b16 %v585, %v579
    %v730 = vpack.c.b16 %v586, %v580
    %v731 = vpack.c.b16 %v587, %v581
    %v732 = vpack.c.b16 %v588, %v582
    %v733 = vpack.c.b16 %v595, %v589
    %v734 = vpack.c.b16 %v596, %v590
    %v735 = vpack.c.b16 %v597, %v591
    %v736 = vpack.c.b16 %v598, %v592
    %v737 = vpack.c.b16 %v599, %v593
    %v738 = vpack.c.b16 %v600, %v594
    %v739 = vpack.c.b16 %v607, %v601
    %v740 = vpack.c.b16 %v608, %v602
    %v741 = vpack.c.b16 %v609, %v603
    %v742 = vpack.c.b16 %v610, %v604
    %v743 = vpack.c.b16 %v611, %v605
    %v744 = vpack.c.b16 %v612, %v606
    %v745 = vpack.c.b16 %v619, %v613
    %v746 = vpack.c.b16 %v620, %v614
    %v747 = vpack.c.b16 %v621, %v615
    %v748 = vpack.c.b16 %v622, %v616
    %v749 = vpack.c.b16 %v623, %v617
    %v750 = vpack.c.b16 %v624, %v618
    %v751 = vpack.c.b16 %v631, %v625
    %v752 = vpack.c.b16 %v632, %v626
    %v753 = vpack.c.b16 %v633, %v627
    %v754 = vpack.c.b16 %v634, %v628
    %v755 = vpack.c.b16 %v635, %v629
    %v756 = vpack.c.b16 %v636, %v630
    %v757 = vpack.c.b16 %v643, %v637
    %v758 = vpack.c.b16 %v644, %v638
    %v759 = vpack.c.b16 %v645, %v639
    %v760 = vpack.c.b16 %v646, %v640
    %v761 = vpack.c.b16 %v647, %v641
    %v762 = vpack.c.b16 %v648, %v642
    %v763 = vpack.c.b16 %v655, %v649
    %v764 = vpack.c.b16 %v656, %v650
    %v765 = vpack.c.b16 %v657, %v651
    %v766 = vpack.c.b16 %v658, %v652
    %v767 = vpack.c.b16 %v659, %v653
    %v768 = vpack.c.b16 %v660, %v654
    %v769 = vpack.c.b16 %v667, %v661
    %v770 = vpack.c.b16 %v668, %v662
    %v771 = vpack.c.b16 %v669, %v663
    %v772 = vpack.c.b16 %v670, %v664
    %v773 = vpack.c.b16 %v671, %v665
    %v774 = vpack.c.b16 %v672, %v666
    %v775 = vpack.c.b16 %v679, %v673
    %v776 = vpack.c.b16 %v680, %v674
    %v777 = vpack.c.b16 %v681, %v675
    %v778 = vpack.c.b16 %v682, %v676
    %v779 = vpack.c.b16 %v683, %v677
    %v780 = vpack.c.b16 %v684, %v678
    %v1069 = vunpack.c.l.b16 %v183
    %v1070 = vunpack.c.h.b16 %v183
    %v1071 = vunpack.c.l.b16 %v184
    %v1072 = vunpack.c.h.b16 %v184
    %v1073 = vunpack.c.l.b16 %v185
    %v1074 = vunpack.c.h.b16 %v185
    %v1075 = vunpack.c.l.b16 %v186
    %v1076 = vunpack.c.h.b16 %v186
    %v1077 = vunpack.c.l.b16 %v187
    %v1078 = vunpack.c.h.b16 %v187
    %v1079 = vunpack.c.l.b16 %v188
    %v1080 = vunpack.c.h.b16 %v188
    %v1081 = vunpack.c.l.b16 %v189
    %v1082 = vunpack.c.h.b16 %v189
    %v1083 = vunpack.c.l.b16 %v190
    %v1084 = vunpack.c.h.b16 %v190
    %v1085 = vunpack.c.l.b16 %v191
    %v1086 = vunpack.c.h.b16 %v191
    %v1087 = vunpack.c.l.b16 %v192
    %v1088 = vunpack.c.h.b16 %v192
    %v1089 = vunpack.c.l.b16 %v193
    %v1090 = vunpack.c.h.b16 %v193
    %v1091 = vunpack.c.l.b16 %v194
    %v1092 = vunpack.c.h.b16 %v194
    %v1093 = vunpack.c.l.b16 %v195
    %v1094 = vunpack.c.h.b16 %v195
    %v1095 = vunpack.c.l.b16 %v196
    %v1096 = vunpack.c.h.b16 %v196
    %v1097 = vunpack.c.l.b16 %v197
    %v1098 = vunpack.c.h.b16 %v197
    %v1099 = vunpack.c.l.b16 %v198
    %v1100 = vunpack.c.h.b16 %v198
    %v1101 = vunpack.c.l.b16 %v199
    %v1102 = vunpack.c.h.b16 %v199
    %v1103 = vunpack.c.l.b16 %v200
    %v1104 = vunpack.c.h.b16 %v200
    %v1105 = vunpack.c.l.b16 %v201
    %v1106 = vunpack.c.h.b16 %v201
    %v1107 = vunpack.c.l.b16 %v202
    %v1108 = vunpack.c.h.b16 %v202
    %v1109 = vunpack.c.l.b16 %v203
    %v1110 = vunpack.c.h.b16 %v203
    %v1111 = vunpack.c.l.b16 %v204
    %v1112 = vunpack.c.h.b16 %v204
    %v1113 = vunpack.c.l.b16 %v205
    %v1114 = vunpack.c.h.b16 %v205
    %v1115 = vunpack.c.l.b16 %v206
    %v1116 = vunpack.c.h.b16 %v206
    %v1117 = vunpack.c.l.b16 %v207
    %v1118 = vunpack.c.h.b16 %v207
    %v1119 = vunpack.c.l.b16 %v208
    %v1120 = vunpack.c.h.b16 %v208
    %v1121 = vunpack.c.l.b16 %v209
    %v1122 = vunpack.c.h.b16 %v209
    %v1123 = vunpack.c.l.b16 %v210
    %v1124 = vunpack.c.h.b16 %v210
    %v1125 = vunpack.c.l.b16 %v211
    %v1126 = vunpack.c.h.b16 %v211
    %v1127 = vunpack.c.l.b16 %v212
    %v1128 = vunpack.c.h.b16 %v212
    %v1129 = vunpack.c.l.b16 %v213
    %v1130 = vunpack.c.h.b16 %v213
    %v1131 = vunpack.c.l.b16 %v214
    %v1132 = vunpack.c.h.b16 %v214
    %v1133 = vunpack.c.l.b16 %v215
    %v1134 = vunpack.c.h.b16 %v215
    %v1135 = vunpack.c.l.b16 %v216
    %v1136 = vunpack.c.h.b16 %v216
    %v1137 = vunpack.c.l.b16 %v217
    %v1138 = vunpack.c.h.b16 %v217
    %v1139 = vunpack.c.l.b16 %v218
    %v1140 = vunpack.c.h.b16 %v218
    %v1141 = vunpack.c.l.b16 %v219
    %v1142 = vunpack.c.h.b16 %v219
    %v1143 = vunpack.c.l.b16 %v220
    %v1144 = vunpack.c.h.b16 %v220
    %v1145 = vunpack.c.l.b16 %v221
    %v1146 = vunpack.c.h.b16 %v221
    %v1147 = vunpack.c.l.b16 %v222
    %v1148 = vunpack.c.h.b16 %v222
    %v1149 = vunpack.c.l.b16 %v223
    %v1150 = vunpack.c.h.b16 %v223
    %v1151 = vunpack.c.l.b16 %v224
    %v1152 = vunpack.c.h.b16 %v224
    %v1153 = vunpack.c.l.b16 %v225
    %v1154 = vunpack.c.h.b16 %v225
    %v1155 = vunpack.c.l.b16 %v226
    %v1156 = vunpack.c.h.b16 %v226
    %v1157 = vunpack.c.l.b16 %v227
    %v1158 = vunpack.c.h.b16 %v227
    %v1159 = vunpack.c.l.b16 %v228
    %v1160 = vunpack.c.h.b16 %v228
    %v1161 = vunpack.c.l.b16 %v229
    %v1162 = vunpack.c.h.b16 %v229
    %v1163 = vunpack.c.l.b16 %v230
    %v1164 = vunpack.c.h.b16 %v230
    %v1165 = vunpack.c.l.b16 %v231
    %v1166 = vunpack.c.h.b16 %v231
    %v1167 = vunpack.c.l.b16 %v232
    %v1168 = vunpack.c.h.b16 %v232
    %v1169 = vunpack.c.l.b16 %v233
    %v1170 = vunpack.c.h.b16 %v233
    %v1171 = vunpack.c.l.b16 %v234
    %v1172 = vunpack.c.h.b16 %v234
    %v1173 = vunpack.c.l.b16 %v235
    %v1174 = vunpack.c.h.b16 %v235
    %v1175 = vunpack.c.l.b16 %v236
    %v1176 = vunpack.c.h.b16 %v236
    %v1177 = vunpack.c.l.b16 %v237
    %v1178 = vunpack.c.h.b16 %v237
    %v1179 = vunpack.c.l.b16 %v238
    %v1180 = vunpack.c.h.b16 %v238
    %v1181 = vunpack.c.l.b16 %v239
    %v1182 = vunpack.c.h.b16 %v239
    %v1183 = vunpack.c.l.b16 %v240
    %v1184 = vunpack.c.h.b16 %v240
    %v1185 = vunpack.c.l.b16 %v241
    %v1186 = vunpack.c.h.b16 %v241
    %v1187 = vunpack.c.l.b16 %v242
    %v1188 = vunpack.c.h.b16 %v242
    %v1189 = vunpack.c.l.b16 %v243
    %v1190 = vunpack.c.h.b16 %v243
    %v1191 = vunpack.c.l.b16 %v244
    %v1192 = vunpack.c.h.b16 %v244
    %v1193 = vunpack.c.l.b16 %v245
    %v1194 = vunpack.c.h.b16 %v245
    %v1195 = vunpack.c.l.b16 %v246
    %v1196 = vunpack.c.h.b16 %v246
    %v1197 = vunpack.c.l.b16 %v247
    %v1198 = vunpack.c.h.b16 %v247
    %v1199 = vunpack.c.l.b16 %v248
    %v1200 = vunpack.c.h.b16 %v248
    %v1201 = vunpack.c.l.b16 %v249
    %v1202 = vunpack.c.h.b16 %v249
    %v1203 = vunpack.c.l.b16 %v250
    %v1204 = vunpack.c.h.b16 %v250
    %v1205 = vunpack.c.l.b16 %v251
    %v1206 = vunpack.c.h.b16 %v251
    %v1207 = vunpack.c.l.b16 %v252
    %v1208 = vunpack.c.h.b16 %v252
    %v1209 = vunpack.c.l.b16 %v253
    %v1210 = vunpack.c.h.b16 %v253
    %v1211 = vunpack.c.l.b16 %v254
    %v1212 = vunpack.c.h.b16 %v254
    %v1213 = vunpack.c.l.b16 %v255
    %v1214 = vunpack.c.h.b16 %v255
    %v1215 = vunpack.c.l.b16 %v256
    %v1216 = vunpack.c.h.b16 %v256
    %v1217 = vunpack.c.l.b16 %v257
    %v1218 = vunpack.c.h.b16 %v257
    %v1219 = vunpack.c.l.b16 %v258
    %v1220 = vunpack.c.h.b16 %v258
    %v1221 = vunpack.c.l.b16 %v259
    %v1222 = vunpack.c.h.b16 %v259
    %v1223 = vunpack.c.l.b16 %v260
    %v1224 = vunpack.c.h.b16 %v260
    %v1225 = vunpack.c.l.b16 %v261
    %v1226 = vunpack.c.h.b16 %v261
    %v1227 = vunpack.c.l.b16 %v262
    %v1228 = vunpack.c.h.b16 %v262
    %v1229 = vunpack.c.l.b16 %v263
    %v1230 = vunpack.c.h.b16 %v263
    %v1231 = vunpack.c.l.b16 %v264
    %v1232 = vunpack.c.h.b16 %v264
    %v1233 = vunpack.c.l.b16 %v265
    %v1234 = vunpack.c.h.b16 %v265
    %v1235 = vunpack.c.l.b16 %v266
    %v1236 = vunpack.c.h.b16 %v266
    %v1237 = vunpack.c.l.b16 %v267
    %v1238 = vunpack.c.h.b16 %v267
    %v1239 = vunpack.c.l.b16 %v268
    %v1240 = vunpack.c.h.b16 %v268
    %v1241 = vunpack.c.l.b16 %v269
    %v1242 = vunpack.c.h.b16 %v269
    %v1243 = vunpack.c.l.b16 %v270
    %v1244 = vunpack.c.h.b16 %v270
    %v1245 = vunpack.c.l.b16 %v271
    %v1246 = vunpack.c.h.b16 %v271
    %v1247 = vunpack.c.l.b16 %v272
    %v1248 = vunpack.c.h.b16 %v272
    %v1249 = vunpack.c.l.b16 %v273
    %v1250 = vunpack.c.h.b16 %v273
    %v1251 = vunpack.c.l.b16 %v274
    %v1252 = vunpack.c.h.b16 %v274
    %v1253 = vunpack.c.l.b16 %v275
    %v1254 = vunpack.c.h.b16 %v275
    %v1255 = vunpack.c.l.b16 %v276
    %v1256 = vunpack.c.h.b16 %v276
    %v1257 = vunpack.c.l.b16 %v277
    %v1258 = vunpack.c.h.b16 %v277
    %v1259 = vunpack.c.l.b16 %v278
    %v1260 = vunpack.c.h.b16 %v278
    %v1261 = vunpack.c.l.b16 %v279
    %v1262 = vunpack.c.h.b16 %v279
    %v1263 = vunpack.c.l.b16 %v280
    %v1264 = vunpack.c.h.b16 %v280
    %v1265 = vunpack.c.l.b16 %v281
    %v1266 = vunpack.c.h.b16 %v281
    %v1267 = vunpack.c.l.b16 %v282
    %v1268 = vunpack.c.h.b16 %v282
    %v1269 = vunpack.c.l.b16 %v283
    %v1270 = vunpack.c.h.b16 %v283
    %v1271 = vunpack.c.l.b16 %v284
    %v1272 = vunpack.c.h.b16 %v284
    %v1273 = vunpack.c.l.b16 %v285
    %v1274 = vunpack.c.h.b16 %v285
    %v1275 = vunpack.c.l.b16 %v286
    %v1276 = vunpack.c.h.b16 %v286
    %v1277 = vunpack.c.l.b16 %v287
    %v1278 = vunpack.c.h.b16 %v287
    %v1279 = vunpack.c.l.b16 %v288
    %v1280 = vunpack.c.h.b16 %v288
    %v1281 = vunpack.c.l.b16 %v289
    %v1282 = vunpack.c.h.b16 %v289
    %v1283 = vunpack.c.l.b16 %v290
    %v1284 = vunpack.c.h.b16 %v290
    %v1285 = vunpack.c.l.b16 %v291
    %v1286 = vunpack.c.h.b16 %v291
    %v1287 = vunpack.c.l.b16 %v292
    %v1288 = vunpack.c.h.b16 %v292
    %v1289 = vunpack.c.l.b16 %v293
    %v1290 = vunpack.c.h.b16 %v293
    %v1291 = vunpack.c.l.b16 %v294
    %v1292 = vunpack.c.h.b16 %v294
    %v1293 = vunpack.c.l.b16 %v295
    %v1294 = vunpack.c.h.b16 %v295
    %v1295 = vunpack.c.l.b16 %v296
    %v1296 = vunpack.c.h.b16 %v296
    %v1297 = vunpack.c.l.b16 %v297
    %v1298 = vunpack.c.h.b16 %v297
    %v1299 = vunpack.c.l.b16 %v298
    %v1300 = vunpack.c.h.b16 %v298
    %v1301 = vunpack.c.l.b16 %v299
    %v1302 = vunpack.c.h.b16 %v299
    %v1303 = vunpack.c.l.b16 %v300
    %v1304 = vunpack.c.h.b16 %v300
    %v1305 = vunpack.c.l.b16 %v301
    %v1306 = vunpack.c.h.b16 %v301
    %v1307 = vunpack.c.l.b16 %v302
    %v1308 = vunpack.c.h.b16 %v302
    %v1309 = vunpack.c.l.b16 %v303
    %v1310 = vunpack.c.h.b16 %v303
    %v1311 = vunpack.c.l.b16 %v304
    %v1312 = vunpack.c.h.b16 %v304
    %v1313 = vunpack.c.l.b16 %v305
    %v1314 = vunpack.c.h.b16 %v305
    %v1315 = vunpack.c.l.b16 %v306
    %v1316 = vunpack.c.h.b16 %v306
    %v1317 = vunpack.c.l.b16 %v307
    %v1318 = vunpack.c.h.b16 %v307
    %v1319 = vunpack.c.l.b16 %v308
    %v1320 = vunpack.c.h.b16 %v308
    %v1321 = vunpack.c.l.b16 %v309
    %v1322 = vunpack.c.h.b16 %v309
    %v1323 = vunpack.c.l.b16 %v310
    %v1324 = vunpack.c.h.b16 %v310
    %v1325 = vunpack.c.l.b16 %v311
    %v1326 = vunpack.c.h.b16 %v311
    %v1327 = vunpack.c.l.b16 %v312
    %v1328 = vunpack.c.h.b16 %v312
    %v1329 = vunpack.c.l.b16 %v313
    %v1330 = vunpack.c.h.b16 %v313
    %v1331 = vunpack.c.l.b16 %v314
    %v1332 = vunpack.c.h.b16 %v314
    %v1333 = vunpack.c.l.b16 %v315
    %v1334 = vunpack.c.h.b16 %v315
    %v1335 = vunpack.c.l.b16 %v316
    %v1336 = vunpack.c.h.b16 %v316
    %v1337 = vunpack.c.l.b16 %v317
    %v1338 = vunpack.c.h.b16 %v317
    %v1339 = vunpack.c.l.b16 %v318
    %v1340 = vunpack.c.h.b16 %v318
    %v1341 = vunpack.c.l.b16 %v319
    %v1342 = vunpack.c.h.b16 %v319
    %v1343 = vunpack.c.l.b16 %v320
    %v1344 = vunpack.c.h.b16 %v320
    %v1345 = vunpack.c.l.b16 %v321
    %v1346 = vunpack.c.h.b16 %v321
    %v1347 = vunpack.c.l.b16 %v322
    %v1348 = vunpack.c.h.b16 %v322
    %v1349 = vunpack.c.l.b16 %v323
    %v1350 = vunpack.c.h.b16 %v323
    %v1351 = vunpack.c.l.b16 %v324
    %v1352 = vunpack.c.h.b16 %v324
    %v1353 = vunpack.c.l.b16 %v325
    %v1354 = vunpack.c.h.b16 %v325
    %v1355 = vunpack.c.l.b16 %v326
    %v1356 = vunpack.c.h.b16 %v326
    %v1357 = vunpack.c.l.b16 %v327
    %v1358 = vunpack.c.h.b16 %v327
    %v1359 = vunpack.c.l.b16 %v328
    %v1360 = vunpack.c.h.b16 %v328
    %v1361 = vunpack.c.l.b16 %v329
    %v1362 = vunpack.c.h.b16 %v329
    %v1363 = vunpack.c.l.b16 %v330
    %v1364 = vunpack.c.h.b16 %v330
    %v1365 = vunpack.c.l.b16 %v331
    %v1366 = vunpack.c.h.b16 %v331
    %v1367 = vunpack.c.l.b16 %v332
    %v1368 = vunpack.c.h.b16 %v332
    %v1369 = vunpack.c.l.b16 %v333
    %v1370 = vunpack.c.h.b16 %v333
    %v1371 = vunpack.c.l.b16 %v334
    %v1372 = vunpack.c.h.b16 %v334
    %v1373 = vunpack.c.l.b16 %v335
    %v1374 = vunpack.c.h.b16 %v335
    %v1375 = vunpack.c.l.b16 %v336
    %v1376 = vunpack.c.h.b16 %v336
    %v1377 = vunpack.c.l.b16 %v337
    %v1378 = vunpack.c.h.b16 %v337
    %v1379 = vunpack.c.l.b16 %v338
    %v1380 = vunpack.c.h.b16 %v338
    %v1381 = vunpack.c.l.b16 %v339
    %v1382 = vunpack.c.h.b16 %v339
    %v1383 = vunpack.c.l.b16 %v340
    %v1384 = vunpack.c.h.b16 %v340
    %v1385 = vunpack.c.l.b16 %v341
    %v1386 = vunpack.c.h.b16 %v341
    %v1387 = vunpack.c.l.b16 %v342
    %v1388 = vunpack.c.h.b16 %v342
    %v1389 = vunpack.c.l.b16 %v343
    %v1390 = vunpack.c.h.b16 %v343
    %v1391 = vunpack.c.l.b16 %v344
    %v1392 = vunpack.c.h.b16 %v344
    %v1393 = vunpack.c.l.b16 %v345
    %v1394 = vunpack.c.h.b16 %v345
    %v1395 = vunpack.c.l.b16 %v346
    %v1396 = vunpack.c.h.b16 %v346
    %v1397 = vunpack.c.l.b16 %v347
    %v1398 = vunpack.c.h.b16 %v347
    %v1399 = vunpack.c.l.b16 %v348
    %v1400 = vunpack.c.h.b16 %v348
    %v1401 = vunpack.c.l.b16 %v349
    %v1402 = vunpack.c.h.b16 %v349
    %v1403 = vunpack.c.l.b16 %v350
    %v1404 = vunpack.c.h.b16 %v350
    %v1405 = vunpack.c.l.b16 %v351
    %v1406 = vunpack.c.h.b16 %v351
    %v1407 = vunpack.c.l.b16 %v352
    %v1408 = vunpack.c.h.b16 %v352
    %v1409 = vunpack.c.l.b16 %v353
    %v1410 = vunpack.c.h.b16 %v353
    %v1411 = vunpack.c.l.b16 %v354
    %v1412 = vunpack.c.h.b16 %v354
    %v1413 = vunpack.c.l.b16 %v355
    %v1414 = vunpack.c.h.b16 %v355
    %v1415 = vunpack.c.l.b16 %v356
    %v1416 = vunpack.c.h.b16 %v356
    %v1417 = vunpack.c.l.b16 %v357
    %v1418 = vunpack.c.h.b16 %v357
    %v1419 = vunpack.c.l.b16 %v358
    %v1420 = vunpack.c.h.b16 %v358
    %v1421 = vunpack.c.l.b16 %v359
    %v1422 = vunpack.c.h.b16 %v359
    %v1423 = vunpack.c.l.b16 %v360
    %v1424 = vunpack.c.h.b16 %v360
    %v1425 = vunpack.c.l.b16 %v361
    %v1426 = vunpack.c.h.b16 %v361
    %v1427 = vunpack.c.l.b16 %v362
    %v1428 = vunpack.c.h.b16 %v362
    %v1429 = vunpack.c.l.b16 %v363
    %v1430 = vunpack.c.h.b16 %v363
    %v1431 = vunpack.c.l.b16 %v364
    %v1432 = vunpack.c.h.b16 %v364
    %v1433 = vunpack.c.l.b16 %v365
    %v1434 = vunpack.c.h.b16 %v365
    %v1435 = vunpack.c.l.b16 %v366
    %v1436 = vunpack.c.h.b16 %v366
    %v1437 = vunpack.c.l.b16 %v367
    %v1438 = vunpack.c.h.b16 %v367
    %v1439 = vunpack.c.l.b16 %v368
    %v1440 = vunpack.c.h.b16 %v368
    %v1441 = vunpack.c.l.b16 %v369
    %v1442 = vunpack.c.h.b16 %v369
    %v1443 = vunpack.c.l.b16 %v370
    %v1444 = vunpack.c.h.b16 %v370
    %v1445 = vunpack.c.l.b16 %v371
    %v1446 = vunpack.c.h.b16 %v371
    %v1447 = vunpack.c.l.b16 %v372
    %v1448 = vunpack.c.h.b16 %v372
    %v1449 = vunpack.c.l.b16 %v373
    %v1450 = vunpack.c.h.b16 %v373
    %v1451 = vunpack.c.l.b16 %v374
    %v1452 = vunpack.c.h.b16 %v374
    %v1453 = vpack.c.b16 %v1073, %v1069
    %v1454 = vpack.c.b16 %v1074, %v1070
    %v1455 = vpack.c.b16 %v1075, %v1071
    %v1456 = vpack.c.b16 %v1076, %v1072
    %v1457 = vpack.c.b16 %v1081, %v1077
    %v1458 = vpack.c.b16 %v1082, %v1078
    %v1459 = vpack.c.b16 %v1083, %v1079
    %v1460 = vpack.c.b16 %v1084, %v1080
    %v1461 = vpack.c.b16 %v1089, %v1085
    %v1462 = vpack.c.b16 %v1090, %v1086
    %v1463 = vpack.c.b16 %v1091, %v1087
    %v1464 = vpack.c.b16 %v1092, %v1088
    %v1465 = vpack.c.b16 %v1097, %v1093
    %v1466 = vpack.c.b16 %v1098, %v1094
    %v1467 = vpack.c.b16 %v1099, %v1095
    %v1468 = vpack.c.b16 %v1100, %v1096
    %v1469 = vpack.c.b16 %v1105, %v1101
    %v1470 = vpack.c.b16 %v1106, %v1102
    %v1471 = vpack.c.b16 %v1107, %v1103
    %v1472 = vpack.c.b16 %v1108, %v1104
    %v1473 = vpack.c.b16 %v1113, %v1109
    %v1474 = vpack.c.b16 %v1114, %v1110
    %v1475 = vpack.c.b16 %v1115, %v1111
    %v1476 = vpack.c.b16 %v1116, %v1112
    %v1477 = vpack.c.b16 %v1121, %v1117
    %v1478 = vpack.c.b16 %v1122, %v1118
    %v1479 = vpack.c.b16 %v1123, %v1119
    %v1480 = vpack.c.b16 %v1124, %v1120
    %v1481 = vpack.c.b16 %v1129, %v1125
    %v1482 = vpack.c.b16 %v1130, %v1126
    %v1483 = vpack.c.b16 %v1131, %v1127
    %v1484 = vpack.c.b16 %v1132, %v1128
    %v1485 = vpack.c.b16 %v1137, %v1133
    %v1486 = vpack.c.b16 %v1138, %v1134
    %v1487 = vpack.c.b16 %v1139, %v1135
    %v1488 = vpack.c.b16 %v1140, %v1136
    %v1489 = vpack.c.b16 %v1145, %v1141
    %v1490 = vpack.c.b16 %v1146, %v1142
    %v1491 = vpack.c.b16 %v1147, %v1143
    %v1492 = vpack.c.b16 %v1148, %v1144
    %v1493 = vpack.c.b16 %v1153, %v1149
    %v1494 = vpack.c.b16 %v1154, %v1150
    %v1495 = vpack.c.b16 %v1155, %v1151
    %v1496 = vpack.c.b16 %v1156, %v1152
    %v1497 = vpack.c.b16 %v1161, %v1157
    %v1498 = vpack.c.b16 %v1162, %v1158
    %v1499 = vpack.c.b16 %v1163, %v1159
    %v1500 = vpack.c.b16 %v1164, %v1160
    %v1501 = vpack.c.b16 %v1169, %v1165
    %v1502 = vpack.c.b16 %v1170, %v1166
    %v1503 = vpack.c.b16 %v1171, %v1167
    %v1504 = vpack.c.b16 %v1172, %v1168
    %v1505 = vpack.c.b16 %v1177, %v1173
    %v1506 = vpack.c.b16 %v1178, %v1174
    %v1507 = vpack.c.b16 %v1179, %v1175
    %v1508 = vpack.c.b16 %v1180, %v1176
    %v1509 = vpack.c.b16 %v1185, %v1181
    %v1510 = vpack.c.b16 %v1186, %v1182
    %v1511 = vpack.c.b16 %v1187, %v1183
    %v1512 = vpack.c.b16 %v1188, %v1184
    %v1513 = vpack.c.b16 %v1193, %v1189
    %v1514 = vpack.c.b16 %v1194, %v1190
    %v1515 = vpack.c.b16 %v1195, %v1191
    %v1516 = vpack.c.b16 %v1196, %v1192
    %v1517 = vpack.c.b16 %v1201, %v1197
    %v1518 = vpack.c.b16 %v1202, %v1198
    %v1519 = vpack.c.b16 %v1203, %v1199
    %v1520 = vpack.c.b16 %v1204, %v1200
    %v1521 = vpack.c.b16 %v1209, %v1205
    %v1522 = vpack.c.b16 %v1210, %v1206
    %v1523 = vpack.c.b16 %v1211, %v1207
    %v1524 = vpack.c.b16 %v1212, %v1208
    %v1525 = vpack.c.b16 %v1217, %v1213
    %v1526 = vpack.c.b16 %v1218, %v1214
    %v1527 = vpack.c.b16 %v1219, %v1215
    %v1528 = vpack.c.b16 %v1220, %v1216
    %v1529 = vpack.c.b16 %v1225, %v1221
    %v1530 = vpack.c.b16 %v1226, %v1222
    %v1531 = vpack.c.b16 %v1227, %v1223
    %v1532 = vpack.c.b16 %v1228, %v1224
    %v1533 = vpack.c.b16 %v1233, %v1229
    %v1534 = vpack.c.b16 %v1234, %v1230
    %v1535 = vpack.c.b16 %v1235, %v1231
    %v1536 = vpack.c.b16 %v1236, %v1232
    %v1537 = vpack.c.b16 %v1241, %v1237
    %v1538 = vpack.c.b16 %v1242, %v1238
    %v1539 = vpack.c.b16 %v1243, %v1239
    %v1540 = vpack.c.b16 %v1244, %v1240
    %v1541 = vpack.c.b16 %v1249, %v1245
    %v1542 = vpack.c.b16 %v1250, %v1246
    %v1543 = vpack.c.b16 %v1251, %v1247
    %v1544 = vpack.c.b16 %v1252, %v1248
    %v1545 = vpack.c.b16 %v1257, %v1253
    %v1546 = vpack.c.b16 %v1258, %v1254
    %v1547 = vpack.c.b16 %v1259, %v1255
    %v1548 = vpack.c.b16 %v1260, %v1256
    %v1549 = vpack.c.b16 %v1265, %v1261
    %v1550 = vpack.c.b16 %v1266, %v1262
    %v1551 = vpack.c.b16 %v1267, %v1263
    %v1552 = vpack.c.b16 %v1268, %v1264
    %v1553 = vpack.c.b16 %v1273, %v1269
    %v1554 = vpack.c.b16 %v1274, %v1270
    %v1555 = vpack.c.b16 %v1275, %v1271
    %v1556 = vpack.c.b16 %v1276, %v1272
    %v1557 = vpack.c.b16 %v1281, %v1277
    %v1558 = vpack.c.b16 %v1282, %v1278
    %v1559 = vpack.c.b16 %v1283, %v1279
    %v1560 = vpack.c.b16 %v1284, %v1280
    %v1561 = vpack.c.b16 %v1289, %v1285
    %v1562 = vpack.c.b16 %v1290, %v1286
    %v1563 = vpack.c.b16 %v1291, %v1287
    %v1564 = vpack.c.b16 %v1292, %v1288
    %v1565 = vpack.c.b16 %v1297, %v1293
    %v1566 = vpack.c.b16 %v1298, %v1294
    %v1567 = vpack.c.b16 %v1299, %v1295
    %v1568 = vpack.c.b16 %v1300, %v1296
    %v1569 = vpack.c.b16 %v1305, %v1301
    %v1570 = vpack.c.b16 %v1306, %v1302
    %v1571 = vpack.c.b16 %v1307, %v1303
    %v1572 = vpack.c.b16 %v1308, %v1304
    %v1573 = vpack.c.b16 %v1313, %v1309
    %v1574 = vpack.c.b16 %v1314, %v1310
    %v1575 = vpack.c.b16 %v1315, %v1311
    %v1576 = vpack.c.b16 %v1316, %v1312
    %v1577 = vpack.c.b16 %v1321, %v1317
    %v1578 = vpack.c.b16 %v1322, %v1318
    %v1579 = vpack.c.b16 %v1323, %v1319
    %v1580 = vpack.c.b16 %v1324, %v1320
    %v1581 = vpack.c.b16 %v1329, %v1325
    %v1582 = vpack.c.b16 %v1330, %v1326
    %v1583 = vpack.c.b16 %v1331, %v1327
    %v1584 = vpack.c.b16 %v1332, %v1328
    %v1585 = vpack.c.b16 %v1337, %v1333
    %v1586 = vpack.c.b16 %v1338, %v1334
    %v1587 = vpack.c.b16 %v1339, %v1335
    %v1588 = vpack.c.b16 %v1340, %v1336
    %v1589 = vpack.c.b16 %v1345, %v1341
    %v1590 = vpack.c.b16 %v1346, %v1342
    %v1591 = vpack.c.b16 %v1347, %v1343
    %v1592 = vpack.c.b16 %v1348, %v1344
    %v1593 = vpack.c.b16 %v1353, %v1349
    %v1594 = vpack.c.b16 %v1354, %v1350
    %v1595 = vpack.c.b16 %v1355, %v1351
    %v1596 = vpack.c.b16 %v1356, %v1352
    %v1597 = vpack.c.b16 %v1361, %v1357
    %v1598 = vpack.c.b16 %v1362, %v1358
    %v1599 = vpack.c.b16 %v1363, %v1359
    %v1600 = vpack.c.b16 %v1364, %v1360
    %v1601 = vpack.c.b16 %v1369, %v1365
    %v1602 = vpack.c.b16 %v1370, %v1366
    %v1603 = vpack.c.b16 %v1371, %v1367
    %v1604 = vpack.c.b16 %v1372, %v1368
    %v1605 = vpack.c.b16 %v1377, %v1373
    %v1606 = vpack.c.b16 %v1378, %v1374
    %v1607 = vpack.c.b16 %v1379, %v1375
    %v1608 = vpack.c.b16 %v1380, %v1376
    %v1609 = vpack.c.b16 %v1385, %v1381
    %v1610 = vpack.c.b16 %v1386, %v1382
    %v1611 = vpack.c.b16 %v1387, %v1383
    %v1612 = vpack.c.b16 %v1388, %v1384
    %v1613 = vpack.c.b16 %v1393, %v1389
    %v1614 = vpack.c.b16 %v1394, %v1390
    %v1615 = vpack.c.b16 %v1395, %v1391
    %v1616 = vpack.c.b16 %v1396, %v1392
    %v1617 = vpack.c.b16 %v1401, %v1397
    %v1618 = vpack.c.b16 %v1402, %v1398
    %v1619 = vpack.c.b16 %v1403, %v1399
    %v1620 = vpack.c.b16 %v1404, %v1400
    %v1621 = vpack.c.b16 %v1409, %v1405
    %v1622 = vpack.c.b16 %v1410, %v1406
    %v1623 = vpack.c.b16 %v1411, %v1407
    %v1624 = vpack.c.b16 %v1412, %v1408
    %v1625 = vpack.c.b16 %v1417, %v1413
    %v1626 = vpack.c.b16 %v1418, %v1414
    %v1627 = vpack.c.b16 %v1419, %v1415
    %v1628 = vpack.c.b16 %v1420, %v1416
    %v1629 = vpack.c.b16 %v1425, %v1421
    %v1630 = vpack.c.b16 %v1426, %v1422
    %v1631 = vpack.c.b16 %v1427, %v1423
    %v1632 = vpack.c.b16 %v1428, %v1424
    %v1633 = vpack.c.b16 %v1433, %v1429
    %v1634 = vpack.c.b16 %v1434, %v1430
    %v1635 = vpack.c.b16 %v1435, %v1431
    %v1636 = vpack.c.b16 %v1436, %v1432
    %v1637 = vpack.c.b16 %v1441, %v1437
    %v1638 = vpack.c.b16 %v1442, %v1438
    %v1639 = vpack.c.b16 %v1443, %v1439
    %v1640 = vpack.c.b16 %v1444, %v1440
    %v1641 = vpack.c.b16 %v1449, %v1445
    %v1642 = vpack.c.b16 %v1450, %v1446
    %v1643 = vpack.c.b16 %v1451, %v1447
    %v1644 = vpack.c.b16 %v1452, %v1448
    %1837 = vmatprep.subr.bf16.mxu0 %v1482
    %1838 = vmatpush1.bf16.msra.mxu0 %v1481
    %1839 = vmatprep.subr.bf16.mxu0 %v1478
    %1840 = vmatpush1.bf16.msra.mxu0 %v1477
    %1841 = vmatprep.subr.bf16.mxu0 %v1474
    %1842 = vmatpush1.bf16.msra.mxu0 %v1473
    %1843 = vmatprep.subr.bf16.mxu0 %v1470
    %1844 = vmatpush1.bf16.msra.mxu0 %v1469
    %1845 = vmatprep.subr.bf16.mxu0 %v1466
    %1846 = vmatpush1.bf16.msra.mxu0 %v1465
    %1847 = vmatprep.subr.bf16.mxu0 %v1462
    %1848 = vmatpush1.bf16.msra.mxu0 %v1461
    %1849 = vmatprep.subr.bf16.mxu0 %v1458
    %1850 = vmatpush1.bf16.msra.mxu0 %v1457
    %1851 = vmatprep.subr.bf16.mxu0 %v1454
    %1852 = vmatpush1.bf16.msra.mxu0 %v1453
    %1853 = vmatprep.subr.bf16.mxu0 %v1514
    %1854 = vmatpush2.bf16.msra.mxu0 %v1513
    %1855 = vmatprep.subr.bf16.mxu0 %v1510
    %1856 = vmatpush2.bf16.msra.mxu0 %v1509
    %1857 = vmatprep.subr.bf16.mxu0 %v1506
    %1858 = vmatpush2.bf16.msra.mxu0 %v1505
    %1859 = vmatprep.subr.bf16.mxu0 %v1502
    %1860 = vmatpush2.bf16.msra.mxu0 %v1501
    %1861 = vmatprep.subr.bf16.mxu0 %v1498
    %1862 = vmatpush2.bf16.msra.mxu0 %v1497
    %1863 = vmatprep.subr.bf16.mxu0 %v1494
    %1864 = vmatpush2.bf16.msra.mxu0 %v1493
    %1865 = vmatprep.subr.bf16.mxu0 %v1490
    %1866 = vmatpush2.bf16.msra.mxu0 %v1489
    %1867 = vmatprep.subr.bf16.mxu0 %v1486
    %1868 = vmatpush2.bf16.msra.mxu0 %v1485
    %1869 = vmatprep.mubr.bf16.mxu0 %v686
    %1870 = vmatmul.mubr.bf16.gmra.mxu0 %v685
    %v1871 = vpop.f32.mrf.mxu0
    %v1872 = vadd.f32 %v380, %v1871
    %v1873 = vpop.f32.mrf.mxu0
    %v1874 = vadd.f32 %v384, %v1873
    %v1875 = vpop.f32.mrf.mxu0
    %v1876 = vadd.f32 %v380, %v1875
    %v1877 = vpop.f32.mrf.mxu0
    %v1878 = vadd.f32 %v384, %v1877
    %1879 = vmatprep.mubr.bf16.mxu0 %v692
    %1880 = vmatmul.mubr.bf16.gmra.mxu0 %v691
    %v1881 = vpop.f32.mrf.mxu0
    %v1882 = vadd.f32 %v380, %v1881
    %v1883 = vpop.f32.mrf.mxu0
    %v1884 = vadd.f32 %v384, %v1883
    %v1885 = vpop.f32.mrf.mxu0
    %v1886 = vadd.f32 %v380, %v1885
    %v1887 = vpop.f32.mrf.mxu0
    %v1888 = vadd.f32 %v384, %v1887
    %1889 = vmatprep.mubr.bf16.mxu0 %v698
    %1890 = vmatmul.mubr.bf16.gmra.mxu0 %v697
    %v1891 = vpop.f32.mrf.mxu0
    %v1892 = vadd.f32 %v380, %v1891
    %v1893 = vpop.f32.mrf.mxu0
    %v1894 = vadd.f32 %v384, %v1893
    %v1895 = vpop.f32.mrf.mxu0
    %v1896 = vadd.f32 %v380, %v1895
    %v1897 = vpop.f32.mrf.mxu0
    %v1898 = vadd.f32 %v384, %v1897
    %1899 = vmatprep.mubr.bf16.mxu0 %v704
    %1900 = vmatmul.mubr.bf16.gmra.mxu0 %v703
    %v1901 = vpop.f32.mrf.mxu0
    %v1902 = vadd.f32 %v380, %v1901
    %v1903 = vpop.f32.mrf.mxu0
    %v1904 = vadd.f32 %v384, %v1903
    %v1905 = vpop.f32.mrf.mxu0
    %v1906 = vadd.f32 %v380, %v1905
    %v1907 = vpop.f32.mrf.mxu0
    %v1908 = vadd.f32 %v384, %v1907
    %1909 = vmatprep.mubr.bf16.mxu0 %v710
    %1910 = vmatmul.mubr.bf16.gmra.mxu0 %v709
    %v1911 = vpop.f32.mrf.mxu0
    %v1912 = vadd.f32 %v380, %v1911
    %v1913 = vpop.f32.mrf.mxu0
    %v1914 = vadd.f32 %v384, %v1913
    %v1915 = vpop.f32.mrf.mxu0
    %v1916 = vadd.f32 %v380, %v1915
    %v1917 = vpop.f32.mrf.mxu0
    %v1918 = vadd.f32 %v384, %v1917
    %1919 = vmatprep.mubr.bf16.mxu0 %v716
    %1920 = vmatmul.mubr.bf16.gmra.mxu0 %v715
    %v1921 = vpop.f32.mrf.mxu0
    %v1922 = vadd.f32 %v380, %v1921
    %v1923 = vpop.f32.mrf.mxu0
    %v1924 = vadd.f32 %v384, %v1923
    %v1925 = vpop.f32.mrf.mxu0
    %v1926 = vadd.f32 %v380, %v1925
    %v1927 = vpop.f32.mrf.mxu0
    %v1928 = vadd.f32 %v384, %v1927
    %1929 = vmatprep.mubr.bf16.mxu0 %v722
    %1930 = vmatmul.mubr.bf16.gmra.mxu0 %v721
    %v1931 = vpop.f32.mrf.mxu0
    %v1932 = vadd.f32 %v380, %v1931
    %v1933 = vpop.f32.mrf.mxu0
    %v1934 = vadd.f32 %v384, %v1933
    %v1935 = vpop.f32.mrf.mxu0
    %v1936 = vadd.f32 %v380, %v1935
    %v1937 = vpop.f32.mrf.mxu0
    %v1938 = vadd.f32 %v384, %v1937
    %1939 = vmatprep.mubr.bf16.mxu0 %v728
    %1940 = vmatmul.mubr.bf16.gmra.mxu0 %v727
    %v1941 = vpop.f32.mrf.mxu0
    %v1942 = vadd.f32 %v380, %v1941
    %v1943 = vpop.f32.mrf.mxu0
    %v1944 = vadd.f32 %v384, %v1943
    %v1945 = vpop.f32.mrf.mxu0
    %v1946 = vadd.f32 %v380, %v1945
    %v1947 = vpop.f32.mrf.mxu0
    %v1948 = vadd.f32 %v384, %v1947
    %1949 = vmatprep.mubr.bf16.mxu0 %v734
    %1950 = vmatmul.mubr.bf16.gmra.mxu0 %v733
    %v1951 = vpop.f32.mrf.mxu0
    %v1952 = vadd.f32 %v380, %v1951
    %v1953 = vpop.f32.mrf.mxu0
    %v1954 = vadd.f32 %v384, %v1953
    %v1955 = vpop.f32.mrf.mxu0
    %v1956 = vadd.f32 %v380, %v1955
    %v1957 = vpop.f32.mrf.mxu0
    %v1958 = vadd.f32 %v384, %v1957
    %1959 = vmatprep.mubr.bf16.mxu0 %v740
    %1960 = vmatmul.mubr.bf16.gmra.mxu0 %v739
    %v1961 = vpop.f32.mrf.mxu0
    %v1962 = vadd.f32 %v380, %v1961
    %v1963 = vpop.f32.mrf.mxu0
    %v1964 = vadd.f32 %v384, %v1963
    %v1965 = vpop.f32.mrf.mxu0
    %v1966 = vadd.f32 %v380, %v1965
    %v1967 = vpop.f32.mrf.mxu0
    %v1968 = vadd.f32 %v384, %v1967
    %1969 = vmatprep.mubr.bf16.mxu0 %v746
    %1970 = vmatmul.mubr.bf16.gmra.mxu0 %v745
    %v1971 = vpop.f32.mrf.mxu0
    %v1972 = vadd.f32 %v380, %v1971
    %v1973 = vpop.f32.mrf.mxu0
    %v1974 = vadd.f32 %v384, %v1973
    %v1975 = vpop.f32.mrf.mxu0
    %v1976 = vadd.f32 %v380, %v1975
    %v1977 = vpop.f32.mrf.mxu0
    %v1978 = vadd.f32 %v384, %v1977
    %1979 = vmatprep.mubr.bf16.mxu0 %v752
    %1980 = vmatmul.mubr.bf16.gmra.mxu0 %v751
    %v1981 = vpop.f32.mrf.mxu0
    %v1982 = vadd.f32 %v380, %v1981
    %v1983 = vpop.f32.mrf.mxu0
    %v1984 = vadd.f32 %v384, %v1983
    %v1985 = vpop.f32.mrf.mxu0
    %v1986 = vadd.f32 %v380, %v1985
    %v1987 = vpop.f32.mrf.mxu0
    %v1988 = vadd.f32 %v384, %v1987
    %1989 = vmatprep.mubr.bf16.mxu0 %v758
    %1990 = vmatmul.mubr.bf16.gmra.mxu0 %v757
    %v1991 = vpop.f32.mrf.mxu0
    %v1992 = vadd.f32 %v380, %v1991
    %v1993 = vpop.f32.mrf.mxu0
    %v1994 = vadd.f32 %v384, %v1993
    %v1995 = vpop.f32.mrf.mxu0
    %v1996 = vadd.f32 %v380, %v1995
    %v1997 = vpop.f32.mrf.mxu0
    %v1998 = vadd.f32 %v384, %v1997
    %1999 = vmatprep.mubr.bf16.mxu0 %v764
    %2000 = vmatmul.mubr.bf16.gmra.mxu0 %v763
    %v2001 = vpop.f32.mrf.mxu0
    %v2002 = vadd.f32 %v380, %v2001
    %v2003 = vpop.f32.mrf.mxu0
    %v2004 = vadd.f32 %v384, %v2003
    %v2005 = vpop.f32.mrf.mxu0
    %v2006 = vadd.f32 %v380, %v2005
    %v2007 = vpop.f32.mrf.mxu0
    %v2008 = vadd.f32 %v384, %v2007
    %2009 = vmatprep.mubr.bf16.mxu0 %v770
    %2010 = vmatmul.mubr.bf16.gmra.mxu0 %v769
    %v2011 = vpop.f32.mrf.mxu0
    %v2012 = vadd.f32 %v380, %v2011
    %v2013 = vpop.f32.mrf.mxu0
    %v2014 = vadd.f32 %v384, %v2013
    %v2015 = vpop.f32.mrf.mxu0
    %v2016 = vadd.f32 %v380, %v2015
    %v2017 = vpop.f32.mrf.mxu0
    %v2018 = vadd.f32 %v384, %v2017
    %2019 = vmatprep.mubr.bf16.mxu0 %v776
    %2020 = vmatmul.mubr.bf16.gmra.mxu0 %v775
    %v2021 = vpop.f32.mrf.mxu0
    %v2022 = vadd.f32 %v380, %v2021
    %v2023 = vpop.f32.mrf.mxu0
    %v2024 = vadd.f32 %v384, %v2023
    %v2025 = vpop.f32.mrf.mxu0
    %v2026 = vadd.f32 %v380, %v2025
    %v2027 = vpop.f32.mrf.mxu0
    %v2028 = vadd.f32 %v384, %v2027
    %2029 = vdwg.mxu0
    %2030 = vmatprep.subr.bf16.mxu0 %v1546
    %2031 = vmatpush1.bf16.msra.mxu0 %v1545
    %2032 = vmatprep.subr.bf16.mxu0 %v1542
    %2033 = vmatpush1.bf16.msra.mxu0 %v1541
    %2034 = vmatprep.subr.bf16.mxu0 %v1538
    %2035 = vmatpush1.bf16.msra.mxu0 %v1537
    %2036 = vmatprep.subr.bf16.mxu0 %v1534
    %2037 = vmatpush1.bf16.msra.mxu0 %v1533
    %2038 = vmatprep.subr.bf16.mxu0 %v1530
    %2039 = vmatpush1.bf16.msra.mxu0 %v1529
    %2040 = vmatprep.subr.bf16.mxu0 %v1526
    %2041 = vmatpush1.bf16.msra.mxu0 %v1525
    %2042 = vmatprep.subr.bf16.mxu0 %v1522
    %2043 = vmatpush1.bf16.msra.mxu0 %v1521
    %2044 = vmatprep.subr.bf16.mxu0 %v1518
    %2045 = vmatpush1.bf16.msra.mxu0 %v1517
    %2046 = vmatprep.subr.bf16.mxu0 %v1578
    %2047 = vmatpush2.bf16.msra.mxu0 %v1577
    %2048 = vmatprep.subr.bf16.mxu0 %v1574
    %2049 = vmatpush2.bf16.msra.mxu0 %v1573
    %2050 = vmatprep.subr.bf16.mxu0 %v1570
    %2051 = vmatpush2.bf16.msra.mxu0 %v1569
    %2052 = vmatprep.subr.bf16.mxu0 %v1566
    %2053 = vmatpush2.bf16.msra.mxu0 %v1565
    %2054 = vmatprep.subr.bf16.mxu0 %v1562
    %2055 = vmatpush2.bf16.msra.mxu0 %v1561
    %2056 = vmatprep.subr.bf16.mxu0 %v1558
    %2057 = vmatpush2.bf16.msra.mxu0 %v1557
    %2058 = vmatprep.subr.bf16.mxu0 %v1554
    %2059 = vmatpush2.bf16.msra.mxu0 %v1553
    %2060 = vmatprep.subr.bf16.mxu0 %v1550
    %2061 = vmatpush2.bf16.msra.mxu0 %v1549
    %2062 = vmatprep.mubr.bf16.mxu0 %v688
    %2063 = vmatmul.mubr.bf16.gmra.mxu0 %v687
    %v2064 = vpop.f32.mrf.mxu0
    %v2065 = vadd.f32 %v1872, %v2064
    %v2066 = vpop.f32.mrf.mxu0
    %v2067 = vadd.f32 %v1874, %v2066
    %v2068 = vpop.f32.mrf.mxu0
    %v2069 = vadd.f32 %v1876, %v2068
    %v2070 = vpop.f32.mrf.mxu0
    %v2071 = vadd.f32 %v1878, %v2070
    %2072 = vmatprep.mubr.bf16.mxu0 %v694
    %2073 = vmatmul.mubr.bf16.gmra.mxu0 %v693
    %v2074 = vpop.f32.mrf.mxu0
    %v2075 = vadd.f32 %v1882, %v2074
    %v2076 = vpop.f32.mrf.mxu0
    %v2077 = vadd.f32 %v1884, %v2076
    %v2078 = vpop.f32.mrf.mxu0
    %v2079 = vadd.f32 %v1886, %v2078
    %v2080 = vpop.f32.mrf.mxu0
    %v2081 = vadd.f32 %v1888, %v2080
    %2082 = vmatprep.mubr.bf16.mxu0 %v700
    %2083 = vmatmul.mubr.bf16.gmra.mxu0 %v699
    %v2084 = vpop.f32.mrf.mxu0
    %v2085 = vadd.f32 %v1892, %v2084
    %v2086 = vpop.f32.mrf.mxu0
    %v2087 = vadd.f32 %v1894, %v2086
    %v2088 = vpop.f32.mrf.mxu0
    %v2089 = vadd.f32 %v1896, %v2088
    %v2090 = vpop.f32.mrf.mxu0
    %v2091 = vadd.f32 %v1898, %v2090
    %2092 = vmatprep.mubr.bf16.mxu0 %v706
    %2093 = vmatmul.mubr.bf16.gmra.mxu0 %v705
    %v2094 = vpop.f32.mrf.mxu0
    %v2095 = vadd.f32 %v1902, %v2094
    %v2096 = vpop.f32.mrf.mxu0
    %v2097 = vadd.f32 %v1904, %v2096
    %v2098 = vpop.f32.mrf.mxu0
    %v2099 = vadd.f32 %v1906, %v2098
    %v2100 = vpop.f32.mrf.mxu0
    %v2101 = vadd.f32 %v1908, %v2100
    %2102 = vmatprep.mubr.bf16.mxu0 %v712
    %2103 = vmatmul.mubr.bf16.gmra.mxu0 %v711
    %v2104 = vpop.f32.mrf.mxu0
    %v2105 = vadd.f32 %v1912, %v2104
    %v2106 = vpop.f32.mrf.mxu0
    %v2107 = vadd.f32 %v1914, %v2106
    %v2108 = vpop.f32.mrf.mxu0
    %v2109 = vadd.f32 %v1916, %v2108
    %v2110 = vpop.f32.mrf.mxu0
    %v2111 = vadd.f32 %v1918, %v2110
    %2112 = vmatprep.mubr.bf16.mxu0 %v718
    %2113 = vmatmul.mubr.bf16.gmra.mxu0 %v717
    %v2114 = vpop.f32.mrf.mxu0
    %v2115 = vadd.f32 %v1922, %v2114
    %v2116 = vpop.f32.mrf.mxu0
    %v2117 = vadd.f32 %v1924, %v2116
    %v2118 = vpop.f32.mrf.mxu0
    %v2119 = vadd.f32 %v1926, %v2118
    %v2120 = vpop.f32.mrf.mxu0
    %v2121 = vadd.f32 %v1928, %v2120
    %2122 = vmatprep.mubr.bf16.mxu0 %v724
    %2123 = vmatmul.mubr.bf16.gmra.mxu0 %v723
    %v2124 = vpop.f32.mrf.mxu0
    %v2125 = vadd.f32 %v1932, %v2124
    %v2126 = vpop.f32.mrf.mxu0
    %v2127 = vadd.f32 %v1934, %v2126
    %v2128 = vpop.f32.mrf.mxu0
    %v2129 = vadd.f32 %v1936, %v2128
    %v2130 = vpop.f32.mrf.mxu0
    %v2131 = vadd.f32 %v1938, %v2130
    %2132 = vmatprep.mubr.bf16.mxu0 %v730
    %2133 = vmatmul.mubr.bf16.gmra.mxu0 %v729
    %v2134 = vpop.f32.mrf.mxu0
    %v2135 = vadd.f32 %v1942, %v2134
    %v2136 = vpop.f32.mrf.mxu0
    %v2137 = vadd.f32 %v1944, %v2136
    %v2138 = vpop.f32.mrf.mxu0
    %v2139 = vadd.f32 %v1946, %v2138
    %v2140 = vpop.f32.mrf.mxu0
    %v2141 = vadd.f32 %v1948, %v2140
    %2142 = vmatprep.mubr.bf16.mxu0 %v736
    %2143 = vmatmul.mubr.bf16.gmra.mxu0 %v735
    %v2144 = vpop.f32.mrf.mxu0
    %v2145 = vadd.f32 %v1952, %v2144
    %v2146 = vpop.f32.mrf.mxu0
    %v2147 = vadd.f32 %v1954, %v2146
    %v2148 = vpop.f32.mrf.mxu0
    %v2149 = vadd.f32 %v1956, %v2148
    %v2150 = vpop.f32.mrf.mxu0
    %v2151 = vadd.f32 %v1958, %v2150
    %2152 = vmatprep.mubr.bf16.mxu0 %v742
    %2153 = vmatmul.mubr.bf16.gmra.mxu0 %v741
    %v2154 = vpop.f32.mrf.mxu0
    %v2155 = vadd.f32 %v1962, %v2154
    %v2156 = vpop.f32.mrf.mxu0
    %v2157 = vadd.f32 %v1964, %v2156
    %v2158 = vpop.f32.mrf.mxu0
    %v2159 = vadd.f32 %v1966, %v2158
    %v2160 = vpop.f32.mrf.mxu0
    %v2161 = vadd.f32 %v1968, %v2160
    %2162 = vmatprep.mubr.bf16.mxu0 %v748
    %2163 = vmatmul.mubr.bf16.gmra.mxu0 %v747
    %v2164 = vpop.f32.mrf.mxu0
    %v2165 = vadd.f32 %v1972, %v2164
    %v2166 = vpop.f32.mrf.mxu0
    %v2167 = vadd.f32 %v1974, %v2166
    %v2168 = vpop.f32.mrf.mxu0
    %v2169 = vadd.f32 %v1976, %v2168
    %v2170 = vpop.f32.mrf.mxu0
    %v2171 = vadd.f32 %v1978, %v2170
    %2172 = vmatprep.mubr.bf16.mxu0 %v754
    %2173 = vmatmul.mubr.bf16.gmra.mxu0 %v753
    %v2174 = vpop.f32.mrf.mxu0
    %v2175 = vadd.f32 %v1982, %v2174
    %v2176 = vpop.f32.mrf.mxu0
    %v2177 = vadd.f32 %v1984, %v2176
    %v2178 = vpop.f32.mrf.mxu0
    %v2179 = vadd.f32 %v1986, %v2178
    %v2180 = vpop.f32.mrf.mxu0
    %v2181 = vadd.f32 %v1988, %v2180
    %2182 = vmatprep.mubr.bf16.mxu0 %v760
    %2183 = vmatmul.mubr.bf16.gmra.mxu0 %v759
    %v2184 = vpop.f32.mrf.mxu0
    %v2185 = vadd.f32 %v1992, %v2184
    %v2186 = vpop.f32.mrf.mxu0
    %v2187 = vadd.f32 %v1994, %v2186
    %v2188 = vpop.f32.mrf.mxu0
    %v2189 = vadd.f32 %v1996, %v2188
    %v2190 = vpop.f32.mrf.mxu0
    %v2191 = vadd.f32 %v1998, %v2190
    %2192 = vmatprep.mubr.bf16.mxu0 %v766
    %2193 = vmatmul.mubr.bf16.gmra.mxu0 %v765
    %v2194 = vpop.f32.mrf.mxu0
    %v2195 = vadd.f32 %v2002, %v2194
    %v2196 = vpop.f32.mrf.mxu0
    %v2197 = vadd.f32 %v2004, %v2196
    %v2198 = vpop.f32.mrf.mxu0
    %v2199 = vadd.f32 %v2006, %v2198
    %v2200 = vpop.f32.mrf.mxu0
    %v2201 = vadd.f32 %v2008, %v2200
    %2202 = vmatprep.mubr.bf16.mxu0 %v772
    %2203 = vmatmul.mubr.bf16.gmra.mxu0 %v771
    %v2204 = vpop.f32.mrf.mxu0
    %v2205 = vadd.f32 %v2012, %v2204
    %v2206 = vpop.f32.mrf.mxu0
    %v2207 = vadd.f32 %v2014, %v2206
    %v2208 = vpop.f32.mrf.mxu0
    %v2209 = vadd.f32 %v2016, %v2208
    %v2210 = vpop.f32.mrf.mxu0
    %v2211 = vadd.f32 %v2018, %v2210
    %2212 = vmatprep.mubr.bf16.mxu0 %v778
    %2213 = vmatmul.mubr.bf16.gmra.mxu0 %v777
    %v2214 = vpop.f32.mrf.mxu0
    %v2215 = vadd.f32 %v2022, %v2214
    %v2216 = vpop.f32.mrf.mxu0
    %v2217 = vadd.f32 %v2024, %v2216
    %v2218 = vpop.f32.mrf.mxu0
    %v2219 = vadd.f32 %v2026, %v2218
    %v2220 = vpop.f32.mrf.mxu0
    %v2221 = vadd.f32 %v2028, %v2220
    %2222 = vdwg.mxu0
    %2223 = vmatprep.subr.bf16.mxu0 %v1610
    %2224 = vmatpush1.bf16.msra.mxu0 %v1609
    %2225 = vmatprep.subr.bf16.mxu0 %v1606
    %2226 = vmatpush1.bf16.msra.mxu0 %v1605
    %2227 = vmatprep.subr.bf16.mxu0 %v1602
    %2228 = vmatpush1.bf16.msra.mxu0 %v1601
    %2229 = vmatprep.subr.bf16.mxu0 %v1598
    %2230 = vmatpush1.bf16.msra.mxu0 %v1597
    %2231 = vmatprep.subr.bf16.mxu0 %v1594
    %2232 = vmatpush1.bf16.msra.mxu0 %v1593
    %2233 = vmatprep.subr.bf16.mxu0 %v1590
    %2234 = vmatpush1.bf16.msra.mxu0 %v1589
    %2235 = vmatprep.subr.bf16.mxu0 %v1586
    %2236 = vmatpush1.bf16.msra.mxu0 %v1585
    %2237 = vmatprep.subr.bf16.mxu0 %v1582
    %2238 = vmatpush1.bf16.msra.mxu0 %v1581
    %2239 = vmatprep.subr.bf16.mxu0 %v1642
    %2240 = vmatpush2.bf16.msra.mxu0 %v1641
    %2241 = vmatprep.subr.bf16.mxu0 %v1638
    %2242 = vmatpush2.bf16.msra.mxu0 %v1637
    %2243 = vmatprep.subr.bf16.mxu0 %v1634
    %2244 = vmatpush2.bf16.msra.mxu0 %v1633
    %2245 = vmatprep.subr.bf16.mxu0 %v1630
    %2246 = vmatpush2.bf16.msra.mxu0 %v1629
    %2247 = vmatprep.subr.bf16.mxu0 %v1626
    %2248 = vmatpush2.bf16.msra.mxu0 %v1625
    %2249 = vmatprep.subr.bf16.mxu0 %v1622
    %2250 = vmatpush2.bf16.msra.mxu0 %v1621
    %2251 = vmatprep.subr.bf16.mxu0 %v1618
    %2252 = vmatpush2.bf16.msra.mxu0 %v1617
    %2253 = vmatprep.subr.bf16.mxu0 %v1614
    %2254 = vmatpush2.bf16.msra.mxu0 %v1613
    %2255 = vmatprep.mubr.bf16.mxu0 %v690
    %2256 = vmatmul.mubr.bf16.gmra.mxu0 %v689
    %v2257 = vpop.f32.mrf.mxu0
    %v2258 = vadd.f32 %v2065, %v2257
    %v2259 = vpop.f32.mrf.mxu0
    %v2260 = vadd.f32 %v2067, %v2259
    %v2261 = vpop.f32.mrf.mxu0
    %v2262 = vadd.f32 %v2069, %v2261
    %v2263 = vpop.f32.mrf.mxu0
    %v2264 = vadd.f32 %v2071, %v2263
    %2265 = vmatprep.mubr.bf16.mxu0 %v696
    %2266 = vmatmul.mubr.bf16.gmra.mxu0 %v695
    %v2267 = vpop.f32.mrf.mxu0
    %v2268 = vadd.f32 %v2075, %v2267
    %v2269 = vpop.f32.mrf.mxu0
    %v2270 = vadd.f32 %v2077, %v2269
    %v2271 = vpop.f32.mrf.mxu0
    %v2272 = vadd.f32 %v2079, %v2271
    %v2273 = vpop.f32.mrf.mxu0
    %v2274 = vadd.f32 %v2081, %v2273
    %2275 = vmatprep.mubr.bf16.mxu0 %v702
    %2276 = vmatmul.mubr.bf16.gmra.mxu0 %v701
    %v2277 = vpop.f32.mrf.mxu0
    %v2278 = vadd.f32 %v2085, %v2277
    %v2279 = vpop.f32.mrf.mxu0
    %v2280 = vadd.f32 %v2087, %v2279
    %v2281 = vpop.f32.mrf.mxu0
    %v2282 = vadd.f32 %v2089, %v2281
    %v2283 = vpop.f32.mrf.mxu0
    %v2284 = vadd.f32 %v2091, %v2283
    %2285 = vmatprep.mubr.bf16.mxu0 %v708
    %2286 = vmatmul.mubr.bf16.gmra.mxu0 %v707
    %v2287 = vpop.f32.mrf.mxu0
    %v2288 = vadd.f32 %v2095, %v2287
    %v2289 = vpop.f32.mrf.mxu0
    %v2290 = vadd.f32 %v2097, %v2289
    %v2291 = vpop.f32.mrf.mxu0
    %v2292 = vadd.f32 %v2099, %v2291
    %v2293 = vpop.f32.mrf.mxu0
    %v2294 = vadd.f32 %v2101, %v2293
    %2295 = vmatprep.mubr.bf16.mxu0 %v714
    %2296 = vmatmul.mubr.bf16.gmra.mxu0 %v713
    %v2297 = vpop.f32.mrf.mxu0
    %v2298 = vadd.f32 %v2105, %v2297
    %v2299 = vpop.f32.mrf.mxu0
    %v2300 = vadd.f32 %v2107, %v2299
    %v2301 = vpop.f32.mrf.mxu0
    %v2302 = vadd.f32 %v2109, %v2301
    %v2303 = vpop.f32.mrf.mxu0
    %v2304 = vadd.f32 %v2111, %v2303
    %2305 = vmatprep.mubr.bf16.mxu0 %v720
    %2306 = vmatmul.mubr.bf16.gmra.mxu0 %v719
    %v2307 = vpop.f32.mrf.mxu0
    %v2308 = vadd.f32 %v2115, %v2307
    %v2309 = vpop.f32.mrf.mxu0
    %v2310 = vadd.f32 %v2117, %v2309
    %v2311 = vpop.f32.mrf.mxu0
    %v2312 = vadd.f32 %v2119, %v2311
    %v2313 = vpop.f32.mrf.mxu0
    %v2314 = vadd.f32 %v2121, %v2313
    %2315 = vmatprep.mubr.bf16.mxu0 %v726
    %2316 = vmatmul.mubr.bf16.gmra.mxu0 %v725
    %v2317 = vpop.f32.mrf.mxu0
    %v2318 = vadd.f32 %v2125, %v2317
    %v2319 = vpop.f32.mrf.mxu0
    %v2320 = vadd.f32 %v2127, %v2319
    %v2321 = vpop.f32.mrf.mxu0
    %v2322 = vadd.f32 %v2129, %v2321
    %v2323 = vpop.f32.mrf.mxu0
    %v2324 = vadd.f32 %v2131, %v2323
    %2325 = vmatprep.mubr.bf16.mxu0 %v732
    %2326 = vmatmul.mubr.bf16.gmra.mxu0 %v731
    %v2327 = vpop.f32.mrf.mxu0
    %v2328 = vadd.f32 %v2135, %v2327
    %v2329 = vpop.f32.mrf.mxu0
    %v2330 = vadd.f32 %v2137, %v2329
    %v2331 = vpop.f32.mrf.mxu0
    %v2332 = vadd.f32 %v2139, %v2331
    %v2333 = vpop.f32.mrf.mxu0
    %v2334 = vadd.f32 %v2141, %v2333
    %2335 = vmatprep.mubr.bf16.mxu0 %v738
    %2336 = vmatmul.mubr.bf16.gmra.mxu0 %v737
    %v2337 = vpop.f32.mrf.mxu0
    %v2338 = vadd.f32 %v2145, %v2337
    %v2339 = vpop.f32.mrf.mxu0
    %v2340 = vadd.f32 %v2147, %v2339
    %v2341 = vpop.f32.mrf.mxu0
    %v2342 = vadd.f32 %v2149, %v2341
    %v2343 = vpop.f32.mrf.mxu0
    %v2344 = vadd.f32 %v2151, %v2343
    %2345 = vmatprep.mubr.bf16.mxu0 %v744
    %2346 = vmatmul.mubr.bf16.gmra.mxu0 %v743
    %v2347 = vpop.f32.mrf.mxu0
    %v2348 = vadd.f32 %v2155, %v2347
    %v2349 = vpop.f32.mrf.mxu0
    %v2350 = vadd.f32 %v2157, %v2349
    %v2351 = vpop.f32.mrf.mxu0
    %v2352 = vadd.f32 %v2159, %v2351
    %v2353 = vpop.f32.mrf.mxu0
    %v2354 = vadd.f32 %v2161, %v2353
    %2355 = vmatprep.mubr.bf16.mxu0 %v750
    %2356 = vmatmul.mubr.bf16.gmra.mxu0 %v749
    %v2357 = vpop.f32.mrf.mxu0
    %v2358 = vadd.f32 %v2165, %v2357
    %v2359 = vpop.f32.mrf.mxu0
    %v2360 = vadd.f32 %v2167, %v2359
    %v2361 = vpop.f32.mrf.mxu0
    %v2362 = vadd.f32 %v2169, %v2361
    %v2363 = vpop.f32.mrf.mxu0
    %v2364 = vadd.f32 %v2171, %v2363
    %2365 = vmatprep.mubr.bf16.mxu0 %v756
    %2366 = vmatmul.mubr.bf16.gmra.mxu0 %v755
    %v2367 = vpop.f32.mrf.mxu0
    %v2368 = vadd.f32 %v2175, %v2367
    %v2369 = vpop.f32.mrf.mxu0
    %v2370 = vadd.f32 %v2177, %v2369
    %v2371 = vpop.f32.mrf.mxu0
    %v2372 = vadd.f32 %v2179, %v2371
    %v2373 = vpop.f32.mrf.mxu0
    %v2374 = vadd.f32 %v2181, %v2373
    %2375 = vmatprep.mubr.bf16.mxu0 %v762
    %2376 = vmatmul.mubr.bf16.gmra.mxu0 %v761
    %v2377 = vpop.f32.mrf.mxu0
    %v2378 = vadd.f32 %v2185, %v2377
    %v2379 = vpop.f32.mrf.mxu0
    %v2380 = vadd.f32 %v2187, %v2379
    %v2381 = vpop.f32.mrf.mxu0
    %v2382 = vadd.f32 %v2189, %v2381
    %v2383 = vpop.f32.mrf.mxu0
    %v2384 = vadd.f32 %v2191, %v2383
    %2385 = vmatprep.mubr.bf16.mxu0 %v768
    %2386 = vmatmul.mubr.bf16.gmra.mxu0 %v767
    %v2387 = vpop.f32.mrf.mxu0
    %v2388 = vadd.f32 %v2195, %v2387
    %v2389 = vpop.f32.mrf.mxu0
    %v2390 = vadd.f32 %v2197, %v2389
    %v2391 = vpop.f32.mrf.mxu0
    %v2392 = vadd.f32 %v2199, %v2391
    %v2393 = vpop.f32.mrf.mxu0
    %v2394 = vadd.f32 %v2201, %v2393
    %2395 = vmatprep.mubr.bf16.mxu0 %v774
    %2396 = vmatmul.mubr.bf16.gmra.mxu0 %v773
    %v2397 = vpop.f32.mrf.mxu0
    %v2398 = vadd.f32 %v2205, %v2397
    %v2399 = vpop.f32.mrf.mxu0
    %v2400 = vadd.f32 %v2207, %v2399
    %v2401 = vpop.f32.mrf.mxu0
    %v2402 = vadd.f32 %v2209, %v2401
    %v2403 = vpop.f32.mrf.mxu0
    %v2404 = vadd.f32 %v2211, %v2403
    %2405 = vmatprep.mubr.bf16.mxu0 %v780
    %2406 = vmatmul.mubr.bf16.gmra.mxu0 %v779
    %v2407 = vpop.f32.mrf.mxu0
    %v2408 = vadd.f32 %v2215, %v2407
    %v2409 = vpop.f32.mrf.mxu0
    %v2410 = vadd.f32 %v2217, %v2409
    %v2411 = vpop.f32.mrf.mxu0
    %v2412 = vadd.f32 %v2219, %v2411
    %v2413 = vpop.f32.mrf.mxu0
    %v2414 = vadd.f32 %v2221, %v2413
    %2415 = vdwg.mxu0
    %2416 = vmatprep.subr.bf16.mxu0 %v1484
    %2417 = vmatpush1.bf16.msra.mxu0 %v1483
    %2418 = vmatprep.subr.bf16.mxu0 %v1480
    %2419 = vmatpush1.bf16.msra.mxu0 %v1479
    %2420 = vmatprep.subr.bf16.mxu0 %v1476
    %2421 = vmatpush1.bf16.msra.mxu0 %v1475
    %2422 = vmatprep.subr.bf16.mxu0 %v1472
    %2423 = vmatpush1.bf16.msra.mxu0 %v1471
    %2424 = vmatprep.subr.bf16.mxu0 %v1468
    %2425 = vmatpush1.bf16.msra.mxu0 %v1467
    %2426 = vmatprep.subr.bf16.mxu0 %v1464
    %2427 = vmatpush1.bf16.msra.mxu0 %v1463
    %2428 = vmatprep.subr.bf16.mxu0 %v1460
    %2429 = vmatpush1.bf16.msra.mxu0 %v1459
    %2430 = vmatprep.subr.bf16.mxu0 %v1456
    %2431 = vmatpush1.bf16.msra.mxu0 %v1455
    %2432 = vmatprep.subr.bf16.mxu0 %v1516
    %2433 = vmatpush2.bf16.msra.mxu0 %v1515
    %2434 = vmatprep.subr.bf16.mxu0 %v1512
    %2435 = vmatpush2.bf16.msra.mxu0 %v1511
    %2436 = vmatprep.subr.bf16.mxu0 %v1508
    %2437 = vmatpush2.bf16.msra.mxu0 %v1507
    %2438 = vmatprep.subr.bf16.mxu0 %v1504
    %2439 = vmatpush2.bf16.msra.mxu0 %v1503
    %2440 = vmatprep.subr.bf16.mxu0 %v1500
    %2441 = vmatpush2.bf16.msra.mxu0 %v1499
    %2442 = vmatprep.subr.bf16.mxu0 %v1496
    %2443 = vmatpush2.bf16.msra.mxu0 %v1495
    %2444 = vmatprep.subr.bf16.mxu0 %v1492
    %2445 = vmatpush2.bf16.msra.mxu0 %v1491
    %2446 = vmatprep.subr.bf16.mxu0 %v1488
    %2447 = vmatpush2.bf16.msra.mxu0 %v1487
    %2448 = vmatprep.mubr.bf16.mxu0 %v686
    %2449 = vmatmul.mubr.bf16.gmra.mxu0 %v685
    %v2450 = vpop.f32.mrf.mxu0
    %v2451 = vadd.f32 %v388, %v2450
    %v2452 = vpop.f32.mrf.mxu0
    %v2453 = vadd.f32 %v392, %v2452
    %v2454 = vpop.f32.mrf.mxu0
    %v2455 = vadd.f32 %v388, %v2454
    %v2456 = vpop.f32.mrf.mxu0
    %v2457 = vadd.f32 %v392, %v2456
    %2458 = vmatprep.mubr.bf16.mxu0 %v692
    %2459 = vmatmul.mubr.bf16.gmra.mxu0 %v691
    %v2460 = vpop.f32.mrf.mxu0
    %v2461 = vadd.f32 %v388, %v2460
    %v2462 = vpop.f32.mrf.mxu0
    %v2463 = vadd.f32 %v392, %v2462
    %v2464 = vpop.f32.mrf.mxu0
    %v2465 = vadd.f32 %v388, %v2464
    %v2466 = vpop.f32.mrf.mxu0
    %v2467 = vadd.f32 %v392, %v2466
    %2468 = vmatprep.mubr.bf16.mxu0 %v698
    %2469 = vmatmul.mubr.bf16.gmra.mxu0 %v697
    %v2470 = vpop.f32.mrf.mxu0
    %v2471 = vadd.f32 %v388, %v2470
    %v2472 = vpop.f32.mrf.mxu0
    %v2473 = vadd.f32 %v392, %v2472
    %v2474 = vpop.f32.mrf.mxu0
    %v2475 = vadd.f32 %v388, %v2474
    %v2476 = vpop.f32.mrf.mxu0
    %v2477 = vadd.f32 %v392, %v2476
    %2478 = vmatprep.mubr.bf16.mxu0 %v704
    %2479 = vmatmul.mubr.bf16.gmra.mxu0 %v703
    %v2480 = vpop.f32.mrf.mxu0
    %v2481 = vadd.f32 %v388, %v2480
    %v2482 = vpop.f32.mrf.mxu0
    %v2483 = vadd.f32 %v392, %v2482
    %v2484 = vpop.f32.mrf.mxu0
    %v2485 = vadd.f32 %v388, %v2484
    %v2486 = vpop.f32.mrf.mxu0
    %v2487 = vadd.f32 %v392, %v2486
    %2488 = vmatprep.mubr.bf16.mxu0 %v710
    %2489 = vmatmul.mubr.bf16.gmra.mxu0 %v709
    %v2490 = vpop.f32.mrf.mxu0
    %v2491 = vadd.f32 %v388, %v2490
    %v2492 = vpop.f32.mrf.mxu0
    %v2493 = vadd.f32 %v392, %v2492
    %v2494 = vpop.f32.mrf.mxu0
    %v2495 = vadd.f32 %v388, %v2494
    %v2496 = vpop.f32.mrf.mxu0
    %v2497 = vadd.f32 %v392, %v2496
    %2498 = vmatprep.mubr.bf16.mxu0 %v716
    %2499 = vmatmul.mubr.bf16.gmra.mxu0 %v715
    %v2500 = vpop.f32.mrf.mxu0
    %v2501 = vadd.f32 %v388, %v2500
    %v2502 = vpop.f32.mrf.mxu0
    %v2503 = vadd.f32 %v392, %v2502
    %v2504 = vpop.f32.mrf.mxu0
    %v2505 = vadd.f32 %v388, %v2504
    %v2506 = vpop.f32.mrf.mxu0
    %v2507 = vadd.f32 %v392, %v2506
    %2508 = vmatprep.mubr.bf16.mxu0 %v722
    %2509 = vmatmul.mubr.bf16.gmra.mxu0 %v721
    %v2510 = vpop.f32.mrf.mxu0
    %v2511 = vadd.f32 %v388, %v2510
    %v2512 = vpop.f32.mrf.mxu0
    %v2513 = vadd.f32 %v392, %v2512
    %v2514 = vpop.f32.mrf.mxu0
    %v2515 = vadd.f32 %v388, %v2514
    %v2516 = vpop.f32.mrf.mxu0
    %v2517 = vadd.f32 %v392, %v2516
    %2518 = vmatprep.mubr.bf16.mxu0 %v728
    %2519 = vmatmul.mubr.bf16.gmra.mxu0 %v727
    %v2520 = vpop.f32.mrf.mxu0
    %v2521 = vadd.f32 %v388, %v2520
    %v2522 = vpop.f32.mrf.mxu0
    %v2523 = vadd.f32 %v392, %v2522
    %v2524 = vpop.f32.mrf.mxu0
    %v2525 = vadd.f32 %v388, %v2524
    %v2526 = vpop.f32.mrf.mxu0
    %v2527 = vadd.f32 %v392, %v2526
    %2528 = vmatprep.mubr.bf16.mxu0 %v734
    %2529 = vmatmul.mubr.bf16.gmra.mxu0 %v733
    %v2530 = vpop.f32.mrf.mxu0
    %v2531 = vadd.f32 %v388, %v2530
    %v2532 = vpop.f32.mrf.mxu0
    %v2533 = vadd.f32 %v392, %v2532
    %v2534 = vpop.f32.mrf.mxu0
    %v2535 = vadd.f32 %v388, %v2534
    %v2536 = vpop.f32.mrf.mxu0
    %v2537 = vadd.f32 %v392, %v2536
    %2538 = vmatprep.mubr.bf16.mxu0 %v740
    %2539 = vmatmul.mubr.bf16.gmra.mxu0 %v739
    %v2540 = vpop.f32.mrf.mxu0
    %v2541 = vadd.f32 %v388, %v2540
    %v2542 = vpop.f32.mrf.mxu0
    %v2543 = vadd.f32 %v392, %v2542
    %v2544 = vpop.f32.mrf.mxu0
    %v2545 = vadd.f32 %v388, %v2544
    %v2546 = vpop.f32.mrf.mxu0
    %v2547 = vadd.f32 %v392, %v2546
    %2548 = vmatprep.mubr.bf16.mxu0 %v746
    %2549 = vmatmul.mubr.bf16.gmra.mxu0 %v745
    %v2550 = vpop.f32.mrf.mxu0
    %v2551 = vadd.f32 %v388, %v2550
    %v2552 = vpop.f32.mrf.mxu0
    %v2553 = vadd.f32 %v392, %v2552
    %v2554 = vpop.f32.mrf.mxu0
    %v2555 = vadd.f32 %v388, %v2554
    %v2556 = vpop.f32.mrf.mxu0
    %v2557 = vadd.f32 %v392, %v2556
    %2558 = vmatprep.mubr.bf16.mxu0 %v752
    %2559 = vmatmul.mubr.bf16.gmra.mxu0 %v751
    %v2560 = vpop.f32.mrf.mxu0
    %v2561 = vadd.f32 %v388, %v2560
    %v2562 = vpop.f32.mrf.mxu0
    %v2563 = vadd.f32 %v392, %v2562
    %v2564 = vpop.f32.mrf.mxu0
    %v2565 = vadd.f32 %v388, %v2564
    %v2566 = vpop.f32.mrf.mxu0
    %v2567 = vadd.f32 %v392, %v2566
    %2568 = vmatprep.mubr.bf16.mxu0 %v758
    %2569 = vmatmul.mubr.bf16.gmra.mxu0 %v757
    %v2570 = vpop.f32.mrf.mxu0
    %v2571 = vadd.f32 %v388, %v2570
    %v2572 = vpop.f32.mrf.mxu0
    %v2573 = vadd.f32 %v392, %v2572
    %v2574 = vpop.f32.mrf.mxu0
    %v2575 = vadd.f32 %v388, %v2574
    %v2576 = vpop.f32.mrf.mxu0
    %v2577 = vadd.f32 %v392, %v2576
    %2578 = vmatprep.mubr.bf16.mxu0 %v764
    %2579 = vmatmul.mubr.bf16.gmra.mxu0 %v763
    %v2580 = vpop.f32.mrf.mxu0
    %v2581 = vadd.f32 %v388, %v2580
    %v2582 = vpop.f32.mrf.mxu0
    %v2583 = vadd.f32 %v392, %v2582
    %v2584 = vpop.f32.mrf.mxu0
    %v2585 = vadd.f32 %v388, %v2584
    %v2586 = vpop.f32.mrf.mxu0
    %v2587 = vadd.f32 %v392, %v2586
    %2588 = vmatprep.mubr.bf16.mxu0 %v770
    %2589 = vmatmul.mubr.bf16.gmra.mxu0 %v769
    %v2590 = vpop.f32.mrf.mxu0
    %v2591 = vadd.f32 %v388, %v2590
    %v2592 = vpop.f32.mrf.mxu0
    %v2593 = vadd.f32 %v392, %v2592
    %v2594 = vpop.f32.mrf.mxu0
    %v2595 = vadd.f32 %v388, %v2594
    %v2596 = vpop.f32.mrf.mxu0
    %v2597 = vadd.f32 %v392, %v2596
    %2598 = vmatprep.mubr.bf16.mxu0 %v776
    %2599 = vmatmul.mubr.bf16.gmra.mxu0 %v775
    %v2600 = vpop.f32.mrf.mxu0
    %v2601 = vadd.f32 %v388, %v2600
    %v2602 = vpop.f32.mrf.mxu0
    %v2603 = vadd.f32 %v392, %v2602
    %v2604 = vpop.f32.mrf.mxu0
    %v2605 = vadd.f32 %v388, %v2604
    %v2606 = vpop.f32.mrf.mxu0
    %v2607 = vadd.f32 %v392, %v2606
    %2608 = vdwg.mxu0
    %2609 = vmatprep.subr.bf16.mxu0 %v1548
    %2610 = vmatpush1.bf16.msra.mxu0 %v1547
    %2611 = vmatprep.subr.bf16.mxu0 %v1544
    %2612 = vmatpush1.bf16.msra.mxu0 %v1543
    %2613 = vmatprep.subr.bf16.mxu0 %v1540
    %2614 = vmatpush1.bf16.msra.mxu0 %v1539
    %2615 = vmatprep.subr.bf16.mxu0 %v1536
    %2616 = vmatpush1.bf16.msra.mxu0 %v1535
    %2617 = vmatprep.subr.bf16.mxu0 %v1532
    %2618 = vmatpush1.bf16.msra.mxu0 %v1531
    %2619 = vmatprep.subr.bf16.mxu0 %v1528
    %2620 = vmatpush1.bf16.msra.mxu0 %v1527
    %2621 = vmatprep.subr.bf16.mxu0 %v1524
    %2622 = vmatpush1.bf16.msra.mxu0 %v1523
    %2623 = vmatprep.subr.bf16.mxu0 %v1520
    %2624 = vmatpush1.bf16.msra.mxu0 %v1519
    %2625 = vmatprep.subr.bf16.mxu0 %v1580
    %2626 = vmatpush2.bf16.msra.mxu0 %v1579
    %2627 = vmatprep.subr.bf16.mxu0 %v1576
    %2628 = vmatpush2.bf16.msra.mxu0 %v1575
    %2629 = vmatprep.subr.bf16.mxu0 %v1572
    %2630 = vmatpush2.bf16.msra.mxu0 %v1571
    %2631 = vmatprep.subr.bf16.mxu0 %v1568
    %2632 = vmatpush2.bf16.msra.mxu0 %v1567
    %2633 = vmatprep.subr.bf16.mxu0 %v1564
    %2634 = vmatpush2.bf16.msra.mxu0 %v1563
    %2635 = vmatprep.subr.bf16.mxu0 %v1560
    %2636 = vmatpush2.bf16.msra.mxu0 %v1559
    %2637 = vmatprep.subr.bf16.mxu0 %v1556
    %2638 = vmatpush2.bf16.msra.mxu0 %v1555
    %2639 = vmatprep.subr.bf16.mxu0 %v1552
    %2640 = vmatpush2.bf16.msra.mxu0 %v1551
    %2641 = vmatprep.mubr.bf16.mxu0 %v688
    %2642 = vmatmul.mubr.bf16.gmra.mxu0 %v687
    %v2643 = vpop.f32.mrf.mxu0
    %v2644 = vadd.f32 %v2451, %v2643
    %v2645 = vpop.f32.mrf.mxu0
    %v2646 = vadd.f32 %v2453, %v2645
    %v2647 = vpop.f32.mrf.mxu0
    %v2648 = vadd.f32 %v2455, %v2647
    %v2649 = vpop.f32.mrf.mxu0
    %v2650 = vadd.f32 %v2457, %v2649
    %2651 = vmatprep.mubr.bf16.mxu0 %v694
    %2652 = vmatmul.mubr.bf16.gmra.mxu0 %v693
    %v2653 = vpop.f32.mrf.mxu0
    %v2654 = vadd.f32 %v2461, %v2653
    %v2655 = vpop.f32.mrf.mxu0
    %v2656 = vadd.f32 %v2463, %v2655
    %v2657 = vpop.f32.mrf.mxu0
    %v2658 = vadd.f32 %v2465, %v2657
    %v2659 = vpop.f32.mrf.mxu0
    %v2660 = vadd.f32 %v2467, %v2659
    %2661 = vmatprep.mubr.bf16.mxu0 %v700
    %2662 = vmatmul.mubr.bf16.gmra.mxu0 %v699
    %v2663 = vpop.f32.mrf.mxu0
    %v2664 = vadd.f32 %v2471, %v2663
    %v2665 = vpop.f32.mrf.mxu0
    %v2666 = vadd.f32 %v2473, %v2665
    %v2667 = vpop.f32.mrf.mxu0
    %v2668 = vadd.f32 %v2475, %v2667
    %v2669 = vpop.f32.mrf.mxu0
    %v2670 = vadd.f32 %v2477, %v2669
    %2671 = vmatprep.mubr.bf16.mxu0 %v706
    %2672 = vmatmul.mubr.bf16.gmra.mxu0 %v705
    %v2673 = vpop.f32.mrf.mxu0
    %v2674 = vadd.f32 %v2481, %v2673
    %v2675 = vpop.f32.mrf.mxu0
    %v2676 = vadd.f32 %v2483, %v2675
    %v2677 = vpop.f32.mrf.mxu0
    %v2678 = vadd.f32 %v2485, %v2677
    %v2679 = vpop.f32.mrf.mxu0
    %v2680 = vadd.f32 %v2487, %v2679
    %2681 = vmatprep.mubr.bf16.mxu0 %v712
    %2682 = vmatmul.mubr.bf16.gmra.mxu0 %v711
    %v2683 = vpop.f32.mrf.mxu0
    %v2684 = vadd.f32 %v2491, %v2683
    %v2685 = vpop.f32.mrf.mxu0
    %v2686 = vadd.f32 %v2493, %v2685
    %v2687 = vpop.f32.mrf.mxu0
    %v2688 = vadd.f32 %v2495, %v2687
    %v2689 = vpop.f32.mrf.mxu0
    %v2690 = vadd.f32 %v2497, %v2689
    %2691 = vmatprep.mubr.bf16.mxu0 %v718
    %2692 = vmatmul.mubr.bf16.gmra.mxu0 %v717
    %v2693 = vpop.f32.mrf.mxu0
    %v2694 = vadd.f32 %v2501, %v2693
    %v2695 = vpop.f32.mrf.mxu0
    %v2696 = vadd.f32 %v2503, %v2695
    %v2697 = vpop.f32.mrf.mxu0
    %v2698 = vadd.f32 %v2505, %v2697
    %v2699 = vpop.f32.mrf.mxu0
    %v2700 = vadd.f32 %v2507, %v2699
    %2701 = vmatprep.mubr.bf16.mxu0 %v724
    %2702 = vmatmul.mubr.bf16.gmra.mxu0 %v723
    %v2703 = vpop.f32.mrf.mxu0
    %v2704 = vadd.f32 %v2511, %v2703
    %v2705 = vpop.f32.mrf.mxu0
    %v2706 = vadd.f32 %v2513, %v2705
    %v2707 = vpop.f32.mrf.mxu0
    %v2708 = vadd.f32 %v2515, %v2707
    %v2709 = vpop.f32.mrf.mxu0
    %v2710 = vadd.f32 %v2517, %v2709
    %2711 = vmatprep.mubr.bf16.mxu0 %v730
    %2712 = vmatmul.mubr.bf16.gmra.mxu0 %v729
    %v2713 = vpop.f32.mrf.mxu0
    %v2714 = vadd.f32 %v2521, %v2713
    %v2715 = vpop.f32.mrf.mxu0
    %v2716 = vadd.f32 %v2523, %v2715
    %v2717 = vpop.f32.mrf.mxu0
    %v2718 = vadd.f32 %v2525, %v2717
    %v2719 = vpop.f32.mrf.mxu0
    %v2720 = vadd.f32 %v2527, %v2719
    %2721 = vmatprep.mubr.bf16.mxu0 %v736
    %2722 = vmatmul.mubr.bf16.gmra.mxu0 %v735
    %v2723 = vpop.f32.mrf.mxu0
    %v2724 = vadd.f32 %v2531, %v2723
    %v2725 = vpop.f32.mrf.mxu0
    %v2726 = vadd.f32 %v2533, %v2725
    %v2727 = vpop.f32.mrf.mxu0
    %v2728 = vadd.f32 %v2535, %v2727
    %v2729 = vpop.f32.mrf.mxu0
    %v2730 = vadd.f32 %v2537, %v2729
    %2731 = vmatprep.mubr.bf16.mxu0 %v742
    %2732 = vmatmul.mubr.bf16.gmra.mxu0 %v741
    %v2733 = vpop.f32.mrf.mxu0
    %v2734 = vadd.f32 %v2541, %v2733
    %v2735 = vpop.f32.mrf.mxu0
    %v2736 = vadd.f32 %v2543, %v2735
    %v2737 = vpop.f32.mrf.mxu0
    %v2738 = vadd.f32 %v2545, %v2737
    %v2739 = vpop.f32.mrf.mxu0
    %v2740 = vadd.f32 %v2547, %v2739
    %2741 = vmatprep.mubr.bf16.mxu0 %v748
    %2742 = vmatmul.mubr.bf16.gmra.mxu0 %v747
    %v2743 = vpop.f32.mrf.mxu0
    %v2744 = vadd.f32 %v2551, %v2743
    %v2745 = vpop.f32.mrf.mxu0
    %v2746 = vadd.f32 %v2553, %v2745
    %v2747 = vpop.f32.mrf.mxu0
    %v2748 = vadd.f32 %v2555, %v2747
    %v2749 = vpop.f32.mrf.mxu0
    %v2750 = vadd.f32 %v2557, %v2749
    %2751 = vmatprep.mubr.bf16.mxu0 %v754
    %2752 = vmatmul.mubr.bf16.gmra.mxu0 %v753
    %v2753 = vpop.f32.mrf.mxu0
    %v2754 = vadd.f32 %v2561, %v2753
    %v2755 = vpop.f32.mrf.mxu0
    %v2756 = vadd.f32 %v2563, %v2755
    %v2757 = vpop.f32.mrf.mxu0
    %v2758 = vadd.f32 %v2565, %v2757
    %v2759 = vpop.f32.mrf.mxu0
    %v2760 = vadd.f32 %v2567, %v2759
    %2761 = vmatprep.mubr.bf16.mxu0 %v760
    %2762 = vmatmul.mubr.bf16.gmra.mxu0 %v759
    %v2763 = vpop.f32.mrf.mxu0
    %v2764 = vadd.f32 %v2571, %v2763
    %v2765 = vpop.f32.mrf.mxu0
    %v2766 = vadd.f32 %v2573, %v2765
    %v2767 = vpop.f32.mrf.mxu0
    %v2768 = vadd.f32 %v2575, %v2767
    %v2769 = vpop.f32.mrf.mxu0
    %v2770 = vadd.f32 %v2577, %v2769
    %2771 = vmatprep.mubr.bf16.mxu0 %v766
    %2772 = vmatmul.mubr.bf16.gmra.mxu0 %v765
    %v2773 = vpop.f32.mrf.mxu0
    %v2774 = vadd.f32 %v2581, %v2773
    %v2775 = vpop.f32.mrf.mxu0
    %v2776 = vadd.f32 %v2583, %v2775
    %v2777 = vpop.f32.mrf.mxu0
    %v2778 = vadd.f32 %v2585, %v2777
    %v2779 = vpop.f32.mrf.mxu0
    %v2780 = vadd.f32 %v2587, %v2779
    %2781 = vmatprep.mubr.bf16.mxu0 %v772
    %2782 = vmatmul.mubr.bf16.gmra.mxu0 %v771
    %v2783 = vpop.f32.mrf.mxu0
    %v2784 = vadd.f32 %v2591, %v2783
    %v2785 = vpop.f32.mrf.mxu0
    %v2786 = vadd.f32 %v2593, %v2785
    %v2787 = vpop.f32.mrf.mxu0
    %v2788 = vadd.f32 %v2595, %v2787
    %v2789 = vpop.f32.mrf.mxu0
    %v2790 = vadd.f32 %v2597, %v2789
    %2791 = vmatprep.mubr.bf16.mxu0 %v778
    %2792 = vmatmul.mubr.bf16.gmra.mxu0 %v777
    %v2793 = vpop.f32.mrf.mxu0
    %v2794 = vadd.f32 %v2601, %v2793
    %v2795 = vpop.f32.mrf.mxu0
    %v2796 = vadd.f32 %v2603, %v2795
    %v2797 = vpop.f32.mrf.mxu0
    %v2798 = vadd.f32 %v2605, %v2797
    %v2799 = vpop.f32.mrf.mxu0
    %v2800 = vadd.f32 %v2607, %v2799
    %2801 = vdwg.mxu0
    %2802 = vmatprep.subr.bf16.mxu0 %v1612
    %2803 = vmatpush1.bf16.msra.mxu0 %v1611
    %2804 = vmatprep.subr.bf16.mxu0 %v1608
    %2805 = vmatpush1.bf16.msra.mxu0 %v1607
    %2806 = vmatprep.subr.bf16.mxu0 %v1604
    %2807 = vmatpush1.bf16.msra.mxu0 %v1603
    %2808 = vmatprep.subr.bf16.mxu0 %v1600
    %2809 = vmatpush1.bf16.msra.mxu0 %v1599
    %2810 = vmatprep.subr.bf16.mxu0 %v1596
    %2811 = vmatpush1.bf16.msra.mxu0 %v1595
    %2812 = vmatprep.subr.bf16.mxu0 %v1592
    %2813 = vmatpush1.bf16.msra.mxu0 %v1591
    %2814 = vmatprep.subr.bf16.mxu0 %v1588
    %2815 = vmatpush1.bf16.msra.mxu0 %v1587
    %2816 = vmatprep.subr.bf16.mxu0 %v1584
    %2817 = vmatpush1.bf16.msra.mxu0 %v1583
    %2818 = vmatprep.subr.bf16.mxu0 %v1644
    %2819 = vmatpush2.bf16.msra.mxu0 %v1643
    %2820 = vmatprep.subr.bf16.mxu0 %v1640
    %2821 = vmatpush2.bf16.msra.mxu0 %v1639
    %2822 = vmatprep.subr.bf16.mxu0 %v1636
    %2823 = vmatpush2.bf16.msra.mxu0 %v1635
    %2824 = vmatprep.subr.bf16.mxu0 %v1632
    %2825 = vmatpush2.bf16.msra.mxu0 %v1631
    %2826 = vmatprep.subr.bf16.mxu0 %v1628
    %2827 = vmatpush2.bf16.msra.mxu0 %v1627
    %2828 = vmatprep.subr.bf16.mxu0 %v1624
    %2829 = vmatpush2.bf16.msra.mxu0 %v1623
    %2830 = vmatprep.subr.bf16.mxu0 %v1620
    %2831 = vmatpush2.bf16.msra.mxu0 %v1619
    %2832 = vmatprep.subr.bf16.mxu0 %v1616
    %2833 = vmatpush2.bf16.msra.mxu0 %v1615
    %2834 = vmatprep.mubr.bf16.mxu0 %v690
    %2835 = vmatmul.mubr.bf16.gmra.mxu0 %v689
    %v2836 = vpop.f32.mrf.mxu0
    %v2837 = vadd.f32 %v2644, %v2836
    %v2838 = vpop.f32.mrf.mxu0
    %v2839 = vadd.f32 %v2646, %v2838
    %v2840 = vpop.f32.mrf.mxu0
    %v2841 = vadd.f32 %v2648, %v2840
    %v2842 = vpop.f32.mrf.mxu0
    %v2843 = vadd.f32 %v2650, %v2842
    %2844 = vmatprep.mubr.bf16.mxu0 %v696
    %2845 = vmatmul.mubr.bf16.gmra.mxu0 %v695
    %v2846 = vpop.f32.mrf.mxu0
    %v2847 = vadd.f32 %v2654, %v2846
    %v2848 = vpop.f32.mrf.mxu0
    %v2849 = vadd.f32 %v2656, %v2848
    %v2850 = vpop.f32.mrf.mxu0
    %v2851 = vadd.f32 %v2658, %v2850
    %v2852 = vpop.f32.mrf.mxu0
    %v2853 = vadd.f32 %v2660, %v2852
    %2854 = vmatprep.mubr.bf16.mxu0 %v702
    %2855 = vmatmul.mubr.bf16.gmra.mxu0 %v701
    %v2856 = vpop.f32.mrf.mxu0
    %v2857 = vadd.f32 %v2664, %v2856
    %v2858 = vpop.f32.mrf.mxu0
    %v2859 = vadd.f32 %v2666, %v2858
    %v2860 = vpop.f32.mrf.mxu0
    %v2861 = vadd.f32 %v2668, %v2860
    %v2862 = vpop.f32.mrf.mxu0
    %v2863 = vadd.f32 %v2670, %v2862
    %2864 = vmatprep.mubr.bf16.mxu0 %v708
    %2865 = vmatmul.mubr.bf16.gmra.mxu0 %v707
    %v2866 = vpop.f32.mrf.mxu0
    %v2867 = vadd.f32 %v2674, %v2866
    %v2868 = vpop.f32.mrf.mxu0
    %v2869 = vadd.f32 %v2676, %v2868
    %v2870 = vpop.f32.mrf.mxu0
    %v2871 = vadd.f32 %v2678, %v2870
    %v2872 = vpop.f32.mrf.mxu0
    %v2873 = vadd.f32 %v2680, %v2872
    %2874 = vmatprep.mubr.bf16.mxu0 %v714
    %2875 = vmatmul.mubr.bf16.gmra.mxu0 %v713
    %v2876 = vpop.f32.mrf.mxu0
    %v2877 = vadd.f32 %v2684, %v2876
    %v2878 = vpop.f32.mrf.mxu0
    %v2879 = vadd.f32 %v2686, %v2878
    %v2880 = vpop.f32.mrf.mxu0
    %v2881 = vadd.f32 %v2688, %v2880
    %v2882 = vpop.f32.mrf.mxu0
    %v2883 = vadd.f32 %v2690, %v2882
    %2884 = vmatprep.mubr.bf16.mxu0 %v720
    %2885 = vmatmul.mubr.bf16.gmra.mxu0 %v719
    %v2886 = vpop.f32.mrf.mxu0
    %v2887 = vadd.f32 %v2694, %v2886
    %v2888 = vpop.f32.mrf.mxu0
    %v2889 = vadd.f32 %v2696, %v2888
    %v2890 = vpop.f32.mrf.mxu0
    %v2891 = vadd.f32 %v2698, %v2890
    %v2892 = vpop.f32.mrf.mxu0
    %v2893 = vadd.f32 %v2700, %v2892
    %2894 = vmatprep.mubr.bf16.mxu0 %v726
    %2895 = vmatmul.mubr.bf16.gmra.mxu0 %v725
    %v2896 = vpop.f32.mrf.mxu0
    %v2897 = vadd.f32 %v2704, %v2896
    %v2898 = vpop.f32.mrf.mxu0
    %v2899 = vadd.f32 %v2706, %v2898
    %v2900 = vpop.f32.mrf.mxu0
    %v2901 = vadd.f32 %v2708, %v2900
    %v2902 = vpop.f32.mrf.mxu0
    %v2903 = vadd.f32 %v2710, %v2902
    %2904 = vmatprep.mubr.bf16.mxu0 %v732
    %2905 = vmatmul.mubr.bf16.gmra.mxu0 %v731
    %v2906 = vpop.f32.mrf.mxu0
    %v2907 = vadd.f32 %v2714, %v2906
    %v2908 = vpop.f32.mrf.mxu0
    %v2909 = vadd.f32 %v2716, %v2908
    %v2910 = vpop.f32.mrf.mxu0
    %v2911 = vadd.f32 %v2718, %v2910
    %v2912 = vpop.f32.mrf.mxu0
    %v2913 = vadd.f32 %v2720, %v2912
    %2914 = vmatprep.mubr.bf16.mxu0 %v738
    %2915 = vmatmul.mubr.bf16.gmra.mxu0 %v737
    %v2916 = vpop.f32.mrf.mxu0
    %v2917 = vadd.f32 %v2724, %v2916
    %v2918 = vpop.f32.mrf.mxu0
    %v2919 = vadd.f32 %v2726, %v2918
    %v2920 = vpop.f32.mrf.mxu0
    %v2921 = vadd.f32 %v2728, %v2920
    %v2922 = vpop.f32.mrf.mxu0
    %v2923 = vadd.f32 %v2730, %v2922
    %2924 = vmatprep.mubr.bf16.mxu0 %v744
    %2925 = vmatmul.mubr.bf16.gmra.mxu0 %v743
    %v2926 = vpop.f32.mrf.mxu0
    %v2927 = vadd.f32 %v2734, %v2926
    %v2928 = vpop.f32.mrf.mxu0
    %v2929 = vadd.f32 %v2736, %v2928
    %v2930 = vpop.f32.mrf.mxu0
    %v2931 = vadd.f32 %v2738, %v2930
    %v2932 = vpop.f32.mrf.mxu0
    %v2933 = vadd.f32 %v2740, %v2932
    %2934 = vmatprep.mubr.bf16.mxu0 %v750
    %2935 = vmatmul.mubr.bf16.gmra.mxu0 %v749
    %v2936 = vpop.f32.mrf.mxu0
    %v2937 = vadd.f32 %v2744, %v2936
    %v2938 = vpop.f32.mrf.mxu0
    %v2939 = vadd.f32 %v2746, %v2938
    %v2940 = vpop.f32.mrf.mxu0
    %v2941 = vadd.f32 %v2748, %v2940
    %v2942 = vpop.f32.mrf.mxu0
    %v2943 = vadd.f32 %v2750, %v2942
    %2944 = vmatprep.mubr.bf16.mxu0 %v756
    %2945 = vmatmul.mubr.bf16.gmra.mxu0 %v755
    %v2946 = vpop.f32.mrf.mxu0
    %v2947 = vadd.f32 %v2754, %v2946
    %v2948 = vpop.f32.mrf.mxu0
    %v2949 = vadd.f32 %v2756, %v2948
    %v2950 = vpop.f32.mrf.mxu0
    %v2951 = vadd.f32 %v2758, %v2950
    %v2952 = vpop.f32.mrf.mxu0
    %v2953 = vadd.f32 %v2760, %v2952
    %2954 = vmatprep.mubr.bf16.mxu0 %v762
    %2955 = vmatmul.mubr.bf16.gmra.mxu0 %v761
    %v2956 = vpop.f32.mrf.mxu0
    %v2957 = vadd.f32 %v2764, %v2956
    %v2958 = vpop.f32.mrf.mxu0
    %v2959 = vadd.f32 %v2766, %v2958
    %v2960 = vpop.f32.mrf.mxu0
    %v2961 = vadd.f32 %v2768, %v2960
    %v2962 = vpop.f32.mrf.mxu0
    %v2963 = vadd.f32 %v2770, %v2962
    %2964 = vmatprep.mubr.bf16.mxu0 %v768
    %2965 = vmatmul.mubr.bf16.gmra.mxu0 %v767
    %v2966 = vpop.f32.mrf.mxu0
    %v2967 = vadd.f32 %v2774, %v2966
    %v2968 = vpop.f32.mrf.mxu0
    %v2969 = vadd.f32 %v2776, %v2968
    %v2970 = vpop.f32.mrf.mxu0
    %v2971 = vadd.f32 %v2778, %v2970
    %v2972 = vpop.f32.mrf.mxu0
    %v2973 = vadd.f32 %v2780, %v2972
    %2974 = vmatprep.mubr.bf16.mxu0 %v774
    %2975 = vmatmul.mubr.bf16.gmra.mxu0 %v773
    %v2976 = vpop.f32.mrf.mxu0
    %v2977 = vadd.f32 %v2784, %v2976
    %v2978 = vpop.f32.mrf.mxu0
    %v2979 = vadd.f32 %v2786, %v2978
    %v2980 = vpop.f32.mrf.mxu0
    %v2981 = vadd.f32 %v2788, %v2980
    %v2982 = vpop.f32.mrf.mxu0
    %v2983 = vadd.f32 %v2790, %v2982
    %2984 = vmatprep.mubr.bf16.mxu0 %v780
    %2985 = vmatmul.mubr.bf16.gmra.mxu0 %v779
    %v2986 = vpop.f32.mrf.mxu0
    %v2987 = vadd.f32 %v2794, %v2986
    %v2988 = vpop.f32.mrf.mxu0
    %v2989 = vadd.f32 %v2796, %v2988
    %v2990 = vpop.f32.mrf.mxu0
    %v2991 = vadd.f32 %v2798, %v2990
    %v2992 = vpop.f32.mrf.mxu0
    %v2993 = vadd.f32 %v2800, %v2992
    %2994 = vdwg.mxu0
    %v2995 = vld [vmem:[#allocation6] sm:$0xff]
    %v2996 = vld [vmem:[#allocation6 + $0x8] sm:$0xff]
    %v2997 = vld [vmem:[#allocation6 + $0x10] sm:$0xff]
    %v2998 = vld [vmem:[#allocation6 + $0x18] sm:$0xff]
    %v2999 = vld [vmem:[#allocation6 + $0x20] sm:$0xff]
    %v3000 = vld [vmem:[#allocation6 + $0x28] sm:$0xff]
    %v3001 = vld [vmem:[#allocation6 + $0x30] sm:$0xff]
    %v3002 = vld [vmem:[#allocation6 + $0x38] sm:$0xff]
    %v3003 = vld [vmem:[#allocation6 + $0x40] sm:$0xff]
    %v3004 = vld [vmem:[#allocation6 + $0x48] sm:$0xff]
    %v3005 = vld [vmem:[#allocation6 + $0x50] sm:$0xff]
    %v3006 = vld [vmem:[#allocation6 + $0x58] sm:$0xff]
    %v3007 = vld [vmem:[#allocation6 + $0x60] sm:$0xff]
    %v3008 = vld [vmem:[#allocation6 + $0x68] sm:$0xff]
    %v3009 = vld [vmem:[#allocation6 + $0x70] sm:$0xff]
    %v3010 = vld [vmem:[#allocation6 + $0x78] sm:$0xff]
    %v3011 = vld [vmem:[#allocation6 + $0x80] sm:$0xff]
    %v3012 = vld [vmem:[#allocation6 + $0x88] sm:$0xff]
    %v3013 = vld [vmem:[#allocation6 + $0x90] sm:$0xff]
    %v3014 = vld [vmem:[#allocation6 + $0x98] sm:$0xff]
    %v3015 = vld [vmem:[#allocation6 + $0xa0] sm:$0xff]
    %v3016 = vld [vmem:[#allocation6 + $0xa8] sm:$0xff]
    %v3017 = vld [vmem:[#allocation6 + $0xb0] sm:$0xff]
    %v3018 = vld [vmem:[#allocation6 + $0xb8] sm:$0xff]
    %v3019 = vld [vmem:[#allocation6 + $0xc0] sm:$0xff]
    %v3020 = vld [vmem:[#allocation6 + $0xc8] sm:$0xff]
    %v3021 = vld [vmem:[#allocation6 + $0xd0] sm:$0xff]
    %v3022 = vld [vmem:[#allocation6 + $0xd8] sm:$0xff]
    %v3023 = vld [vmem:[#allocation6 + $0xe0] sm:$0xff]
    %v3024 = vld [vmem:[#allocation6 + $0xe8] sm:$0xff]
    %v3025 = vld [vmem:[#allocation6 + $0xf0] sm:$0xff]
    %v3026 = vld [vmem:[#allocation6 + $0xf8] sm:$0xff]
    %v3027 = vld [vmem:[#allocation6 + $0x100] sm:$0xff]
    %v3028 = vld [vmem:[#allocation6 + $0x108] sm:$0xff]
    %v3029 = vld [vmem:[#allocation6 + $0x110] sm:$0xff]
    %v3030 = vld [vmem:[#allocation6 + $0x118] sm:$0xff]
    %v3031 = vld [vmem:[#allocation6 + $0x120] sm:$0xff]
    %v3032 = vld [vmem:[#allocation6 + $0x128] sm:$0xff]
    %v3033 = vld [vmem:[#allocation6 + $0x130] sm:$0xff]
    %v3034 = vld [vmem:[#allocation6 + $0x138] sm:$0xff]
    %v3035 = vld [vmem:[#allocation6 + $0x140] sm:$0xff]
    %v3036 = vld [vmem:[#allocation6 + $0x148] sm:$0xff]
    %v3037 = vld [vmem:[#allocation6 + $0x150] sm:$0xff]
    %v3038 = vld [vmem:[#allocation6 + $0x158] sm:$0xff]
    %v3039 = vld [vmem:[#allocation6 + $0x160] sm:$0xff]
    %v3040 = vld [vmem:[#allocation6 + $0x168] sm:$0xff]
    %v3041 = vld [vmem:[#allocation6 + $0x170] sm:$0xff]
    %v3042 = vld [vmem:[#allocation6 + $0x178] sm:$0xff]
    %v3043 = vld [vmem:[#allocation6 + $0x180] sm:$0xff]
    %v3044 = vld [vmem:[#allocation6 + $0x188] sm:$0xff]
    %v3045 = vld [vmem:[#allocation6 + $0x190] sm:$0xff]
    %v3046 = vld [vmem:[#allocation6 + $0x198] sm:$0xff]
    %v3047 = vld [vmem:[#allocation6 + $0x1a0] sm:$0xff]
    %v3048 = vld [vmem:[#allocation6 + $0x1a8] sm:$0xff]
    %v3049 = vld [vmem:[#allocation6 + $0x1b0] sm:$0xff]
    %v3050 = vld [vmem:[#allocation6 + $0x1b8] sm:$0xff]
    %v3051 = vld [vmem:[#allocation6 + $0x1c0] sm:$0xff]
    %v3052 = vld [vmem:[#allocation6 + $0x1c8] sm:$0xff]
    %v3053 = vld [vmem:[#allocation6 + $0x1d0] sm:$0xff]
    %v3054 = vld [vmem:[#allocation6 + $0x1d8] sm:$0xff]
    %v3055 = vld [vmem:[#allocation6 + $0x1e0] sm:$0xff]
    %v3056 = vld [vmem:[#allocation6 + $0x1e8] sm:$0xff]
    %v3057 = vld [vmem:[#allocation6 + $0x1f0] sm:$0xff]
    %v3058 = vld [vmem:[#allocation6 + $0x1f8] sm:$0xff]
    %v3059 = vld [vmem:[#allocation6 + $0x200] sm:$0xff]
    %v3060 = vld [vmem:[#allocation6 + $0x208] sm:$0xff]
    %v3061 = vld [vmem:[#allocation6 + $0x210] sm:$0xff]
    %v3062 = vld [vmem:[#allocation6 + $0x218] sm:$0xff]
    %v3063 = vld [vmem:[#allocation6 + $0x220] sm:$0xff]
    %v3064 = vld [vmem:[#allocation6 + $0x228] sm:$0xff]
    %v3065 = vld [vmem:[#allocation6 + $0x230] sm:$0xff]
    %v3066 = vld [vmem:[#allocation6 + $0x238] sm:$0xff]
    %v3067 = vld [vmem:[#allocation6 + $0x240] sm:$0xff]
    %v3068 = vld [vmem:[#allocation6 + $0x248] sm:$0xff]
    %v3069 = vld [vmem:[#allocation6 + $0x250] sm:$0xff]
    %v3070 = vld [vmem:[#allocation6 + $0x258] sm:$0xff]
    %v3071 = vld [vmem:[#allocation6 + $0x260] sm:$0xff]
    %v3072 = vld [vmem:[#allocation6 + $0x268] sm:$0xff]
    %v3073 = vld [vmem:[#allocation6 + $0x270] sm:$0xff]
    %v3074 = vld [vmem:[#allocation6 + $0x278] sm:$0xff]
    %v3075 = vld [vmem:[#allocation6 + $0x280] sm:$0xff]
    %v3076 = vld [vmem:[#allocation6 + $0x288] sm:$0xff]
    %v3077 = vld [vmem:[#allocation6 + $0x290] sm:$0xff]
    %v3078 = vld [vmem:[#allocation6 + $0x298] sm:$0xff]
    %v3079 = vld [vmem:[#allocation6 + $0x2a0] sm:$0xff]
    %v3080 = vld [vmem:[#allocation6 + $0x2a8] sm:$0xff]
    %v3081 = vld [vmem:[#allocation6 + $0x2b0] sm:$0xff]
    %v3082 = vld [vmem:[#allocation6 + $0x2b8] sm:$0xff]
    %v3083 = vld [vmem:[#allocation6 + $0x2c0] sm:$0xff]
    %v3084 = vld [vmem:[#allocation6 + $0x2c8] sm:$0xff]
    %v3085 = vld [vmem:[#allocation6 + $0x2d0] sm:$0xff]
    %v3086 = vld [vmem:[#allocation6 + $0x2d8] sm:$0xff]
    %v3087 = vld [vmem:[#allocation6 + $0x2e0] sm:$0xff]
    %v3088 = vld [vmem:[#allocation6 + $0x2e8] sm:$0xff]
    %v3089 = vld [vmem:[#allocation6 + $0x2f0] sm:$0xff]
    %v3090 = vld [vmem:[#allocation6 + $0x2f8] sm:$0xff]
    %v3091 = vld [vmem:[#allocation9] sm:$0xff]
    %v3092 = vld [vmem:[#allocation9 + $0x8] sm:$0xff]
    %v3093 = vld [vmem:[#allocation9 + $0x10] sm:$0xff]
    %v3094 = vld [vmem:[#allocation9 + $0x18] sm:$0xff]
    %v3095 = vld [vmem:[#allocation9 + $0x20] sm:$0xff]
    %v3096 = vld [vmem:[#allocation9 + $0x28] sm:$0xff]
    %v3097 = vld [vmem:[#allocation9 + $0x30] sm:$0xff]
    %v3098 = vld [vmem:[#allocation9 + $0x38] sm:$0xff]
    %v3099 = vld [vmem:[#allocation9 + $0x40] sm:$0xff]
    %v3100 = vld [vmem:[#allocation9 + $0x48] sm:$0xff]
    %v3101 = vld [vmem:[#allocation9 + $0x50] sm:$0xff]
    %v3102 = vld [vmem:[#allocation9 + $0x58] sm:$0xff]
    %v3103 = vld [vmem:[#allocation9 + $0x60] sm:$0xff]
    %v3104 = vld [vmem:[#allocation9 + $0x68] sm:$0xff]
    %v3105 = vld [vmem:[#allocation9 + $0x70] sm:$0xff]
    %v3106 = vld [vmem:[#allocation9 + $0x78] sm:$0xff]
    %v3107 = vld [vmem:[#allocation9 + $0x80] sm:$0xff]
    %v3108 = vld [vmem:[#allocation9 + $0x88] sm:$0xff]
    %v3109 = vld [vmem:[#allocation9 + $0x90] sm:$0xff]
    %v3110 = vld [vmem:[#allocation9 + $0x98] sm:$0xff]
    %v3111 = vld [vmem:[#allocation9 + $0xa0] sm:$0xff]
    %v3112 = vld [vmem:[#allocation9 + $0xa8] sm:$0xff]
    %v3113 = vld [vmem:[#allocation9 + $0xb0] sm:$0xff]
    %v3114 = vld [vmem:[#allocation9 + $0xb8] sm:$0xff]
    %v3115 = vld [vmem:[#allocation9 + $0xc0] sm:$0xff]
    %v3116 = vld [vmem:[#allocation9 + $0xc8] sm:$0xff]
    %v3117 = vld [vmem:[#allocation9 + $0xd0] sm:$0xff]
    %v3118 = vld [vmem:[#allocation9 + $0xd8] sm:$0xff]
    %v3119 = vld [vmem:[#allocation9 + $0xe0] sm:$0xff]
    %v3120 = vld [vmem:[#allocation9 + $0xe8] sm:$0xff]
    %v3121 = vld [vmem:[#allocation9 + $0xf0] sm:$0xff]
    %v3122 = vld [vmem:[#allocation9 + $0xf8] sm:$0xff]
    %v3123 = vld [vmem:[#allocation9 + $0x100] sm:$0xff]
    %v3124 = vld [vmem:[#allocation9 + $0x108] sm:$0xff]
    %v3125 = vld [vmem:[#allocation9 + $0x110] sm:$0xff]
    %v3126 = vld [vmem:[#allocation9 + $0x118] sm:$0xff]
    %v3127 = vld [vmem:[#allocation9 + $0x120] sm:$0xff]
    %v3128 = vld [vmem:[#allocation9 + $0x128] sm:$0xff]
    %v3129 = vld [vmem:[#allocation9 + $0x130] sm:$0xff]
    %v3130 = vld [vmem:[#allocation9 + $0x138] sm:$0xff]
    %v3131 = vld [vmem:[#allocation9 + $0x140] sm:$0xff]
    %v3132 = vld [vmem:[#allocation9 + $0x148] sm:$0xff]
    %v3133 = vld [vmem:[#allocation9 + $0x150] sm:$0xff]
    %v3134 = vld [vmem:[#allocation9 + $0x158] sm:$0xff]
    %v3135 = vld [vmem:[#allocation9 + $0x160] sm:$0xff]
    %v3136 = vld [vmem:[#allocation9 + $0x168] sm:$0xff]
    %v3137 = vld [vmem:[#allocation9 + $0x170] sm:$0xff]
    %v3138 = vld [vmem:[#allocation9 + $0x178] sm:$0xff]
    %v3139 = vld [vmem:[#allocation9 + $0x180] sm:$0xff]
    %v3140 = vld [vmem:[#allocation9 + $0x188] sm:$0xff]
    %v3141 = vld [vmem:[#allocation9 + $0x190] sm:$0xff]
    %v3142 = vld [vmem:[#allocation9 + $0x198] sm:$0xff]
    %v3143 = vld [vmem:[#allocation9 + $0x1a0] sm:$0xff]
    %v3144 = vld [vmem:[#allocation9 + $0x1a8] sm:$0xff]
    %v3145 = vld [vmem:[#allocation9 + $0x1b0] sm:$0xff]
    %v3146 = vld [vmem:[#allocation9 + $0x1b8] sm:$0xff]
    %v3147 = vld [vmem:[#allocation9 + $0x1c0] sm:$0xff]
    %v3148 = vld [vmem:[#allocation9 + $0x1c8] sm:$0xff]
    %v3149 = vld [vmem:[#allocation9 + $0x1d0] sm:$0xff]
    %v3150 = vld [vmem:[#allocation9 + $0x1d8] sm:$0xff]
    %v3151 = vld [vmem:[#allocation9 + $0x1e0] sm:$0xff]
    %v3152 = vld [vmem:[#allocation9 + $0x1e8] sm:$0xff]
    %v3153 = vld [vmem:[#allocation9 + $0x1f0] sm:$0xff]
    %v3154 = vld [vmem:[#allocation9 + $0x1f8] sm:$0xff]
    %v3155 = vld [vmem:[#allocation9 + $0x200] sm:$0xff]
    %v3156 = vld [vmem:[#allocation9 + $0x208] sm:$0xff]
    %v3157 = vld [vmem:[#allocation9 + $0x210] sm:$0xff]
    %v3158 = vld [vmem:[#allocation9 + $0x218] sm:$0xff]
    %v3159 = vld [vmem:[#allocation9 + $0x220] sm:$0xff]
    %v3160 = vld [vmem:[#allocation9 + $0x228] sm:$0xff]
    %v3161 = vld [vmem:[#allocation9 + $0x230] sm:$0xff]
    %v3162 = vld [vmem:[#allocation9 + $0x238] sm:$0xff]
    %v3163 = vld [vmem:[#allocation9 + $0x240] sm:$0xff]
    %v3164 = vld [vmem:[#allocation9 + $0x248] sm:$0xff]
    %v3165 = vld [vmem:[#allocation9 + $0x250] sm:$0xff]
    %v3166 = vld [vmem:[#allocation9 + $0x258] sm:$0xff]
    %v3167 = vld [vmem:[#allocation9 + $0x260] sm:$0xff]
    %v3168 = vld [vmem:[#allocation9 + $0x268] sm:$0xff]
    %v3169 = vld [vmem:[#allocation9 + $0x270] sm:$0xff]
    %v3170 = vld [vmem:[#allocation9 + $0x278] sm:$0xff]
    %v3171 = vld [vmem:[#allocation9 + $0x280] sm:$0xff]
    %v3172 = vld [vmem:[#allocation9 + $0x288] sm:$0xff]
    %v3173 = vld [vmem:[#allocation9 + $0x290] sm:$0xff]
    %v3174 = vld [vmem:[#allocation9 + $0x298] sm:$0xff]
    %v3175 = vld [vmem:[#allocation9 + $0x2a0] sm:$0xff]
    %v3176 = vld [vmem:[#allocation9 + $0x2a8] sm:$0xff]
    %v3177 = vld [vmem:[#allocation9 + $0x2b0] sm:$0xff]
    %v3178 = vld [vmem:[#allocation9 + $0x2b8] sm:$0xff]
    %v3179 = vld [vmem:[#allocation9 + $0x2c0] sm:$0xff]
    %v3180 = vld [vmem:[#allocation9 + $0x2c8] sm:$0xff]
    %v3181 = vld [vmem:[#allocation9 + $0x2d0] sm:$0xff]
    %v3182 = vld [vmem:[#allocation9 + $0x2d8] sm:$0xff]
    %v3183 = vld [vmem:[#allocation9 + $0x2e0] sm:$0xff]
    %v3184 = vld [vmem:[#allocation9 + $0x2e8] sm:$0xff]
    %v3185 = vld [vmem:[#allocation9 + $0x2f0] sm:$0xff]
    %v3186 = vld [vmem:[#allocation9 + $0x2f8] sm:$0xff]
    %v3187 = vld [vmem:[#allocation9 + $0x300] sm:$0xff]
    %v3188 = vld [vmem:[#allocation9 + $0x308] sm:$0xff]
    %v3189 = vld [vmem:[#allocation9 + $0x310] sm:$0xff]
    %v3190 = vld [vmem:[#allocation9 + $0x318] sm:$0xff]
    %v3191 = vld [vmem:[#allocation9 + $0x320] sm:$0xff]
    %v3192 = vld [vmem:[#allocation9 + $0x328] sm:$0xff]
    %v3193 = vld [vmem:[#allocation9 + $0x330] sm:$0xff]
    %v3194 = vld [vmem:[#allocation9 + $0x338] sm:$0xff]
    %v3195 = vld [vmem:[#allocation9 + $0x340] sm:$0xff]
    %v3196 = vld [vmem:[#allocation9 + $0x348] sm:$0xff]
    %v3197 = vld [vmem:[#allocation9 + $0x350] sm:$0xff]
    %v3198 = vld [vmem:[#allocation9 + $0x358] sm:$0xff]
    %v3199 = vld [vmem:[#allocation9 + $0x360] sm:$0xff]
    %v3200 = vld [vmem:[#allocation9 + $0x368] sm:$0xff]
    %v3201 = vld [vmem:[#allocation9 + $0x370] sm:$0xff]
    %v3202 = vld [vmem:[#allocation9 + $0x378] sm:$0xff]
    %v3203 = vld [vmem:[#allocation9 + $0x380] sm:$0xff]
    %v3204 = vld [vmem:[#allocation9 + $0x388] sm:$0xff]
    %v3205 = vld [vmem:[#allocation9 + $0x390] sm:$0xff]
    %v3206 = vld [vmem:[#allocation9 + $0x398] sm:$0xff]
    %v3207 = vld [vmem:[#allocation9 + $0x3a0] sm:$0xff]
    %v3208 = vld [vmem:[#allocation9 + $0x3a8] sm:$0xff]
    %v3209 = vld [vmem:[#allocation9 + $0x3b0] sm:$0xff]
    %v3210 = vld [vmem:[#allocation9 + $0x3b8] sm:$0xff]
    %v3211 = vld [vmem:[#allocation9 + $0x3c0] sm:$0xff]
    %v3212 = vld [vmem:[#allocation9 + $0x3c8] sm:$0xff]
    %v3213 = vld [vmem:[#allocation9 + $0x3d0] sm:$0xff]
    %v3214 = vld [vmem:[#allocation9 + $0x3d8] sm:$0xff]
    %v3215 = vld [vmem:[#allocation9 + $0x3e0] sm:$0xff]
    %v3216 = vld [vmem:[#allocation9 + $0x3e8] sm:$0xff]
    %v3217 = vld [vmem:[#allocation9 + $0x3f0] sm:$0xff]
    %v3218 = vld [vmem:[#allocation9 + $0x3f8] sm:$0xff]
    %v3219 = vld [vmem:[#allocation9 + $0x400] sm:$0xff]
    %v3220 = vld [vmem:[#allocation9 + $0x408] sm:$0xff]
    %v3221 = vld [vmem:[#allocation9 + $0x410] sm:$0xff]
    %v3222 = vld [vmem:[#allocation9 + $0x418] sm:$0xff]
    %v3223 = vld [vmem:[#allocation9 + $0x420] sm:$0xff]
    %v3224 = vld [vmem:[#allocation9 + $0x428] sm:$0xff]
    %v3225 = vld [vmem:[#allocation9 + $0x430] sm:$0xff]
    %v3226 = vld [vmem:[#allocation9 + $0x438] sm:$0xff]
    %v3227 = vld [vmem:[#allocation9 + $0x440] sm:$0xff]
    %v3228 = vld [vmem:[#allocation9 + $0x448] sm:$0xff]
    %v3229 = vld [vmem:[#allocation9 + $0x450] sm:$0xff]
    %v3230 = vld [vmem:[#allocation9 + $0x458] sm:$0xff]
    %v3231 = vld [vmem:[#allocation9 + $0x460] sm:$0xff]
    %v3232 = vld [vmem:[#allocation9 + $0x468] sm:$0xff]
    %v3233 = vld [vmem:[#allocation9 + $0x470] sm:$0xff]
    %v3234 = vld [vmem:[#allocation9 + $0x478] sm:$0xff]
    %v3235 = vld [vmem:[#allocation9 + $0x480] sm:$0xff]
    %v3236 = vld [vmem:[#allocation9 + $0x488] sm:$0xff]
    %v3237 = vld [vmem:[#allocation9 + $0x490] sm:$0xff]
    %v3238 = vld [vmem:[#allocation9 + $0x498] sm:$0xff]
    %v3239 = vld [vmem:[#allocation9 + $0x4a0] sm:$0xff]
    %v3240 = vld [vmem:[#allocation9 + $0x4a8] sm:$0xff]
    %v3241 = vld [vmem:[#allocation9 + $0x4b0] sm:$0xff]
    %v3242 = vld [vmem:[#allocation9 + $0x4b8] sm:$0xff]
    %v3243 = vld [vmem:[#allocation9 + $0x4c0] sm:$0xff]
    %v3244 = vld [vmem:[#allocation9 + $0x4c8] sm:$0xff]
    %v3245 = vld [vmem:[#allocation9 + $0x4d0] sm:$0xff]
    %v3246 = vld [vmem:[#allocation9 + $0x4d8] sm:$0xff]
    %v3247 = vld [vmem:[#allocation9 + $0x4e0] sm:$0xff]
    %v3248 = vld [vmem:[#allocation9 + $0x4e8] sm:$0xff]
    %v3249 = vld [vmem:[#allocation9 + $0x4f0] sm:$0xff]
    %v3250 = vld [vmem:[#allocation9 + $0x4f8] sm:$0xff]
    %v3251 = vld [vmem:[#allocation9 + $0x500] sm:$0xff]
    %v3252 = vld [vmem:[#allocation9 + $0x508] sm:$0xff]
    %v3253 = vld [vmem:[#allocation9 + $0x510] sm:$0xff]
    %v3254 = vld [vmem:[#allocation9 + $0x518] sm:$0xff]
    %v3255 = vld [vmem:[#allocation9 + $0x520] sm:$0xff]
    %v3256 = vld [vmem:[#allocation9 + $0x528] sm:$0xff]
    %v3257 = vld [vmem:[#allocation9 + $0x530] sm:$0xff]
    %v3258 = vld [vmem:[#allocation9 + $0x538] sm:$0xff]
    %v3259 = vld [vmem:[#allocation9 + $0x540] sm:$0xff]
    %v3260 = vld [vmem:[#allocation9 + $0x548] sm:$0xff]
    %v3261 = vld [vmem:[#allocation9 + $0x550] sm:$0xff]
    %v3262 = vld [vmem:[#allocation9 + $0x558] sm:$0xff]
    %v3263 = vld [vmem:[#allocation9 + $0x560] sm:$0xff]
    %v3264 = vld [vmem:[#allocation9 + $0x568] sm:$0xff]
    %v3265 = vld [vmem:[#allocation9 + $0x570] sm:$0xff]
    %v3266 = vld [vmem:[#allocation9 + $0x578] sm:$0xff]
    %v3267 = vld [vmem:[#allocation9 + $0x580] sm:$0xff]
    %v3268 = vld [vmem:[#allocation9 + $0x588] sm:$0xff]
    %v3269 = vld [vmem:[#allocation9 + $0x590] sm:$0xff]
    %v3270 = vld [vmem:[#allocation9 + $0x598] sm:$0xff]
    %v3271 = vld [vmem:[#allocation9 + $0x5a0] sm:$0xff]
    %v3272 = vld [vmem:[#allocation9 + $0x5a8] sm:$0xff]
    %v3273 = vld [vmem:[#allocation9 + $0x5b0] sm:$0xff]
    %v3274 = vld [vmem:[#allocation9 + $0x5b8] sm:$0xff]
    %v3275 = vld [vmem:[#allocation9 + $0x5c0] sm:$0xff]
    %v3276 = vld [vmem:[#allocation9 + $0x5c8] sm:$0xff]
    %v3277 = vld [vmem:[#allocation9 + $0x5d0] sm:$0xff]
    %v3278 = vld [vmem:[#allocation9 + $0x5d8] sm:$0xff]
    %v3279 = vld [vmem:[#allocation9 + $0x5e0] sm:$0xff]
    %v3280 = vld [vmem:[#allocation9 + $0x5e8] sm:$0xff]
    %v3281 = vld [vmem:[#allocation9 + $0x5f0] sm:$0xff]
    %v3282 = vld [vmem:[#allocation9 + $0x5f8] sm:$0xff]
    %v3283 = vld [vmem:[%s6] sm:$0xf]
    %v3285 = vlaneseq
    %v3286 = vshrl.u32 %v3285, 7
    %v3287 = vsub.s32 0, %v3286
    %v3288 = vrot.slane %v3283, %v3287
    %v3289 = vlaneseq
    %v3290 = vshrl.u32 %v3289, 7
    %v3291 = vsub.s32 1, %v3290
    %v3292 = vrot.slane %v3283, %v3291
    %v3293 = vlaneseq
    %v3294 = vshrl.u32 %v3293, 7
    %v3295 = vsub.s32 2, %v3294
    %v3296 = vrot.slane %v3283, %v3295
    %v3297 = vlaneseq
    %v3298 = vshrl.u32 %v3297, 7
    %v3299 = vsub.s32 3, %v3298
    %v3300 = vrot.slane %v3283, %v3299
    %v3401 = vunpack.c.l.b16 %v2995
    %v3402 = vunpack.c.h.b16 %v2995
    %v3403 = vunpack.c.l.b16 %v2996
    %v3404 = vunpack.c.h.b16 %v2996
    %v3405 = vunpack.c.l.b16 %v2997
    %v3406 = vunpack.c.h.b16 %v2997
    %v3407 = vunpack.c.l.b16 %v2998
    %v3408 = vunpack.c.h.b16 %v2998
    %v3409 = vunpack.c.l.b16 %v2999
    %v3410 = vunpack.c.h.b16 %v2999
    %v3411 = vunpack.c.l.b16 %v3000
    %v3412 = vunpack.c.h.b16 %v3000
    %v3413 = vunpack.c.l.b16 %v3001
    %v3414 = vunpack.c.h.b16 %v3001
    %v3415 = vunpack.c.l.b16 %v3002
    %v3416 = vunpack.c.h.b16 %v3002
    %v3417 = vunpack.c.l.b16 %v3003
    %v3418 = vunpack.c.h.b16 %v3003
    %v3419 = vunpack.c.l.b16 %v3004
    %v3420 = vunpack.c.h.b16 %v3004
    %v3421 = vunpack.c.l.b16 %v3005
    %v3422 = vunpack.c.h.b16 %v3005
    %v3423 = vunpack.c.l.b16 %v3006
    %v3424 = vunpack.c.h.b16 %v3006
    %v3425 = vunpack.c.l.b16 %v3007
    %v3426 = vunpack.c.h.b16 %v3007
    %v3427 = vunpack.c.l.b16 %v3008
    %v3428 = vunpack.c.h.b16 %v3008
    %v3429 = vunpack.c.l.b16 %v3009
    %v3430 = vunpack.c.h.b16 %v3009
    %v3431 = vunpack.c.l.b16 %v3010
    %v3432 = vunpack.c.h.b16 %v3010
    %v3433 = vunpack.c.l.b16 %v3011
    %v3434 = vunpack.c.h.b16 %v3011
    %v3435 = vunpack.c.l.b16 %v3012
    %v3436 = vunpack.c.h.b16 %v3012
    %v3437 = vunpack.c.l.b16 %v3013
    %v3438 = vunpack.c.h.b16 %v3013
    %v3439 = vunpack.c.l.b16 %v3014
    %v3440 = vunpack.c.h.b16 %v3014
    %v3441 = vunpack.c.l.b16 %v3015
    %v3442 = vunpack.c.h.b16 %v3015
    %v3443 = vunpack.c.l.b16 %v3016
    %v3444 = vunpack.c.h.b16 %v3016
    %v3445 = vunpack.c.l.b16 %v3017
    %v3446 = vunpack.c.h.b16 %v3017
    %v3447 = vunpack.c.l.b16 %v3018
    %v3448 = vunpack.c.h.b16 %v3018
    %v3449 = vunpack.c.l.b16 %v3019
    %v3450 = vunpack.c.h.b16 %v3019
    %v3451 = vunpack.c.l.b16 %v3020
    %v3452 = vunpack.c.h.b16 %v3020
    %v3453 = vunpack.c.l.b16 %v3021
    %v3454 = vunpack.c.h.b16 %v3021
    %v3455 = vunpack.c.l.b16 %v3022
    %v3456 = vunpack.c.h.b16 %v3022
    %v3457 = vunpack.c.l.b16 %v3023
    %v3458 = vunpack.c.h.b16 %v3023
    %v3459 = vunpack.c.l.b16 %v3024
    %v3460 = vunpack.c.h.b16 %v3024
    %v3461 = vunpack.c.l.b16 %v3025
    %v3462 = vunpack.c.h.b16 %v3025
    %v3463 = vunpack.c.l.b16 %v3026
    %v3464 = vunpack.c.h.b16 %v3026
    %v3465 = vunpack.c.l.b16 %v3027
    %v3466 = vunpack.c.h.b16 %v3027
    %v3467 = vunpack.c.l.b16 %v3028
    %v3468 = vunpack.c.h.b16 %v3028
    %v3469 = vunpack.c.l.b16 %v3029
    %v3470 = vunpack.c.h.b16 %v3029
    %v3471 = vunpack.c.l.b16 %v3030
    %v3472 = vunpack.c.h.b16 %v3030
    %v3473 = vunpack.c.l.b16 %v3031
    %v3474 = vunpack.c.h.b16 %v3031
    %v3475 = vunpack.c.l.b16 %v3032
    %v3476 = vunpack.c.h.b16 %v3032
    %v3477 = vunpack.c.l.b16 %v3033
    %v3478 = vunpack.c.h.b16 %v3033
    %v3479 = vunpack.c.l.b16 %v3034
    %v3480 = vunpack.c.h.b16 %v3034
    %v3481 = vunpack.c.l.b16 %v3035
    %v3482 = vunpack.c.h.b16 %v3035
    %v3483 = vunpack.c.l.b16 %v3036
    %v3484 = vunpack.c.h.b16 %v3036
    %v3485 = vunpack.c.l.b16 %v3037
    %v3486 = vunpack.c.h.b16 %v3037
    %v3487 = vunpack.c.l.b16 %v3038
    %v3488 = vunpack.c.h.b16 %v3038
    %v3489 = vunpack.c.l.b16 %v3039
    %v3490 = vunpack.c.h.b16 %v3039
    %v3491 = vunpack.c.l.b16 %v3040
    %v3492 = vunpack.c.h.b16 %v3040
    %v3493 = vunpack.c.l.b16 %v3041
    %v3494 = vunpack.c.h.b16 %v3041
    %v3495 = vunpack.c.l.b16 %v3042
    %v3496 = vunpack.c.h.b16 %v3042
    %v3497 = vunpack.c.l.b16 %v3043
    %v3498 = vunpack.c.h.b16 %v3043
    %v3499 = vunpack.c.l.b16 %v3044
    %v3500 = vunpack.c.h.b16 %v3044
    %v3501 = vunpack.c.l.b16 %v3045
    %v3502 = vunpack.c.h.b16 %v3045
    %v3503 = vunpack.c.l.b16 %v3046
    %v3504 = vunpack.c.h.b16 %v3046
    %v3505 = vunpack.c.l.b16 %v3047
    %v3506 = vunpack.c.h.b16 %v3047
    %v3507 = vunpack.c.l.b16 %v3048
    %v3508 = vunpack.c.h.b16 %v3048
    %v3509 = vunpack.c.l.b16 %v3049
    %v3510 = vunpack.c.h.b16 %v3049
    %v3511 = vunpack.c.l.b16 %v3050
    %v3512 = vunpack.c.h.b16 %v3050
    %v3513 = vunpack.c.l.b16 %v3051
    %v3514 = vunpack.c.h.b16 %v3051
    %v3515 = vunpack.c.l.b16 %v3052
    %v3516 = vunpack.c.h.b16 %v3052
    %v3517 = vunpack.c.l.b16 %v3053
    %v3518 = vunpack.c.h.b16 %v3053
    %v3519 = vunpack.c.l.b16 %v3054
    %v3520 = vunpack.c.h.b16 %v3054
    %v3521 = vunpack.c.l.b16 %v3055
    %v3522 = vunpack.c.h.b16 %v3055
    %v3523 = vunpack.c.l.b16 %v3056
    %v3524 = vunpack.c.h.b16 %v3056
    %v3525 = vunpack.c.l.b16 %v3057
    %v3526 = vunpack.c.h.b16 %v3057
    %v3527 = vunpack.c.l.b16 %v3058
    %v3528 = vunpack.c.h.b16 %v3058
    %v3529 = vunpack.c.l.b16 %v3059
    %v3530 = vunpack.c.h.b16 %v3059
    %v3531 = vunpack.c.l.b16 %v3060
    %v3532 = vunpack.c.h.b16 %v3060
    %v3533 = vunpack.c.l.b16 %v3061
    %v3534 = vunpack.c.h.b16 %v3061
    %v3535 = vunpack.c.l.b16 %v3062
    %v3536 = vunpack.c.h.b16 %v3062
    %v3537 = vunpack.c.l.b16 %v3063
    %v3538 = vunpack.c.h.b16 %v3063
    %v3539 = vunpack.c.l.b16 %v3064
    %v3540 = vunpack.c.h.b16 %v3064
    %v3541 = vunpack.c.l.b16 %v3065
    %v3542 = vunpack.c.h.b16 %v3065
    %v3543 = vunpack.c.l.b16 %v3066
    %v3544 = vunpack.c.h.b16 %v3066
    %v3545 = vunpack.c.l.b16 %v3067
    %v3546 = vunpack.c.h.b16 %v3067
    %v3547 = vunpack.c.l.b16 %v3068
    %v3548 = vunpack.c.h.b16 %v3068
    %v3549 = vunpack.c.l.b16 %v3069
    %v3550 = vunpack.c.h.b16 %v3069
    %v3551 = vunpack.c.l.b16 %v3070
    %v3552 = vunpack.c.h.b16 %v3070
    %v3553 = vunpack.c.l.b16 %v3071
    %v3554 = vunpack.c.h.b16 %v3071
    %v3555 = vunpack.c.l.b16 %v3072
    %v3556 = vunpack.c.h.b16 %v3072
    %v3557 = vunpack.c.l.b16 %v3073
    %v3558 = vunpack.c.h.b16 %v3073
    %v3559 = vunpack.c.l.b16 %v3074
    %v3560 = vunpack.c.h.b16 %v3074
    %v3561 = vunpack.c.l.b16 %v3075
    %v3562 = vunpack.c.h.b16 %v3075
    %v3563 = vunpack.c.l.b16 %v3076
    %v3564 = vunpack.c.h.b16 %v3076
    %v3565 = vunpack.c.l.b16 %v3077
    %v3566 = vunpack.c.h.b16 %v3077
    %v3567 = vunpack.c.l.b16 %v3078
    %v3568 = vunpack.c.h.b16 %v3078
    %v3569 = vunpack.c.l.b16 %v3079
    %v3570 = vunpack.c.h.b16 %v3079
    %v3571 = vunpack.c.l.b16 %v3080
    %v3572 = vunpack.c.h.b16 %v3080
    %v3573 = vunpack.c.l.b16 %v3081
    %v3574 = vunpack.c.h.b16 %v3081
    %v3575 = vunpack.c.l.b16 %v3082
    %v3576 = vunpack.c.h.b16 %v3082
    %v3577 = vunpack.c.l.b16 %v3083
    %v3578 = vunpack.c.h.b16 %v3083
    %v3579 = vunpack.c.l.b16 %v3084
    %v3580 = vunpack.c.h.b16 %v3084
    %v3581 = vunpack.c.l.b16 %v3085
    %v3582 = vunpack.c.h.b16 %v3085
    %v3583 = vunpack.c.l.b16 %v3086
    %v3584 = vunpack.c.h.b16 %v3086
    %v3585 = vunpack.c.l.b16 %v3087
    %v3586 = vunpack.c.h.b16 %v3087
    %v3587 = vunpack.c.l.b16 %v3088
    %v3588 = vunpack.c.h.b16 %v3088
    %v3589 = vunpack.c.l.b16 %v3089
    %v3590 = vunpack.c.h.b16 %v3089
    %v3591 = vunpack.c.l.b16 %v3090
    %v3592 = vunpack.c.h.b16 %v3090
    %v3593 = vpack.c.b16 %v3407, %v3401
    %v3594 = vpack.c.b16 %v3408, %v3402
    %v3595 = vpack.c.b16 %v3409, %v3403
    %v3596 = vpack.c.b16 %v3410, %v3404
    %v3597 = vpack.c.b16 %v3411, %v3405
    %v3598 = vpack.c.b16 %v3412, %v3406
    %v3599 = vpack.c.b16 %v3419, %v3413
    %v3600 = vpack.c.b16 %v3420, %v3414
    %v3601 = vpack.c.b16 %v3421, %v3415
    %v3602 = vpack.c.b16 %v3422, %v3416
    %v3603 = vpack.c.b16 %v3423, %v3417
    %v3604 = vpack.c.b16 %v3424, %v3418
    %v3605 = vpack.c.b16 %v3431, %v3425
    %v3606 = vpack.c.b16 %v3432, %v3426
    %v3607 = vpack.c.b16 %v3433, %v3427
    %v3608 = vpack.c.b16 %v3434, %v3428
    %v3609 = vpack.c.b16 %v3435, %v3429
    %v3610 = vpack.c.b16 %v3436, %v3430
    %v3611 = vpack.c.b16 %v3443, %v3437
    %v3612 = vpack.c.b16 %v3444, %v3438
    %v3613 = vpack.c.b16 %v3445, %v3439
    %v3614 = vpack.c.b16 %v3446, %v3440
    %v3615 = vpack.c.b16 %v3447, %v3441
    %v3616 = vpack.c.b16 %v3448, %v3442
    %v3617 = vpack.c.b16 %v3455, %v3449
    %v3618 = vpack.c.b16 %v3456, %v3450
    %v3619 = vpack.c.b16 %v3457, %v3451
    %v3620 = vpack.c.b16 %v3458, %v3452
    %v3621 = vpack.c.b16 %v3459, %v3453
    %v3622 = vpack.c.b16 %v3460, %v3454
    %v3623 = vpack.c.b16 %v3467, %v3461
    %v3624 = vpack.c.b16 %v3468, %v3462
    %v3625 = vpack.c.b16 %v3469, %v3463
    %v3626 = vpack.c.b16 %v3470, %v3464
    %v3627 = vpack.c.b16 %v3471, %v3465
    %v3628 = vpack.c.b16 %v3472, %v3466
    %v3629 = vpack.c.b16 %v3479, %v3473
    %v3630 = vpack.c.b16 %v3480, %v3474
    %v3631 = vpack.c.b16 %v3481, %v3475
    %v3632 = vpack.c.b16 %v3482, %v3476
    %v3633 = vpack.c.b16 %v3483, %v3477
    %v3634 = vpack.c.b16 %v3484, %v3478
    %v3635 = vpack.c.b16 %v3491, %v3485
    %v3636 = vpack.c.b16 %v3492, %v3486
    %v3637 = vpack.c.b16 %v3493, %v3487
    %v3638 = vpack.c.b16 %v3494, %v3488
    %v3639 = vpack.c.b16 %v3495, %v3489
    %v3640 = vpack.c.b16 %v3496, %v3490
    %v3641 = vpack.c.b16 %v3503, %v3497
    %v3642 = vpack.c.b16 %v3504, %v3498
    %v3643 = vpack.c.b16 %v3505, %v3499
    %v3644 = vpack.c.b16 %v3506, %v3500
    %v3645 = vpack.c.b16 %v3507, %v3501
    %v3646 = vpack.c.b16 %v3508, %v3502
    %v3647 = vpack.c.b16 %v3515, %v3509
    %v3648 = vpack.c.b16 %v3516, %v3510
    %v3649 = vpack.c.b16 %v3517, %v3511
    %v3650 = vpack.c.b16 %v3518, %v3512
    %v3651 = vpack.c.b16 %v3519, %v3513
    %v3652 = vpack.c.b16 %v3520, %v3514
    %v3653 = vpack.c.b16 %v3527, %v3521
    %v3654 = vpack.c.b16 %v3528, %v3522
    %v3655 = vpack.c.b16 %v3529, %v3523
    %v3656 = vpack.c.b16 %v3530, %v3524
    %v3657 = vpack.c.b16 %v3531, %v3525
    %v3658 = vpack.c.b16 %v3532, %v3526
    %v3659 = vpack.c.b16 %v3539, %v3533
    %v3660 = vpack.c.b16 %v3540, %v3534
    %v3661 = vpack.c.b16 %v3541, %v3535
    %v3662 = vpack.c.b16 %v3542, %v3536
    %v3663 = vpack.c.b16 %v3543, %v3537
    %v3664 = vpack.c.b16 %v3544, %v3538
    %v3665 = vpack.c.b16 %v3551, %v3545
    %v3666 = vpack.c.b16 %v3552, %v3546
    %v3667 = vpack.c.b16 %v3553, %v3547
    %v3668 = vpack.c.b16 %v3554, %v3548
    %v3669 = vpack.c.b16 %v3555, %v3549
    %v3670 = vpack.c.b16 %v3556, %v3550
    %v3671 = vpack.c.b16 %v3563, %v3557
    %v3672 = vpack.c.b16 %v3564, %v3558
    %v3673 = vpack.c.b16 %v3565, %v3559
    %v3674 = vpack.c.b16 %v3566, %v3560
    %v3675 = vpack.c.b16 %v3567, %v3561
    %v3676 = vpack.c.b16 %v3568, %v3562
    %v3677 = vpack.c.b16 %v3575, %v3569
    %v3678 = vpack.c.b16 %v3576, %v3570
    %v3679 = vpack.c.b16 %v3577, %v3571
    %v3680 = vpack.c.b16 %v3578, %v3572
    %v3681 = vpack.c.b16 %v3579, %v3573
    %v3682 = vpack.c.b16 %v3580, %v3574
    %v3683 = vpack.c.b16 %v3587, %v3581
    %v3684 = vpack.c.b16 %v3588, %v3582
    %v3685 = vpack.c.b16 %v3589, %v3583
    %v3686 = vpack.c.b16 %v3590, %v3584
    %v3687 = vpack.c.b16 %v3591, %v3585
    %v3688 = vpack.c.b16 %v3592, %v3586
    %v3977 = vunpack.c.l.b16 %v3091
    %v3978 = vunpack.c.h.b16 %v3091
    %v3979 = vunpack.c.l.b16 %v3092
    %v3980 = vunpack.c.h.b16 %v3092
    %v3981 = vunpack.c.l.b16 %v3093
    %v3982 = vunpack.c.h.b16 %v3093
    %v3983 = vunpack.c.l.b16 %v3094
    %v3984 = vunpack.c.h.b16 %v3094
    %v3985 = vunpack.c.l.b16 %v3095
    %v3986 = vunpack.c.h.b16 %v3095
    %v3987 = vunpack.c.l.b16 %v3096
    %v3988 = vunpack.c.h.b16 %v3096
    %v3989 = vunpack.c.l.b16 %v3097
    %v3990 = vunpack.c.h.b16 %v3097
    %v3991 = vunpack.c.l.b16 %v3098
    %v3992 = vunpack.c.h.b16 %v3098
    %v3993 = vunpack.c.l.b16 %v3099
    %v3994 = vunpack.c.h.b16 %v3099
    %v3995 = vunpack.c.l.b16 %v3100
    %v3996 = vunpack.c.h.b16 %v3100
    %v3997 = vunpack.c.l.b16 %v3101
    %v3998 = vunpack.c.h.b16 %v3101
    %v3999 = vunpack.c.l.b16 %v3102
    %v4000 = vunpack.c.h.b16 %v3102
    %v4001 = vunpack.c.l.b16 %v3103
    %v4002 = vunpack.c.h.b16 %v3103
    %v4003 = vunpack.c.l.b16 %v3104
    %v4004 = vunpack.c.h.b16 %v3104
    %v4005 = vunpack.c.l.b16 %v3105
    %v4006 = vunpack.c.h.b16 %v3105
    %v4007 = vunpack.c.l.b16 %v3106
    %v4008 = vunpack.c.h.b16 %v3106
    %v4009 = vunpack.c.l.b16 %v3107
    %v4010 = vunpack.c.h.b16 %v3107
    %v4011 = vunpack.c.l.b16 %v3108
    %v4012 = vunpack.c.h.b16 %v3108
    %v4013 = vunpack.c.l.b16 %v3109
    %v4014 = vunpack.c.h.b16 %v3109
    %v4015 = vunpack.c.l.b16 %v3110
    %v4016 = vunpack.c.h.b16 %v3110
    %v4017 = vunpack.c.l.b16 %v3111
    %v4018 = vunpack.c.h.b16 %v3111
    %v4019 = vunpack.c.l.b16 %v3112
    %v4020 = vunpack.c.h.b16 %v3112
    %v4021 = vunpack.c.l.b16 %v3113
    %v4022 = vunpack.c.h.b16 %v3113
    %v4023 = vunpack.c.l.b16 %v3114
    %v4024 = vunpack.c.h.b16 %v3114
    %v4025 = vunpack.c.l.b16 %v3115
    %v4026 = vunpack.c.h.b16 %v3115
    %v4027 = vunpack.c.l.b16 %v3116
    %v4028 = vunpack.c.h.b16 %v3116
    %v4029 = vunpack.c.l.b16 %v3117
    %v4030 = vunpack.c.h.b16 %v3117
    %v4031 = vunpack.c.l.b16 %v3118
    %v4032 = vunpack.c.h.b16 %v3118
    %v4033 = vunpack.c.l.b16 %v3119
    %v4034 = vunpack.c.h.b16 %v3119
    %v4035 = vunpack.c.l.b16 %v3120
    %v4036 = vunpack.c.h.b16 %v3120
    %v4037 = vunpack.c.l.b16 %v3121
    %v4038 = vunpack.c.h.b16 %v3121
    %v4039 = vunpack.c.l.b16 %v3122
    %v4040 = vunpack.c.h.b16 %v3122
    %v4041 = vunpack.c.l.b16 %v3123
    %v4042 = vunpack.c.h.b16 %v3123
    %v4043 = vunpack.c.l.b16 %v3124
    %v4044 = vunpack.c.h.b16 %v3124
    %v4045 = vunpack.c.l.b16 %v3125
    %v4046 = vunpack.c.h.b16 %v3125
    %v4047 = vunpack.c.l.b16 %v3126
    %v4048 = vunpack.c.h.b16 %v3126
    %v4049 = vunpack.c.l.b16 %v3127
    %v4050 = vunpack.c.h.b16 %v3127
    %v4051 = vunpack.c.l.b16 %v3128
    %v4052 = vunpack.c.h.b16 %v3128
    %v4053 = vunpack.c.l.b16 %v3129
    %v4054 = vunpack.c.h.b16 %v3129
    %v4055 = vunpack.c.l.b16 %v3130
    %v4056 = vunpack.c.h.b16 %v3130
    %v4057 = vunpack.c.l.b16 %v3131
    %v4058 = vunpack.c.h.b16 %v3131
    %v4059 = vunpack.c.l.b16 %v3132
    %v4060 = vunpack.c.h.b16 %v3132
    %v4061 = vunpack.c.l.b16 %v3133
    %v4062 = vunpack.c.h.b16 %v3133
    %v4063 = vunpack.c.l.b16 %v3134
    %v4064 = vunpack.c.h.b16 %v3134
    %v4065 = vunpack.c.l.b16 %v3135
    %v4066 = vunpack.c.h.b16 %v3135
    %v4067 = vunpack.c.l.b16 %v3136
    %v4068 = vunpack.c.h.b16 %v3136
    %v4069 = vunpack.c.l.b16 %v3137
    %v4070 = vunpack.c.h.b16 %v3137
    %v4071 = vunpack.c.l.b16 %v3138
    %v4072 = vunpack.c.h.b16 %v3138
    %v4073 = vunpack.c.l.b16 %v3139
    %v4074 = vunpack.c.h.b16 %v3139
    %v4075 = vunpack.c.l.b16 %v3140
    %v4076 = vunpack.c.h.b16 %v3140
    %v4077 = vunpack.c.l.b16 %v3141
    %v4078 = vunpack.c.h.b16 %v3141
    %v4079 = vunpack.c.l.b16 %v3142
    %v4080 = vunpack.c.h.b16 %v3142
    %v4081 = vunpack.c.l.b16 %v3143
    %v4082 = vunpack.c.h.b16 %v3143
    %v4083 = vunpack.c.l.b16 %v3144
    %v4084 = vunpack.c.h.b16 %v3144
    %v4085 = vunpack.c.l.b16 %v3145
    %v4086 = vunpack.c.h.b16 %v3145
    %v4087 = vunpack.c.l.b16 %v3146
    %v4088 = vunpack.c.h.b16 %v3146
    %v4089 = vunpack.c.l.b16 %v3147
    %v4090 = vunpack.c.h.b16 %v3147
    %v4091 = vunpack.c.l.b16 %v3148
    %v4092 = vunpack.c.h.b16 %v3148
    %v4093 = vunpack.c.l.b16 %v3149
    %v4094 = vunpack.c.h.b16 %v3149
    %v4095 = vunpack.c.l.b16 %v3150
    %v4096 = vunpack.c.h.b16 %v3150
    %v4097 = vunpack.c.l.b16 %v3151
    %v4098 = vunpack.c.h.b16 %v3151
    %v4099 = vunpack.c.l.b16 %v3152
    %v4100 = vunpack.c.h.b16 %v3152
    %v4101 = vunpack.c.l.b16 %v3153
    %v4102 = vunpack.c.h.b16 %v3153
    %v4103 = vunpack.c.l.b16 %v3154
    %v4104 = vunpack.c.h.b16 %v3154
    %v4105 = vunpack.c.l.b16 %v3155
    %v4106 = vunpack.c.h.b16 %v3155
    %v4107 = vunpack.c.l.b16 %v3156
    %v4108 = vunpack.c.h.b16 %v3156
    %v4109 = vunpack.c.l.b16 %v3157
    %v4110 = vunpack.c.h.b16 %v3157
    %v4111 = vunpack.c.l.b16 %v3158
    %v4112 = vunpack.c.h.b16 %v3158
    %v4113 = vunpack.c.l.b16 %v3159
    %v4114 = vunpack.c.h.b16 %v3159
    %v4115 = vunpack.c.l.b16 %v3160
    %v4116 = vunpack.c.h.b16 %v3160
    %v4117 = vunpack.c.l.b16 %v3161
    %v4118 = vunpack.c.h.b16 %v3161
    %v4119 = vunpack.c.l.b16 %v3162
    %v4120 = vunpack.c.h.b16 %v3162
    %v4121 = vunpack.c.l.b16 %v3163
    %v4122 = vunpack.c.h.b16 %v3163
    %v4123 = vunpack.c.l.b16 %v3164
    %v4124 = vunpack.c.h.b16 %v3164
    %v4125 = vunpack.c.l.b16 %v3165
    %v4126 = vunpack.c.h.b16 %v3165
    %v4127 = vunpack.c.l.b16 %v3166
    %v4128 = vunpack.c.h.b16 %v3166
    %v4129 = vunpack.c.l.b16 %v3167
    %v4130 = vunpack.c.h.b16 %v3167
    %v4131 = vunpack.c.l.b16 %v3168
    %v4132 = vunpack.c.h.b16 %v3168
    %v4133 = vunpack.c.l.b16 %v3169
    %v4134 = vunpack.c.h.b16 %v3169
    %v4135 = vunpack.c.l.b16 %v3170
    %v4136 = vunpack.c.h.b16 %v3170
    %v4137 = vunpack.c.l.b16 %v3171
    %v4138 = vunpack.c.h.b16 %v3171
    %v4139 = vunpack.c.l.b16 %v3172
    %v4140 = vunpack.c.h.b16 %v3172
    %v4141 = vunpack.c.l.b16 %v3173
    %v4142 = vunpack.c.h.b16 %v3173
    %v4143 = vunpack.c.l.b16 %v3174
    %v4144 = vunpack.c.h.b16 %v3174
    %v4145 = vunpack.c.l.b16 %v3175
    %v4146 = vunpack.c.h.b16 %v3175
    %v4147 = vunpack.c.l.b16 %v3176
    %v4148 = vunpack.c.h.b16 %v3176
    %v4149 = vunpack.c.l.b16 %v3177
    %v4150 = vunpack.c.h.b16 %v3177
    %v4151 = vunpack.c.l.b16 %v3178
    %v4152 = vunpack.c.h.b16 %v3178
    %v4153 = vunpack.c.l.b16 %v3179
    %v4154 = vunpack.c.h.b16 %v3179
    %v4155 = vunpack.c.l.b16 %v3180
    %v4156 = vunpack.c.h.b16 %v3180
    %v4157 = vunpack.c.l.b16 %v3181
    %v4158 = vunpack.c.h.b16 %v3181
    %v4159 = vunpack.c.l.b16 %v3182
    %v4160 = vunpack.c.h.b16 %v3182
    %v4161 = vunpack.c.l.b16 %v3183
    %v4162 = vunpack.c.h.b16 %v3183
    %v4163 = vunpack.c.l.b16 %v3184
    %v4164 = vunpack.c.h.b16 %v3184
    %v4165 = vunpack.c.l.b16 %v3185
    %v4166 = vunpack.c.h.b16 %v3185
    %v4167 = vunpack.c.l.b16 %v3186
    %v4168 = vunpack.c.h.b16 %v3186
    %v4169 = vunpack.c.l.b16 %v3187
    %v4170 = vunpack.c.h.b16 %v3187
    %v4171 = vunpack.c.l.b16 %v3188
    %v4172 = vunpack.c.h.b16 %v3188
    %v4173 = vunpack.c.l.b16 %v3189
    %v4174 = vunpack.c.h.b16 %v3189
    %v4175 = vunpack.c.l.b16 %v3190
    %v4176 = vunpack.c.h.b16 %v3190
    %v4177 = vunpack.c.l.b16 %v3191
    %v4178 = vunpack.c.h.b16 %v3191
    %v4179 = vunpack.c.l.b16 %v3192
    %v4180 = vunpack.c.h.b16 %v3192
    %v4181 = vunpack.c.l.b16 %v3193
    %v4182 = vunpack.c.h.b16 %v3193
    %v4183 = vunpack.c.l.b16 %v3194
    %v4184 = vunpack.c.h.b16 %v3194
    %v4185 = vunpack.c.l.b16 %v3195
    %v4186 = vunpack.c.h.b16 %v3195
    %v4187 = vunpack.c.l.b16 %v3196
    %v4188 = vunpack.c.h.b16 %v3196
    %v4189 = vunpack.c.l.b16 %v3197
    %v4190 = vunpack.c.h.b16 %v3197
    %v4191 = vunpack.c.l.b16 %v3198
    %v4192 = vunpack.c.h.b16 %v3198
    %v4193 = vunpack.c.l.b16 %v3199
    %v4194 = vunpack.c.h.b16 %v3199
    %v4195 = vunpack.c.l.b16 %v3200
    %v4196 = vunpack.c.h.b16 %v3200
    %v4197 = vunpack.c.l.b16 %v3201
    %v4198 = vunpack.c.h.b16 %v3201
    %v4199 = vunpack.c.l.b16 %v3202
    %v4200 = vunpack.c.h.b16 %v3202
    %v4201 = vunpack.c.l.b16 %v3203
    %v4202 = vunpack.c.h.b16 %v3203
    %v4203 = vunpack.c.l.b16 %v3204
    %v4204 = vunpack.c.h.b16 %v3204
    %v4205 = vunpack.c.l.b16 %v3205
    %v4206 = vunpack.c.h.b16 %v3205
    %v4207 = vunpack.c.l.b16 %v3206
    %v4208 = vunpack.c.h.b16 %v3206
    %v4209 = vunpack.c.l.b16 %v3207
    %v4210 = vunpack.c.h.b16 %v3207
    %v4211 = vunpack.c.l.b16 %v3208
    %v4212 = vunpack.c.h.b16 %v3208
    %v4213 = vunpack.c.l.b16 %v3209
    %v4214 = vunpack.c.h.b16 %v3209
    %v4215 = vunpack.c.l.b16 %v3210
    %v4216 = vunpack.c.h.b16 %v3210
    %v4217 = vunpack.c.l.b16 %v3211
    %v4218 = vunpack.c.h.b16 %v3211
    %v4219 = vunpack.c.l.b16 %v3212
    %v4220 = vunpack.c.h.b16 %v3212
    %v4221 = vunpack.c.l.b16 %v3213
    %v4222 = vunpack.c.h.b16 %v3213
    %v4223 = vunpack.c.l.b16 %v3214
    %v4224 = vunpack.c.h.b16 %v3214
    %v4225 = vunpack.c.l.b16 %v3215
    %v4226 = vunpack.c.h.b16 %v3215
    %v4227 = vunpack.c.l.b16 %v3216
    %v4228 = vunpack.c.h.b16 %v3216
    %v4229 = vunpack.c.l.b16 %v3217
    %v4230 = vunpack.c.h.b16 %v3217
    %v4231 = vunpack.c.l.b16 %v3218
    %v4232 = vunpack.c.h.b16 %v3218
    %v4233 = vunpack.c.l.b16 %v3219
    %v4234 = vunpack.c.h.b16 %v3219
    %v4235 = vunpack.c.l.b16 %v3220
    %v4236 = vunpack.c.h.b16 %v3220
    %v4237 = vunpack.c.l.b16 %v3221
    %v4238 = vunpack.c.h.b16 %v3221
    %v4239 = vunpack.c.l.b16 %v3222
    %v4240 = vunpack.c.h.b16 %v3222
    %v4241 = vunpack.c.l.b16 %v3223
    %v4242 = vunpack.c.h.b16 %v3223
    %v4243 = vunpack.c.l.b16 %v3224
    %v4244 = vunpack.c.h.b16 %v3224
    %v4245 = vunpack.c.l.b16 %v3225
    %v4246 = vunpack.c.h.b16 %v3225
    %v4247 = vunpack.c.l.b16 %v3226
    %v4248 = vunpack.c.h.b16 %v3226
    %v4249 = vunpack.c.l.b16 %v3227
    %v4250 = vunpack.c.h.b16 %v3227
    %v4251 = vunpack.c.l.b16 %v3228
    %v4252 = vunpack.c.h.b16 %v3228
    %v4253 = vunpack.c.l.b16 %v3229
    %v4254 = vunpack.c.h.b16 %v3229
    %v4255 = vunpack.c.l.b16 %v3230
    %v4256 = vunpack.c.h.b16 %v3230
    %v4257 = vunpack.c.l.b16 %v3231
    %v4258 = vunpack.c.h.b16 %v3231
    %v4259 = vunpack.c.l.b16 %v3232
    %v4260 = vunpack.c.h.b16 %v3232
    %v4261 = vunpack.c.l.b16 %v3233
    %v4262 = vunpack.c.h.b16 %v3233
    %v4263 = vunpack.c.l.b16 %v3234
    %v4264 = vunpack.c.h.b16 %v3234
    %v4265 = vunpack.c.l.b16 %v3235
    %v4266 = vunpack.c.h.b16 %v3235
    %v4267 = vunpack.c.l.b16 %v3236
    %v4268 = vunpack.c.h.b16 %v3236
    %v4269 = vunpack.c.l.b16 %v3237
    %v4270 = vunpack.c.h.b16 %v3237
    %v4271 = vunpack.c.l.b16 %v3238
    %v4272 = vunpack.c.h.b16 %v3238
    %v4273 = vunpack.c.l.b16 %v3239
    %v4274 = vunpack.c.h.b16 %v3239
    %v4275 = vunpack.c.l.b16 %v3240
    %v4276 = vunpack.c.h.b16 %v3240
    %v4277 = vunpack.c.l.b16 %v3241
    %v4278 = vunpack.c.h.b16 %v3241
    %v4279 = vunpack.c.l.b16 %v3242
    %v4280 = vunpack.c.h.b16 %v3242
    %v4281 = vunpack.c.l.b16 %v3243
    %v4282 = vunpack.c.h.b16 %v3243
    %v4283 = vunpack.c.l.b16 %v3244
    %v4284 = vunpack.c.h.b16 %v3244
    %v4285 = vunpack.c.l.b16 %v3245
    %v4286 = vunpack.c.h.b16 %v3245
    %v4287 = vunpack.c.l.b16 %v3246
    %v4288 = vunpack.c.h.b16 %v3246
    %v4289 = vunpack.c.l.b16 %v3247
    %v4290 = vunpack.c.h.b16 %v3247
    %v4291 = vunpack.c.l.b16 %v3248
    %v4292 = vunpack.c.h.b16 %v3248
    %v4293 = vunpack.c.l.b16 %v3249
    %v4294 = vunpack.c.h.b16 %v3249
    %v4295 = vunpack.c.l.b16 %v3250
    %v4296 = vunpack.c.h.b16 %v3250
    %v4297 = vunpack.c.l.b16 %v3251
    %v4298 = vunpack.c.h.b16 %v3251
    %v4299 = vunpack.c.l.b16 %v3252
    %v4300 = vunpack.c.h.b16 %v3252
    %v4301 = vunpack.c.l.b16 %v3253
    %v4302 = vunpack.c.h.b16 %v3253
    %v4303 = vunpack.c.l.b16 %v3254
    %v4304 = vunpack.c.h.b16 %v3254
    %v4305 = vunpack.c.l.b16 %v3255
    %v4306 = vunpack.c.h.b16 %v3255
    %v4307 = vunpack.c.l.b16 %v3256
    %v4308 = vunpack.c.h.b16 %v3256
    %v4309 = vunpack.c.l.b16 %v3257
    %v4310 = vunpack.c.h.b16 %v3257
    %v4311 = vunpack.c.l.b16 %v3258
    %v4312 = vunpack.c.h.b16 %v3258
    %v4313 = vunpack.c.l.b16 %v3259
    %v4314 = vunpack.c.h.b16 %v3259
    %v4315 = vunpack.c.l.b16 %v3260
    %v4316 = vunpack.c.h.b16 %v3260
    %v4317 = vunpack.c.l.b16 %v3261
    %v4318 = vunpack.c.h.b16 %v3261
    %v4319 = vunpack.c.l.b16 %v3262
    %v4320 = vunpack.c.h.b16 %v3262
    %v4321 = vunpack.c.l.b16 %v3263
    %v4322 = vunpack.c.h.b16 %v3263
    %v4323 = vunpack.c.l.b16 %v3264
    %v4324 = vunpack.c.h.b16 %v3264
    %v4325 = vunpack.c.l.b16 %v3265
    %v4326 = vunpack.c.h.b16 %v3265
    %v4327 = vunpack.c.l.b16 %v3266
    %v4328 = vunpack.c.h.b16 %v3266
    %v4329 = vunpack.c.l.b16 %v3267
    %v4330 = vunpack.c.h.b16 %v3267
    %v4331 = vunpack.c.l.b16 %v3268
    %v4332 = vunpack.c.h.b16 %v3268
    %v4333 = vunpack.c.l.b16 %v3269
    %v4334 = vunpack.c.h.b16 %v3269
    %v4335 = vunpack.c.l.b16 %v3270
    %v4336 = vunpack.c.h.b16 %v3270
    %v4337 = vunpack.c.l.b16 %v3271
    %v4338 = vunpack.c.h.b16 %v3271
    %v4339 = vunpack.c.l.b16 %v3272
    %v4340 = vunpack.c.h.b16 %v3272
    %v4341 = vunpack.c.l.b16 %v3273
    %v4342 = vunpack.c.h.b16 %v3273
    %v4343 = vunpack.c.l.b16 %v3274
    %v4344 = vunpack.c.h.b16 %v3274
    %v4345 = vunpack.c.l.b16 %v3275
    %v4346 = vunpack.c.h.b16 %v3275
    %v4347 = vunpack.c.l.b16 %v3276
    %v4348 = vunpack.c.h.b16 %v3276
    %v4349 = vunpack.c.l.b16 %v3277
    %v4350 = vunpack.c.h.b16 %v3277
    %v4351 = vunpack.c.l.b16 %v3278
    %v4352 = vunpack.c.h.b16 %v3278
    %v4353 = vunpack.c.l.b16 %v3279
    %v4354 = vunpack.c.h.b16 %v3279
    %v4355 = vunpack.c.l.b16 %v3280
    %v4356 = vunpack.c.h.b16 %v3280
    %v4357 = vunpack.c.l.b16 %v3281
    %v4358 = vunpack.c.h.b16 %v3281
    %v4359 = vunpack.c.l.b16 %v3282
    %v4360 = vunpack.c.h.b16 %v3282
    %v4361 = vpack.c.b16 %v3981, %v3977
    %v4362 = vpack.c.b16 %v3982, %v3978
    %v4363 = vpack.c.b16 %v3983, %v3979
    %v4364 = vpack.c.b16 %v3984, %v3980
    %v4365 = vpack.c.b16 %v3989, %v3985
    %v4366 = vpack.c.b16 %v3990, %v3986
    %v4367 = vpack.c.b16 %v3991, %v3987
    %v4368 = vpack.c.b16 %v3992, %v3988
    %v4369 = vpack.c.b16 %v3997, %v3993
    %v4370 = vpack.c.b16 %v3998, %v3994
    %v4371 = vpack.c.b16 %v3999, %v3995
    %v4372 = vpack.c.b16 %v4000, %v3996
    %v4373 = vpack.c.b16 %v4005, %v4001
    %v4374 = vpack.c.b16 %v4006, %v4002
    %v4375 = vpack.c.b16 %v4007, %v4003
    %v4376 = vpack.c.b16 %v4008, %v4004
    %v4377 = vpack.c.b16 %v4013, %v4009
    %v4378 = vpack.c.b16 %v4014, %v4010
    %v4379 = vpack.c.b16 %v4015, %v4011
    %v4380 = vpack.c.b16 %v4016, %v4012
    %v4381 = vpack.c.b16 %v4021, %v4017
    %v4382 = vpack.c.b16 %v4022, %v4018
    %v4383 = vpack.c.b16 %v4023, %v4019
    %v4384 = vpack.c.b16 %v4024, %v4020
    %v4385 = vpack.c.b16 %v4029, %v4025
    %v4386 = vpack.c.b16 %v4030, %v4026
    %v4387 = vpack.c.b16 %v4031, %v4027
    %v4388 = vpack.c.b16 %v4032, %v4028
    %v4389 = vpack.c.b16 %v4037, %v4033
    %v4390 = vpack.c.b16 %v4038, %v4034
    %v4391 = vpack.c.b16 %v4039, %v4035
    %v4392 = vpack.c.b16 %v4040, %v4036
    %v4393 = vpack.c.b16 %v4045, %v4041
    %v4394 = vpack.c.b16 %v4046, %v4042
    %v4395 = vpack.c.b16 %v4047, %v4043
    %v4396 = vpack.c.b16 %v4048, %v4044
    %v4397 = vpack.c.b16 %v4053, %v4049
    %v4398 = vpack.c.b16 %v4054, %v4050
    %v4399 = vpack.c.b16 %v4055, %v4051
    %v4400 = vpack.c.b16 %v4056, %v4052
    %v4401 = vpack.c.b16 %v4061, %v4057
    %v4402 = vpack.c.b16 %v4062, %v4058
    %v4403 = vpack.c.b16 %v4063, %v4059
    %v4404 = vpack.c.b16 %v4064, %v4060
    %v4405 = vpack.c.b16 %v4069, %v4065
    %v4406 = vpack.c.b16 %v4070, %v4066
    %v4407 = vpack.c.b16 %v4071, %v4067
    %v4408 = vpack.c.b16 %v4072, %v4068
    %v4409 = vpack.c.b16 %v4077, %v4073
    %v4410 = vpack.c.b16 %v4078, %v4074
    %v4411 = vpack.c.b16 %v4079, %v4075
    %v4412 = vpack.c.b16 %v4080, %v4076
    %v4413 = vpack.c.b16 %v4085, %v4081
    %v4414 = vpack.c.b16 %v4086, %v4082
    %v4415 = vpack.c.b16 %v4087, %v4083
    %v4416 = vpack.c.b16 %v4088, %v4084
    %v4417 = vpack.c.b16 %v4093, %v4089
    %v4418 = vpack.c.b16 %v4094, %v4090
    %v4419 = vpack.c.b16 %v4095, %v4091
    %v4420 = vpack.c.b16 %v4096, %v4092
    %v4421 = vpack.c.b16 %v4101, %v4097
    %v4422 = vpack.c.b16 %v4102, %v4098
    %v4423 = vpack.c.b16 %v4103, %v4099
    %v4424 = vpack.c.b16 %v4104, %v4100
    %v4425 = vpack.c.b16 %v4109, %v4105
    %v4426 = vpack.c.b16 %v4110, %v4106
    %v4427 = vpack.c.b16 %v4111, %v4107
    %v4428 = vpack.c.b16 %v4112, %v4108
    %v4429 = vpack.c.b16 %v4117, %v4113
    %v4430 = vpack.c.b16 %v4118, %v4114
    %v4431 = vpack.c.b16 %v4119, %v4115
    %v4432 = vpack.c.b16 %v4120, %v4116
    %v4433 = vpack.c.b16 %v4125, %v4121
    %v4434 = vpack.c.b16 %v4126, %v4122
    %v4435 = vpack.c.b16 %v4127, %v4123
    %v4436 = vpack.c.b16 %v4128, %v4124
    %v4437 = vpack.c.b16 %v4133, %v4129
    %v4438 = vpack.c.b16 %v4134, %v4130
    %v4439 = vpack.c.b16 %v4135, %v4131
    %v4440 = vpack.c.b16 %v4136, %v4132
    %v4441 = vpack.c.b16 %v4141, %v4137
    %v4442 = vpack.c.b16 %v4142, %v4138
    %v4443 = vpack.c.b16 %v4143, %v4139
    %v4444 = vpack.c.b16 %v4144, %v4140
    %v4445 = vpack.c.b16 %v4149, %v4145
    %v4446 = vpack.c.b16 %v4150, %v4146
    %v4447 = vpack.c.b16 %v4151, %v4147
    %v4448 = vpack.c.b16 %v4152, %v4148
    %v4449 = vpack.c.b16 %v4157, %v4153
    %v4450 = vpack.c.b16 %v4158, %v4154
    %v4451 = vpack.c.b16 %v4159, %v4155
    %v4452 = vpack.c.b16 %v4160, %v4156
    %v4453 = vpack.c.b16 %v4165, %v4161
    %v4454 = vpack.c.b16 %v4166, %v4162
    %v4455 = vpack.c.b16 %v4167, %v4163
    %v4456 = vpack.c.b16 %v4168, %v4164
    %v4457 = vpack.c.b16 %v4173, %v4169
    %v4458 = vpack.c.b16 %v4174, %v4170
    %v4459 = vpack.c.b16 %v4175, %v4171
    %v4460 = vpack.c.b16 %v4176, %v4172
    %v4461 = vpack.c.b16 %v4181, %v4177
    %v4462 = vpack.c.b16 %v4182, %v4178
    %v4463 = vpack.c.b16 %v4183, %v4179
    %v4464 = vpack.c.b16 %v4184, %v4180
    %v4465 = vpack.c.b16 %v4189, %v4185
    %v4466 = vpack.c.b16 %v4190, %v4186
    %v4467 = vpack.c.b16 %v4191, %v4187
    %v4468 = vpack.c.b16 %v4192, %v4188
    %v4469 = vpack.c.b16 %v4197, %v4193
    %v4470 = vpack.c.b16 %v4198, %v4194
    %v4471 = vpack.c.b16 %v4199, %v4195
    %v4472 = vpack.c.b16 %v4200, %v4196
    %v4473 = vpack.c.b16 %v4205, %v4201
    %v4474 = vpack.c.b16 %v4206, %v4202
    %v4475 = vpack.c.b16 %v4207, %v4203
    %v4476 = vpack.c.b16 %v4208, %v4204
    %v4477 = vpack.c.b16 %v4213, %v4209
    %v4478 = vpack.c.b16 %v4214, %v4210
    %v4479 = vpack.c.b16 %v4215, %v4211
    %v4480 = vpack.c.b16 %v4216, %v4212
    %v4481 = vpack.c.b16 %v4221, %v4217
    %v4482 = vpack.c.b16 %v4222, %v4218
    %v4483 = vpack.c.b16 %v4223, %v4219
    %v4484 = vpack.c.b16 %v4224, %v4220
    %v4485 = vpack.c.b16 %v4229, %v4225
    %v4486 = vpack.c.b16 %v4230, %v4226
    %v4487 = vpack.c.b16 %v4231, %v4227
    %v4488 = vpack.c.b16 %v4232, %v4228
    %v4489 = vpack.c.b16 %v4237, %v4233
    %v4490 = vpack.c.b16 %v4238, %v4234
    %v4491 = vpack.c.b16 %v4239, %v4235
    %v4492 = vpack.c.b16 %v4240, %v4236
    %v4493 = vpack.c.b16 %v4245, %v4241
    %v4494 = vpack.c.b16 %v4246, %v4242
    %v4495 = vpack.c.b16 %v4247, %v4243
    %v4496 = vpack.c.b16 %v4248, %v4244
    %v4497 = vpack.c.b16 %v4253, %v4249
    %v4498 = vpack.c.b16 %v4254, %v4250
    %v4499 = vpack.c.b16 %v4255, %v4251
    %v4500 = vpack.c.b16 %v4256, %v4252
    %v4501 = vpack.c.b16 %v4261, %v4257
    %v4502 = vpack.c.b16 %v4262, %v4258
    %v4503 = vpack.c.b16 %v4263, %v4259
    %v4504 = vpack.c.b16 %v4264, %v4260
    %v4505 = vpack.c.b16 %v4269, %v4265
    %v4506 = vpack.c.b16 %v4270, %v4266
    %v4507 = vpack.c.b16 %v4271, %v4267
    %v4508 = vpack.c.b16 %v4272, %v4268
    %v4509 = vpack.c.b16 %v4277, %v4273
    %v4510 = vpack.c.b16 %v4278, %v4274
    %v4511 = vpack.c.b16 %v4279, %v4275
    %v4512 = vpack.c.b16 %v4280, %v4276
    %v4513 = vpack.c.b16 %v4285, %v4281
    %v4514 = vpack.c.b16 %v4286, %v4282
    %v4515 = vpack.c.b16 %v4287, %v4283
    %v4516 = vpack.c.b16 %v4288, %v4284
    %v4517 = vpack.c.b16 %v4293, %v4289
    %v4518 = vpack.c.b16 %v4294, %v4290
    %v4519 = vpack.c.b16 %v4295, %v4291
    %v4520 = vpack.c.b16 %v4296, %v4292
    %v4521 = vpack.c.b16 %v4301, %v4297
    %v4522 = vpack.c.b16 %v4302, %v4298
    %v4523 = vpack.c.b16 %v4303, %v4299
    %v4524 = vpack.c.b16 %v4304, %v4300
    %v4525 = vpack.c.b16 %v4309, %v4305
    %v4526 = vpack.c.b16 %v4310, %v4306
    %v4527 = vpack.c.b16 %v4311, %v4307
    %v4528 = vpack.c.b16 %v4312, %v4308
    %v4529 = vpack.c.b16 %v4317, %v4313
    %v4530 = vpack.c.b16 %v4318, %v4314
    %v4531 = vpack.c.b16 %v4319, %v4315
    %v4532 = vpack.c.b16 %v4320, %v4316
    %v4533 = vpack.c.b16 %v4325, %v4321
    %v4534 = vpack.c.b16 %v4326, %v4322
    %v4535 = vpack.c.b16 %v4327, %v4323
    %v4536 = vpack.c.b16 %v4328, %v4324
    %v4537 = vpack.c.b16 %v4333, %v4329
    %v4538 = vpack.c.b16 %v4334, %v4330
    %v4539 = vpack.c.b16 %v4335, %v4331
    %v4540 = vpack.c.b16 %v4336, %v4332
    %v4541 = vpack.c.b16 %v4341, %v4337
    %v4542 = vpack.c.b16 %v4342, %v4338
    %v4543 = vpack.c.b16 %v4343, %v4339
    %v4544 = vpack.c.b16 %v4344, %v4340
    %v4545 = vpack.c.b16 %v4349, %v4345
    %v4546 = vpack.c.b16 %v4350, %v4346
    %v4547 = vpack.c.b16 %v4351, %v4347
    %v4548 = vpack.c.b16 %v4352, %v4348
    %v4549 = vpack.c.b16 %v4357, %v4353
    %v4550 = vpack.c.b16 %v4358, %v4354
    %v4551 = vpack.c.b16 %v4359, %v4355
    %v4552 = vpack.c.b16 %v4360, %v4356
    %4745 = vmatprep.subr.bf16.mxu0 %v4390
    %4746 = vmatpush1.bf16.msra.mxu0 %v4389
    %4747 = vmatprep.subr.bf16.mxu0 %v4386
    %4748 = vmatpush1.bf16.msra.mxu0 %v4385
    %4749 = vmatprep.subr.bf16.mxu0 %v4382
    %4750 = vmatpush1.bf16.msra.mxu0 %v4381
    %4751 = vmatprep.subr.bf16.mxu0 %v4378
    %4752 = vmatpush1.bf16.msra.mxu0 %v4377
    %4753 = vmatprep.subr.bf16.mxu0 %v4374
    %4754 = vmatpush1.bf16.msra.mxu0 %v4373
    %4755 = vmatprep.subr.bf16.mxu0 %v4370
    %4756 = vmatpush1.bf16.msra.mxu0 %v4369
    %4757 = vmatprep.subr.bf16.mxu0 %v4366
    %4758 = vmatpush1.bf16.msra.mxu0 %v4365
    %4759 = vmatprep.subr.bf16.mxu0 %v4362
    %4760 = vmatpush1.bf16.msra.mxu0 %v4361
    %4761 = vmatprep.subr.bf16.mxu0 %v4422
    %4762 = vmatpush2.bf16.msra.mxu0 %v4421
    %4763 = vmatprep.subr.bf16.mxu0 %v4418
    %4764 = vmatpush2.bf16.msra.mxu0 %v4417
    %4765 = vmatprep.subr.bf16.mxu0 %v4414
    %4766 = vmatpush2.bf16.msra.mxu0 %v4413
    %4767 = vmatprep.subr.bf16.mxu0 %v4410
    %4768 = vmatpush2.bf16.msra.mxu0 %v4409
    %4769 = vmatprep.subr.bf16.mxu0 %v4406
    %4770 = vmatpush2.bf16.msra.mxu0 %v4405
    %4771 = vmatprep.subr.bf16.mxu0 %v4402
    %4772 = vmatpush2.bf16.msra.mxu0 %v4401
    %4773 = vmatprep.subr.bf16.mxu0 %v4398
    %4774 = vmatpush2.bf16.msra.mxu0 %v4397
    %4775 = vmatprep.subr.bf16.mxu0 %v4394
    %4776 = vmatpush2.bf16.msra.mxu0 %v4393
    %4777 = vmatprep.mubr.bf16.mxu0 %v3594
    %4778 = vmatmul.mubr.bf16.gmra.mxu0 %v3593
    %v4779 = vpop.f32.mrf.mxu0
    %v4780 = vadd.f32 %v3288, %v4779
    %v4781 = vpop.f32.mrf.mxu0
    %v4782 = vadd.f32 %v3292, %v4781
    %v4783 = vpop.f32.mrf.mxu0
    %v4784 = vadd.f32 %v3288, %v4783
    %v4785 = vpop.f32.mrf.mxu0
    %v4786 = vadd.f32 %v3292, %v4785
    %4787 = vmatprep.mubr.bf16.mxu0 %v3600
    %4788 = vmatmul.mubr.bf16.gmra.mxu0 %v3599
    %v4789 = vpop.f32.mrf.mxu0
    %v4790 = vadd.f32 %v3288, %v4789
    %v4791 = vpop.f32.mrf.mxu0
    %v4792 = vadd.f32 %v3292, %v4791
    %v4793 = vpop.f32.mrf.mxu0
    %v4794 = vadd.f32 %v3288, %v4793
    %v4795 = vpop.f32.mrf.mxu0
    %v4796 = vadd.f32 %v3292, %v4795
    %4797 = vmatprep.mubr.bf16.mxu0 %v3606
    %4798 = vmatmul.mubr.bf16.gmra.mxu0 %v3605
    %v4799 = vpop.f32.mrf.mxu0
    %v4800 = vadd.f32 %v3288, %v4799
    %v4801 = vpop.f32.mrf.mxu0
    %v4802 = vadd.f32 %v3292, %v4801
    %v4803 = vpop.f32.mrf.mxu0
    %v4804 = vadd.f32 %v3288, %v4803
    %v4805 = vpop.f32.mrf.mxu0
    %v4806 = vadd.f32 %v3292, %v4805
    %4807 = vmatprep.mubr.bf16.mxu0 %v3612
    %4808 = vmatmul.mubr.bf16.gmra.mxu0 %v3611
    %v4809 = vpop.f32.mrf.mxu0
    %v4810 = vadd.f32 %v3288, %v4809
    %v4811 = vpop.f32.mrf.mxu0
    %v4812 = vadd.f32 %v3292, %v4811
    %v4813 = vpop.f32.mrf.mxu0
    %v4814 = vadd.f32 %v3288, %v4813
    %v4815 = vpop.f32.mrf.mxu0
    %v4816 = vadd.f32 %v3292, %v4815
    %4817 = vmatprep.mubr.bf16.mxu0 %v3618
    %4818 = vmatmul.mubr.bf16.gmra.mxu0 %v3617
    %v4819 = vpop.f32.mrf.mxu0
    %v4820 = vadd.f32 %v3288, %v4819
    %v4821 = vpop.f32.mrf.mxu0
    %v4822 = vadd.f32 %v3292, %v4821
    %v4823 = vpop.f32.mrf.mxu0
    %v4824 = vadd.f32 %v3288, %v4823
    %v4825 = vpop.f32.mrf.mxu0
    %v4826 = vadd.f32 %v3292, %v4825
    %4827 = vmatprep.mubr.bf16.mxu0 %v3624
    %4828 = vmatmul.mubr.bf16.gmra.mxu0 %v3623
    %v4829 = vpop.f32.mrf.mxu0
    %v4830 = vadd.f32 %v3288, %v4829
    %v4831 = vpop.f32.mrf.mxu0
    %v4832 = vadd.f32 %v3292, %v4831
    %v4833 = vpop.f32.mrf.mxu0
    %v4834 = vadd.f32 %v3288, %v4833
    %v4835 = vpop.f32.mrf.mxu0
    %v4836 = vadd.f32 %v3292, %v4835
    %4837 = vmatprep.mubr.bf16.mxu0 %v3630
    %4838 = vmatmul.mubr.bf16.gmra.mxu0 %v3629
    %v4839 = vpop.f32.mrf.mxu0
    %v4840 = vadd.f32 %v3288, %v4839
    %v4841 = vpop.f32.mrf.mxu0
    %v4842 = vadd.f32 %v3292, %v4841
    %v4843 = vpop.f32.mrf.mxu0
    %v4844 = vadd.f32 %v3288, %v4843
    %v4845 = vpop.f32.mrf.mxu0
    %v4846 = vadd.f32 %v3292, %v4845
    %4847 = vmatprep.mubr.bf16.mxu0 %v3636
    %4848 = vmatmul.mubr.bf16.gmra.mxu0 %v3635
    %v4849 = vpop.f32.mrf.mxu0
    %v4850 = vadd.f32 %v3288, %v4849
    %v4851 = vpop.f32.mrf.mxu0
    %v4852 = vadd.f32 %v3292, %v4851
    %v4853 = vpop.f32.mrf.mxu0
    %v4854 = vadd.f32 %v3288, %v4853
    %v4855 = vpop.f32.mrf.mxu0
    %v4856 = vadd.f32 %v3292, %v4855
    %4857 = vmatprep.mubr.bf16.mxu0 %v3642
    %4858 = vmatmul.mubr.bf16.gmra.mxu0 %v3641
    %v4859 = vpop.f32.mrf.mxu0
    %v4860 = vadd.f32 %v3288, %v4859
    %v4861 = vpop.f32.mrf.mxu0
    %v4862 = vadd.f32 %v3292, %v4861
    %v4863 = vpop.f32.mrf.mxu0
    %v4864 = vadd.f32 %v3288, %v4863
    %v4865 = vpop.f32.mrf.mxu0
    %v4866 = vadd.f32 %v3292, %v4865
    %4867 = vmatprep.mubr.bf16.mxu0 %v3648
    %4868 = vmatmul.mubr.bf16.gmra.mxu0 %v3647
    %v4869 = vpop.f32.mrf.mxu0
    %v4870 = vadd.f32 %v3288, %v4869
    %v4871 = vpop.f32.mrf.mxu0
    %v4872 = vadd.f32 %v3292, %v4871
    %v4873 = vpop.f32.mrf.mxu0
    %v4874 = vadd.f32 %v3288, %v4873
    %v4875 = vpop.f32.mrf.mxu0
    %v4876 = vadd.f32 %v3292, %v4875
    %4877 = vmatprep.mubr.bf16.mxu0 %v3654
    %4878 = vmatmul.mubr.bf16.gmra.mxu0 %v3653
    %v4879 = vpop.f32.mrf.mxu0
    %v4880 = vadd.f32 %v3288, %v4879
    %v4881 = vpop.f32.mrf.mxu0
    %v4882 = vadd.f32 %v3292, %v4881
    %v4883 = vpop.f32.mrf.mxu0
    %v4884 = vadd.f32 %v3288, %v4883
    %v4885 = vpop.f32.mrf.mxu0
    %v4886 = vadd.f32 %v3292, %v4885
    %4887 = vmatprep.mubr.bf16.mxu0 %v3660
    %4888 = vmatmul.mubr.bf16.gmra.mxu0 %v3659
    %v4889 = vpop.f32.mrf.mxu0
    %v4890 = vadd.f32 %v3288, %v4889
    %v4891 = vpop.f32.mrf.mxu0
    %v4892 = vadd.f32 %v3292, %v4891
    %v4893 = vpop.f32.mrf.mxu0
    %v4894 = vadd.f32 %v3288, %v4893
    %v4895 = vpop.f32.mrf.mxu0
    %v4896 = vadd.f32 %v3292, %v4895
    %4897 = vmatprep.mubr.bf16.mxu0 %v3666
    %4898 = vmatmul.mubr.bf16.gmra.mxu0 %v3665
    %v4899 = vpop.f32.mrf.mxu0
    %v4900 = vadd.f32 %v3288, %v4899
    %v4901 = vpop.f32.mrf.mxu0
    %v4902 = vadd.f32 %v3292, %v4901
    %v4903 = vpop.f32.mrf.mxu0
    %v4904 = vadd.f32 %v3288, %v4903
    %v4905 = vpop.f32.mrf.mxu0
    %v4906 = vadd.f32 %v3292, %v4905
    %4907 = vmatprep.mubr.bf16.mxu0 %v3672
    %4908 = vmatmul.mubr.bf16.gmra.mxu0 %v3671
    %v4909 = vpop.f32.mrf.mxu0
    %v4910 = vadd.f32 %v3288, %v4909
    %v4911 = vpop.f32.mrf.mxu0
    %v4912 = vadd.f32 %v3292, %v4911
    %v4913 = vpop.f32.mrf.mxu0
    %v4914 = vadd.f32 %v3288, %v4913
    %v4915 = vpop.f32.mrf.mxu0
    %v4916 = vadd.f32 %v3292, %v4915
    %4917 = vmatprep.mubr.bf16.mxu0 %v3678
    %4918 = vmatmul.mubr.bf16.gmra.mxu0 %v3677
    %v4919 = vpop.f32.mrf.mxu0
    %v4920 = vadd.f32 %v3288, %v4919
    %v4921 = vpop.f32.mrf.mxu0
    %v4922 = vadd.f32 %v3292, %v4921
    %v4923 = vpop.f32.mrf.mxu0
    %v4924 = vadd.f32 %v3288, %v4923
    %v4925 = vpop.f32.mrf.mxu0
    %v4926 = vadd.f32 %v3292, %v4925
    %4927 = vmatprep.mubr.bf16.mxu0 %v3684
    %4928 = vmatmul.mubr.bf16.gmra.mxu0 %v3683
    %v4929 = vpop.f32.mrf.mxu0
    %v4930 = vadd.f32 %v3288, %v4929
    %v4931 = vpop.f32.mrf.mxu0
    %v4932 = vadd.f32 %v3292, %v4931
    %v4933 = vpop.f32.mrf.mxu0
    %v4934 = vadd.f32 %v3288, %v4933
    %v4935 = vpop.f32.mrf.mxu0
    %v4936 = vadd.f32 %v3292, %v4935
    %4937 = vdwg.mxu0
    %4938 = vmatprep.subr.bf16.mxu0 %v4454
    %4939 = vmatpush1.bf16.msra.mxu0 %v4453
    %4940 = vmatprep.subr.bf16.mxu0 %v4450
    %4941 = vmatpush1.bf16.msra.mxu0 %v4449
    %4942 = vmatprep.subr.bf16.mxu0 %v4446
    %4943 = vmatpush1.bf16.msra.mxu0 %v4445
    %4944 = vmatprep.subr.bf16.mxu0 %v4442
    %4945 = vmatpush1.bf16.msra.mxu0 %v4441
    %4946 = vmatprep.subr.bf16.mxu0 %v4438
    %4947 = vmatpush1.bf16.msra.mxu0 %v4437
    %4948 = vmatprep.subr.bf16.mxu0 %v4434
    %4949 = vmatpush1.bf16.msra.mxu0 %v4433
    %4950 = vmatprep.subr.bf16.mxu0 %v4430
    %4951 = vmatpush1.bf16.msra.mxu0 %v4429
    %4952 = vmatprep.subr.bf16.mxu0 %v4426
    %4953 = vmatpush1.bf16.msra.mxu0 %v4425
    %4954 = vmatprep.subr.bf16.mxu0 %v4486
    %4955 = vmatpush2.bf16.msra.mxu0 %v4485
    %4956 = vmatprep.subr.bf16.mxu0 %v4482
    %4957 = vmatpush2.bf16.msra.mxu0 %v4481
    %4958 = vmatprep.subr.bf16.mxu0 %v4478
    %4959 = vmatpush2.bf16.msra.mxu0 %v4477
    %4960 = vmatprep.subr.bf16.mxu0 %v4474
    %4961 = vmatpush2.bf16.msra.mxu0 %v4473
    %4962 = vmatprep.subr.bf16.mxu0 %v4470
    %4963 = vmatpush2.bf16.msra.mxu0 %v4469
    %4964 = vmatprep.subr.bf16.mxu0 %v4466
    %4965 = vmatpush2.bf16.msra.mxu0 %v4465
    %4966 = vmatprep.subr.bf16.mxu0 %v4462
    %4967 = vmatpush2.bf16.msra.mxu0 %v4461
    %4968 = vmatprep.subr.bf16.mxu0 %v4458
    %4969 = vmatpush2.bf16.msra.mxu0 %v4457
    %4970 = vmatprep.mubr.bf16.mxu0 %v3596
    %4971 = vmatmul.mubr.bf16.gmra.mxu0 %v3595
    %v4972 = vpop.f32.mrf.mxu0
    %v4973 = vadd.f32 %v4780, %v4972
    %v4974 = vpop.f32.mrf.mxu0
    %v4975 = vadd.f32 %v4782, %v4974
    %v4976 = vpop.f32.mrf.mxu0
    %v4977 = vadd.f32 %v4784, %v4976
    %v4978 = vpop.f32.mrf.mxu0
    %v4979 = vadd.f32 %v4786, %v4978
    %4980 = vmatprep.mubr.bf16.mxu0 %v3602
    %4981 = vmatmul.mubr.bf16.gmra.mxu0 %v3601
    %v4982 = vpop.f32.mrf.mxu0
    %v4983 = vadd.f32 %v4790, %v4982
    %v4984 = vpop.f32.mrf.mxu0
    %v4985 = vadd.f32 %v4792, %v4984
    %v4986 = vpop.f32.mrf.mxu0
    %v4987 = vadd.f32 %v4794, %v4986
    %v4988 = vpop.f32.mrf.mxu0
    %v4989 = vadd.f32 %v4796, %v4988
    %4990 = vmatprep.mubr.bf16.mxu0 %v3608
    %4991 = vmatmul.mubr.bf16.gmra.mxu0 %v3607
    %v4992 = vpop.f32.mrf.mxu0
    %v4993 = vadd.f32 %v4800, %v4992
    %v4994 = vpop.f32.mrf.mxu0
    %v4995 = vadd.f32 %v4802, %v4994
    %v4996 = vpop.f32.mrf.mxu0
    %v4997 = vadd.f32 %v4804, %v4996
    %v4998 = vpop.f32.mrf.mxu0
    %v4999 = vadd.f32 %v4806, %v4998
    %5000 = vmatprep.mubr.bf16.mxu0 %v3614
    %5001 = vmatmul.mubr.bf16.gmra.mxu0 %v3613
    %v5002 = vpop.f32.mrf.mxu0
    %v5003 = vadd.f32 %v4810, %v5002
    %v5004 = vpop.f32.mrf.mxu0
    %v5005 = vadd.f32 %v4812, %v5004
    %v5006 = vpop.f32.mrf.mxu0
    %v5007 = vadd.f32 %v4814, %v5006
    %v5008 = vpop.f32.mrf.mxu0
    %v5009 = vadd.f32 %v4816, %v5008
    %5010 = vmatprep.mubr.bf16.mxu0 %v3620
    %5011 = vmatmul.mubr.bf16.gmra.mxu0 %v3619
    %v5012 = vpop.f32.mrf.mxu0
    %v5013 = vadd.f32 %v4820, %v5012
    %v5014 = vpop.f32.mrf.mxu0
    %v5015 = vadd.f32 %v4822, %v5014
    %v5016 = vpop.f32.mrf.mxu0
    %v5017 = vadd.f32 %v4824, %v5016
    %v5018 = vpop.f32.mrf.mxu0
    %v5019 = vadd.f32 %v4826, %v5018
    %5020 = vmatprep.mubr.bf16.mxu0 %v3626
    %5021 = vmatmul.mubr.bf16.gmra.mxu0 %v3625
    %v5022 = vpop.f32.mrf.mxu0
    %v5023 = vadd.f32 %v4830, %v5022
    %v5024 = vpop.f32.mrf.mxu0
    %v5025 = vadd.f32 %v4832, %v5024
    %v5026 = vpop.f32.mrf.mxu0
    %v5027 = vadd.f32 %v4834, %v5026
    %v5028 = vpop.f32.mrf.mxu0
    %v5029 = vadd.f32 %v4836, %v5028
    %5030 = vmatprep.mubr.bf16.mxu0 %v3632
    %5031 = vmatmul.mubr.bf16.gmra.mxu0 %v3631
    %v5032 = vpop.f32.mrf.mxu0
    %v5033 = vadd.f32 %v4840, %v5032
    %v5034 = vpop.f32.mrf.mxu0
    %v5035 = vadd.f32 %v4842, %v5034
    %v5036 = vpop.f32.mrf.mxu0
    %v5037 = vadd.f32 %v4844, %v5036
    %v5038 = vpop.f32.mrf.mxu0
    %v5039 = vadd.f32 %v4846, %v5038
    %5040 = vmatprep.mubr.bf16.mxu0 %v3638
    %5041 = vmatmul.mubr.bf16.gmra.mxu0 %v3637
    %v5042 = vpop.f32.mrf.mxu0
    %v5043 = vadd.f32 %v4850, %v5042
    %v5044 = vpop.f32.mrf.mxu0
    %v5045 = vadd.f32 %v4852, %v5044
    %v5046 = vpop.f32.mrf.mxu0
    %v5047 = vadd.f32 %v4854, %v5046
    %v5048 = vpop.f32.mrf.mxu0
    %v5049 = vadd.f32 %v4856, %v5048
    %5050 = vmatprep.mubr.bf16.mxu0 %v3644
    %5051 = vmatmul.mubr.bf16.gmra.mxu0 %v3643
    %v5052 = vpop.f32.mrf.mxu0
    %v5053 = vadd.f32 %v4860, %v5052
    %v5054 = vpop.f32.mrf.mxu0
    %v5055 = vadd.f32 %v4862, %v5054
    %v5056 = vpop.f32.mrf.mxu0
    %v5057 = vadd.f32 %v4864, %v5056
    %v5058 = vpop.f32.mrf.mxu0
    %v5059 = vadd.f32 %v4866, %v5058
    %5060 = vmatprep.mubr.bf16.mxu0 %v3650
    %5061 = vmatmul.mubr.bf16.gmra.mxu0 %v3649
    %v5062 = vpop.f32.mrf.mxu0
    %v5063 = vadd.f32 %v4870, %v5062
    %v5064 = vpop.f32.mrf.mxu0
    %v5065 = vadd.f32 %v4872, %v5064
    %v5066 = vpop.f32.mrf.mxu0
    %v5067 = vadd.f32 %v4874, %v5066
    %v5068 = vpop.f32.mrf.mxu0
    %v5069 = vadd.f32 %v4876, %v5068
    %5070 = vmatprep.mubr.bf16.mxu0 %v3656
    %5071 = vmatmul.mubr.bf16.gmra.mxu0 %v3655
    %v5072 = vpop.f32.mrf.mxu0
    %v5073 = vadd.f32 %v4880, %v5072
    %v5074 = vpop.f32.mrf.mxu0
    %v5075 = vadd.f32 %v4882, %v5074
    %v5076 = vpop.f32.mrf.mxu0
    %v5077 = vadd.f32 %v4884, %v5076
    %v5078 = vpop.f32.mrf.mxu0
    %v5079 = vadd.f32 %v4886, %v5078
    %5080 = vmatprep.mubr.bf16.mxu0 %v3662
    %5081 = vmatmul.mubr.bf16.gmra.mxu0 %v3661
    %v5082 = vpop.f32.mrf.mxu0
    %v5083 = vadd.f32 %v4890, %v5082
    %v5084 = vpop.f32.mrf.mxu0
    %v5085 = vadd.f32 %v4892, %v5084
    %v5086 = vpop.f32.mrf.mxu0
    %v5087 = vadd.f32 %v4894, %v5086
    %v5088 = vpop.f32.mrf.mxu0
    %v5089 = vadd.f32 %v4896, %v5088
    %5090 = vmatprep.mubr.bf16.mxu0 %v3668
    %5091 = vmatmul.mubr.bf16.gmra.mxu0 %v3667
    %v5092 = vpop.f32.mrf.mxu0
    %v5093 = vadd.f32 %v4900, %v5092
    %v5094 = vpop.f32.mrf.mxu0
    %v5095 = vadd.f32 %v4902, %v5094
    %v5096 = vpop.f32.mrf.mxu0
    %v5097 = vadd.f32 %v4904, %v5096
    %v5098 = vpop.f32.mrf.mxu0
    %v5099 = vadd.f32 %v4906, %v5098
    %5100 = vmatprep.mubr.bf16.mxu0 %v3674
    %5101 = vmatmul.mubr.bf16.gmra.mxu0 %v3673
    %v5102 = vpop.f32.mrf.mxu0
    %v5103 = vadd.f32 %v4910, %v5102
    %v5104 = vpop.f32.mrf.mxu0
    %v5105 = vadd.f32 %v4912, %v5104
    %v5106 = vpop.f32.mrf.mxu0
    %v5107 = vadd.f32 %v4914, %v5106
    %v5108 = vpop.f32.mrf.mxu0
    %v5109 = vadd.f32 %v4916, %v5108
    %5110 = vmatprep.mubr.bf16.mxu0 %v3680
    %5111 = vmatmul.mubr.bf16.gmra.mxu0 %v3679
    %v5112 = vpop.f32.mrf.mxu0
    %v5113 = vadd.f32 %v4920, %v5112
    %v5114 = vpop.f32.mrf.mxu0
    %v5115 = vadd.f32 %v4922, %v5114
    %v5116 = vpop.f32.mrf.mxu0
    %v5117 = vadd.f32 %v4924, %v5116
    %v5118 = vpop.f32.mrf.mxu0
    %v5119 = vadd.f32 %v4926, %v5118
    %5120 = vmatprep.mubr.bf16.mxu0 %v3686
    %5121 = vmatmul.mubr.bf16.gmra.mxu0 %v3685
    %v5122 = vpop.f32.mrf.mxu0
    %v5123 = vadd.f32 %v4930, %v5122
    %v5124 = vpop.f32.mrf.mxu0
    %v5125 = vadd.f32 %v4932, %v5124
    %v5126 = vpop.f32.mrf.mxu0
    %v5127 = vadd.f32 %v4934, %v5126
    %v5128 = vpop.f32.mrf.mxu0
    %v5129 = vadd.f32 %v4936, %v5128
    %5130 = vdwg.mxu0
    %5131 = vmatprep.subr.bf16.mxu0 %v4518
    %5132 = vmatpush1.bf16.msra.mxu0 %v4517
    %5133 = vmatprep.subr.bf16.mxu0 %v4514
    %5134 = vmatpush1.bf16.msra.mxu0 %v4513
    %5135 = vmatprep.subr.bf16.mxu0 %v4510
    %5136 = vmatpush1.bf16.msra.mxu0 %v4509
    %5137 = vmatprep.subr.bf16.mxu0 %v4506
    %5138 = vmatpush1.bf16.msra.mxu0 %v4505
    %5139 = vmatprep.subr.bf16.mxu0 %v4502
    %5140 = vmatpush1.bf16.msra.mxu0 %v4501
    %5141 = vmatprep.subr.bf16.mxu0 %v4498
    %5142 = vmatpush1.bf16.msra.mxu0 %v4497
    %5143 = vmatprep.subr.bf16.mxu0 %v4494
    %5144 = vmatpush1.bf16.msra.mxu0 %v4493
    %5145 = vmatprep.subr.bf16.mxu0 %v4490
    %5146 = vmatpush1.bf16.msra.mxu0 %v4489
    %5147 = vmatprep.subr.bf16.mxu0 %v4550
    %5148 = vmatpush2.bf16.msra.mxu0 %v4549
    %5149 = vmatprep.subr.bf16.mxu0 %v4546
    %5150 = vmatpush2.bf16.msra.mxu0 %v4545
    %5151 = vmatprep.subr.bf16.mxu0 %v4542
    %5152 = vmatpush2.bf16.msra.mxu0 %v4541
    %5153 = vmatprep.subr.bf16.mxu0 %v4538
    %5154 = vmatpush2.bf16.msra.mxu0 %v4537
    %5155 = vmatprep.subr.bf16.mxu0 %v4534
    %5156 = vmatpush2.bf16.msra.mxu0 %v4533
    %5157 = vmatprep.subr.bf16.mxu0 %v4530
    %5158 = vmatpush2.bf16.msra.mxu0 %v4529
    %5159 = vmatprep.subr.bf16.mxu0 %v4526
    %5160 = vmatpush2.bf16.msra.mxu0 %v4525
    %5161 = vmatprep.subr.bf16.mxu0 %v4522
    %5162 = vmatpush2.bf16.msra.mxu0 %v4521
    %5163 = vmatprep.mubr.bf16.mxu0 %v3598
    %5164 = vmatmul.mubr.bf16.gmra.mxu0 %v3597
    %v5165 = vpop.f32.mrf.mxu0
    %v5166 = vadd.f32 %v4973, %v5165
    %v5167 = vpop.f32.mrf.mxu0
    %v5168 = vadd.f32 %v4975, %v5167
    %v5169 = vpop.f32.mrf.mxu0
    %v5170 = vadd.f32 %v4977, %v5169
    %v5171 = vpop.f32.mrf.mxu0
    %v5172 = vadd.f32 %v4979, %v5171
    %5173 = vmatprep.mubr.bf16.mxu0 %v3604
    %5174 = vmatmul.mubr.bf16.gmra.mxu0 %v3603
    %v5175 = vpop.f32.mrf.mxu0
    %v5176 = vadd.f32 %v4983, %v5175
    %v5177 = vpop.f32.mrf.mxu0
    %v5178 = vadd.f32 %v4985, %v5177
    %v5179 = vpop.f32.mrf.mxu0
    %v5180 = vadd.f32 %v4987, %v5179
    %v5181 = vpop.f32.mrf.mxu0
    %v5182 = vadd.f32 %v4989, %v5181
    %5183 = vmatprep.mubr.bf16.mxu0 %v3610
    %5184 = vmatmul.mubr.bf16.gmra.mxu0 %v3609
    %v5185 = vpop.f32.mrf.mxu0
    %v5186 = vadd.f32 %v4993, %v5185
    %v5187 = vpop.f32.mrf.mxu0
    %v5188 = vadd.f32 %v4995, %v5187
    %v5189 = vpop.f32.mrf.mxu0
    %v5190 = vadd.f32 %v4997, %v5189
    %v5191 = vpop.f32.mrf.mxu0
    %v5192 = vadd.f32 %v4999, %v5191
    %5193 = vmatprep.mubr.bf16.mxu0 %v3616
    %5194 = vmatmul.mubr.bf16.gmra.mxu0 %v3615
    %v5195 = vpop.f32.mrf.mxu0
    %v5196 = vadd.f32 %v5003, %v5195
    %v5197 = vpop.f32.mrf.mxu0
    %v5198 = vadd.f32 %v5005, %v5197
    %v5199 = vpop.f32.mrf.mxu0
    %v5200 = vadd.f32 %v5007, %v5199
    %v5201 = vpop.f32.mrf.mxu0
    %v5202 = vadd.f32 %v5009, %v5201
    %5203 = vmatprep.mubr.bf16.mxu0 %v3622
    %5204 = vmatmul.mubr.bf16.gmra.mxu0 %v3621
    %v5205 = vpop.f32.mrf.mxu0
    %v5206 = vadd.f32 %v5013, %v5205
    %v5207 = vpop.f32.mrf.mxu0
    %v5208 = vadd.f32 %v5015, %v5207
    %v5209 = vpop.f32.mrf.mxu0
    %v5210 = vadd.f32 %v5017, %v5209
    %v5211 = vpop.f32.mrf.mxu0
    %v5212 = vadd.f32 %v5019, %v5211
    %5213 = vmatprep.mubr.bf16.mxu0 %v3628
    %5214 = vmatmul.mubr.bf16.gmra.mxu0 %v3627
    %v5215 = vpop.f32.mrf.mxu0
    %v5216 = vadd.f32 %v5023, %v5215
    %v5217 = vpop.f32.mrf.mxu0
    %v5218 = vadd.f32 %v5025, %v5217
    %v5219 = vpop.f32.mrf.mxu0
    %v5220 = vadd.f32 %v5027, %v5219
    %v5221 = vpop.f32.mrf.mxu0
    %v5222 = vadd.f32 %v5029, %v5221
    %5223 = vmatprep.mubr.bf16.mxu0 %v3634
    %5224 = vmatmul.mubr.bf16.gmra.mxu0 %v3633
    %v5225 = vpop.f32.mrf.mxu0
    %v5226 = vadd.f32 %v5033, %v5225
    %v5227 = vpop.f32.mrf.mxu0
    %v5228 = vadd.f32 %v5035, %v5227
    %v5229 = vpop.f32.mrf.mxu0
    %v5230 = vadd.f32 %v5037, %v5229
    %v5231 = vpop.f32.mrf.mxu0
    %v5232 = vadd.f32 %v5039, %v5231
    %5233 = vmatprep.mubr.bf16.mxu0 %v3640
    %5234 = vmatmul.mubr.bf16.gmra.mxu0 %v3639
    %v5235 = vpop.f32.mrf.mxu0
    %v5236 = vadd.f32 %v5043, %v5235
    %v5237 = vpop.f32.mrf.mxu0
    %v5238 = vadd.f32 %v5045, %v5237
    %v5239 = vpop.f32.mrf.mxu0
    %v5240 = vadd.f32 %v5047, %v5239
    %v5241 = vpop.f32.mrf.mxu0
    %v5242 = vadd.f32 %v5049, %v5241
    %5243 = vmatprep.mubr.bf16.mxu0 %v3646
    %5244 = vmatmul.mubr.bf16.gmra.mxu0 %v3645
    %v5245 = vpop.f32.mrf.mxu0
    %v5246 = vadd.f32 %v5053, %v5245
    %v5247 = vpop.f32.mrf.mxu0
    %v5248 = vadd.f32 %v5055, %v5247
    %v5249 = vpop.f32.mrf.mxu0
    %v5250 = vadd.f32 %v5057, %v5249
    %v5251 = vpop.f32.mrf.mxu0
    %v5252 = vadd.f32 %v5059, %v5251
    %5253 = vmatprep.mubr.bf16.mxu0 %v3652
    %5254 = vmatmul.mubr.bf16.gmra.mxu0 %v3651
    %v5255 = vpop.f32.mrf.mxu0
    %v5256 = vadd.f32 %v5063, %v5255
    %v5257 = vpop.f32.mrf.mxu0
    %v5258 = vadd.f32 %v5065, %v5257
    %v5259 = vpop.f32.mrf.mxu0
    %v5260 = vadd.f32 %v5067, %v5259
    %v5261 = vpop.f32.mrf.mxu0
    %v5262 = vadd.f32 %v5069, %v5261
    %5263 = vmatprep.mubr.bf16.mxu0 %v3658
    %5264 = vmatmul.mubr.bf16.gmra.mxu0 %v3657
    %v5265 = vpop.f32.mrf.mxu0
    %v5266 = vadd.f32 %v5073, %v5265
    %v5267 = vpop.f32.mrf.mxu0
    %v5268 = vadd.f32 %v5075, %v5267
    %v5269 = vpop.f32.mrf.mxu0
    %v5270 = vadd.f32 %v5077, %v5269
    %v5271 = vpop.f32.mrf.mxu0
    %v5272 = vadd.f32 %v5079, %v5271
    %5273 = vmatprep.mubr.bf16.mxu0 %v3664
    %5274 = vmatmul.mubr.bf16.gmra.mxu0 %v3663
    %v5275 = vpop.f32.mrf.mxu0
    %v5276 = vadd.f32 %v5083, %v5275
    %v5277 = vpop.f32.mrf.mxu0
    %v5278 = vadd.f32 %v5085, %v5277
    %v5279 = vpop.f32.mrf.mxu0
    %v5280 = vadd.f32 %v5087, %v5279
    %v5281 = vpop.f32.mrf.mxu0
    %v5282 = vadd.f32 %v5089, %v5281
    %5283 = vmatprep.mubr.bf16.mxu0 %v3670
    %5284 = vmatmul.mubr.bf16.gmra.mxu0 %v3669
    %v5285 = vpop.f32.mrf.mxu0
    %v5286 = vadd.f32 %v5093, %v5285
    %v5287 = vpop.f32.mrf.mxu0
    %v5288 = vadd.f32 %v5095, %v5287
    %v5289 = vpop.f32.mrf.mxu0
    %v5290 = vadd.f32 %v5097, %v5289
    %v5291 = vpop.f32.mrf.mxu0
    %v5292 = vadd.f32 %v5099, %v5291
    %5293 = vmatprep.mubr.bf16.mxu0 %v3676
    %5294 = vmatmul.mubr.bf16.gmra.mxu0 %v3675
    %v5295 = vpop.f32.mrf.mxu0
    %v5296 = vadd.f32 %v5103, %v5295
    %v5297 = vpop.f32.mrf.mxu0
    %v5298 = vadd.f32 %v5105, %v5297
    %v5299 = vpop.f32.mrf.mxu0
    %v5300 = vadd.f32 %v5107, %v5299
    %v5301 = vpop.f32.mrf.mxu0
    %v5302 = vadd.f32 %v5109, %v5301
    %5303 = vmatprep.mubr.bf16.mxu0 %v3682
    %5304 = vmatmul.mubr.bf16.gmra.mxu0 %v3681
    %v5305 = vpop.f32.mrf.mxu0
    %v5306 = vadd.f32 %v5113, %v5305
    %v5307 = vpop.f32.mrf.mxu0
    %v5308 = vadd.f32 %v5115, %v5307
    %v5309 = vpop.f32.mrf.mxu0
    %v5310 = vadd.f32 %v5117, %v5309
    %v5311 = vpop.f32.mrf.mxu0
    %v5312 = vadd.f32 %v5119, %v5311
    %5313 = vmatprep.mubr.bf16.mxu0 %v3688
    %5314 = vmatmul.mubr.bf16.gmra.mxu0 %v3687
    %v5315 = vpop.f32.mrf.mxu0
    %v5316 = vadd.f32 %v5123, %v5315
    %v5317 = vpop.f32.mrf.mxu0
    %v5318 = vadd.f32 %v5125, %v5317
    %v5319 = vpop.f32.mrf.mxu0
    %v5320 = vadd.f32 %v5127, %v5319
    %v5321 = vpop.f32.mrf.mxu0
    %v5322 = vadd.f32 %v5129, %v5321
    %5323 = vdwg.mxu0
    %5324 = vmatprep.subr.bf16.mxu0 %v4392
    %5325 = vmatpush1.bf16.msra.mxu0 %v4391
    %5326 = vmatprep.subr.bf16.mxu0 %v4388
    %5327 = vmatpush1.bf16.msra.mxu0 %v4387
    %5328 = vmatprep.subr.bf16.mxu0 %v4384
    %5329 = vmatpush1.bf16.msra.mxu0 %v4383
    %5330 = vmatprep.subr.bf16.mxu0 %v4380
    %5331 = vmatpush1.bf16.msra.mxu0 %v4379
    %5332 = vmatprep.subr.bf16.mxu0 %v4376
    %5333 = vmatpush1.bf16.msra.mxu0 %v4375
    %5334 = vmatprep.subr.bf16.mxu0 %v4372
    %5335 = vmatpush1.bf16.msra.mxu0 %v4371
    %5336 = vmatprep.subr.bf16.mxu0 %v4368
    %5337 = vmatpush1.bf16.msra.mxu0 %v4367
    %5338 = vmatprep.subr.bf16.mxu0 %v4364
    %5339 = vmatpush1.bf16.msra.mxu0 %v4363
    %5340 = vmatprep.subr.bf16.mxu0 %v4424
    %5341 = vmatpush2.bf16.msra.mxu0 %v4423
    %5342 = vmatprep.subr.bf16.mxu0 %v4420
    %5343 = vmatpush2.bf16.msra.mxu0 %v4419
    %5344 = vmatprep.subr.bf16.mxu0 %v4416
    %5345 = vmatpush2.bf16.msra.mxu0 %v4415
    %5346 = vmatprep.subr.bf16.mxu0 %v4412
    %5347 = vmatpush2.bf16.msra.mxu0 %v4411
    %5348 = vmatprep.subr.bf16.mxu0 %v4408
    %5349 = vmatpush2.bf16.msra.mxu0 %v4407
    %5350 = vmatprep.subr.bf16.mxu0 %v4404
    %5351 = vmatpush2.bf16.msra.mxu0 %v4403
    %5352 = vmatprep.subr.bf16.mxu0 %v4400
    %5353 = vmatpush2.bf16.msra.mxu0 %v4399
    %5354 = vmatprep.subr.bf16.mxu0 %v4396
    %5355 = vmatpush2.bf16.msra.mxu0 %v4395
    %5356 = vmatprep.mubr.bf16.mxu0 %v3594
    %5357 = vmatmul.mubr.bf16.gmra.mxu0 %v3593
    %v5358 = vpop.f32.mrf.mxu0
    %v5359 = vadd.f32 %v3296, %v5358
    %v5360 = vpop.f32.mrf.mxu0
    %v5361 = vadd.f32 %v3300, %v5360
    %v5362 = vpop.f32.mrf.mxu0
    %v5363 = vadd.f32 %v3296, %v5362
    %v5364 = vpop.f32.mrf.mxu0
    %v5365 = vadd.f32 %v3300, %v5364
    %5366 = vmatprep.mubr.bf16.mxu0 %v3600
    %5367 = vmatmul.mubr.bf16.gmra.mxu0 %v3599
    %v5368 = vpop.f32.mrf.mxu0
    %v5369 = vadd.f32 %v3296, %v5368
    %v5370 = vpop.f32.mrf.mxu0
    %v5371 = vadd.f32 %v3300, %v5370
    %v5372 = vpop.f32.mrf.mxu0
    %v5373 = vadd.f32 %v3296, %v5372
    %v5374 = vpop.f32.mrf.mxu0
    %v5375 = vadd.f32 %v3300, %v5374
    %5376 = vmatprep.mubr.bf16.mxu0 %v3606
    %5377 = vmatmul.mubr.bf16.gmra.mxu0 %v3605
    %v5378 = vpop.f32.mrf.mxu0
    %v5379 = vadd.f32 %v3296, %v5378
    %v5380 = vpop.f32.mrf.mxu0
    %v5381 = vadd.f32 %v3300, %v5380
    %v5382 = vpop.f32.mrf.mxu0
    %v5383 = vadd.f32 %v3296, %v5382
    %v5384 = vpop.f32.mrf.mxu0
    %v5385 = vadd.f32 %v3300, %v5384
    %5386 = vmatprep.mubr.bf16.mxu0 %v3612
    %5387 = vmatmul.mubr.bf16.gmra.mxu0 %v3611
    %v5388 = vpop.f32.mrf.mxu0
    %v5389 = vadd.f32 %v3296, %v5388
    %v5390 = vpop.f32.mrf.mxu0
    %v5391 = vadd.f32 %v3300, %v5390
    %v5392 = vpop.f32.mrf.mxu0
    %v5393 = vadd.f32 %v3296, %v5392
    %v5394 = vpop.f32.mrf.mxu0
    %v5395 = vadd.f32 %v3300, %v5394
    %5396 = vmatprep.mubr.bf16.mxu0 %v3618
    %5397 = vmatmul.mubr.bf16.gmra.mxu0 %v3617
    %v5398 = vpop.f32.mrf.mxu0
    %v5399 = vadd.f32 %v3296, %v5398
    %v5400 = vpop.f32.mrf.mxu0
    %v5401 = vadd.f32 %v3300, %v5400
    %v5402 = vpop.f32.mrf.mxu0
    %v5403 = vadd.f32 %v3296, %v5402
    %v5404 = vpop.f32.mrf.mxu0
    %v5405 = vadd.f32 %v3300, %v5404
    %5406 = vmatprep.mubr.bf16.mxu0 %v3624
    %5407 = vmatmul.mubr.bf16.gmra.mxu0 %v3623
    %v5408 = vpop.f32.mrf.mxu0
    %v5409 = vadd.f32 %v3296, %v5408
    %v5410 = vpop.f32.mrf.mxu0
    %v5411 = vadd.f32 %v3300, %v5410
    %v5412 = vpop.f32.mrf.mxu0
    %v5413 = vadd.f32 %v3296, %v5412
    %v5414 = vpop.f32.mrf.mxu0
    %v5415 = vadd.f32 %v3300, %v5414
    %5416 = vmatprep.mubr.bf16.mxu0 %v3630
    %5417 = vmatmul.mubr.bf16.gmra.mxu0 %v3629
    %v5418 = vpop.f32.mrf.mxu0
    %v5419 = vadd.f32 %v3296, %v5418
    %v5420 = vpop.f32.mrf.mxu0
    %v5421 = vadd.f32 %v3300, %v5420
    %v5422 = vpop.f32.mrf.mxu0
    %v5423 = vadd.f32 %v3296, %v5422
    %v5424 = vpop.f32.mrf.mxu0
    %v5425 = vadd.f32 %v3300, %v5424
    %5426 = vmatprep.mubr.bf16.mxu0 %v3636
    %5427 = vmatmul.mubr.bf16.gmra.mxu0 %v3635
    %v5428 = vpop.f32.mrf.mxu0
    %v5429 = vadd.f32 %v3296, %v5428
    %v5430 = vpop.f32.mrf.mxu0
    %v5431 = vadd.f32 %v3300, %v5430
    %v5432 = vpop.f32.mrf.mxu0
    %v5433 = vadd.f32 %v3296, %v5432
    %v5434 = vpop.f32.mrf.mxu0
    %v5435 = vadd.f32 %v3300, %v5434
    %5436 = vmatprep.mubr.bf16.mxu0 %v3642
    %5437 = vmatmul.mubr.bf16.gmra.mxu0 %v3641
    %v5438 = vpop.f32.mrf.mxu0
    %v5439 = vadd.f32 %v3296, %v5438
    %v5440 = vpop.f32.mrf.mxu0
    %v5441 = vadd.f32 %v3300, %v5440
    %v5442 = vpop.f32.mrf.mxu0
    %v5443 = vadd.f32 %v3296, %v5442
    %v5444 = vpop.f32.mrf.mxu0
    %v5445 = vadd.f32 %v3300, %v5444
    %5446 = vmatprep.mubr.bf16.mxu0 %v3648
    %5447 = vmatmul.mubr.bf16.gmra.mxu0 %v3647
    %v5448 = vpop.f32.mrf.mxu0
    %v5449 = vadd.f32 %v3296, %v5448
    %v5450 = vpop.f32.mrf.mxu0
    %v5451 = vadd.f32 %v3300, %v5450
    %v5452 = vpop.f32.mrf.mxu0
    %v5453 = vadd.f32 %v3296, %v5452
    %v5454 = vpop.f32.mrf.mxu0
    %v5455 = vadd.f32 %v3300, %v5454
    %5456 = vmatprep.mubr.bf16.mxu0 %v3654
    %5457 = vmatmul.mubr.bf16.gmra.mxu0 %v3653
    %v5458 = vpop.f32.mrf.mxu0
    %v5459 = vadd.f32 %v3296, %v5458
    %v5460 = vpop.f32.mrf.mxu0
    %v5461 = vadd.f32 %v3300, %v5460
    %v5462 = vpop.f32.mrf.mxu0
    %v5463 = vadd.f32 %v3296, %v5462
    %v5464 = vpop.f32.mrf.mxu0
    %v5465 = vadd.f32 %v3300, %v5464
    %5466 = vmatprep.mubr.bf16.mxu0 %v3660
    %5467 = vmatmul.mubr.bf16.gmra.mxu0 %v3659
    %v5468 = vpop.f32.mrf.mxu0
    %v5469 = vadd.f32 %v3296, %v5468
    %v5470 = vpop.f32.mrf.mxu0
    %v5471 = vadd.f32 %v3300, %v5470
    %v5472 = vpop.f32.mrf.mxu0
    %v5473 = vadd.f32 %v3296, %v5472
    %v5474 = vpop.f32.mrf.mxu0
    %v5475 = vadd.f32 %v3300, %v5474
    %5476 = vmatprep.mubr.bf16.mxu0 %v3666
    %5477 = vmatmul.mubr.bf16.gmra.mxu0 %v3665
    %v5478 = vpop.f32.mrf.mxu0
    %v5479 = vadd.f32 %v3296, %v5478
    %v5480 = vpop.f32.mrf.mxu0
    %v5481 = vadd.f32 %v3300, %v5480
    %v5482 = vpop.f32.mrf.mxu0
    %v5483 = vadd.f32 %v3296, %v5482
    %v5484 = vpop.f32.mrf.mxu0
    %v5485 = vadd.f32 %v3300, %v5484
    %5486 = vmatprep.mubr.bf16.mxu0 %v3672
    %5487 = vmatmul.mubr.bf16.gmra.mxu0 %v3671
    %v5488 = vpop.f32.mrf.mxu0
    %v5489 = vadd.f32 %v3296, %v5488
    %v5490 = vpop.f32.mrf.mxu0
    %v5491 = vadd.f32 %v3300, %v5490
    %v5492 = vpop.f32.mrf.mxu0
    %v5493 = vadd.f32 %v3296, %v5492
    %v5494 = vpop.f32.mrf.mxu0
    %v5495 = vadd.f32 %v3300, %v5494
    %5496 = vmatprep.mubr.bf16.mxu0 %v3678
    %5497 = vmatmul.mubr.bf16.gmra.mxu0 %v3677
    %v5498 = vpop.f32.mrf.mxu0
    %v5499 = vadd.f32 %v3296, %v5498
    %v5500 = vpop.f32.mrf.mxu0
    %v5501 = vadd.f32 %v3300, %v5500
    %v5502 = vpop.f32.mrf.mxu0
    %v5503 = vadd.f32 %v3296, %v5502
    %v5504 = vpop.f32.mrf.mxu0
    %v5505 = vadd.f32 %v3300, %v5504
    %5506 = vmatprep.mubr.bf16.mxu0 %v3684
    %5507 = vmatmul.mubr.bf16.gmra.mxu0 %v3683
    %v5508 = vpop.f32.mrf.mxu0
    %v5509 = vadd.f32 %v3296, %v5508
    %v5510 = vpop.f32.mrf.mxu0
    %v5511 = vadd.f32 %v3300, %v5510
    %v5512 = vpop.f32.mrf.mxu0
    %v5513 = vadd.f32 %v3296, %v5512
    %v5514 = vpop.f32.mrf.mxu0
    %v5515 = vadd.f32 %v3300, %v5514
    %5516 = vdwg.mxu0
    %5517 = vmatprep.subr.bf16.mxu0 %v4456
    %5518 = vmatpush1.bf16.msra.mxu0 %v4455
    %5519 = vmatprep.subr.bf16.mxu0 %v4452
    %5520 = vmatpush1.bf16.msra.mxu0 %v4451
    %5521 = vmatprep.subr.bf16.mxu0 %v4448
    %5522 = vmatpush1.bf16.msra.mxu0 %v4447
    %5523 = vmatprep.subr.bf16.mxu0 %v4444
    %5524 = vmatpush1.bf16.msra.mxu0 %v4443
    %5525 = vmatprep.subr.bf16.mxu0 %v4440
    %5526 = vmatpush1.bf16.msra.mxu0 %v4439
    %5527 = vmatprep.subr.bf16.mxu0 %v4436
    %5528 = vmatpush1.bf16.msra.mxu0 %v4435
    %5529 = vmatprep.subr.bf16.mxu0 %v4432
    %5530 = vmatpush1.bf16.msra.mxu0 %v4431
    %5531 = vmatprep.subr.bf16.mxu0 %v4428
    %5532 = vmatpush1.bf16.msra.mxu0 %v4427
    %5533 = vmatprep.subr.bf16.mxu0 %v4488
    %5534 = vmatpush2.bf16.msra.mxu0 %v4487
    %5535 = vmatprep.subr.bf16.mxu0 %v4484
    %5536 = vmatpush2.bf16.msra.mxu0 %v4483
    %5537 = vmatprep.subr.bf16.mxu0 %v4480
    %5538 = vmatpush2.bf16.msra.mxu0 %v4479
    %5539 = vmatprep.subr.bf16.mxu0 %v4476
    %5540 = vmatpush2.bf16.msra.mxu0 %v4475
    %5541 = vmatprep.subr.bf16.mxu0 %v4472
    %5542 = vmatpush2.bf16.msra.mxu0 %v4471
    %5543 = vmatprep.subr.bf16.mxu0 %v4468
    %5544 = vmatpush2.bf16.msra.mxu0 %v4467
    %5545 = vmatprep.subr.bf16.mxu0 %v4464
    %5546 = vmatpush2.bf16.msra.mxu0 %v4463
    %5547 = vmatprep.subr.bf16.mxu0 %v4460
    %5548 = vmatpush2.bf16.msra.mxu0 %v4459
    %5549 = vmatprep.mubr.bf16.mxu0 %v3596
    %5550 = vmatmul.mubr.bf16.gmra.mxu0 %v3595
    %v5551 = vpop.f32.mrf.mxu0
    %v5552 = vadd.f32 %v5359, %v5551
    %v5553 = vpop.f32.mrf.mxu0
    %v5554 = vadd.f32 %v5361, %v5553
    %v5555 = vpop.f32.mrf.mxu0
    %v5556 = vadd.f32 %v5363, %v5555
    %v5557 = vpop.f32.mrf.mxu0
    %v5558 = vadd.f32 %v5365, %v5557
    %5559 = vmatprep.mubr.bf16.mxu0 %v3602
    %5560 = vmatmul.mubr.bf16.gmra.mxu0 %v3601
    %v5561 = vpop.f32.mrf.mxu0
    %v5562 = vadd.f32 %v5369, %v5561
    %v5563 = vpop.f32.mrf.mxu0
    %v5564 = vadd.f32 %v5371, %v5563
    %v5565 = vpop.f32.mrf.mxu0
    %v5566 = vadd.f32 %v5373, %v5565
    %v5567 = vpop.f32.mrf.mxu0
    %v5568 = vadd.f32 %v5375, %v5567
    %5569 = vmatprep.mubr.bf16.mxu0 %v3608
    %5570 = vmatmul.mubr.bf16.gmra.mxu0 %v3607
    %v5571 = vpop.f32.mrf.mxu0
    %v5572 = vadd.f32 %v5379, %v5571
    %v5573 = vpop.f32.mrf.mxu0
    %v5574 = vadd.f32 %v5381, %v5573
    %v5575 = vpop.f32.mrf.mxu0
    %v5576 = vadd.f32 %v5383, %v5575
    %v5577 = vpop.f32.mrf.mxu0
    %v5578 = vadd.f32 %v5385, %v5577
    %5579 = vmatprep.mubr.bf16.mxu0 %v3614
    %5580 = vmatmul.mubr.bf16.gmra.mxu0 %v3613
    %v5581 = vpop.f32.mrf.mxu0
    %v5582 = vadd.f32 %v5389, %v5581
    %v5583 = vpop.f32.mrf.mxu0
    %v5584 = vadd.f32 %v5391, %v5583
    %v5585 = vpop.f32.mrf.mxu0
    %v5586 = vadd.f32 %v5393, %v5585
    %v5587 = vpop.f32.mrf.mxu0
    %v5588 = vadd.f32 %v5395, %v5587
    %5589 = vmatprep.mubr.bf16.mxu0 %v3620
    %5590 = vmatmul.mubr.bf16.gmra.mxu0 %v3619
    %v5591 = vpop.f32.mrf.mxu0
    %v5592 = vadd.f32 %v5399, %v5591
    %v5593 = vpop.f32.mrf.mxu0
    %v5594 = vadd.f32 %v5401, %v5593
    %v5595 = vpop.f32.mrf.mxu0
    %v5596 = vadd.f32 %v5403, %v5595
    %v5597 = vpop.f32.mrf.mxu0
    %v5598 = vadd.f32 %v5405, %v5597
    %5599 = vmatprep.mubr.bf16.mxu0 %v3626
    %5600 = vmatmul.mubr.bf16.gmra.mxu0 %v3625
    %v5601 = vpop.f32.mrf.mxu0
    %v5602 = vadd.f32 %v5409, %v5601
    %v5603 = vpop.f32.mrf.mxu0
    %v5604 = vadd.f32 %v5411, %v5603
    %v5605 = vpop.f32.mrf.mxu0
    %v5606 = vadd.f32 %v5413, %v5605
    %v5607 = vpop.f32.mrf.mxu0
    %v5608 = vadd.f32 %v5415, %v5607
    %5609 = vmatprep.mubr.bf16.mxu0 %v3632
    %5610 = vmatmul.mubr.bf16.gmra.mxu0 %v3631
    %v5611 = vpop.f32.mrf.mxu0
    %v5612 = vadd.f32 %v5419, %v5611
    %v5613 = vpop.f32.mrf.mxu0
    %v5614 = vadd.f32 %v5421, %v5613
    %v5615 = vpop.f32.mrf.mxu0
    %v5616 = vadd.f32 %v5423, %v5615
    %v5617 = vpop.f32.mrf.mxu0
    %v5618 = vadd.f32 %v5425, %v5617
    %5619 = vmatprep.mubr.bf16.mxu0 %v3638
    %5620 = vmatmul.mubr.bf16.gmra.mxu0 %v3637
    %v5621 = vpop.f32.mrf.mxu0
    %v5622 = vadd.f32 %v5429, %v5621
    %v5623 = vpop.f32.mrf.mxu0
    %v5624 = vadd.f32 %v5431, %v5623
    %v5625 = vpop.f32.mrf.mxu0
    %v5626 = vadd.f32 %v5433, %v5625
    %v5627 = vpop.f32.mrf.mxu0
    %v5628 = vadd.f32 %v5435, %v5627
    %5629 = vmatprep.mubr.bf16.mxu0 %v3644
    %5630 = vmatmul.mubr.bf16.gmra.mxu0 %v3643
    %v5631 = vpop.f32.mrf.mxu0
    %v5632 = vadd.f32 %v5439, %v5631
    %v5633 = vpop.f32.mrf.mxu0
    %v5634 = vadd.f32 %v5441, %v5633
    %v5635 = vpop.f32.mrf.mxu0
    %v5636 = vadd.f32 %v5443, %v5635
    %v5637 = vpop.f32.mrf.mxu0
    %v5638 = vadd.f32 %v5445, %v5637
    %5639 = vmatprep.mubr.bf16.mxu0 %v3650
    %5640 = vmatmul.mubr.bf16.gmra.mxu0 %v3649
    %v5641 = vpop.f32.mrf.mxu0
    %v5642 = vadd.f32 %v5449, %v5641
    %v5643 = vpop.f32.mrf.mxu0
    %v5644 = vadd.f32 %v5451, %v5643
    %v5645 = vpop.f32.mrf.mxu0
    %v5646 = vadd.f32 %v5453, %v5645
    %v5647 = vpop.f32.mrf.mxu0
    %v5648 = vadd.f32 %v5455, %v5647
    %5649 = vmatprep.mubr.bf16.mxu0 %v3656
    %5650 = vmatmul.mubr.bf16.gmra.mxu0 %v3655
    %v5651 = vpop.f32.mrf.mxu0
    %v5652 = vadd.f32 %v5459, %v5651
    %v5653 = vpop.f32.mrf.mxu0
    %v5654 = vadd.f32 %v5461, %v5653
    %v5655 = vpop.f32.mrf.mxu0
    %v5656 = vadd.f32 %v5463, %v5655
    %v5657 = vpop.f32.mrf.mxu0
    %v5658 = vadd.f32 %v5465, %v5657
    %5659 = vmatprep.mubr.bf16.mxu0 %v3662
    %5660 = vmatmul.mubr.bf16.gmra.mxu0 %v3661
    %v5661 = vpop.f32.mrf.mxu0
    %v5662 = vadd.f32 %v5469, %v5661
    %v5663 = vpop.f32.mrf.mxu0
    %v5664 = vadd.f32 %v5471, %v5663
    %v5665 = vpop.f32.mrf.mxu0
    %v5666 = vadd.f32 %v5473, %v5665
    %v5667 = vpop.f32.mrf.mxu0
    %v5668 = vadd.f32 %v5475, %v5667
    %5669 = vmatprep.mubr.bf16.mxu0 %v3668
    %5670 = vmatmul.mubr.bf16.gmra.mxu0 %v3667
    %v5671 = vpop.f32.mrf.mxu0
    %v5672 = vadd.f32 %v5479, %v5671
    %v5673 = vpop.f32.mrf.mxu0
    %v5674 = vadd.f32 %v5481, %v5673
    %v5675 = vpop.f32.mrf.mxu0
    %v5676 = vadd.f32 %v5483, %v5675
    %v5677 = vpop.f32.mrf.mxu0
    %v5678 = vadd.f32 %v5485, %v5677
    %5679 = vmatprep.mubr.bf16.mxu0 %v3674
    %5680 = vmatmul.mubr.bf16.gmra.mxu0 %v3673
    %v5681 = vpop.f32.mrf.mxu0
    %v5682 = vadd.f32 %v5489, %v5681
    %v5683 = vpop.f32.mrf.mxu0
    %v5684 = vadd.f32 %v5491, %v5683
    %v5685 = vpop.f32.mrf.mxu0
    %v5686 = vadd.f32 %v5493, %v5685
    %v5687 = vpop.f32.mrf.mxu0
    %v5688 = vadd.f32 %v5495, %v5687
    %5689 = vmatprep.mubr.bf16.mxu0 %v3680
    %5690 = vmatmul.mubr.bf16.gmra.mxu0 %v3679
    %v5691 = vpop.f32.mrf.mxu0
    %v5692 = vadd.f32 %v5499, %v5691
    %v5693 = vpop.f32.mrf.mxu0
    %v5694 = vadd.f32 %v5501, %v5693
    %v5695 = vpop.f32.mrf.mxu0
    %v5696 = vadd.f32 %v5503, %v5695
    %v5697 = vpop.f32.mrf.mxu0
    %v5698 = vadd.f32 %v5505, %v5697
    %5699 = vmatprep.mubr.bf16.mxu0 %v3686
    %5700 = vmatmul.mubr.bf16.gmra.mxu0 %v3685
    %v5701 = vpop.f32.mrf.mxu0
    %v5702 = vadd.f32 %v5509, %v5701
    %v5703 = vpop.f32.mrf.mxu0
    %v5704 = vadd.f32 %v5511, %v5703
    %v5705 = vpop.f32.mrf.mxu0
    %v5706 = vadd.f32 %v5513, %v5705
    %v5707 = vpop.f32.mrf.mxu0
    %v5708 = vadd.f32 %v5515, %v5707
    %5709 = vdwg.mxu0
    %5710 = vmatprep.subr.bf16.mxu0 %v4520
    %5711 = vmatpush1.bf16.msra.mxu0 %v4519
    %5712 = vmatprep.subr.bf16.mxu0 %v4516
    %5713 = vmatpush1.bf16.msra.mxu0 %v4515
    %5714 = vmatprep.subr.bf16.mxu0 %v4512
    %5715 = vmatpush1.bf16.msra.mxu0 %v4511
    %5716 = vmatprep.subr.bf16.mxu0 %v4508
    %5717 = vmatpush1.bf16.msra.mxu0 %v4507
    %5718 = vmatprep.subr.bf16.mxu0 %v4504
    %5719 = vmatpush1.bf16.msra.mxu0 %v4503
    %5720 = vmatprep.subr.bf16.mxu0 %v4500
    %5721 = vmatpush1.bf16.msra.mxu0 %v4499
    %5722 = vmatprep.subr.bf16.mxu0 %v4496
    %5723 = vmatpush1.bf16.msra.mxu0 %v4495
    %5724 = vmatprep.subr.bf16.mxu0 %v4492
    %5725 = vmatpush1.bf16.msra.mxu0 %v4491
    %5726 = vmatprep.subr.bf16.mxu0 %v4552
    %5727 = vmatpush2.bf16.msra.mxu0 %v4551
    %5728 = vmatprep.subr.bf16.mxu0 %v4548
    %5729 = vmatpush2.bf16.msra.mxu0 %v4547
    %5730 = vmatprep.subr.bf16.mxu0 %v4544
    %5731 = vmatpush2.bf16.msra.mxu0 %v4543
    %5732 = vmatprep.subr.bf16.mxu0 %v4540
    %5733 = vmatpush2.bf16.msra.mxu0 %v4539
    %5734 = vmatprep.subr.bf16.mxu0 %v4536
    %5735 = vmatpush2.bf16.msra.mxu0 %v4535
    %5736 = vmatprep.subr.bf16.mxu0 %v4532
    %5737 = vmatpush2.bf16.msra.mxu0 %v4531
    %5738 = vmatprep.subr.bf16.mxu0 %v4528
    %5739 = vmatpush2.bf16.msra.mxu0 %v4527
    %5740 = vmatprep.subr.bf16.mxu0 %v4524
    %5741 = vmatpush2.bf16.msra.mxu0 %v4523
    %5742 = vmatprep.mubr.bf16.mxu0 %v3598
    %5743 = vmatmul.mubr.bf16.gmra.mxu0 %v3597
    %v5744 = vpop.f32.mrf.mxu0
    %v5745 = vadd.f32 %v5552, %v5744
    %v5746 = vpop.f32.mrf.mxu0
    %v5747 = vadd.f32 %v5554, %v5746
    %v5748 = vpop.f32.mrf.mxu0
    %v5749 = vadd.f32 %v5556, %v5748
    %v5750 = vpop.f32.mrf.mxu0
    %v5751 = vadd.f32 %v5558, %v5750
    %5752 = vmatprep.mubr.bf16.mxu0 %v3604
    %5753 = vmatmul.mubr.bf16.gmra.mxu0 %v3603
    %v5754 = vpop.f32.mrf.mxu0
    %v5755 = vadd.f32 %v5562, %v5754
    %v5756 = vpop.f32.mrf.mxu0
    %v5757 = vadd.f32 %v5564, %v5756
    %v5758 = vpop.f32.mrf.mxu0
    %v5759 = vadd.f32 %v5566, %v5758
    %v5760 = vpop.f32.mrf.mxu0
    %v5761 = vadd.f32 %v5568, %v5760
    %5762 = vmatprep.mubr.bf16.mxu0 %v3610
    %5763 = vmatmul.mubr.bf16.gmra.mxu0 %v3609
    %v5764 = vpop.f32.mrf.mxu0
    %v5765 = vadd.f32 %v5572, %v5764
    %v5766 = vpop.f32.mrf.mxu0
    %v5767 = vadd.f32 %v5574, %v5766
    %v5768 = vpop.f32.mrf.mxu0
    %v5769 = vadd.f32 %v5576, %v5768
    %v5770 = vpop.f32.mrf.mxu0
    %v5771 = vadd.f32 %v5578, %v5770
    %5772 = vmatprep.mubr.bf16.mxu0 %v3616
    %5773 = vmatmul.mubr.bf16.gmra.mxu0 %v3615
    %v5774 = vpop.f32.mrf.mxu0
    %v5775 = vadd.f32 %v5582, %v5774
    %v5776 = vpop.f32.mrf.mxu0
    %v5777 = vadd.f32 %v5584, %v5776
    %v5778 = vpop.f32.mrf.mxu0
    %v5779 = vadd.f32 %v5586, %v5778
    %v5780 = vpop.f32.mrf.mxu0
    %v5781 = vadd.f32 %v5588, %v5780
    %5782 = vmatprep.mubr.bf16.mxu0 %v3622
    %5783 = vmatmul.mubr.bf16.gmra.mxu0 %v3621
    %v5784 = vpop.f32.mrf.mxu0
    %v5785 = vadd.f32 %v5592, %v5784
    %v5786 = vpop.f32.mrf.mxu0
    %v5787 = vadd.f32 %v5594, %v5786
    %v5788 = vpop.f32.mrf.mxu0
    %v5789 = vadd.f32 %v5596, %v5788
    %v5790 = vpop.f32.mrf.mxu0
    %v5791 = vadd.f32 %v5598, %v5790
    %5792 = vmatprep.mubr.bf16.mxu0 %v3628
    %5793 = vmatmul.mubr.bf16.gmra.mxu0 %v3627
    %v5794 = vpop.f32.mrf.mxu0
    %v5795 = vadd.f32 %v5602, %v5794
    %v5796 = vpop.f32.mrf.mxu0
    %v5797 = vadd.f32 %v5604, %v5796
    %v5798 = vpop.f32.mrf.mxu0
    %v5799 = vadd.f32 %v5606, %v5798
    %v5800 = vpop.f32.mrf.mxu0
    %v5801 = vadd.f32 %v5608, %v5800
    %5802 = vmatprep.mubr.bf16.mxu0 %v3634
    %5803 = vmatmul.mubr.bf16.gmra.mxu0 %v3633
    %v5804 = vpop.f32.mrf.mxu0
    %v5805 = vadd.f32 %v5612, %v5804
    %v5806 = vpop.f32.mrf.mxu0
    %v5807 = vadd.f32 %v5614, %v5806
    %v5808 = vpop.f32.mrf.mxu0
    %v5809 = vadd.f32 %v5616, %v5808
    %v5810 = vpop.f32.mrf.mxu0
    %v5811 = vadd.f32 %v5618, %v5810
    %5812 = vmatprep.mubr.bf16.mxu0 %v3640
    %5813 = vmatmul.mubr.bf16.gmra.mxu0 %v3639
    %v5814 = vpop.f32.mrf.mxu0
    %v5815 = vadd.f32 %v5622, %v5814
    %v5816 = vpop.f32.mrf.mxu0
    %v5817 = vadd.f32 %v5624, %v5816
    %v5818 = vpop.f32.mrf.mxu0
    %v5819 = vadd.f32 %v5626, %v5818
    %v5820 = vpop.f32.mrf.mxu0
    %v5821 = vadd.f32 %v5628, %v5820
    %5822 = vmatprep.mubr.bf16.mxu0 %v3646
    %5823 = vmatmul.mubr.bf16.gmra.mxu0 %v3645
    %v5824 = vpop.f32.mrf.mxu0
    %v5825 = vadd.f32 %v5632, %v5824
    %v5826 = vpop.f32.mrf.mxu0
    %v5827 = vadd.f32 %v5634, %v5826
    %v5828 = vpop.f32.mrf.mxu0
    %v5829 = vadd.f32 %v5636, %v5828
    %v5830 = vpop.f32.mrf.mxu0
    %v5831 = vadd.f32 %v5638, %v5830
    %5832 = vmatprep.mubr.bf16.mxu0 %v3652
    %5833 = vmatmul.mubr.bf16.gmra.mxu0 %v3651
    %v5834 = vpop.f32.mrf.mxu0
    %v5835 = vadd.f32 %v5642, %v5834
    %v5836 = vpop.f32.mrf.mxu0
    %v5837 = vadd.f32 %v5644, %v5836
    %v5838 = vpop.f32.mrf.mxu0
    %v5839 = vadd.f32 %v5646, %v5838
    %v5840 = vpop.f32.mrf.mxu0
    %v5841 = vadd.f32 %v5648, %v5840
    %5842 = vmatprep.mubr.bf16.mxu0 %v3658
    %5843 = vmatmul.mubr.bf16.gmra.mxu0 %v3657
    %v5844 = vpop.f32.mrf.mxu0
    %v5845 = vadd.f32 %v5652, %v5844
    %v5846 = vpop.f32.mrf.mxu0
    %v5847 = vadd.f32 %v5654, %v5846
    %v5848 = vpop.f32.mrf.mxu0
    %v5849 = vadd.f32 %v5656, %v5848
    %v5850 = vpop.f32.mrf.mxu0
    %v5851 = vadd.f32 %v5658, %v5850
    %5852 = vmatprep.mubr.bf16.mxu0 %v3664
    %5853 = vmatmul.mubr.bf16.gmra.mxu0 %v3663
    %v5854 = vpop.f32.mrf.mxu0
    %v5855 = vadd.f32 %v5662, %v5854
    %v5856 = vpop.f32.mrf.mxu0
    %v5857 = vadd.f32 %v5664, %v5856
    %v5858 = vpop.f32.mrf.mxu0
    %v5859 = vadd.f32 %v5666, %v5858
    %v5860 = vpop.f32.mrf.mxu0
    %v5861 = vadd.f32 %v5668, %v5860
    %5862 = vmatprep.mubr.bf16.mxu0 %v3670
    %5863 = vmatmul.mubr.bf16.gmra.mxu0 %v3669
    %v5864 = vpop.f32.mrf.mxu0
    %v5865 = vadd.f32 %v5672, %v5864
    %v5866 = vpop.f32.mrf.mxu0
    %v5867 = vadd.f32 %v5674, %v5866
    %v5868 = vpop.f32.mrf.mxu0
    %v5869 = vadd.f32 %v5676, %v5868
    %v5870 = vpop.f32.mrf.mxu0
    %v5871 = vadd.f32 %v5678, %v5870
    %5872 = vmatprep.mubr.bf16.mxu0 %v3676
    %5873 = vmatmul.mubr.bf16.gmra.mxu0 %v3675
    %v5874 = vpop.f32.mrf.mxu0
    %v5875 = vadd.f32 %v5682, %v5874
    %v5876 = vpop.f32.mrf.mxu0
    %v5877 = vadd.f32 %v5684, %v5876
    %v5878 = vpop.f32.mrf.mxu0
    %v5879 = vadd.f32 %v5686, %v5878
    %v5880 = vpop.f32.mrf.mxu0
    %v5881 = vadd.f32 %v5688, %v5880
    %5882 = vmatprep.mubr.bf16.mxu0 %v3682
    %5883 = vmatmul.mubr.bf16.gmra.mxu0 %v3681
    %v5884 = vpop.f32.mrf.mxu0
    %v5885 = vadd.f32 %v5692, %v5884
    %v5886 = vpop.f32.mrf.mxu0
    %v5887 = vadd.f32 %v5694, %v5886
    %v5888 = vpop.f32.mrf.mxu0
    %v5889 = vadd.f32 %v5696, %v5888
    %v5890 = vpop.f32.mrf.mxu0
    %v5891 = vadd.f32 %v5698, %v5890
    %5892 = vmatprep.mubr.bf16.mxu0 %v3688
    %5893 = vmatmul.mubr.bf16.gmra.mxu0 %v3687
    %v5894 = vpop.f32.mrf.mxu0
    %v5895 = vadd.f32 %v5702, %v5894
    %v5896 = vpop.f32.mrf.mxu0
    %v5897 = vadd.f32 %v5704, %v5896
    %v5898 = vpop.f32.mrf.mxu0
    %v5899 = vadd.f32 %v5706, %v5898
    %v5900 = vpop.f32.mrf.mxu0
    %v5901 = vadd.f32 %v5708, %v5900
    %5902 = vdwg.mxu0
    %v5903 = vmul.f32 %v2258, %v2258
    %v5904 = vmul.f32 %v2260, %v2260
    %v5905 = vmul.f32 %v2837, %v2837
    %v5906 = vmul.f32 %v2839, %v2839
    %v5907 = vmul.f32 %v2262, %v2262
    %v5908 = vmul.f32 %v2264, %v2264
    %v5909 = vmul.f32 %v2841, %v2841
    %v5910 = vmul.f32 %v2843, %v2843
    %v5911 = vmul.f32 %v2268, %v2268
    %v5912 = vmul.f32 %v2270, %v2270
    %v5913 = vmul.f32 %v2847, %v2847
    %v5914 = vmul.f32 %v2849, %v2849
    %v5915 = vmul.f32 %v2272, %v2272
    %v5916 = vmul.f32 %v2274, %v2274
    %v5917 = vmul.f32 %v2851, %v2851
    %v5918 = vmul.f32 %v2853, %v2853
    %v5919 = vmul.f32 %v2278, %v2278
    %v5920 = vmul.f32 %v2280, %v2280
    %v5921 = vmul.f32 %v2857, %v2857
    %v5922 = vmul.f32 %v2859, %v2859
    %v5923 = vmul.f32 %v2282, %v2282
    %v5924 = vmul.f32 %v2284, %v2284
    %v5925 = vmul.f32 %v2861, %v2861
    %v5926 = vmul.f32 %v2863, %v2863
    %v5927 = vmul.f32 %v2288, %v2288
    %v5928 = vmul.f32 %v2290, %v2290
    %v5929 = vmul.f32 %v2867, %v2867
    %v5930 = vmul.f32 %v2869, %v2869
    %v5931 = vmul.f32 %v2292, %v2292
    %v5932 = vmul.f32 %v2294, %v2294
    %v5933 = vmul.f32 %v2871, %v2871
    %v5934 = vmul.f32 %v2873, %v2873
    %v5935 = vmul.f32 %v2298, %v2298
    %v5936 = vmul.f32 %v2300, %v2300
    %v5937 = vmul.f32 %v2877, %v2877
    %v5938 = vmul.f32 %v2879, %v2879
    %v5939 = vmul.f32 %v2302, %v2302
    %v5940 = vmul.f32 %v2304, %v2304
    %v5941 = vmul.f32 %v2881, %v2881
    %v5942 = vmul.f32 %v2883, %v2883
    %v5943 = vmul.f32 %v2308, %v2308
    %v5944 = vmul.f32 %v2310, %v2310
    %v5945 = vmul.f32 %v2887, %v2887
    %v5946 = vmul.f32 %v2889, %v2889
    %v5947 = vmul.f32 %v2312, %v2312
    %v5948 = vmul.f32 %v2314, %v2314
    %v5949 = vmul.f32 %v2891, %v2891
    %v5950 = vmul.f32 %v2893, %v2893
    %v5951 = vmul.f32 %v2318, %v2318
    %v5952 = vmul.f32 %v2320, %v2320
    %v5953 = vmul.f32 %v2897, %v2897
    %v5954 = vmul.f32 %v2899, %v2899
    %v5955 = vmul.f32 %v2322, %v2322
    %v5956 = vmul.f32 %v2324, %v2324
    %v5957 = vmul.f32 %v2901, %v2901
    %v5958 = vmul.f32 %v2903, %v2903
    %v5959 = vmul.f32 %v2328, %v2328
    %v5960 = vmul.f32 %v2330, %v2330
    %v5961 = vmul.f32 %v2907, %v2907
    %v5962 = vmul.f32 %v2909, %v2909
    %v5963 = vmul.f32 %v2332, %v2332
    %v5964 = vmul.f32 %v2334, %v2334
    %v5965 = vmul.f32 %v2911, %v2911
    %v5966 = vmul.f32 %v2913, %v2913
    %v5967 = vmul.f32 %v2338, %v2338
    %v5968 = vmul.f32 %v2340, %v2340
    %v5969 = vmul.f32 %v2917, %v2917
    %v5970 = vmul.f32 %v2919, %v2919
    %v5971 = vmul.f32 %v2342, %v2342
    %v5972 = vmul.f32 %v2344, %v2344
    %v5973 = vmul.f32 %v2921, %v2921
    %v5974 = vmul.f32 %v2923, %v2923
    %v5975 = vmul.f32 %v2348, %v2348
    %v5976 = vmul.f32 %v2350, %v2350
    %v5977 = vmul.f32 %v2927, %v2927
    %v5978 = vmul.f32 %v2929, %v2929
    %v5979 = vmul.f32 %v2352, %v2352
    %v5980 = vmul.f32 %v2354, %v2354
    %v5981 = vmul.f32 %v2931, %v2931
    %v5982 = vmul.f32 %v2933, %v2933
    %v5983 = vmul.f32 %v2358, %v2358
    %v5984 = vmul.f32 %v2360, %v2360
    %v5985 = vmul.f32 %v2937, %v2937
    %v5986 = vmul.f32 %v2939, %v2939
    %v5987 = vmul.f32 %v2362, %v2362
    %v5988 = vmul.f32 %v2364, %v2364
    %v5989 = vmul.f32 %v2941, %v2941
    %v5990 = vmul.f32 %v2943, %v2943
    %v5991 = vmul.f32 %v2368, %v2368
    %v5992 = vmul.f32 %v2370, %v2370
    %v5993 = vmul.f32 %v2947, %v2947
    %v5994 = vmul.f32 %v2949, %v2949
    %v5995 = vmul.f32 %v2372, %v2372
    %v5996 = vmul.f32 %v2374, %v2374
    %v5997 = vmul.f32 %v2951, %v2951
    %v5998 = vmul.f32 %v2953, %v2953
    %v5999 = vmul.f32 %v2378, %v2378
    %v6000 = vmul.f32 %v2380, %v2380
    %v6001 = vmul.f32 %v2957, %v2957
    %v6002 = vmul.f32 %v2959, %v2959
    %v6003 = vmul.f32 %v2382, %v2382
    %v6004 = vmul.f32 %v2384, %v2384
    %v6005 = vmul.f32 %v2961, %v2961
    %v6006 = vmul.f32 %v2963, %v2963
    %v6007 = vmul.f32 %v2388, %v2388
    %v6008 = vmul.f32 %v2390, %v2390
    %v6009 = vmul.f32 %v2967, %v2967
    %v6010 = vmul.f32 %v2969, %v2969
    %v6011 = vmul.f32 %v2392, %v2392
    %v6012 = vmul.f32 %v2394, %v2394
    %v6013 = vmul.f32 %v2971, %v2971
    %v6014 = vmul.f32 %v2973, %v2973
    %v6015 = vmul.f32 %v2398, %v2398
    %v6016 = vmul.f32 %v2400, %v2400
    %v6017 = vmul.f32 %v2977, %v2977
    %v6018 = vmul.f32 %v2979, %v2979
    %v6019 = vmul.f32 %v2402, %v2402
    %v6020 = vmul.f32 %v2404, %v2404
    %v6021 = vmul.f32 %v2981, %v2981
    %v6022 = vmul.f32 %v2983, %v2983
    %v6023 = vmul.f32 %v2408, %v2408
    %v6024 = vmul.f32 %v2410, %v2410
    %v6025 = vmul.f32 %v2987, %v2987
    %v6026 = vmul.f32 %v2989, %v2989
    %v6027 = vmul.f32 %v2412, %v2412
    %v6028 = vmul.f32 %v2414, %v2414
    %v6029 = vmul.f32 %v2991, %v2991
    %v6030 = vmul.f32 %v2993, %v2993
    %v6031 = vadd.f32 %v5903, %v5904
    %v6032 = vadd.f32 %v6031, %v5905
    %v6033 = vadd.f32 %v6032, %v5906
    %6034 = vadd.xlane.f32.xlu0 %v6033
    %v6035 = vpop.xlane.xlu0 %6034
    %v6036 = vadd.f32 %v5907, %v5908
    %v6037 = vadd.f32 %v6036, %v5909
    %v6038 = vadd.f32 %v6037, %v5910
    %6039 = vadd.xlane.f32.xlu0 %v6038
    %v6040 = vpop.xlane.xlu0 %6039
    %v6041 = vadd.f32 %v5911, %v5912
    %v6042 = vadd.f32 %v6041, %v5913
    %v6043 = vadd.f32 %v6042, %v5914
    %6044 = vadd.xlane.f32.xlu0 %v6043
    %v6045 = vpop.xlane.xlu0 %6044
    %v6046 = vadd.f32 %v5915, %v5916
    %v6047 = vadd.f32 %v6046, %v5917
    %v6048 = vadd.f32 %v6047, %v5918
    %6049 = vadd.xlane.f32.xlu0 %v6048
    %v6050 = vpop.xlane.xlu0 %6049
    %v6051 = vadd.f32 %v5919, %v5920
    %v6052 = vadd.f32 %v6051, %v5921
    %v6053 = vadd.f32 %v6052, %v5922
    %6054 = vadd.xlane.f32.xlu0 %v6053
    %v6055 = vpop.xlane.xlu0 %6054
    %v6056 = vadd.f32 %v5923, %v5924
    %v6057 = vadd.f32 %v6056, %v5925
    %v6058 = vadd.f32 %v6057, %v5926
    %6059 = vadd.xlane.f32.xlu0 %v6058
    %v6060 = vpop.xlane.xlu0 %6059
    %v6061 = vadd.f32 %v5927, %v5928
    %v6062 = vadd.f32 %v6061, %v5929
    %v6063 = vadd.f32 %v6062, %v5930
    %6064 = vadd.xlane.f32.xlu0 %v6063
    %v6065 = vpop.xlane.xlu0 %6064
    %v6066 = vadd.f32 %v5931, %v5932
    %v6067 = vadd.f32 %v6066, %v5933
    %v6068 = vadd.f32 %v6067, %v5934
    %6069 = vadd.xlane.f32.xlu0 %v6068
    %v6070 = vpop.xlane.xlu0 %6069
    %v6071 = vadd.f32 %v5935, %v5936
    %v6072 = vadd.f32 %v6071, %v5937
    %v6073 = vadd.f32 %v6072, %v5938
    %6074 = vadd.xlane.f32.xlu0 %v6073
    %v6075 = vpop.xlane.xlu0 %6074
    %v6076 = vadd.f32 %v5939, %v5940
    %v6077 = vadd.f32 %v6076, %v5941
    %v6078 = vadd.f32 %v6077, %v5942
    %6079 = vadd.xlane.f32.xlu0 %v6078
    %v6080 = vpop.xlane.xlu0 %6079
    %v6081 = vadd.f32 %v5943, %v5944
    %v6082 = vadd.f32 %v6081, %v5945
    %v6083 = vadd.f32 %v6082, %v5946
    %6084 = vadd.xlane.f32.xlu0 %v6083
    %v6085 = vpop.xlane.xlu0 %6084
    %v6086 = vadd.f32 %v5947, %v5948
    %v6087 = vadd.f32 %v6086, %v5949
    %v6088 = vadd.f32 %v6087, %v5950
    %6089 = vadd.xlane.f32.xlu0 %v6088
    %v6090 = vpop.xlane.xlu0 %6089
    %v6091 = vadd.f32 %v5951, %v5952
    %v6092 = vadd.f32 %v6091, %v5953
    %v6093 = vadd.f32 %v6092, %v5954
    %6094 = vadd.xlane.f32.xlu0 %v6093
    %v6095 = vpop.xlane.xlu0 %6094
    %v6096 = vadd.f32 %v5955, %v5956
    %v6097 = vadd.f32 %v6096, %v5957
    %v6098 = vadd.f32 %v6097, %v5958
    %6099 = vadd.xlane.f32.xlu0 %v6098
    %v6100 = vpop.xlane.xlu0 %6099
    %v6101 = vadd.f32 %v5959, %v5960
    %v6102 = vadd.f32 %v6101, %v5961
    %v6103 = vadd.f32 %v6102, %v5962
    %6104 = vadd.xlane.f32.xlu0 %v6103
    %v6105 = vpop.xlane.xlu0 %6104
    %v6106 = vadd.f32 %v5963, %v5964
    %v6107 = vadd.f32 %v6106, %v5965
    %v6108 = vadd.f32 %v6107, %v5966
    %6109 = vadd.xlane.f32.xlu0 %v6108
    %v6110 = vpop.xlane.xlu0 %6109
    %v6111 = vadd.f32 %v5967, %v5968
    %v6112 = vadd.f32 %v6111, %v5969
    %v6113 = vadd.f32 %v6112, %v5970
    %6114 = vadd.xlane.f32.xlu0 %v6113
    %v6115 = vpop.xlane.xlu0 %6114
    %v6116 = vadd.f32 %v5971, %v5972
    %v6117 = vadd.f32 %v6116, %v5973
    %v6118 = vadd.f32 %v6117, %v5974
    %6119 = vadd.xlane.f32.xlu0 %v6118
    %v6120 = vpop.xlane.xlu0 %6119
    %v6121 = vadd.f32 %v5975, %v5976
    %v6122 = vadd.f32 %v6121, %v5977
    %v6123 = vadd.f32 %v6122, %v5978
    %6124 = vadd.xlane.f32.xlu0 %v6123
    %v6125 = vpop.xlane.xlu0 %6124
    %v6126 = vadd.f32 %v5979, %v5980
    %v6127 = vadd.f32 %v6126, %v5981
    %v6128 = vadd.f32 %v6127, %v5982
    %6129 = vadd.xlane.f32.xlu0 %v6128
    %v6130 = vpop.xlane.xlu0 %6129
    %v6131 = vadd.f32 %v5983, %v5984
    %v6132 = vadd.f32 %v6131, %v5985
    %v6133 = vadd.f32 %v6132, %v5986
    %6134 = vadd.xlane.f32.xlu0 %v6133
    %v6135 = vpop.xlane.xlu0 %6134
    %v6136 = vadd.f32 %v5987, %v5988
    %v6137 = vadd.f32 %v6136, %v5989
    %v6138 = vadd.f32 %v6137, %v5990
    %6139 = vadd.xlane.f32.xlu0 %v6138
    %v6140 = vpop.xlane.xlu0 %6139
    %v6141 = vadd.f32 %v5991, %v5992
    %v6142 = vadd.f32 %v6141, %v5993
    %v6143 = vadd.f32 %v6142, %v5994
    %6144 = vadd.xlane.f32.xlu0 %v6143
    %v6145 = vpop.xlane.xlu0 %6144
    %v6146 = vadd.f32 %v5995, %v5996
    %v6147 = vadd.f32 %v6146, %v5997
    %v6148 = vadd.f32 %v6147, %v5998
    %6149 = vadd.xlane.f32.xlu0 %v6148
    %v6150 = vpop.xlane.xlu0 %6149
    %v6151 = vadd.f32 %v5999, %v6000
    %v6152 = vadd.f32 %v6151, %v6001
    %v6153 = vadd.f32 %v6152, %v6002
    %6154 = vadd.xlane.f32.xlu0 %v6153
    %v6155 = vpop.xlane.xlu0 %6154
    %v6156 = vadd.f32 %v6003, %v6004
    %v6157 = vadd.f32 %v6156, %v6005
    %v6158 = vadd.f32 %v6157, %v6006
    %6159 = vadd.xlane.f32.xlu0 %v6158
    %v6160 = vpop.xlane.xlu0 %6159
    %v6161 = vadd.f32 %v6007, %v6008
    %v6162 = vadd.f32 %v6161, %v6009
    %v6163 = vadd.f32 %v6162, %v6010
    %6164 = vadd.xlane.f32.xlu0 %v6163
    %v6165 = vpop.xlane.xlu0 %6164
    %v6166 = vadd.f32 %v6011, %v6012
    %v6167 = vadd.f32 %v6166, %v6013
    %v6168 = vadd.f32 %v6167, %v6014
    %6169 = vadd.xlane.f32.xlu0 %v6168
    %v6170 = vpop.xlane.xlu0 %6169
    %v6171 = vadd.f32 %v6015, %v6016
    %v6172 = vadd.f32 %v6171, %v6017
    %v6173 = vadd.f32 %v6172, %v6018
    %6174 = vadd.xlane.f32.xlu0 %v6173
    %v6175 = vpop.xlane.xlu0 %6174
    %v6176 = vadd.f32 %v6019, %v6020
    %v6177 = vadd.f32 %v6176, %v6021
    %v6178 = vadd.f32 %v6177, %v6022
    %6179 = vadd.xlane.f32.xlu0 %v6178
    %v6180 = vpop.xlane.xlu0 %6179
    %v6181 = vadd.f32 %v6023, %v6024
    %v6182 = vadd.f32 %v6181, %v6025
    %v6183 = vadd.f32 %v6182, %v6026
    %6184 = vadd.xlane.f32.xlu0 %v6183
    %v6185 = vpop.xlane.xlu0 %6184
    %v6186 = vadd.f32 %v6027, %v6028
    %v6187 = vadd.f32 %v6186, %v6029
    %v6188 = vadd.f32 %v6187, %v6030
    %6189 = vadd.xlane.f32.xlu0 %v6188
    %v6190 = vpop.xlane.xlu0 %6189
    %v6191 = vadd.f32 %v6035, 1e-12
    %v6192 = vadd.f32 %v6040, 1e-12
    %v6193 = vadd.f32 %v6045, 1e-12
    %v6194 = vadd.f32 %v6050, 1e-12
    %v6195 = vadd.f32 %v6055, 1e-12
    %v6196 = vadd.f32 %v6060, 1e-12
    %v6197 = vadd.f32 %v6065, 1e-12
    %v6198 = vadd.f32 %v6070, 1e-12
    %v6199 = vadd.f32 %v6075, 1e-12
    %v6200 = vadd.f32 %v6080, 1e-12
    %v6201 = vadd.f32 %v6085, 1e-12
    %v6202 = vadd.f32 %v6090, 1e-12
    %v6203 = vadd.f32 %v6095, 1e-12
    %v6204 = vadd.f32 %v6100, 1e-12
    %v6205 = vadd.f32 %v6105, 1e-12
    %v6206 = vadd.f32 %v6110, 1e-12
    %v6207 = vadd.f32 %v6115, 1e-12
    %v6208 = vadd.f32 %v6120, 1e-12
    %v6209 = vadd.f32 %v6125, 1e-12
    %v6210 = vadd.f32 %v6130, 1e-12
    %v6211 = vadd.f32 %v6135, 1e-12
    %v6212 = vadd.f32 %v6140, 1e-12
    %v6213 = vadd.f32 %v6145, 1e-12
    %v6214 = vadd.f32 %v6150, 1e-12
    %v6215 = vadd.f32 %v6155, 1e-12
    %v6216 = vadd.f32 %v6160, 1e-12
    %v6217 = vadd.f32 %v6165, 1e-12
    %v6218 = vadd.f32 %v6170, 1e-12
    %v6219 = vadd.f32 %v6175, 1e-12
    %v6220 = vadd.f32 %v6180, 1e-12
    %v6221 = vadd.f32 %v6185, 1e-12
    %v6222 = vadd.f32 %v6190, 1e-12
    %v6223 = vrsqrt.pop %v6191
    %v6224 = vrsqrt.pop %v6192
    %v6225 = vrsqrt.pop %v6193
    %v6226 = vrsqrt.pop %v6194
    %v6227 = vrsqrt.pop %v6195
    %v6228 = vrsqrt.pop %v6196
    %v6229 = vrsqrt.pop %v6197
    %v6230 = vrsqrt.pop %v6198
    %v6231 = vrsqrt.pop %v6199
    %v6232 = vrsqrt.pop %v6200
    %v6233 = vrsqrt.pop %v6201
    %v6234 = vrsqrt.pop %v6202
    %v6235 = vrsqrt.pop %v6203
    %v6236 = vrsqrt.pop %v6204
    %v6237 = vrsqrt.pop %v6205
    %v6238 = vrsqrt.pop %v6206
    %v6239 = vrsqrt.pop %v6207
    %v6240 = vrsqrt.pop %v6208
    %v6241 = vrsqrt.pop %v6209
    %v6242 = vrsqrt.pop %v6210
    %v6243 = vrsqrt.pop %v6211
    %v6244 = vrsqrt.pop %v6212
    %v6245 = vrsqrt.pop %v6213
    %v6246 = vrsqrt.pop %v6214
    %v6247 = vrsqrt.pop %v6215
    %v6248 = vrsqrt.pop %v6216
    %v6249 = vrsqrt.pop %v6217
    %v6250 = vrsqrt.pop %v6218
    %v6251 = vrsqrt.pop %v6219
    %v6252 = vrsqrt.pop %v6220
    %v6253 = vrsqrt.pop %v6221
    %v6254 = vrsqrt.pop %v6222
    %v6255 = vmul.f32 %v5166, %v5166
    %v6256 = vmul.f32 %v5168, %v5168
    %v6257 = vmul.f32 %v5745, %v5745
    %v6258 = vmul.f32 %v5747, %v5747
    %v6259 = vmul.f32 %v5170, %v5170
    %v6260 = vmul.f32 %v5172, %v5172
    %v6261 = vmul.f32 %v5749, %v5749
    %v6262 = vmul.f32 %v5751, %v5751
    %v6263 = vmul.f32 %v5176, %v5176
    %v6264 = vmul.f32 %v5178, %v5178
    %v6265 = vmul.f32 %v5755, %v5755
    %v6266 = vmul.f32 %v5757, %v5757
    %v6267 = vmul.f32 %v5180, %v5180
    %v6268 = vmul.f32 %v5182, %v5182
    %v6269 = vmul.f32 %v5759, %v5759
    %v6270 = vmul.f32 %v5761, %v5761
    %v6271 = vmul.f32 %v5186, %v5186
    %v6272 = vmul.f32 %v5188, %v5188
    %v6273 = vmul.f32 %v5765, %v5765
    %v6274 = vmul.f32 %v5767, %v5767
    %v6275 = vmul.f32 %v5190, %v5190
    %v6276 = vmul.f32 %v5192, %v5192
    %v6277 = vmul.f32 %v5769, %v5769
    %v6278 = vmul.f32 %v5771, %v5771
    %v6279 = vmul.f32 %v5196, %v5196
    %v6280 = vmul.f32 %v5198, %v5198
    %v6281 = vmul.f32 %v5775, %v5775
    %v6282 = vmul.f32 %v5777, %v5777
    %v6283 = vmul.f32 %v5200, %v5200
    %v6284 = vmul.f32 %v5202, %v5202
    %v6285 = vmul.f32 %v5779, %v5779
    %v6286 = vmul.f32 %v5781, %v5781
    %v6287 = vmul.f32 %v5206, %v5206
    %v6288 = vmul.f32 %v5208, %v5208
    %v6289 = vmul.f32 %v5785, %v5785
    %v6290 = vmul.f32 %v5787, %v5787
    %v6291 = vmul.f32 %v5210, %v5210
    %v6292 = vmul.f32 %v5212, %v5212
    %v6293 = vmul.f32 %v5789, %v5789
    %v6294 = vmul.f32 %v5791, %v5791
    %v6295 = vmul.f32 %v5216, %v5216
    %v6296 = vmul.f32 %v5218, %v5218
    %v6297 = vmul.f32 %v5795, %v5795
    %v6298 = vmul.f32 %v5797, %v5797
    %v6299 = vmul.f32 %v5220, %v5220
    %v6300 = vmul.f32 %v5222, %v5222
    %v6301 = vmul.f32 %v5799, %v5799
    %v6302 = vmul.f32 %v5801, %v5801
    %v6303 = vmul.f32 %v5226, %v5226
    %v6304 = vmul.f32 %v5228, %v5228
    %v6305 = vmul.f32 %v5805, %v5805
    %v6306 = vmul.f32 %v5807, %v5807
    %v6307 = vmul.f32 %v5230, %v5230
    %v6308 = vmul.f32 %v5232, %v5232
    %v6309 = vmul.f32 %v5809, %v5809
    %v6310 = vmul.f32 %v5811, %v5811
    %v6311 = vmul.f32 %v5236, %v5236
    %v6312 = vmul.f32 %v5238, %v5238
    %v6313 = vmul.f32 %v5815, %v5815
    %v6314 = vmul.f32 %v5817, %v5817
    %v6315 = vmul.f32 %v5240, %v5240
    %v6316 = vmul.f32 %v5242, %v5242
    %v6317 = vmul.f32 %v5819, %v5819
    %v6318 = vmul.f32 %v5821, %v5821
    %v6319 = vmul.f32 %v5246, %v5246
    %v6320 = vmul.f32 %v5248, %v5248
    %v6321 = vmul.f32 %v5825, %v5825
    %v6322 = vmul.f32 %v5827, %v5827
    %v6323 = vmul.f32 %v5250, %v5250
    %v6324 = vmul.f32 %v5252, %v5252
    %v6325 = vmul.f32 %v5829, %v5829
    %v6326 = vmul.f32 %v5831, %v5831
    %v6327 = vmul.f32 %v5256, %v5256
    %v6328 = vmul.f32 %v5258, %v5258
    %v6329 = vmul.f32 %v5835, %v5835
    %v6330 = vmul.f32 %v5837, %v5837
    %v6331 = vmul.f32 %v5260, %v5260
    %v6332 = vmul.f32 %v5262, %v5262
    %v6333 = vmul.f32 %v5839, %v5839
    %v6334 = vmul.f32 %v5841, %v5841
    %v6335 = vmul.f32 %v5266, %v5266
    %v6336 = vmul.f32 %v5268, %v5268
    %v6337 = vmul.f32 %v5845, %v5845
    %v6338 = vmul.f32 %v5847, %v5847
    %v6339 = vmul.f32 %v5270, %v5270
    %v6340 = vmul.f32 %v5272, %v5272
    %v6341 = vmul.f32 %v5849, %v5849
    %v6342 = vmul.f32 %v5851, %v5851
    %v6343 = vmul.f32 %v5276, %v5276
    %v6344 = vmul.f32 %v5278, %v5278
    %v6345 = vmul.f32 %v5855, %v5855
    %v6346 = vmul.f32 %v5857, %v5857
    %v6347 = vmul.f32 %v5280, %v5280
    %v6348 = vmul.f32 %v5282, %v5282
    %v6349 = vmul.f32 %v5859, %v5859
    %v6350 = vmul.f32 %v5861, %v5861
    %v6351 = vmul.f32 %v5286, %v5286
    %v6352 = vmul.f32 %v5288, %v5288
    %v6353 = vmul.f32 %v5865, %v5865
    %v6354 = vmul.f32 %v5867, %v5867
    %v6355 = vmul.f32 %v5290, %v5290
    %v6356 = vmul.f32 %v5292, %v5292
    %v6357 = vmul.f32 %v5869, %v5869
    %v6358 = vmul.f32 %v5871, %v5871
    %v6359 = vmul.f32 %v5296, %v5296
    %v6360 = vmul.f32 %v5298, %v5298
    %v6361 = vmul.f32 %v5875, %v5875
    %v6362 = vmul.f32 %v5877, %v5877
    %v6363 = vmul.f32 %v5300, %v5300
    %v6364 = vmul.f32 %v5302, %v5302
    %v6365 = vmul.f32 %v5879, %v5879
    %v6366 = vmul.f32 %v5881, %v5881
    %v6367 = vmul.f32 %v5306, %v5306
    %v6368 = vmul.f32 %v5308, %v5308
    %v6369 = vmul.f32 %v5885, %v5885
    %v6370 = vmul.f32 %v5887, %v5887
    %v6371 = vmul.f32 %v5310, %v5310
    %v6372 = vmul.f32 %v5312, %v5312
    %v6373 = vmul.f32 %v5889, %v5889
    %v6374 = vmul.f32 %v5891, %v5891
    %v6375 = vmul.f32 %v5316, %v5316
    %v6376 = vmul.f32 %v5318, %v5318
    %v6377 = vmul.f32 %v5895, %v5895
    %v6378 = vmul.f32 %v5897, %v5897
    %v6379 = vmul.f32 %v5320, %v5320
    %v6380 = vmul.f32 %v5322, %v5322
    %v6381 = vmul.f32 %v5899, %v5899
    %v6382 = vmul.f32 %v5901, %v5901
    %v6383 = vadd.f32 %v6255, %v6256
    %v6384 = vadd.f32 %v6383, %v6257
    %v6385 = vadd.f32 %v6384, %v6258
    %6386 = vadd.xlane.f32.xlu0 %v6385
    %v6387 = vpop.xlane.xlu0 %6386
    %v6388 = vadd.f32 %v6259, %v6260
    %v6389 = vadd.f32 %v6388, %v6261
    %v6390 = vadd.f32 %v6389, %v6262
    %6391 = vadd.xlane.f32.xlu0 %v6390
    %v6392 = vpop.xlane.xlu0 %6391
    %v6393 = vadd.f32 %v6263, %v6264
    %v6394 = vadd.f32 %v6393, %v6265
    %v6395 = vadd.f32 %v6394, %v6266
    %6396 = vadd.xlane.f32.xlu0 %v6395
    %v6397 = vpop.xlane.xlu0 %6396
    %v6398 = vadd.f32 %v6267, %v6268
    %v6399 = vadd.f32 %v6398, %v6269
    %v6400 = vadd.f32 %v6399, %v6270
    %6401 = vadd.xlane.f32.xlu0 %v6400
    %v6402 = vpop.xlane.xlu0 %6401
    %v6403 = vadd.f32 %v6271, %v6272
    %v6404 = vadd.f32 %v6403, %v6273
    %v6405 = vadd.f32 %v6404, %v6274
    %6406 = vadd.xlane.f32.xlu0 %v6405
    %v6407 = vpop.xlane.xlu0 %6406
    %v6408 = vadd.f32 %v6275, %v6276
    %v6409 = vadd.f32 %v6408, %v6277
    %v6410 = vadd.f32 %v6409, %v6278
    %6411 = vadd.xlane.f32.xlu0 %v6410
    %v6412 = vpop.xlane.xlu0 %6411
    %v6413 = vadd.f32 %v6279, %v6280
    %v6414 = vadd.f32 %v6413, %v6281
    %v6415 = vadd.f32 %v6414, %v6282
    %6416 = vadd.xlane.f32.xlu0 %v6415
    %v6417 = vpop.xlane.xlu0 %6416
    %v6418 = vadd.f32 %v6283, %v6284
    %v6419 = vadd.f32 %v6418, %v6285
    %v6420 = vadd.f32 %v6419, %v6286
    %6421 = vadd.xlane.f32.xlu0 %v6420
    %v6422 = vpop.xlane.xlu0 %6421
    %v6423 = vadd.f32 %v6287, %v6288
    %v6424 = vadd.f32 %v6423, %v6289
    %v6425 = vadd.f32 %v6424, %v6290
    %6426 = vadd.xlane.f32.xlu0 %v6425
    %v6427 = vpop.xlane.xlu0 %6426
    %v6428 = vadd.f32 %v6291, %v6292
    %v6429 = vadd.f32 %v6428, %v6293
    %v6430 = vadd.f32 %v6429, %v6294
    %6431 = vadd.xlane.f32.xlu0 %v6430
    %v6432 = vpop.xlane.xlu0 %6431
    %v6433 = vadd.f32 %v6295, %v6296
    %v6434 = vadd.f32 %v6433, %v6297
    %v6435 = vadd.f32 %v6434, %v6298
    %6436 = vadd.xlane.f32.xlu0 %v6435
    %v6437 = vpop.xlane.xlu0 %6436
    %v6438 = vadd.f32 %v6299, %v6300
    %v6439 = vadd.f32 %v6438, %v6301
    %v6440 = vadd.f32 %v6439, %v6302
    %6441 = vadd.xlane.f32.xlu0 %v6440
    %v6442 = vpop.xlane.xlu0 %6441
    %v6443 = vadd.f32 %v6303, %v6304
    %v6444 = vadd.f32 %v6443, %v6305
    %v6445 = vadd.f32 %v6444, %v6306
    %6446 = vadd.xlane.f32.xlu0 %v6445
    %v6447 = vpop.xlane.xlu0 %6446
    %v6448 = vadd.f32 %v6307, %v6308
    %v6449 = vadd.f32 %v6448, %v6309
    %v6450 = vadd.f32 %v6449, %v6310
    %6451 = vadd.xlane.f32.xlu0 %v6450
    %v6452 = vpop.xlane.xlu0 %6451
    %v6453 = vadd.f32 %v6311, %v6312
    %v6454 = vadd.f32 %v6453, %v6313
    %v6455 = vadd.f32 %v6454, %v6314
    %6456 = vadd.xlane.f32.xlu0 %v6455
    %v6457 = vpop.xlane.xlu0 %6456
    %v6458 = vadd.f32 %v6315, %v6316
    %v6459 = vadd.f32 %v6458, %v6317
    %v6460 = vadd.f32 %v6459, %v6318
    %6461 = vadd.xlane.f32.xlu0 %v6460
    %v6462 = vpop.xlane.xlu0 %6461
    %v6463 = vadd.f32 %v6319, %v6320
    %v6464 = vadd.f32 %v6463, %v6321
    %v6465 = vadd.f32 %v6464, %v6322
    %6466 = vadd.xlane.f32.xlu0 %v6465
    %v6467 = vpop.xlane.xlu0 %6466
    %v6468 = vadd.f32 %v6323, %v6324
    %v6469 = vadd.f32 %v6468, %v6325
    %v6470 = vadd.f32 %v6469, %v6326
    %6471 = vadd.xlane.f32.xlu0 %v6470
    %v6472 = vpop.xlane.xlu0 %6471
    %v6473 = vadd.f32 %v6327, %v6328
    %v6474 = vadd.f32 %v6473, %v6329
    %v6475 = vadd.f32 %v6474, %v6330
    %6476 = vadd.xlane.f32.xlu0 %v6475
    %v6477 = vpop.xlane.xlu0 %6476
    %v6478 = vadd.f32 %v6331, %v6332
    %v6479 = vadd.f32 %v6478, %v6333
    %v6480 = vadd.f32 %v6479, %v6334
    %6481 = vadd.xlane.f32.xlu0 %v6480
    %v6482 = vpop.xlane.xlu0 %6481
    %v6483 = vadd.f32 %v6335, %v6336
    %v6484 = vadd.f32 %v6483, %v6337
    %v6485 = vadd.f32 %v6484, %v6338
    %6486 = vadd.xlane.f32.xlu0 %v6485
    %v6487 = vpop.xlane.xlu0 %6486
    %v6488 = vadd.f32 %v6339, %v6340
    %v6489 = vadd.f32 %v6488, %v6341
    %v6490 = vadd.f32 %v6489, %v6342
    %6491 = vadd.xlane.f32.xlu0 %v6490
    %v6492 = vpop.xlane.xlu0 %6491
    %v6493 = vadd.f32 %v6343, %v6344
    %v6494 = vadd.f32 %v6493, %v6345
    %v6495 = vadd.f32 %v6494, %v6346
    %6496 = vadd.xlane.f32.xlu0 %v6495
    %v6497 = vpop.xlane.xlu0 %6496
    %v6498 = vadd.f32 %v6347, %v6348
    %v6499 = vadd.f32 %v6498, %v6349
    %v6500 = vadd.f32 %v6499, %v6350
    %6501 = vadd.xlane.f32.xlu0 %v6500
    %v6502 = vpop.xlane.xlu0 %6501
    %v6503 = vadd.f32 %v6351, %v6352
    %v6504 = vadd.f32 %v6503, %v6353
    %v6505 = vadd.f32 %v6504, %v6354
    %6506 = vadd.xlane.f32.xlu0 %v6505
    %v6507 = vpop.xlane.xlu0 %6506
    %v6508 = vadd.f32 %v6355, %v6356
    %v6509 = vadd.f32 %v6508, %v6357
    %v6510 = vadd.f32 %v6509, %v6358
    %6511 = vadd.xlane.f32.xlu0 %v6510
    %v6512 = vpop.xlane.xlu0 %6511
    %v6513 = vadd.f32 %v6359, %v6360
    %v6514 = vadd.f32 %v6513, %v6361
    %v6515 = vadd.f32 %v6514, %v6362
    %6516 = vadd.xlane.f32.xlu0 %v6515
    %v6517 = vpop.xlane.xlu0 %6516
    %v6518 = vadd.f32 %v6363, %v6364
    %v6519 = vadd.f32 %v6518, %v6365
    %v6520 = vadd.f32 %v6519, %v6366
    %6521 = vadd.xlane.f32.xlu0 %v6520
    %v6522 = vpop.xlane.xlu0 %6521
    %v6523 = vadd.f32 %v6367, %v6368
    %v6524 = vadd.f32 %v6523, %v6369
    %v6525 = vadd.f32 %v6524, %v6370
    %6526 = vadd.xlane.f32.xlu0 %v6525
    %v6527 = vpop.xlane.xlu0 %6526
    %v6528 = vadd.f32 %v6371, %v6372
    %v6529 = vadd.f32 %v6528, %v6373
    %v6530 = vadd.f32 %v6529, %v6374
    %6531 = vadd.xlane.f32.xlu0 %v6530
    %v6532 = vpop.xlane.xlu0 %6531
    %v6533 = vadd.f32 %v6375, %v6376
    %v6534 = vadd.f32 %v6533, %v6377
    %v6535 = vadd.f32 %v6534, %v6378
    %6536 = vadd.xlane.f32.xlu0 %v6535
    %v6537 = vpop.xlane.xlu0 %6536
    %v6538 = vadd.f32 %v6379, %v6380
    %v6539 = vadd.f32 %v6538, %v6381
    %v6540 = vadd.f32 %v6539, %v6382
    %6541 = vadd.xlane.f32.xlu0 %v6540
    %v6542 = vpop.xlane.xlu0 %6541
    %v6543 = vadd.f32 %v6387, 1e-12
    %v6544 = vadd.f32 %v6392, 1e-12
    %v6545 = vadd.f32 %v6397, 1e-12
    %v6546 = vadd.f32 %v6402, 1e-12
    %v6547 = vadd.f32 %v6407, 1e-12
    %v6548 = vadd.f32 %v6412, 1e-12
    %v6549 = vadd.f32 %v6417, 1e-12
    %v6550 = vadd.f32 %v6422, 1e-12
    %v6551 = vadd.f32 %v6427, 1e-12
    %v6552 = vadd.f32 %v6432, 1e-12
    %v6553 = vadd.f32 %v6437, 1e-12
    %v6554 = vadd.f32 %v6442, 1e-12
    %v6555 = vadd.f32 %v6447, 1e-12
    %v6556 = vadd.f32 %v6452, 1e-12
    %v6557 = vadd.f32 %v6457, 1e-12
    %v6558 = vadd.f32 %v6462, 1e-12
    %v6559 = vadd.f32 %v6467, 1e-12
    %v6560 = vadd.f32 %v6472, 1e-12
    %v6561 = vadd.f32 %v6477, 1e-12
    %v6562 = vadd.f32 %v6482, 1e-12
    %v6563 = vadd.f32 %v6487, 1e-12
    %v6564 = vadd.f32 %v6492, 1e-12
    %v6565 = vadd.f32 %v6497, 1e-12
    %v6566 = vadd.f32 %v6502, 1e-12
    %v6567 = vadd.f32 %v6507, 1e-12
    %v6568 = vadd.f32 %v6512, 1e-12
    %v6569 = vadd.f32 %v6517, 1e-12
    %v6570 = vadd.f32 %v6522, 1e-12
    %v6571 = vadd.f32 %v6527, 1e-12
    %v6572 = vadd.f32 %v6532, 1e-12
    %v6573 = vadd.f32 %v6537, 1e-12
    %v6574 = vadd.f32 %v6542, 1e-12
    %v6575 = vrsqrt.pop %v6543
    %v6576 = vrsqrt.pop %v6544
    %v6577 = vrsqrt.pop %v6545
    %v6578 = vrsqrt.pop %v6546
    %v6579 = vrsqrt.pop %v6547
    %v6580 = vrsqrt.pop %v6548
    %v6581 = vrsqrt.pop %v6549
    %v6582 = vrsqrt.pop %v6550
    %v6583 = vrsqrt.pop %v6551
    %v6584 = vrsqrt.pop %v6552
    %v6585 = vrsqrt.pop %v6553
    %v6586 = vrsqrt.pop %v6554
    %v6587 = vrsqrt.pop %v6555
    %v6588 = vrsqrt.pop %v6556
    %v6589 = vrsqrt.pop %v6557
    %v6590 = vrsqrt.pop %v6558
    %v6591 = vrsqrt.pop %v6559
    %v6592 = vrsqrt.pop %v6560
    %v6593 = vrsqrt.pop %v6561
    %v6594 = vrsqrt.pop %v6562
    %v6595 = vrsqrt.pop %v6563
    %v6596 = vrsqrt.pop %v6564
    %v6597 = vrsqrt.pop %v6565
    %v6598 = vrsqrt.pop %v6566
    %v6599 = vrsqrt.pop %v6567
    %v6600 = vrsqrt.pop %v6568
    %v6601 = vrsqrt.pop %v6569
    %v6602 = vrsqrt.pop %v6570
    %v6603 = vrsqrt.pop %v6571
    %v6604 = vrsqrt.pop %v6572
    %v6605 = vrsqrt.pop %v6573
    %v6606 = vrsqrt.pop %v6574
    %v6607 = vstv %s86
    %v6608 = vmul.f32 %v6607, %v6223
    %v6609 = vmul.f32 %v6607, %v6224
    %v6610 = vmul.f32 %v6607, %v6225
    %v6611 = vmul.f32 %v6607, %v6226
    %v6612 = vmul.f32 %v6607, %v6227
    %v6613 = vmul.f32 %v6607, %v6228
    %v6614 = vmul.f32 %v6607, %v6229
    %v6615 = vmul.f32 %v6607, %v6230
    %v6616 = vmul.f32 %v6607, %v6231
    %v6617 = vmul.f32 %v6607, %v6232
    %v6618 = vmul.f32 %v6607, %v6233
    %v6619 = vmul.f32 %v6607, %v6234
    %v6620 = vmul.f32 %v6607, %v6235
    %v6621 = vmul.f32 %v6607, %v6236
    %v6622 = vmul.f32 %v6607, %v6237
    %v6623 = vmul.f32 %v6607, %v6238
    %v6624 = vmul.f32 %v6607, %v6239
    %v6625 = vmul.f32 %v6607, %v6240
    %v6626 = vmul.f32 %v6607, %v6241
    %v6627 = vmul.f32 %v6607, %v6242
    %v6628 = vmul.f32 %v6607, %v6243
    %v6629 = vmul.f32 %v6607, %v6244
    %v6630 = vmul.f32 %v6607, %v6245
    %v6631 = vmul.f32 %v6607, %v6246
    %v6632 = vmul.f32 %v6607, %v6247
    %v6633 = vmul.f32 %v6607, %v6248
    %v6634 = vmul.f32 %v6607, %v6249
    %v6635 = vmul.f32 %v6607, %v6250
    %v6636 = vmul.f32 %v6607, %v6251
    %v6637 = vmul.f32 %v6607, %v6252
    %v6638 = vmul.f32 %v6607, %v6253
    %v6639 = vmul.f32 %v6607, %v6254
    %v6640 = vmul.f32 %v2258, %v6608
    %v6641 = vmul.f32 %v2260, %v6608
    %v6642 = vmul.f32 %v2837, %v6608
    %v6643 = vmul.f32 %v2839, %v6608
    %v6644 = vmul.f32 %v2262, %v6609
    %v6645 = vmul.f32 %v2264, %v6609
    %v6646 = vmul.f32 %v2841, %v6609
    %v6647 = vmul.f32 %v2843, %v6609
    %v6648 = vmul.f32 %v2268, %v6610
    %v6649 = vmul.f32 %v2270, %v6610
    %v6650 = vmul.f32 %v2847, %v6610
    %v6651 = vmul.f32 %v2849, %v6610
    %v6652 = vmul.f32 %v2272, %v6611
    %v6653 = vmul.f32 %v2274, %v6611
    %v6654 = vmul.f32 %v2851, %v6611
    %v6655 = vmul.f32 %v2853, %v6611
    %v6656 = vmul.f32 %v2278, %v6612
    %v6657 = vmul.f32 %v2280, %v6612
    %v6658 = vmul.f32 %v2857, %v6612
    %v6659 = vmul.f32 %v2859, %v6612
    %v6660 = vmul.f32 %v2282, %v6613
    %v6661 = vmul.f32 %v2284, %v6613
    %v6662 = vmul.f32 %v2861, %v6613
    %v6663 = vmul.f32 %v2863, %v6613
    %v6664 = vmul.f32 %v2288, %v6614
    %v6665 = vmul.f32 %v2290, %v6614
    %v6666 = vmul.f32 %v2867, %v6614
    %v6667 = vmul.f32 %v2869, %v6614
    %v6668 = vmul.f32 %v2292, %v6615
    %v6669 = vmul.f32 %v2294, %v6615
    %v6670 = vmul.f32 %v2871, %v6615
    %v6671 = vmul.f32 %v2873, %v6615
    %v6672 = vmul.f32 %v2298, %v6616
    %v6673 = vmul.f32 %v2300, %v6616
    %v6674 = vmul.f32 %v2877, %v6616
    %v6675 = vmul.f32 %v2879, %v6616
    %v6676 = vmul.f32 %v2302, %v6617
    %v6677 = vmul.f32 %v2304, %v6617
    %v6678 = vmul.f32 %v2881, %v6617
    %v6679 = vmul.f32 %v2883, %v6617
    %v6680 = vmul.f32 %v2308, %v6618
    %v6681 = vmul.f32 %v2310, %v6618
    %v6682 = vmul.f32 %v2887, %v6618
    %v6683 = vmul.f32 %v2889, %v6618
    %v6684 = vmul.f32 %v2312, %v6619
    %v6685 = vmul.f32 %v2314, %v6619
    %v6686 = vmul.f32 %v2891, %v6619
    %v6687 = vmul.f32 %v2893, %v6619
    %v6688 = vmul.f32 %v2318, %v6620
    %v6689 = vmul.f32 %v2320, %v6620
    %v6690 = vmul.f32 %v2897, %v6620
    %v6691 = vmul.f32 %v2899, %v6620
    %v6692 = vmul.f32 %v2322, %v6621
    %v6693 = vmul.f32 %v2324, %v6621
    %v6694 = vmul.f32 %v2901, %v6621
    %v6695 = vmul.f32 %v2903, %v6621
    %v6696 = vmul.f32 %v2328, %v6622
    %v6697 = vmul.f32 %v2330, %v6622
    %v6698 = vmul.f32 %v2907, %v6622
    %v6699 = vmul.f32 %v2909, %v6622
    %v6700 = vmul.f32 %v2332, %v6623
    %v6701 = vmul.f32 %v2334, %v6623
    %v6702 = vmul.f32 %v2911, %v6623
    %v6703 = vmul.f32 %v2913, %v6623
    %v6704 = vmul.f32 %v2338, %v6624
    %v6705 = vmul.f32 %v2340, %v6624
    %v6706 = vmul.f32 %v2917, %v6624
    %v6707 = vmul.f32 %v2919, %v6624
    %v6708 = vmul.f32 %v2342, %v6625
    %v6709 = vmul.f32 %v2344, %v6625
    %v6710 = vmul.f32 %v2921, %v6625
    %v6711 = vmul.f32 %v2923, %v6625
    %v6712 = vmul.f32 %v2348, %v6626
    %v6713 = vmul.f32 %v2350, %v6626
    %v6714 = vmul.f32 %v2927, %v6626
    %v6715 = vmul.f32 %v2929, %v6626
    %v6716 = vmul.f32 %v2352, %v6627
    %v6717 = vmul.f32 %v2354, %v6627
    %v6718 = vmul.f32 %v2931, %v6627
    %v6719 = vmul.f32 %v2933, %v6627
    %v6720 = vmul.f32 %v2358, %v6628
    %v6721 = vmul.f32 %v2360, %v6628
    %v6722 = vmul.f32 %v2937, %v6628
    %v6723 = vmul.f32 %v2939, %v6628
    %v6724 = vmul.f32 %v2362, %v6629
    %v6725 = vmul.f32 %v2364, %v6629
    %v6726 = vmul.f32 %v2941, %v6629
    %v6727 = vmul.f32 %v2943, %v6629
    %v6728 = vmul.f32 %v2368, %v6630
    %v6729 = vmul.f32 %v2370, %v6630
    %v6730 = vmul.f32 %v2947, %v6630
    %v6731 = vmul.f32 %v2949, %v6630
    %v6732 = vmul.f32 %v2372, %v6631
    %v6733 = vmul.f32 %v2374, %v6631
    %v6734 = vmul.f32 %v2951, %v6631
    %v6735 = vmul.f32 %v2953, %v6631
    %v6736 = vmul.f32 %v2378, %v6632
    %v6737 = vmul.f32 %v2380, %v6632
    %v6738 = vmul.f32 %v2957, %v6632
    %v6739 = vmul.f32 %v2959, %v6632
    %v6740 = vmul.f32 %v2382, %v6633
    %v6741 = vmul.f32 %v2384, %v6633
    %v6742 = vmul.f32 %v2961, %v6633
    %v6743 = vmul.f32 %v2963, %v6633
    %v6744 = vmul.f32 %v2388, %v6634
    %v6745 = vmul.f32 %v2390, %v6634
    %v6746 = vmul.f32 %v2967, %v6634
    %v6747 = vmul.f32 %v2969, %v6634
    %v6748 = vmul.f32 %v2392, %v6635
    %v6749 = vmul.f32 %v2394, %v6635
    %v6750 = vmul.f32 %v2971, %v6635
    %v6751 = vmul.f32 %v2973, %v6635
    %v6752 = vmul.f32 %v2398, %v6636
    %v6753 = vmul.f32 %v2400, %v6636
    %v6754 = vmul.f32 %v2977, %v6636
    %v6755 = vmul.f32 %v2979, %v6636
    %v6756 = vmul.f32 %v2402, %v6637
    %v6757 = vmul.f32 %v2404, %v6637
    %v6758 = vmul.f32 %v2981, %v6637
    %v6759 = vmul.f32 %v2983, %v6637
    %v6760 = vmul.f32 %v2408, %v6638
    %v6761 = vmul.f32 %v2410, %v6638
    %v6762 = vmul.f32 %v2987, %v6638
    %v6763 = vmul.f32 %v2989, %v6638
    %v6764 = vmul.f32 %v2412, %v6639
    %v6765 = vmul.f32 %v2414, %v6639
    %v6766 = vmul.f32 %v2991, %v6639
    %v6767 = vmul.f32 %v2993, %v6639
    %v6768 = vpack.c.bf16 %v6644, %v6640
    %v6769 = vpack.c.bf16 %v6645, %v6641
    %v6770 = vpack.c.bf16 %v6646, %v6642
    %v6771 = vpack.c.bf16 %v6647, %v6643
    %v6772 = vpack.c.bf16 %v6652, %v6648
    %v6773 = vpack.c.bf16 %v6653, %v6649
    %v6774 = vpack.c.bf16 %v6654, %v6650
    %v6775 = vpack.c.bf16 %v6655, %v6651
    %v6776 = vpack.c.bf16 %v6660, %v6656
    %v6777 = vpack.c.bf16 %v6661, %v6657
    %v6778 = vpack.c.bf16 %v6662, %v6658
    %v6779 = vpack.c.bf16 %v6663, %v6659
    %v6780 = vpack.c.bf16 %v6668, %v6664
    %v6781 = vpack.c.bf16 %v6669, %v6665
    %v6782 = vpack.c.bf16 %v6670, %v6666
    %v6783 = vpack.c.bf16 %v6671, %v6667
    %v6784 = vpack.c.bf16 %v6676, %v6672
    %v6785 = vpack.c.bf16 %v6677, %v6673
    %v6786 = vpack.c.bf16 %v6678, %v6674
    %v6787 = vpack.c.bf16 %v6679, %v6675
    %v6788 = vpack.c.bf16 %v6684, %v6680
    %v6789 = vpack.c.bf16 %v6685, %v6681
    %v6790 = vpack.c.bf16 %v6686, %v6682
    %v6791 = vpack.c.bf16 %v6687, %v6683
    %v6792 = vpack.c.bf16 %v6692, %v6688
    %v6793 = vpack.c.bf16 %v6693, %v6689
    %v6794 = vpack.c.bf16 %v6694, %v6690
    %v6795 = vpack.c.bf16 %v6695, %v6691
    %v6796 = vpack.c.bf16 %v6700, %v6696
    %v6797 = vpack.c.bf16 %v6701, %v6697
    %v6798 = vpack.c.bf16 %v6702, %v6698
    %v6799 = vpack.c.bf16 %v6703, %v6699
    %v6800 = vpack.c.bf16 %v6708, %v6704
    %v6801 = vpack.c.bf16 %v6709, %v6705
    %v6802 = vpack.c.bf16 %v6710, %v6706
    %v6803 = vpack.c.bf16 %v6711, %v6707
    %v6804 = vpack.c.bf16 %v6716, %v6712
    %v6805 = vpack.c.bf16 %v6717, %v6713
    %v6806 = vpack.c.bf16 %v6718, %v6714
    %v6807 = vpack.c.bf16 %v6719, %v6715
    %v6808 = vpack.c.bf16 %v6724, %v6720
    %v6809 = vpack.c.bf16 %v6725, %v6721
    %v6810 = vpack.c.bf16 %v6726, %v6722
    %v6811 = vpack.c.bf16 %v6727, %v6723
    %v6812 = vpack.c.bf16 %v6732, %v6728
    %v6813 = vpack.c.bf16 %v6733, %v6729
    %v6814 = vpack.c.bf16 %v6734, %v6730
    %v6815 = vpack.c.bf16 %v6735, %v6731
    %v6816 = vpack.c.bf16 %v6740, %v6736
    %v6817 = vpack.c.bf16 %v6741, %v6737
    %v6818 = vpack.c.bf16 %v6742, %v6738
    %v6819 = vpack.c.bf16 %v6743, %v6739
    %v6820 = vpack.c.bf16 %v6748, %v6744
    %v6821 = vpack.c.bf16 %v6749, %v6745
    %v6822 = vpack.c.bf16 %v6750, %v6746
    %v6823 = vpack.c.bf16 %v6751, %v6747
    %v6824 = vpack.c.bf16 %v6756, %v6752
    %v6825 = vpack.c.bf16 %v6757, %v6753
    %v6826 = vpack.c.bf16 %v6758, %v6754
    %v6827 = vpack.c.bf16 %v6759, %v6755
    %v6828 = vpack.c.bf16 %v6764, %v6760
    %v6829 = vpack.c.bf16 %v6765, %v6761
    %v6830 = vpack.c.bf16 %v6766, %v6762
    %v6831 = vpack.c.bf16 %v6767, %v6763
    %v6896 = vunpack.c.l.b16 %v6768
    %v6897 = vunpack.c.l.b16 %v6769
    %v6898 = vunpack.c.l.b16 %v6770
    %v6899 = vunpack.c.l.b16 %v6771
    %v6900 = vunpack.c.h.b16 %v6768
    %v6901 = vunpack.c.h.b16 %v6769
    %v6902 = vunpack.c.h.b16 %v6770
    %v6903 = vunpack.c.h.b16 %v6771
    %v6904 = vunpack.c.l.b16 %v6772
    %v6905 = vunpack.c.l.b16 %v6773
    %v6906 = vunpack.c.l.b16 %v6774
    %v6907 = vunpack.c.l.b16 %v6775
    %v6908 = vunpack.c.h.b16 %v6772
    %v6909 = vunpack.c.h.b16 %v6773
    %v6910 = vunpack.c.h.b16 %v6774
    %v6911 = vunpack.c.h.b16 %v6775
    %v6912 = vunpack.c.l.b16 %v6776
    %v6913 = vunpack.c.l.b16 %v6777
    %v6914 = vunpack.c.l.b16 %v6778
    %v6915 = vunpack.c.l.b16 %v6779
    %v6916 = vunpack.c.h.b16 %v6776
    %v6917 = vunpack.c.h.b16 %v6777
    %v6918 = vunpack.c.h.b16 %v6778
    %v6919 = vunpack.c.h.b16 %v6779
    %v6920 = vunpack.c.l.b16 %v6780
    %v6921 = vunpack.c.l.b16 %v6781
    %v6922 = vunpack.c.l.b16 %v6782
    %v6923 = vunpack.c.l.b16 %v6783
    %v6924 = vunpack.c.h.b16 %v6780
    %v6925 = vunpack.c.h.b16 %v6781
    %v6926 = vunpack.c.h.b16 %v6782
    %v6927 = vunpack.c.h.b16 %v6783
    %v6928 = vunpack.c.l.b16 %v6784
    %v6929 = vunpack.c.l.b16 %v6785
    %v6930 = vunpack.c.l.b16 %v6786
    %v6931 = vunpack.c.l.b16 %v6787
    %v6932 = vunpack.c.h.b16 %v6784
    %v6933 = vunpack.c.h.b16 %v6785
    %v6934 = vunpack.c.h.b16 %v6786
    %v6935 = vunpack.c.h.b16 %v6787
    %v6936 = vunpack.c.l.b16 %v6788
    %v6937 = vunpack.c.l.b16 %v6789
    %v6938 = vunpack.c.l.b16 %v6790
    %v6939 = vunpack.c.l.b16 %v6791
    %v6940 = vunpack.c.h.b16 %v6788
    %v6941 = vunpack.c.h.b16 %v6789
    %v6942 = vunpack.c.h.b16 %v6790
    %v6943 = vunpack.c.h.b16 %v6791
    %v6944 = vunpack.c.l.b16 %v6792
    %v6945 = vunpack.c.l.b16 %v6793
    %v6946 = vunpack.c.l.b16 %v6794
    %v6947 = vunpack.c.l.b16 %v6795
    %v6948 = vunpack.c.h.b16 %v6792
    %v6949 = vunpack.c.h.b16 %v6793
    %v6950 = vunpack.c.h.b16 %v6794
    %v6951 = vunpack.c.h.b16 %v6795
    %v6952 = vunpack.c.l.b16 %v6796
    %v6953 = vunpack.c.l.b16 %v6797
    %v6954 = vunpack.c.l.b16 %v6798
    %v6955 = vunpack.c.l.b16 %v6799
    %v6956 = vunpack.c.h.b16 %v6796
    %v6957 = vunpack.c.h.b16 %v6797
    %v6958 = vunpack.c.h.b16 %v6798
    %v6959 = vunpack.c.h.b16 %v6799
    %v6960 = vunpack.c.l.b16 %v6800
    %v6961 = vunpack.c.l.b16 %v6801
    %v6962 = vunpack.c.l.b16 %v6802
    %v6963 = vunpack.c.l.b16 %v6803
    %v6964 = vunpack.c.h.b16 %v6800
    %v6965 = vunpack.c.h.b16 %v6801
    %v6966 = vunpack.c.h.b16 %v6802
    %v6967 = vunpack.c.h.b16 %v6803
    %v6968 = vunpack.c.l.b16 %v6804
    %v6969 = vunpack.c.l.b16 %v6805
    %v6970 = vunpack.c.l.b16 %v6806
    %v6971 = vunpack.c.l.b16 %v6807
    %v6972 = vunpack.c.h.b16 %v6804
    %v6973 = vunpack.c.h.b16 %v6805
    %v6974 = vunpack.c.h.b16 %v6806
    %v6975 = vunpack.c.h.b16 %v6807
    %v6976 = vunpack.c.l.b16 %v6808
    %v6977 = vunpack.c.l.b16 %v6809
    %v6978 = vunpack.c.l.b16 %v6810
    %v6979 = vunpack.c.l.b16 %v6811
    %v6980 = vunpack.c.h.b16 %v6808
    %v6981 = vunpack.c.h.b16 %v6809
    %v6982 = vunpack.c.h.b16 %v6810
    %v6983 = vunpack.c.h.b16 %v6811
    %v6984 = vunpack.c.l.b16 %v6812
    %v6985 = vunpack.c.l.b16 %v6813
    %v6986 = vunpack.c.l.b16 %v6814
    %v6987 = vunpack.c.l.b16 %v6815
    %v6988 = vunpack.c.h.b16 %v6812
    %v6989 = vunpack.c.h.b16 %v6813
    %v6990 = vunpack.c.h.b16 %v6814
    %v6991 = vunpack.c.h.b16 %v6815
    %v6992 = vunpack.c.l.b16 %v6816
    %v6993 = vunpack.c.l.b16 %v6817
    %v6994 = vunpack.c.l.b16 %v6818
    %v6995 = vunpack.c.l.b16 %v6819
    %v6996 = vunpack.c.h.b16 %v6816
    %v6997 = vunpack.c.h.b16 %v6817
    %v6998 = vunpack.c.h.b16 %v6818
    %v6999 = vunpack.c.h.b16 %v6819
    %v7000 = vunpack.c.l.b16 %v6820
    %v7001 = vunpack.c.l.b16 %v6821
    %v7002 = vunpack.c.l.b16 %v6822
    %v7003 = vunpack.c.l.b16 %v6823
    %v7004 = vunpack.c.h.b16 %v6820
    %v7005 = vunpack.c.h.b16 %v6821
    %v7006 = vunpack.c.h.b16 %v6822
    %v7007 = vunpack.c.h.b16 %v6823
    %v7008 = vunpack.c.l.b16 %v6824
    %v7009 = vunpack.c.l.b16 %v6825
    %v7010 = vunpack.c.l.b16 %v6826
    %v7011 = vunpack.c.l.b16 %v6827
    %v7012 = vunpack.c.h.b16 %v6824
    %v7013 = vunpack.c.h.b16 %v6825
    %v7014 = vunpack.c.h.b16 %v6826
    %v7015 = vunpack.c.h.b16 %v6827
    %v7016 = vunpack.c.l.b16 %v6828
    %v7017 = vunpack.c.l.b16 %v6829
    %v7018 = vunpack.c.l.b16 %v6830
    %v7019 = vunpack.c.l.b16 %v6831
    %v7020 = vunpack.c.h.b16 %v6828
    %v7021 = vunpack.c.h.b16 %v6829
    %v7022 = vunpack.c.h.b16 %v6830
    %v7023 = vunpack.c.h.b16 %v6831
    %v7024 = vpack.c.b16 %v6897, %v6896
    %v7025 = vpack.c.b16 %v6899, %v6898
    %v7026 = vpack.c.b16 %v6901, %v6900
    %v7027 = vpack.c.b16 %v6903, %v6902
    %v7028 = vpack.c.b16 %v6905, %v6904
    %v7029 = vpack.c.b16 %v6907, %v6906
    %v7030 = vpack.c.b16 %v6909, %v6908
    %v7031 = vpack.c.b16 %v6911, %v6910
    %v7032 = vpack.c.b16 %v6913, %v6912
    %v7033 = vpack.c.b16 %v6915, %v6914
    %v7034 = vpack.c.b16 %v6917, %v6916
    %v7035 = vpack.c.b16 %v6919, %v6918
    %v7036 = vpack.c.b16 %v6921, %v6920
    %v7037 = vpack.c.b16 %v6923, %v6922
    %v7038 = vpack.c.b16 %v6925, %v6924
    %v7039 = vpack.c.b16 %v6927, %v6926
    %v7040 = vpack.c.b16 %v6929, %v6928
    %v7041 = vpack.c.b16 %v6931, %v6930
    %v7042 = vpack.c.b16 %v6933, %v6932
    %v7043 = vpack.c.b16 %v6935, %v6934
    %v7044 = vpack.c.b16 %v6937, %v6936
    %v7045 = vpack.c.b16 %v6939, %v6938
    %v7046 = vpack.c.b16 %v6941, %v6940
    %v7047 = vpack.c.b16 %v6943, %v6942
    %v7048 = vpack.c.b16 %v6945, %v6944
    %v7049 = vpack.c.b16 %v6947, %v6946
    %v7050 = vpack.c.b16 %v6949, %v6948
    %v7051 = vpack.c.b16 %v6951, %v6950
    %v7052 = vpack.c.b16 %v6953, %v6952
    %v7053 = vpack.c.b16 %v6955, %v6954
    %v7054 = vpack.c.b16 %v6957, %v6956
    %v7055 = vpack.c.b16 %v6959, %v6958
    %v7056 = vpack.c.b16 %v6961, %v6960
    %v7057 = vpack.c.b16 %v6963, %v6962
    %v7058 = vpack.c.b16 %v6965, %v6964
    %v7059 = vpack.c.b16 %v6967, %v6966
    %v7060 = vpack.c.b16 %v6969, %v6968
    %v7061 = vpack.c.b16 %v6971, %v6970
    %v7062 = vpack.c.b16 %v6973, %v6972
    %v7063 = vpack.c.b16 %v6975, %v6974
    %v7064 = vpack.c.b16 %v6977, %v6976
    %v7065 = vpack.c.b16 %v6979, %v6978
    %v7066 = vpack.c.b16 %v6981, %v6980
    %v7067 = vpack.c.b16 %v6983, %v6982
    %v7068 = vpack.c.b16 %v6985, %v6984
    %v7069 = vpack.c.b16 %v6987, %v6986
    %v7070 = vpack.c.b16 %v6989, %v6988
    %v7071 = vpack.c.b16 %v6991, %v6990
    %v7072 = vpack.c.b16 %v6993, %v6992
    %v7073 = vpack.c.b16 %v6995, %v6994
    %v7074 = vpack.c.b16 %v6997, %v6996
    %v7075 = vpack.c.b16 %v6999, %v6998
    %v7076 = vpack.c.b16 %v7001, %v7000
    %v7077 = vpack.c.b16 %v7003, %v7002
    %v7078 = vpack.c.b16 %v7005, %v7004
    %v7079 = vpack.c.b16 %v7007, %v7006
    %v7080 = vpack.c.b16 %v7009, %v7008
    %v7081 = vpack.c.b16 %v7011, %v7010
    %v7082 = vpack.c.b16 %v7013, %v7012
    %v7083 = vpack.c.b16 %v7015, %v7014
    %v7084 = vpack.c.b16 %v7017, %v7016
    %v7085 = vpack.c.b16 %v7019, %v7018
    %v7086 = vpack.c.b16 %v7021, %v7020
    %v7087 = vpack.c.b16 %v7023, %v7022
    %7152 = vst [vmem:[#allocation11] sm:$0xff] %v7024
    %7153 = vst [vmem:[#allocation11 + $0x8] sm:$0xff] %v7025
    %7154 = vst [vmem:[#allocation11 + $0x10] sm:$0xff] %v7026
    %7155 = vst [vmem:[#allocation11 + $0x18] sm:$0xff] %v7027
    %7156 = vst [vmem:[#allocation11 + $0x20] sm:$0xff] %v7028
    %7157 = vst [vmem:[#allocation11 + $0x28] sm:$0xff] %v7029
    %7158 = vst [vmem:[#allocation11 + $0x30] sm:$0xff] %v7030
    %7159 = vst [vmem:[#allocation11 + $0x38] sm:$0xff] %v7031
    %7160 = vst [vmem:[#allocation11 + $0x40] sm:$0xff] %v7032
    %7161 = vst [vmem:[#allocation11 + $0x48] sm:$0xff] %v7033
    %7162 = vst [vmem:[#allocation11 + $0x50] sm:$0xff] %v7034
    %7163 = vst [vmem:[#allocation11 + $0x58] sm:$0xff] %v7035
    %7164 = vst [vmem:[#allocation11 + $0x60] sm:$0xff] %v7036
    %7165 = vst [vmem:[#allocation11 + $0x68] sm:$0xff] %v7037
    %7166 = vst [vmem:[#allocation11 + $0x70] sm:$0xff] %v7038
    %7167 = vst [vmem:[#allocation11 + $0x78] sm:$0xff] %v7039
    %7168 = vst [vmem:[#allocation11 + $0x80] sm:$0xff] %v7040
    %7169 = vst [vmem:[#allocation11 + $0x88] sm:$0xff] %v7041
    %7170 = vst [vmem:[#allocation11 + $0x90] sm:$0xff] %v7042
    %7171 = vst [vmem:[#allocation11 + $0x98] sm:$0xff] %v7043
    %7172 = vst [vmem:[#allocation11 + $0xa0] sm:$0xff] %v7044
    %7173 = vst [vmem:[#allocation11 + $0xa8] sm:$0xff] %v7045
    %7174 = vst [vmem:[#allocation11 + $0xb0] sm:$0xff] %v7046
    %7175 = vst [vmem:[#allocation11 + $0xb8] sm:$0xff] %v7047
    %7176 = vst [vmem:[#allocation11 + $0xc0] sm:$0xff] %v7048
    %7177 = vst [vmem:[#allocation11 + $0xc8] sm:$0xff] %v7049
    %7178 = vst [vmem:[#allocation11 + $0xd0] sm:$0xff] %v7050
    %7179 = vst [vmem:[#allocation11 + $0xd8] sm:$0xff] %v7051
    %7180 = vst [vmem:[#allocation11 + $0xe0] sm:$0xff] %v7052
    %7181 = vst [vmem:[#allocation11 + $0xe8] sm:$0xff] %v7053
    %7182 = vst [vmem:[#allocation11 + $0xf0] sm:$0xff] %v7054
    %7183 = vst [vmem:[#allocation11 + $0xf8] sm:$0xff] %v7055
    %7184 = vst [vmem:[#allocation11 + $0x100] sm:$0xff] %v7056
    %7185 = vst [vmem:[#allocation11 + $0x108] sm:$0xff] %v7057
    %7186 = vst [vmem:[#allocation11 + $0x110] sm:$0xff] %v7058
    %7187 = vst [vmem:[#allocation11 + $0x118] sm:$0xff] %v7059
    %7188 = vst [vmem:[#allocation11 + $0x120] sm:$0xff] %v7060
    %7189 = vst [vmem:[#allocation11 + $0x128] sm:$0xff] %v7061
    %7190 = vst [vmem:[#allocation11 + $0x130] sm:$0xff] %v7062
    %7191 = vst [vmem:[#allocation11 + $0x138] sm:$0xff] %v7063
    %7192 = vst [vmem:[#allocation11 + $0x140] sm:$0xff] %v7064
    %7193 = vst [vmem:[#allocation11 + $0x148] sm:$0xff] %v7065
    %7194 = vst [vmem:[#allocation11 + $0x150] sm:$0xff] %v7066
    %7195 = vst [vmem:[#allocation11 + $0x158] sm:$0xff] %v7067
    %7196 = vst [vmem:[#allocation11 + $0x160] sm:$0xff] %v7068
    %7197 = vst [vmem:[#allocation11 + $0x168] sm:$0xff] %v7069
    %7198 = vst [vmem:[#allocation11 + $0x170] sm:$0xff] %v7070
    %7199 = vst [vmem:[#allocation11 + $0x178] sm:$0xff] %v7071
    %7200 = vst [vmem:[#allocation11 + $0x180] sm:$0xff] %v7072
    %7201 = vst [vmem:[#allocation11 + $0x188] sm:$0xff] %v7073
    %7202 = vst [vmem:[#allocation11 + $0x190] sm:$0xff] %v7074
    %7203 = vst [vmem:[#allocation11 + $0x198] sm:$0xff] %v7075
    %7204 = vst [vmem:[#allocation11 + $0x1a0] sm:$0xff] %v7076
    %7205 = vst [vmem:[#allocation11 + $0x1a8] sm:$0xff] %v7077
    %7206 = vst [vmem:[#allocation11 + $0x1b0] sm:$0xff] %v7078
    %7207 = vst [vmem:[#allocation11 + $0x1b8] sm:$0xff] %v7079
    %7208 = vst [vmem:[#allocation11 + $0x1c0] sm:$0xff] %v7080
    %7209 = vst [vmem:[#allocation11 + $0x1c8] sm:$0xff] %v7081
    %7210 = vst [vmem:[#allocation11 + $0x1d0] sm:$0xff] %v7082
    %7211 = vst [vmem:[#allocation11 + $0x1d8] sm:$0xff] %v7083
    %7212 = vst [vmem:[#allocation11 + $0x1e0] sm:$0xff] %v7084
    %7213 = vst [vmem:[#allocation11 + $0x1e8] sm:$0xff] %v7085
    %7214 = vst [vmem:[#allocation11 + $0x1f0] sm:$0xff] %v7086
    %7215 = vst [vmem:[#allocation11 + $0x1f8] sm:$0xff] %v7087
    %v7216 = vmul.f32 %v5166, %v6575
    %v7217 = vmul.f32 %v5168, %v6575
    %v7218 = vmul.f32 %v5745, %v6575
    %v7219 = vmul.f32 %v5747, %v6575
    %v7220 = vmul.f32 %v5170, %v6576
    %v7221 = vmul.f32 %v5172, %v6576
    %v7222 = vmul.f32 %v5749, %v6576
    %v7223 = vmul.f32 %v5751, %v6576
    %v7224 = vmul.f32 %v5176, %v6577
    %v7225 = vmul.f32 %v5178, %v6577
    %v7226 = vmul.f32 %v5755, %v6577
    %v7227 = vmul.f32 %v5757, %v6577
    %v7228 = vmul.f32 %v5180, %v6578
    %v7229 = vmul.f32 %v5182, %v6578
    %v7230 = vmul.f32 %v5759, %v6578
    %v7231 = vmul.f32 %v5761, %v6578
    %v7232 = vmul.f32 %v5186, %v6579
    %v7233 = vmul.f32 %v5188, %v6579
    %v7234 = vmul.f32 %v5765, %v6579
    %v7235 = vmul.f32 %v5767, %v6579
    %v7236 = vmul.f32 %v5190, %v6580
    %v7237 = vmul.f32 %v5192, %v6580
    %v7238 = vmul.f32 %v5769, %v6580
    %v7239 = vmul.f32 %v5771, %v6580
    %v7240 = vmul.f32 %v5196, %v6581
    %v7241 = vmul.f32 %v5198, %v6581
    %v7242 = vmul.f32 %v5775, %v6581
    %v7243 = vmul.f32 %v5777, %v6581
    %v7244 = vmul.f32 %v5200, %v6582
    %v7245 = vmul.f32 %v5202, %v6582
    %v7246 = vmul.f32 %v5779, %v6582
    %v7247 = vmul.f32 %v5781, %v6582
    %v7248 = vmul.f32 %v5206, %v6583
    %v7249 = vmul.f32 %v5208, %v6583
    %v7250 = vmul.f32 %v5785, %v6583
    %v7251 = vmul.f32 %v5787, %v6583
    %v7252 = vmul.f32 %v5210, %v6584
    %v7253 = vmul.f32 %v5212, %v6584
    %v7254 = vmul.f32 %v5789, %v6584
    %v7255 = vmul.f32 %v5791, %v6584
    %v7256 = vmul.f32 %v5216, %v6585
    %v7257 = vmul.f32 %v5218, %v6585
    %v7258 = vmul.f32 %v5795, %v6585
    %v7259 = vmul.f32 %v5797, %v6585
    %v7260 = vmul.f32 %v5220, %v6586
    %v7261 = vmul.f32 %v5222, %v6586
    %v7262 = vmul.f32 %v5799, %v6586
    %v7263 = vmul.f32 %v5801, %v6586
    %v7264 = vmul.f32 %v5226, %v6587
    %v7265 = vmul.f32 %v5228, %v6587
    %v7266 = vmul.f32 %v5805, %v6587
    %v7267 = vmul.f32 %v5807, %v6587
    %v7268 = vmul.f32 %v5230, %v6588
    %v7269 = vmul.f32 %v5232, %v6588
    %v7270 = vmul.f32 %v5809, %v6588
    %v7271 = vmul.f32 %v5811, %v6588
    %v7272 = vmul.f32 %v5236, %v6589
    %v7273 = vmul.f32 %v5238, %v6589
    %v7274 = vmul.f32 %v5815, %v6589
    %v7275 = vmul.f32 %v5817, %v6589
    %v7276 = vmul.f32 %v5240, %v6590
    %v7277 = vmul.f32 %v5242, %v6590
    %v7278 = vmul.f32 %v5819, %v6590
    %v7279 = vmul.f32 %v5821, %v6590
    %v7280 = vmul.f32 %v5246, %v6591
    %v7281 = vmul.f32 %v5248, %v6591
    %v7282 = vmul.f32 %v5825, %v6591
    %v7283 = vmul.f32 %v5827, %v6591
    %v7284 = vmul.f32 %v5250, %v6592
    %v7285 = vmul.f32 %v5252, %v6592
    %v7286 = vmul.f32 %v5829, %v6592
    %v7287 = vmul.f32 %v5831, %v6592
    %v7288 = vmul.f32 %v5256, %v6593
    %v7289 = vmul.f32 %v5258, %v6593
    %v7290 = vmul.f32 %v5835, %v6593
    %v7291 = vmul.f32 %v5837, %v6593
    %v7292 = vmul.f32 %v5260, %v6594
    %v7293 = vmul.f32 %v5262, %v6594
    %v7294 = vmul.f32 %v5839, %v6594
    %v7295 = vmul.f32 %v5841, %v6594
    %v7296 = vmul.f32 %v5266, %v6595
    %v7297 = vmul.f32 %v5268, %v6595
    %v7298 = vmul.f32 %v5845, %v6595
    %v7299 = vmul.f32 %v5847, %v6595
    %v7300 = vmul.f32 %v5270, %v6596
    %v7301 = vmul.f32 %v5272, %v6596
    %v7302 = vmul.f32 %v5849, %v6596
    %v7303 = vmul.f32 %v5851, %v6596
    %v7304 = vmul.f32 %v5276, %v6597
    %v7305 = vmul.f32 %v5278, %v6597
    %v7306 = vmul.f32 %v5855, %v6597
    %v7307 = vmul.f32 %v5857, %v6597
    %v7308 = vmul.f32 %v5280, %v6598
    %v7309 = vmul.f32 %v5282, %v6598
    %v7310 = vmul.f32 %v5859, %v6598
    %v7311 = vmul.f32 %v5861, %v6598
    %v7312 = vmul.f32 %v5286, %v6599
    %v7313 = vmul.f32 %v5288, %v6599
    %v7314 = vmul.f32 %v5865, %v6599
    %v7315 = vmul.f32 %v5867, %v6599
    %v7316 = vmul.f32 %v5290, %v6600
    %v7317 = vmul.f32 %v5292, %v6600
    %v7318 = vmul.f32 %v5869, %v6600
    %v7319 = vmul.f32 %v5871, %v6600
    %v7320 = vmul.f32 %v5296, %v6601
    %v7321 = vmul.f32 %v5298, %v6601
    %v7322 = vmul.f32 %v5875, %v6601
    %v7323 = vmul.f32 %v5877, %v6601
    %v7324 = vmul.f32 %v5300, %v6602
    %v7325 = vmul.f32 %v5302, %v6602
    %v7326 = vmul.f32 %v5879, %v6602
    %v7327 = vmul.f32 %v5881, %v6602
    %v7328 = vmul.f32 %v5306, %v6603
    %v7329 = vmul.f32 %v5308, %v6603
    %v7330 = vmul.f32 %v5885, %v6603
    %v7331 = vmul.f32 %v5887, %v6603
    %v7332 = vmul.f32 %v5310, %v6604
    %v7333 = vmul.f32 %v5312, %v6604
    %v7334 = vmul.f32 %v5889, %v6604
    %v7335 = vmul.f32 %v5891, %v6604
    %v7336 = vmul.f32 %v5316, %v6605
    %v7337 = vmul.f32 %v5318, %v6605
    %v7338 = vmul.f32 %v5895, %v6605
    %v7339 = vmul.f32 %v5897, %v6605
    %v7340 = vmul.f32 %v5320, %v6606
    %v7341 = vmul.f32 %v5322, %v6606
    %v7342 = vmul.f32 %v5899, %v6606
    %v7343 = vmul.f32 %v5901, %v6606
    %v7344 = vpack.c.bf16 %v7220, %v7216
    %v7345 = vpack.c.bf16 %v7221, %v7217
    %v7346 = vpack.c.bf16 %v7222, %v7218
    %v7347 = vpack.c.bf16 %v7223, %v7219
    %v7348 = vpack.c.bf16 %v7228, %v7224
    %v7349 = vpack.c.bf16 %v7229, %v7225
    %v7350 = vpack.c.bf16 %v7230, %v7226
    %v7351 = vpack.c.bf16 %v7231, %v7227
    %v7352 = vpack.c.bf16 %v7236, %v7232
    %v7353 = vpack.c.bf16 %v7237, %v7233
    %v7354 = vpack.c.bf16 %v7238, %v7234
    %v7355 = vpack.c.bf16 %v7239, %v7235
    %v7356 = vpack.c.bf16 %v7244, %v7240
    %v7357 = vpack.c.bf16 %v7245, %v7241
    %v7358 = vpack.c.bf16 %v7246, %v7242
    %v7359 = vpack.c.bf16 %v7247, %v7243
    %v7360 = vpack.c.bf16 %v7252, %v7248
    %v7361 = vpack.c.bf16 %v7253, %v7249
    %v7362 = vpack.c.bf16 %v7254, %v7250
    %v7363 = vpack.c.bf16 %v7255, %v7251
    %v7364 = vpack.c.bf16 %v7260, %v7256
    %v7365 = vpack.c.bf16 %v7261, %v7257
    %v7366 = vpack.c.bf16 %v7262, %v7258
    %v7367 = vpack.c.bf16 %v7263, %v7259
    %v7368 = vpack.c.bf16 %v7268, %v7264
    %v7369 = vpack.c.bf16 %v7269, %v7265
    %v7370 = vpack.c.bf16 %v7270, %v7266
    %v7371 = vpack.c.bf16 %v7271, %v7267
    %v7372 = vpack.c.bf16 %v7276, %v7272
    %v7373 = vpack.c.bf16 %v7277, %v7273
    %v7374 = vpack.c.bf16 %v7278, %v7274
    %v7375 = vpack.c.bf16 %v7279, %v7275
    %v7376 = vpack.c.bf16 %v7284, %v7280
    %v7377 = vpack.c.bf16 %v7285, %v7281
    %v7378 = vpack.c.bf16 %v7286, %v7282
    %v7379 = vpack.c.bf16 %v7287, %v7283
    %v7380 = vpack.c.bf16 %v7292, %v7288
    %v7381 = vpack.c.bf16 %v7293, %v7289
    %v7382 = vpack.c.bf16 %v7294, %v7290
    %v7383 = vpack.c.bf16 %v7295, %v7291
    %v7384 = vpack.c.bf16 %v7300, %v7296
    %v7385 = vpack.c.bf16 %v7301, %v7297
    %v7386 = vpack.c.bf16 %v7302, %v7298
    %v7387 = vpack.c.bf16 %v7303, %v7299
    %v7388 = vpack.c.bf16 %v7308, %v7304
    %v7389 = vpack.c.bf16 %v7309, %v7305
    %v7390 = vpack.c.bf16 %v7310, %v7306
    %v7391 = vpack.c.bf16 %v7311, %v7307
    %v7392 = vpack.c.bf16 %v7316, %v7312
    %v7393 = vpack.c.bf16 %v7317, %v7313
    %v7394 = vpack.c.bf16 %v7318, %v7314
    %v7395 = vpack.c.bf16 %v7319, %v7315
    %v7396 = vpack.c.bf16 %v7324, %v7320
    %v7397 = vpack.c.bf16 %v7325, %v7321
    %v7398 = vpack.c.bf16 %v7326, %v7322
    %v7399 = vpack.c.bf16 %v7327, %v7323
    %v7400 = vpack.c.bf16 %v7332, %v7328
    %v7401 = vpack.c.bf16 %v7333, %v7329
    %v7402 = vpack.c.bf16 %v7334, %v7330
    %v7403 = vpack.c.bf16 %v7335, %v7331
    %v7404 = vpack.c.bf16 %v7340, %v7336
    %v7405 = vpack.c.bf16 %v7341, %v7337
    %v7406 = vpack.c.bf16 %v7342, %v7338
    %v7407 = vpack.c.bf16 %v7343, %v7339
    %v7472 = vunpack.c.l.b16 %v7344
    %v7473 = vunpack.c.l.b16 %v7345
    %v7474 = vunpack.c.l.b16 %v7346
    %v7475 = vunpack.c.l.b16 %v7347
    %v7476 = vunpack.c.h.b16 %v7344
    %v7477 = vunpack.c.h.b16 %v7345
    %v7478 = vunpack.c.h.b16 %v7346
    %v7479 = vunpack.c.h.b16 %v7347
    %v7480 = vunpack.c.l.b16 %v7348
    %v7481 = vunpack.c.l.b16 %v7349
    %v7482 = vunpack.c.l.b16 %v7350
    %v7483 = vunpack.c.l.b16 %v7351
    %v7484 = vunpack.c.h.b16 %v7348
    %v7485 = vunpack.c.h.b16 %v7349
    %v7486 = vunpack.c.h.b16 %v7350
    %v7487 = vunpack.c.h.b16 %v7351
    %v7488 = vunpack.c.l.b16 %v7352
    %v7489 = vunpack.c.l.b16 %v7353
    %v7490 = vunpack.c.l.b16 %v7354
    %v7491 = vunpack.c.l.b16 %v7355
    %v7492 = vunpack.c.h.b16 %v7352
    %v7493 = vunpack.c.h.b16 %v7353
    %v7494 = vunpack.c.h.b16 %v7354
    %v7495 = vunpack.c.h.b16 %v7355
    %v7496 = vunpack.c.l.b16 %v7356
    %v7497 = vunpack.c.l.b16 %v7357
    %v7498 = vunpack.c.l.b16 %v7358
    %v7499 = vunpack.c.l.b16 %v7359
    %v7500 = vunpack.c.h.b16 %v7356
    %v7501 = vunpack.c.h.b16 %v7357
    %v7502 = vunpack.c.h.b16 %v7358
    %v7503 = vunpack.c.h.b16 %v7359
    %v7504 = vunpack.c.l.b16 %v7360
    %v7505 = vunpack.c.l.b16 %v7361
    %v7506 = vunpack.c.l.b16 %v7362
    %v7507 = vunpack.c.l.b16 %v7363
    %v7508 = vunpack.c.h.b16 %v7360
    %v7509 = vunpack.c.h.b16 %v7361
    %v7510 = vunpack.c.h.b16 %v7362
    %v7511 = vunpack.c.h.b16 %v7363
    %v7512 = vunpack.c.l.b16 %v7364
    %v7513 = vunpack.c.l.b16 %v7365
    %v7514 = vunpack.c.l.b16 %v7366
    %v7515 = vunpack.c.l.b16 %v7367
    %v7516 = vunpack.c.h.b16 %v7364
    %v7517 = vunpack.c.h.b16 %v7365
    %v7518 = vunpack.c.h.b16 %v7366
    %v7519 = vunpack.c.h.b16 %v7367
    %v7520 = vunpack.c.l.b16 %v7368
    %v7521 = vunpack.c.l.b16 %v7369
    %v7522 = vunpack.c.l.b16 %v7370
    %v7523 = vunpack.c.l.b16 %v7371
    %v7524 = vunpack.c.h.b16 %v7368
    %v7525 = vunpack.c.h.b16 %v7369
    %v7526 = vunpack.c.h.b16 %v7370
    %v7527 = vunpack.c.h.b16 %v7371
    %v7528 = vunpack.c.l.b16 %v7372
    %v7529 = vunpack.c.l.b16 %v7373
    %v7530 = vunpack.c.l.b16 %v7374
    %v7531 = vunpack.c.l.b16 %v7375
    %v7532 = vunpack.c.h.b16 %v7372
    %v7533 = vunpack.c.h.b16 %v7373
    %v7534 = vunpack.c.h.b16 %v7374
    %v7535 = vunpack.c.h.b16 %v7375
    %v7536 = vunpack.c.l.b16 %v7376
    %v7537 = vunpack.c.l.b16 %v7377
    %v7538 = vunpack.c.l.b16 %v7378
    %v7539 = vunpack.c.l.b16 %v7379
    %v7540 = vunpack.c.h.b16 %v7376
    %v7541 = vunpack.c.h.b16 %v7377
    %v7542 = vunpack.c.h.b16 %v7378
    %v7543 = vunpack.c.h.b16 %v7379
    %v7544 = vunpack.c.l.b16 %v7380
    %v7545 = vunpack.c.l.b16 %v7381
    %v7546 = vunpack.c.l.b16 %v7382
    %v7547 = vunpack.c.l.b16 %v7383
    %v7548 = vunpack.c.h.b16 %v7380
    %v7549 = vunpack.c.h.b16 %v7381
    %v7550 = vunpack.c.h.b16 %v7382
    %v7551 = vunpack.c.h.b16 %v7383
    %v7552 = vunpack.c.l.b16 %v7384
    %v7553 = vunpack.c.l.b16 %v7385
    %v7554 = vunpack.c.l.b16 %v7386
    %v7555 = vunpack.c.l.b16 %v7387
    %v7556 = vunpack.c.h.b16 %v7384
    %v7557 = vunpack.c.h.b16 %v7385
    %v7558 = vunpack.c.h.b16 %v7386
    %v7559 = vunpack.c.h.b16 %v7387
    %v7560 = vunpack.c.l.b16 %v7388
    %v7561 = vunpack.c.l.b16 %v7389
    %v7562 = vunpack.c.l.b16 %v7390
    %v7563 = vunpack.c.l.b16 %v7391
    %v7564 = vunpack.c.h.b16 %v7388
    %v7565 = vunpack.c.h.b16 %v7389
    %v7566 = vunpack.c.h.b16 %v7390
    %v7567 = vunpack.c.h.b16 %v7391
    %v7568 = vunpack.c.l.b16 %v7392
    %v7569 = vunpack.c.l.b16 %v7393
    %v7570 = vunpack.c.l.b16 %v7394
    %v7571 = vunpack.c.l.b16 %v7395
    %v7572 = vunpack.c.h.b16 %v7392
    %v7573 = vunpack.c.h.b16 %v7393
    %v7574 = vunpack.c.h.b16 %v7394
    %v7575 = vunpack.c.h.b16 %v7395
    %v7576 = vunpack.c.l.b16 %v7396
    %v7577 = vunpack.c.l.b16 %v7397
    %v7578 = vunpack.c.l.b16 %v7398
    %v7579 = vunpack.c.l.b16 %v7399
    %v7580 = vunpack.c.h.b16 %v7396
    %v7581 = vunpack.c.h.b16 %v7397
    %v7582 = vunpack.c.h.b16 %v7398
    %v7583 = vunpack.c.h.b16 %v7399
    %v7584 = vunpack.c.l.b16 %v7400
    %v7585 = vunpack.c.l.b16 %v7401
    %v7586 = vunpack.c.l.b16 %v7402
    %v7587 = vunpack.c.l.b16 %v7403
    %v7588 = vunpack.c.h.b16 %v7400
    %v7589 = vunpack.c.h.b16 %v7401
    %v7590 = vunpack.c.h.b16 %v7402
    %v7591 = vunpack.c.h.b16 %v7403
    %v7592 = vunpack.c.l.b16 %v7404
    %v7593 = vunpack.c.l.b16 %v7405
    %v7594 = vunpack.c.l.b16 %v7406
    %v7595 = vunpack.c.l.b16 %v7407
    %v7596 = vunpack.c.h.b16 %v7404
    %v7597 = vunpack.c.h.b16 %v7405
    %v7598 = vunpack.c.h.b16 %v7406
    %v7599 = vunpack.c.h.b16 %v7407
    %v7600 = vpack.c.b16 %v7473, %v7472
    %v7601 = vpack.c.b16 %v7475, %v7474
    %v7602 = vpack.c.b16 %v7477, %v7476
    %v7603 = vpack.c.b16 %v7479, %v7478
    %v7604 = vpack.c.b16 %v7481, %v7480
    %v7605 = vpack.c.b16 %v7483, %v7482
    %v7606 = vpack.c.b16 %v7485, %v7484
    %v7607 = vpack.c.b16 %v7487, %v7486
    %v7608 = vpack.c.b16 %v7489, %v7488
    %v7609 = vpack.c.b16 %v7491, %v7490
    %v7610 = vpack.c.b16 %v7493, %v7492
    %v7611 = vpack.c.b16 %v7495, %v7494
    %v7612 = vpack.c.b16 %v7497, %v7496
    %v7613 = vpack.c.b16 %v7499, %v7498
    %v7614 = vpack.c.b16 %v7501, %v7500
    %v7615 = vpack.c.b16 %v7503, %v7502
    %v7616 = vpack.c.b16 %v7505, %v7504
    %v7617 = vpack.c.b16 %v7507, %v7506
    %v7618 = vpack.c.b16 %v7509, %v7508
    %v7619 = vpack.c.b16 %v7511, %v7510
    %v7620 = vpack.c.b16 %v7513, %v7512
    %v7621 = vpack.c.b16 %v7515, %v7514
    %v7622 = vpack.c.b16 %v7517, %v7516
    %v7623 = vpack.c.b16 %v7519, %v7518
    %v7624 = vpack.c.b16 %v7521, %v7520
    %v7625 = vpack.c.b16 %v7523, %v7522
    %v7626 = vpack.c.b16 %v7525, %v7524
    %v7627 = vpack.c.b16 %v7527, %v7526
    %v7628 = vpack.c.b16 %v7529, %v7528
    %v7629 = vpack.c.b16 %v7531, %v7530
    %v7630 = vpack.c.b16 %v7533, %v7532
    %v7631 = vpack.c.b16 %v7535, %v7534
    %v7632 = vpack.c.b16 %v7537, %v7536
    %v7633 = vpack.c.b16 %v7539, %v7538
    %v7634 = vpack.c.b16 %v7541, %v7540
    %v7635 = vpack.c.b16 %v7543, %v7542
    %v7636 = vpack.c.b16 %v7545, %v7544
    %v7637 = vpack.c.b16 %v7547, %v7546
    %v7638 = vpack.c.b16 %v7549, %v7548
    %v7639 = vpack.c.b16 %v7551, %v7550
    %v7640 = vpack.c.b16 %v7553, %v7552
    %v7641 = vpack.c.b16 %v7555, %v7554
    %v7642 = vpack.c.b16 %v7557, %v7556
    %v7643 = vpack.c.b16 %v7559, %v7558
    %v7644 = vpack.c.b16 %v7561, %v7560
    %v7645 = vpack.c.b16 %v7563, %v7562
    %v7646 = vpack.c.b16 %v7565, %v7564
    %v7647 = vpack.c.b16 %v7567, %v7566
    %v7648 = vpack.c.b16 %v7569, %v7568
    %v7649 = vpack.c.b16 %v7571, %v7570
    %v7650 = vpack.c.b16 %v7573, %v7572
    %v7651 = vpack.c.b16 %v7575, %v7574
    %v7652 = vpack.c.b16 %v7577, %v7576
    %v7653 = vpack.c.b16 %v7579, %v7578
    %v7654 = vpack.c.b16 %v7581, %v7580
    %v7655 = vpack.c.b16 %v7583, %v7582
    %v7656 = vpack.c.b16 %v7585, %v7584
    %v7657 = vpack.c.b16 %v7587, %v7586
    %v7658 = vpack.c.b16 %v7589, %v7588
    %v7659 = vpack.c.b16 %v7591, %v7590
    %v7660 = vpack.c.b16 %v7593, %v7592
    %v7661 = vpack.c.b16 %v7595, %v7594
    %v7662 = vpack.c.b16 %v7597, %v7596
    %v7663 = vpack.c.b16 %v7599, %v7598
    %7728 = vst [vmem:[#allocation12] sm:$0xff] %v7600
    %7729 = vst [vmem:[#allocation12 + $0x8] sm:$0xff] %v7601
    %7730 = vst [vmem:[#allocation12 + $0x10] sm:$0xff] %v7602
    %7731 = vst [vmem:[#allocation12 + $0x18] sm:$0xff] %v7603
    %7732 = vst [vmem:[#allocation12 + $0x20] sm:$0xff] %v7604
    %7733 = vst [vmem:[#allocation12 + $0x28] sm:$0xff] %v7605
    %7734 = vst [vmem:[#allocation12 + $0x30] sm:$0xff] %v7606
    %7735 = vst [vmem:[#allocation12 + $0x38] sm:$0xff] %v7607
    %7736 = vst [vmem:[#allocation12 + $0x40] sm:$0xff] %v7608
    %7737 = vst [vmem:[#allocation12 + $0x48] sm:$0xff] %v7609
    %7738 = vst [vmem:[#allocation12 + $0x50] sm:$0xff] %v7610
    %7739 = vst [vmem:[#allocation12 + $0x58] sm:$0xff] %v7611
    %7740 = vst [vmem:[#allocation12 + $0x60] sm:$0xff] %v7612
    %7741 = vst [vmem:[#allocation12 + $0x68] sm:$0xff] %v7613
    %7742 = vst [vmem:[#allocation12 + $0x70] sm:$0xff] %v7614
    %7743 = vst [vmem:[#allocation12 + $0x78] sm:$0xff] %v7615
    %7744 = vst [vmem:[#allocation12 + $0x80] sm:$0xff] %v7616
    %7745 = vst [vmem:[#allocation12 + $0x88] sm:$0xff] %v7617
    %7746 = vst [vmem:[#allocation12 + $0x90] sm:$0xff] %v7618
    %7747 = vst [vmem:[#allocation12 + $0x98] sm:$0xff] %v7619
    %7748 = vst [vmem:[#allocation12 + $0xa0] sm:$0xff] %v7620
    %7749 = vst [vmem:[#allocation12 + $0xa8] sm:$0xff] %v7621
    %7750 = vst [vmem:[#allocation12 + $0xb0] sm:$0xff] %v7622
    %7751 = vst [vmem:[#allocation12 + $0xb8] sm:$0xff] %v7623
    %7752 = vst [vmem:[#allocation12 + $0xc0] sm:$0xff] %v7624
    %7753 = vst [vmem:[#allocation12 + $0xc8] sm:$0xff] %v7625
    %7754 = vst [vmem:[#allocation12 + $0xd0] sm:$0xff] %v7626
    %7755 = vst [vmem:[#allocation12 + $0xd8] sm:$0xff] %v7627
    %7756 = vst [vmem:[#allocation12 + $0xe0] sm:$0xff] %v7628
    %7757 = vst [vmem:[#allocation12 + $0xe8] sm:$0xff] %v7629
    %7758 = vst [vmem:[#allocation12 + $0xf0] sm:$0xff] %v7630
    %7759 = vst [vmem:[#allocation12 + $0xf8] sm:$0xff] %v7631
    %7760 = vst [vmem:[#allocation12 + $0x100] sm:$0xff] %v7632
    %7761 = vst [vmem:[#allocation12 + $0x108] sm:$0xff] %v7633
    %7762 = vst [vmem:[#allocation12 + $0x110] sm:$0xff] %v7634
    %7763 = vst [vmem:[#allocation12 + $0x118] sm:$0xff] %v7635
    %7764 = vst [vmem:[#allocation12 + $0x120] sm:$0xff] %v7636
    %7765 = vst [vmem:[#allocation12 + $0x128] sm:$0xff] %v7637
    %7766 = vst [vmem:[#allocation12 + $0x130] sm:$0xff] %v7638
    %7767 = vst [vmem:[#allocation12 + $0x138] sm:$0xff] %v7639
    %7768 = vst [vmem:[#allocation12 + $0x140] sm:$0xff] %v7640
    %7769 = vst [vmem:[#allocation12 + $0x148] sm:$0xff] %v7641
    %7770 = vst [vmem:[#allocation12 + $0x150] sm:$0xff] %v7642
    %7771 = vst [vmem:[#allocation12 + $0x158] sm:$0xff] %v7643
    %7772 = vst [vmem:[#allocation12 + $0x160] sm:$0xff] %v7644
    %7773 = vst [vmem:[#allocation12 + $0x168] sm:$0xff] %v7645
    %7774 = vst [vmem:[#allocation12 + $0x170] sm:$0xff] %v7646
    %7775 = vst [vmem:[#allocation12 + $0x178] sm:$0xff] %v7647
    %7776 = vst [vmem:[#allocation12 + $0x180] sm:$0xff] %v7648
    %7777 = vst [vmem:[#allocation12 + $0x188] sm:$0xff] %v7649
    %7778 = vst [vmem:[#allocation12 + $0x190] sm:$0xff] %v7650
    %7779 = vst [vmem:[#allocation12 + $0x198] sm:$0xff] %v7651
    %7780 = vst [vmem:[#allocation12 + $0x1a0] sm:$0xff] %v7652
    %7781 = vst [vmem:[#allocation12 + $0x1a8] sm:$0xff] %v7653
    %7782 = vst [vmem:[#allocation12 + $0x1b0] sm:$0xff] %v7654
    %7783 = vst [vmem:[#allocation12 + $0x1b8] sm:$0xff] %v7655
    %7784 = vst [vmem:[#allocation12 + $0x1c0] sm:$0xff] %v7656
    %7785 = vst [vmem:[#allocation12 + $0x1c8] sm:$0xff] %v7657
    %7786 = vst [vmem:[#allocation12 + $0x1d0] sm:$0xff] %v7658
    %7787 = vst [vmem:[#allocation12 + $0x1d8] sm:$0xff] %v7659
    %7788 = vst [vmem:[#allocation12 + $0x1e0] sm:$0xff] %v7660
    %7789 = vst [vmem:[#allocation12 + $0x1e8] sm:$0xff] %v7661
    %7790 = vst [vmem:[#allocation12 + $0x1f0] sm:$0xff] %v7662
    %7791 = vst [vmem:[#allocation12 + $0x1f8] sm:$0xff] %v7663
    // Predicated region
    $region46: #{tpu_custom_call.1} parent=1 // pred_check
      _
    $region47: #{tpu_custom_call.1} parent=1 // pred_check_branch
      %7793 = sbr.rel (0) target = $region49
    $region48: #{tpu_custom_call.1} parent=1 // pred_region
      %s7795 = ssub.s32 8192, 8192
      %7796 = vsyncadd [#allocation5], %s7795
      %s7797 = sshll.u32 [#allocation11], 4
      %s7798 = int_to_ptr.vmem [resolvable:$true] %s7797
      %7803 = dma.vmem_to_hbm [thread:$0]  %s7798, 8192, %s7, [#allocation5], 256, 256, 16
    $region49: #{tpu_custom_call.1} parent=1 // pred_fallthru
      _
    // Predicated region
    $region50: #{tpu_custom_call.1} parent=1 // pred_check
      _
    $region51: #{tpu_custom_call.1} parent=1 // pred_check_branch
      %7805 = sbr.rel (0) target = $region53
    $region52: #{tpu_custom_call.1} parent=1 // pred_region
      %s7807 = ssub.s32 8192, 8192
      %7808 = vsyncadd [#allocation13], %s7807
      %s7809 = sshll.u32 [#allocation12], 4
      %s7810 = int_to_ptr.vmem [resolvable:$true] %s7809
      %7815 = dma.vmem_to_hbm [thread:$0]  %s7810, 8192, %s8, [#allocation13], 256, 256, 16
    $region53: #{tpu_custom_call.1} parent=1 // pred_fallthru
      _
    // Predicated region
    $region54: #{tpu_custom_call.1} parent=1 // pred_check
      _
    $region55: #{tpu_custom_call.1} parent=1 // pred_check_branch
      %7817 = sbr.rel (0) target = $region57
    $region56: #{tpu_custom_call.1} parent=1 // pred_region
      %7818 = dma.done [#allocation5], 8192
    $region57: #{tpu_custom_call.1} parent=1 // pred_fallthru
      _
    // Predicated region
    $region58: #{tpu_custom_call.1} parent=1 // pred_check
      _
    $region59: #{tpu_custom_call.1} parent=1 // pred_check_branch
      %7820 = sbr.rel (0) target = $region61
    $region60: #{tpu_custom_call.1} parent=1 // pred_region
      %7821 = dma.done [#allocation13], 8192
    $region61: #{tpu_custom_call.1} parent=1 // pred_fallthru
      _
    %7822 = vsyncpa [#allocation4], 1
    %7823 = vsyncpa [#allocation7], 1
    %7824 = vsyncpa [#allocation10], 1
    %7825 = vsyncpa [#allocation5], 1
    %7826 = vsyncpa [#allocation13], 1

</llo_original>
